<compile_context>
chip_gen: v7x
topology: tpu7x:2x2x1
jax: 0.10.0
libtpu: 0.0.40
codegen_flags: <defaults>
</compile_context>

<pallas_src>
import math
import functools

import jax
import jax.numpy as jnp
from jax import lax
from jax.experimental import pallas as pl
from jax.experimental.pallas import tpu as pltpu


NEG_INF = -1e30  # large finite negative (diagonal always kept => no 0/0 risk)

# Per-layer parameter arrays, each stacked with a leading num_layers axis.
PARAM_ORDER = [
    "wqkv1", "wo1", "bo1", "g1", "b1",          # masked self-attention + LN1
    "wq2", "wkv2", "wo2", "bo2", "g2", "b2",    # cross-attention + LN2
    "wf1", "bf1", "wf2", "bf2", "g3", "b3",     # FFN + LN3
]


# ----------------------------- shared math helpers -----------------------------
# Used both inside the Pallas kernel and by the pure-JAX reference so the two
# paths are numerically identical.

def _mm(a, b_bf16):
    """bf16-input / f32-accumulate 2-D matmul; weight operand is already bf16."""
    return jnp.dot(a.astype(jnp.bfloat16), b_bf16,
                   preferred_element_type=jnp.float32)


def _bmm(pattern, a, b):
    """bf16-input / f32-accumulate (batched) matmul via einsum."""
    return jnp.einsum(pattern, a.astype(jnp.bfloat16), b.astype(jnp.bfloat16),
                      preferred_element_type=jnp.float32)


def _layer_norm(x, g, b, eps=1e-5):
    mu = jnp.mean(x, axis=-1, keepdims=True)
    var = jnp.mean((x - mu) ** 2, axis=-1, keepdims=True)
    return (x - mu) * lax.rsqrt(var + eps) * g + b


def _attention_out(q, k, v, wo, bo, mask_bias, num_heads):
    """Scaled-dot attention over heads + output projection.

    q: (B, Tq, H), k/v: (B, Tk, H) -- already projected, heads concatenated
    along the last dim.  wo: (H, H) bf16, bo: (1, H) f32.
    Per-head context is accumulated directly through wo's matching row-slice,
    avoiding the lane-dim concat.
    """
    B, Tq, H = q.shape
    dh = H // num_heads
    inv_scale = 1.0 / math.sqrt(dh)

    out = jnp.zeros((B, Tq, H), jnp.float32)
    for h in range(num_heads):
        sl = slice(h * dh, (h + 1) * dh)
        s = _bmm("bqd,bkd->bqk", q[..., sl], k[..., sl]) * inv_scale + mask_bias
        m = jnp.max(s, axis=-1, keepdims=True)
        e = jnp.exp(s - m)
        p = e / jnp.sum(e, axis=-1, keepdims=True)          # exact softmax
        ctx = _bmm("bqk,bkd->bqd", p, v[..., sl])            # (B, Tq, dh)
        out = out + _bmm("bqd,de->bqe", ctx, wo[sl, :])      # accumulate via wo
    return out + bo


def _decoder_layer(x, xe, mask_bias, p, num_heads):
    """One TransformerDecoderLayer (shared by kernel and reference)."""
    B, T, H = x.shape
    Tk = xe.shape[1]

    # masked self-attention (fused QKV projection) + residual + LayerNorm1
    qkv = _mm(x.reshape(B * T, H), p["wqkv1"]).reshape(B, T, 3 * H)
    q, k, v = qkv[..., :H], qkv[..., H:2 * H], qkv[..., 2 * H:]
    a = _attention_out(q, k, v, p["wo1"], p["bo1"], mask_bias, num_heads)
    x = _layer_norm(a + x, p["g1"], p["b1"])

    # cross-attention (same (T,T) mask, as in the reference) + residual + LN2
    q = _mm(x.reshape(B * T, H), p["wq2"]).reshape(B, T, H)
    kv = _mm(xe.reshape(B * Tk, H), p["wkv2"]).reshape(B, Tk, 2 * H)
    k, v = kv[..., :H], kv[..., H:]
    a = _attention_out(q, k, v, p["wo2"], p["bo2"], mask_bias, num_heads)
    x = _layer_norm(a + x, p["g2"], p["b2"])

    # FFN + residual + LayerNorm3 (batch folded into the M dim; fused ReLU+cast)
    xf = x.reshape(B * T, H)
    h1 = jnp.maximum(_mm(xf, p["wf1"]) + p["bf1"], 0.0).astype(jnp.bfloat16)
    f = (jnp.dot(h1, p["wf2"], preferred_element_type=jnp.float32)
         + p["bf2"]).reshape(B, T, H)
    x = _layer_norm(f + x, p["g3"], p["b3"])
    return x


# --------------------------------- Pallas kernel --------------------------------

def decoder_kernel(x_ref, xe_ref, pos_ref,
                   wqkv1_ref, wo1_ref, bo1_ref, g1_ref, b1_ref,
                   wq2_ref, wkv2_ref, wo2_ref, bo2_ref, g2_ref, b2_ref,
                   wf1_ref, bf1_ref, wf2_ref, bf2_ref, g3_ref, b3_ref,
                   o_ref, *, num_heads, num_layers):
    # Positional-embedding add (once).
    x = x_ref[...] + pos_ref[...]            # (B, T, H) f32
    xe = xe_ref[...]                         # (B, T, H) encoder output
    B, T, H = x.shape

    # Reference mask: triu(ones(T,T), 0) -> keep j >= i; additive -1e30 bias.
    rows = lax.broadcasted_iota(jnp.int32, (T, T), 0)
    cols = lax.broadcasted_iota(jnp.int32, (T, T), 1)
    mask_bias = jnp.where(cols >= rows, 0.0, NEG_INF).astype(jnp.float32)

    # Fully unrolled layer loop; all weights are VMEM-resident.
    for l in range(num_layers):
        p = dict(
            wqkv1=wqkv1_ref[l], wo1=wo1_ref[l], bo1=bo1_ref[l],
            g1=g1_ref[l], b1=b1_ref[l],
            wq2=wq2_ref[l], wkv2=wkv2_ref[l], wo2=wo2_ref[l], bo2=bo2_ref[l],
            g2=g2_ref[l], b2=b2_ref[l],
            wf1=wf1_ref[l], bf1=bf1_ref[l], wf2=wf2_ref[l], bf2=bf2_ref[l],
            g3=g3_ref[l], b3=b3_ref[l],
        )
        x = _decoder_layer(x, xe, mask_bias, p, num_heads)

    o_ref[...] = x


# ----------------------------------- wrapper -------------------------------------

def transformer_decoder_pallas(x, x_enc, params, num_heads):
    B, T, H = x.shape
    # The module applies the (T, T) mask to cross-attention too => T_enc == T.
    assert x_enc.shape == (B, T, H), (x.shape, x_enc.shape)
    assert H % num_heads == 0
    assert T <= params["pos"].shape[0]

    pos = params["pos"][:T]                       # pos_emb.weight[:T]
    weights = [params[name] for name in PARAM_ORDER]
    num_layers = params["wqkv1"].shape[0]

    vmem = pl.BlockSpec(memory_space=pltpu.MemorySpace.VMEM)  # whole array in VMEM
    n_inputs = 3 + len(weights)

    return pl.pallas_call(
        functools.partial(decoder_kernel, num_heads=num_heads,
                          num_layers=num_layers),
        out_shape=jax.ShapeDtypeStruct((B, T, H), jnp.float32),
        in_specs=[vmem] * n_inputs,
        out_specs=pl.BlockSpec(memory_space=pltpu.MemorySpace.VMEM),
    )(x, x_enc, pos, *weights)


# ------------------------- deterministic parameters -------------------------

def init_params(key, num_layers, h_dim, num_heads, d_ff, max_time_steps):
    L = num_layers

    def wmat(k, shape, scale=0.05):
        # Big matrices live in bf16 on the wire (halves weight-DMA bytes).
        return (scale * jax.random.normal(k, shape, dtype=jnp.float32)
                ).astype(jnp.bfloat16)

    def bvec(k, shape, scale=0.05):
        return scale * jax.random.normal(k, shape, dtype=jnp.float32)

    keys = jax.random.split(key, 12)
    ones = jnp.ones((L, 1, h_dim), jnp.float32)
    zeros = jnp.zeros((L, 1, h_dim), jnp.float32)
    return dict(
        pos=jax.random.normal(keys[0], (max_time_steps, h_dim), dtype=jnp.float32),
        # Fused projections: columns [0:H)=Q, [H:2H)=K, [2H:3H)=V; within each,
        # column block h*Dh:(h+1)*Dh == head h.
        wqkv1=wmat(keys[1], (L, h_dim, 3 * h_dim)),
        wo1=wmat(keys[2], (L, h_dim, h_dim)),
        bo1=bvec(keys[3], (L, 1, h_dim)),
        g1=ones, b1=zeros,
        wq2=wmat(keys[4], (L, h_dim, h_dim)),
        wkv2=wmat(keys[5], (L, h_dim, 2 * h_dim)),
        wo2=wmat(keys[6], (L, h_dim, h_dim)),
        bo2=bvec(keys[7], (L, 1, h_dim)),
        g2=ones, b2=zeros,
        wf1=wmat(keys[8], (L, h_dim, d_ff)),
        bf1=bvec(keys[9], (L, 1, d_ff)),
        wf2=wmat(keys[10], (L, d_ff, h_dim)),
        bf2=bvec(keys[11], (L, 1, h_dim)),
        g3=ones, b3=zeros,
    )


# --------------------------- pure-JAX reference -----------------------------

def ref_forward(x, x_enc, params, num_heads):
    B, T, H = x.shape
    x = x + params["pos"][:T]
    rows = jnp.arange(T)[:, None]
    cols = jnp.arange(T)[None, :]
    mask_bias = jnp.where(cols >= rows, 0.0, NEG_INF).astype(jnp.float32)
    L = params["wqkv1"].shape[0]
    for l in range(L):
        p = {k: params[k][l] for k in PARAM_ORDER}
        x = _decoder_layer(x, x_enc, mask_bias, p, num_heads)
    return x


# ----------------------------------- main -----------------------------------

if __name__ == "__main__":
    num_layers = 2
    h_dim = 32
    num_heads = 4
    d_ff = 2048           # hardcoded in TransformerDecoder.__init__
    max_time_steps = 16
    B, T = 2, 8           # T_enc == T (required by the module's masking)

    key = jax.random.PRNGKey(0)
    kx, ke, kp = jax.random.split(key, 3)
    x = jax.random.normal(kx, (B, T, h_dim), dtype=jnp.float32)
    x_enc = jax.random.normal(ke, (B, T, h_dim), dtype=jnp.float32)
    params = init_params(kp, num_layers, h_dim, num_heads, d_ff, max_time_steps)

    out = transformer_decoder_pallas(x, x_enc, params, num_heads)
    out = jax.block_until_ready(out)

    ref = ref_forward(x, x_enc, params, num_heads)
    assert out.shape == (B, T, h_dim), out.shape
    max_err = float(jnp.max(jnp.abs(out - ref)))
    assert jnp.allclose(out, ref, atol=2e-3, rtol=2e-3), f"max abs err {max_err}"

    print("KERNEL_OK")
</pallas_src>

<mosaic_0001>
module attributes {stable_mosaic.version = 11 : i64} {
  func.func @decoder_kernel(%arg0: memref<2x8x32xf32, #tpu.memory_space<vmem>>, %arg1: memref<2x8x32xf32, #tpu.memory_space<vmem>>, %arg2: memref<8x32xf32, #tpu.memory_space<vmem>>, %arg3: memref<2x32x96xbf16, #tpu.memory_space<vmem>>, %arg4: memref<2x32x32xbf16, #tpu.memory_space<vmem>>, %arg5: memref<2x1x32xf32, #tpu.memory_space<vmem>>, %arg6: memref<2x1x32xf32, #tpu.memory_space<vmem>>, %arg7: memref<2x1x32xf32, #tpu.memory_space<vmem>>, %arg8: memref<2x32x32xbf16, #tpu.memory_space<vmem>>, %arg9: memref<2x32x64xbf16, #tpu.memory_space<vmem>>, %arg10: memref<2x32x32xbf16, #tpu.memory_space<vmem>>, %arg11: memref<2x1x32xf32, #tpu.memory_space<vmem>>, %arg12: memref<2x1x32xf32, #tpu.memory_space<vmem>>, %arg13: memref<2x1x32xf32, #tpu.memory_space<vmem>>, %arg14: memref<2x32x2048xbf16, #tpu.memory_space<vmem>>, %arg15: memref<2x1x2048xf32, #tpu.memory_space<vmem>>, %arg16: memref<2x2048x32xbf16, #tpu.memory_space<vmem>>, %arg17: memref<2x1x32xf32, #tpu.memory_space<vmem>>, %arg18: memref<2x1x32xf32, #tpu.memory_space<vmem>>, %arg19: memref<2x1x32xf32, #tpu.memory_space<vmem>>, %arg20: memref<2x8x32xf32, #tpu.memory_space<vmem>>) attributes {dimension_semantics = [], scalar_prefetch = 0 : i64, scratch_operands = 0 : i64, tpu.core_type = #tpu.core_type<tc>} {
    %c0 = arith.constant 0 : index
    %c0_0 = arith.constant 0 : index
    %c0_1 = arith.constant 0 : index
    %0 = vector.load %arg0[%c0, %c0_0, %c0_1] : memref<2x8x32xf32, #tpu.memory_space<vmem>>, vector<2x8x32xf32>
    %c0_2 = arith.constant 0 : index
    %c0_3 = arith.constant 0 : index
    %1 = vector.load %arg2[%c0_2, %c0_3] : memref<8x32xf32, #tpu.memory_space<vmem>>, vector<8x32xf32>
    %2 = vector.shape_cast %1 : vector<8x32xf32> to vector<1x8x32xf32>
    %3 = vector.broadcast %2 : vector<1x8x32xf32> to vector<2x8x32xf32>
    %4 = arith.addf %0, %3 : vector<2x8x32xf32>
    %c0_4 = arith.constant 0 : index
    %c0_5 = arith.constant 0 : index
    %c0_6 = arith.constant 0 : index
    %5 = vector.load %arg1[%c0_4, %c0_5, %c0_6] : memref<2x8x32xf32, #tpu.memory_space<vmem>>, vector<2x8x32xf32>
    %6 = tpu.iota {dimensions = array<i32: 0>} : vector<8x8xi32>
    %7 = tpu.iota {dimensions = array<i32: 1>} : vector<8x8xi32>
    %8 = arith.cmpi sge, %7, %6 : vector<8x8xi32>
    %cst = arith.constant 0.000000e+00 : f32
    %cst_7 = arith.constant -1.000000e+30 : f32
    %9 = vector.broadcast %cst : f32 to vector<8x8xf32>
    %10 = vector.broadcast %cst_7 : f32 to vector<8x8xf32>
    %11 = arith.select %8, %9, %10 : vector<8x8xi1>, vector<8x8xf32>
    %c0_8 = arith.constant 0 : index
    %c0_9 = arith.constant 0 : index
    %c0_10 = arith.constant 0 : index
    %12 = vector.load %arg3[%c0_8, %c0_9, %c0_10] : memref<2x32x96xbf16, #tpu.memory_space<vmem>>, vector<1x32x96xbf16>
    %13 = vector.shape_cast %12 : vector<1x32x96xbf16> to vector<32x96xbf16>
    %c0_11 = arith.constant 0 : index
    %c0_12 = arith.constant 0 : index
    %c0_13 = arith.constant 0 : index
    %14 = vector.load %arg4[%c0_11, %c0_12, %c0_13] : memref<2x32x32xbf16, #tpu.memory_space<vmem>>, vector<1x32x32xbf16>
    %15 = vector.shape_cast %14 : vector<1x32x32xbf16> to vector<32x32xbf16>
    %c0_14 = arith.constant 0 : index
    %c0_15 = arith.constant 0 : index
    %c0_16 = arith.constant 0 : index
    %16 = vector.load %arg5[%c0_14, %c0_15, %c0_16] : memref<2x1x32xf32, #tpu.memory_space<vmem>>, vector<1x1x32xf32>
    %17 = vector.shape_cast %16 : vector<1x1x32xf32> to vector<1x32xf32>
    %c0_17 = arith.constant 0 : index
    %c0_18 = arith.constant 0 : index
    %c0_19 = arith.constant 0 : index
    %18 = vector.load %arg6[%c0_17, %c0_18, %c0_19] : memref<2x1x32xf32, #tpu.memory_space<vmem>>, vector<1x1x32xf32>
    %19 = vector.shape_cast %18 : vector<1x1x32xf32> to vector<1x32xf32>
    %c0_20 = arith.constant 0 : index
    %c0_21 = arith.constant 0 : index
    %c0_22 = arith.constant 0 : index
    %20 = vector.load %arg7[%c0_20, %c0_21, %c0_22] : memref<2x1x32xf32, #tpu.memory_space<vmem>>, vector<1x1x32xf32>
    %21 = vector.shape_cast %20 : vector<1x1x32xf32> to vector<1x32xf32>
    %c0_23 = arith.constant 0 : index
    %c0_24 = arith.constant 0 : index
    %c0_25 = arith.constant 0 : index
    %22 = vector.load %arg8[%c0_23, %c0_24, %c0_25] : memref<2x32x32xbf16, #tpu.memory_space<vmem>>, vector<1x32x32xbf16>
    %23 = vector.shape_cast %22 : vector<1x32x32xbf16> to vector<32x32xbf16>
    %c0_26 = arith.constant 0 : index
    %c0_27 = arith.constant 0 : index
    %c0_28 = arith.constant 0 : index
    %24 = vector.load %arg9[%c0_26, %c0_27, %c0_28] : memref<2x32x64xbf16, #tpu.memory_space<vmem>>, vector<1x32x64xbf16>
    %25 = vector.shape_cast %24 : vector<1x32x64xbf16> to vector<32x64xbf16>
    %c0_29 = arith.constant 0 : index
    %c0_30 = arith.constant 0 : index
    %c0_31 = arith.constant 0 : index
    %26 = vector.load %arg10[%c0_29, %c0_30, %c0_31] : memref<2x32x32xbf16, #tpu.memory_space<vmem>>, vector<1x32x32xbf16>
    %27 = vector.shape_cast %26 : vector<1x32x32xbf16> to vector<32x32xbf16>
    %c0_32 = arith.constant 0 : index
    %c0_33 = arith.constant 0 : index
    %c0_34 = arith.constant 0 : index
    %28 = vector.load %arg11[%c0_32, %c0_33, %c0_34] : memref<2x1x32xf32, #tpu.memory_space<vmem>>, vector<1x1x32xf32>
    %29 = vector.shape_cast %28 : vector<1x1x32xf32> to vector<1x32xf32>
    %c0_35 = arith.constant 0 : index
    %c0_36 = arith.constant 0 : index
    %c0_37 = arith.constant 0 : index
    %30 = vector.load %arg12[%c0_35, %c0_36, %c0_37] : memref<2x1x32xf32, #tpu.memory_space<vmem>>, vector<1x1x32xf32>
    %31 = vector.shape_cast %30 : vector<1x1x32xf32> to vector<1x32xf32>
    %c0_38 = arith.constant 0 : index
    %c0_39 = arith.constant 0 : index
    %c0_40 = arith.constant 0 : index
    %32 = vector.load %arg13[%c0_38, %c0_39, %c0_40] : memref<2x1x32xf32, #tpu.memory_space<vmem>>, vector<1x1x32xf32>
    %33 = vector.shape_cast %32 : vector<1x1x32xf32> to vector<1x32xf32>
    %c0_41 = arith.constant 0 : index
    %c0_42 = arith.constant 0 : index
    %c0_43 = arith.constant 0 : index
    %34 = vector.load %arg14[%c0_41, %c0_42, %c0_43] : memref<2x32x2048xbf16, #tpu.memory_space<vmem>>, vector<1x32x2048xbf16>
    %35 = vector.shape_cast %34 : vector<1x32x2048xbf16> to vector<32x2048xbf16>
    %c0_44 = arith.constant 0 : index
    %c0_45 = arith.constant 0 : index
    %c0_46 = arith.constant 0 : index
    %36 = vector.load %arg15[%c0_44, %c0_45, %c0_46] : memref<2x1x2048xf32, #tpu.memory_space<vmem>>, vector<1x1x2048xf32>
    %37 = vector.shape_cast %36 : vector<1x1x2048xf32> to vector<1x2048xf32>
    %c0_47 = arith.constant 0 : index
    %c0_48 = arith.constant 0 : index
    %c0_49 = arith.constant 0 : index
    %38 = vector.load %arg16[%c0_47, %c0_48, %c0_49] : memref<2x2048x32xbf16, #tpu.memory_space<vmem>>, vector<1x2048x32xbf16>
    %39 = vector.shape_cast %38 : vector<1x2048x32xbf16> to vector<2048x32xbf16>
    %c0_50 = arith.constant 0 : index
    %c0_51 = arith.constant 0 : index
    %c0_52 = arith.constant 0 : index
    %40 = vector.load %arg17[%c0_50, %c0_51, %c0_52] : memref<2x1x32xf32, #tpu.memory_space<vmem>>, vector<1x1x32xf32>
    %41 = vector.shape_cast %40 : vector<1x1x32xf32> to vector<1x32xf32>
    %c0_53 = arith.constant 0 : index
    %c0_54 = arith.constant 0 : index
    %c0_55 = arith.constant 0 : index
    %42 = vector.load %arg18[%c0_53, %c0_54, %c0_55] : memref<2x1x32xf32, #tpu.memory_space<vmem>>, vector<1x1x32xf32>
    %43 = vector.shape_cast %42 : vector<1x1x32xf32> to vector<1x32xf32>
    %c0_56 = arith.constant 0 : index
    %c0_57 = arith.constant 0 : index
    %c0_58 = arith.constant 0 : index
    %44 = vector.load %arg19[%c0_56, %c0_57, %c0_58] : memref<2x1x32xf32, #tpu.memory_space<vmem>>, vector<1x1x32xf32>
    %45 = vector.shape_cast %44 : vector<1x1x32xf32> to vector<1x32xf32>
    %46 = vector.shape_cast %4 : vector<2x8x32xf32> to vector<16x32xf32>
    %47 = arith.truncf %46 : vector<16x32xf32> to vector<16x32xbf16>
    %cst_59 = arith.constant dense<0.000000e+00> : vector<16x96xf32>
    %48 = tpu.matmul %47, %13, %cst_59 {dimension_numbers = #tpu.dot_dimension_numbers<[1], [0], [0], [1], [0, 0, 1, 1], [], []>} : vector<16x32xbf16>, vector<32x96xbf16>, vector<16x96xf32> -> vector<16x96xf32>
    %49 = vector.shape_cast %48 : vector<16x96xf32> to vector<2x8x96xf32>
    %50 = vector.extract_strided_slice %49 {offsets = [0, 0, 0], sizes = [2, 8, 32], strides = [1, 1, 1]} : vector<2x8x96xf32> to vector<2x8x32xf32>
    %51 = vector.extract_strided_slice %49 {offsets = [0, 0, 32], sizes = [2, 8, 32], strides = [1, 1, 1]} : vector<2x8x96xf32> to vector<2x8x32xf32>
    %52 = vector.extract_strided_slice %49 {offsets = [0, 0, 64], sizes = [2, 8, 32], strides = [1, 1, 1]} : vector<2x8x96xf32> to vector<2x8x32xf32>
    %cst_60 = arith.constant 0.000000e+00 : f32
    %53 = vector.broadcast %cst_60 : f32 to vector<2x8x32xf32>
    %54 = vector.extract_strided_slice %50 {offsets = [0, 0, 0], sizes = [2, 8, 8], strides = [1, 1, 1]} : vector<2x8x32xf32> to vector<2x8x8xf32>
    %55 = vector.extract_strided_slice %51 {offsets = [0, 0, 0], sizes = [2, 8, 8], strides = [1, 1, 1]} : vector<2x8x32xf32> to vector<2x8x8xf32>
    %56 = arith.truncf %54 : vector<2x8x8xf32> to vector<2x8x8xbf16>
    %57 = arith.truncf %55 : vector<2x8x8xf32> to vector<2x8x8xbf16>
    "tpu.trace_start"() <{level = 10 : i32, message = "bqd,bkd->bqk"}> : () -> ()
    %cst_61 = arith.constant dense<0.000000e+00> : vector<2x8x8xf32>
    %58 = tpu.matmul %56, %57, %cst_61 {dimension_numbers = #tpu.dot_dimension_numbers<[2], [2], [1], [1], [0, 0, 0, 1, 1, 1], [0], [0]>} : vector<2x8x8xbf16>, vector<2x8x8xbf16>, vector<2x8x8xf32> -> vector<2x8x8xf32>
    "tpu.trace_stop"() : () -> ()
    %cst_62 = arith.constant 0.353553385 : f32
    %59 = vector.broadcast %cst_62 : f32 to vector<2x8x8xf32>
    %60 = arith.mulf %58, %59 : vector<2x8x8xf32>
    %61 = vector.shape_cast %11 : vector<8x8xf32> to vector<1x8x8xf32>
    %62 = vector.broadcast %61 : vector<1x8x8xf32> to vector<2x8x8xf32>
    %63 = arith.addf %60, %62 : vector<2x8x8xf32>
    %cst_63 = arith.constant dense<0xFF800000> : vector<2x8xf32>
    %64 = vector.multi_reduction <maximumf>, %63, %cst_63 [2] : vector<2x8x8xf32> to vector<2x8xf32>
    %65 = vector.shape_cast %64 : vector<2x8xf32> to vector<2x8x1xf32>
    %66 = vector.broadcast %65 : vector<2x8x1xf32> to vector<2x8x8xf32>
    %67 = arith.subf %63, %66 : vector<2x8x8xf32>
    %68 = math.exp %67 : vector<2x8x8xf32>
    %cst_64 = arith.constant dense<0.000000e+00> : vector<2x8xf32>
    %69 = vector.multi_reduction <add>, %68, %cst_64 [2] : vector<2x8x8xf32> to vector<2x8xf32>
    %70 = vector.shape_cast %69 : vector<2x8xf32> to vector<2x8x1xf32>
    %71 = vector.broadcast %70 : vector<2x8x1xf32> to vector<2x8x8xf32>
    %72 = arith.divf %68, %71 : vector<2x8x8xf32>
    %73 = vector.extract_strided_slice %52 {offsets = [0, 0, 0], sizes = [2, 8, 8], strides = [1, 1, 1]} : vector<2x8x32xf32> to vector<2x8x8xf32>
    %74 = arith.truncf %72 : vector<2x8x8xf32> to vector<2x8x8xbf16>
    %75 = arith.truncf %73 : vector<2x8x8xf32> to vector<2x8x8xbf16>
    "tpu.trace_start"() <{level = 10 : i32, message = "bqk,bkd->bqd"}> : () -> ()
    %cst_65 = arith.constant dense<0.000000e+00> : vector<2x8x8xf32>
    %76 = tpu.matmul %74, %75, %cst_65 {dimension_numbers = #tpu.dot_dimension_numbers<[2], [1], [1], [2], [0, 0, 0, 1, 1, 2], [0], [0]>} : vector<2x8x8xbf16>, vector<2x8x8xbf16>, vector<2x8x8xf32> -> vector<2x8x8xf32>
    "tpu.trace_stop"() : () -> ()
    %77 = vector.extract_strided_slice %15 {offsets = [0, 0], sizes = [8, 32], strides = [1, 1]} : vector<32x32xbf16> to vector<8x32xbf16>
    %78 = arith.truncf %76 : vector<2x8x8xf32> to vector<2x8x8xbf16>
    "tpu.trace_start"() <{level = 10 : i32, message = "bqd,de->bqe"}> : () -> ()
    %cst_66 = arith.constant dense<0.000000e+00> : vector<2x8x32xf32>
    %79 = tpu.matmul %78, %77, %cst_66 {dimension_numbers = #tpu.dot_dimension_numbers<[2], [0], [0, 1], [1], [0, 0, 0, 1, 1, 1], [], []>} : vector<2x8x8xbf16>, vector<8x32xbf16>, vector<2x8x32xf32> -> vector<2x8x32xf32>
    "tpu.trace_stop"() : () -> ()
    %80 = arith.addf %53, %79 : vector<2x8x32xf32>
    %81 = vector.extract_strided_slice %50 {offsets = [0, 0, 8], sizes = [2, 8, 8], strides = [1, 1, 1]} : vector<2x8x32xf32> to vector<2x8x8xf32>
    %82 = vector.extract_strided_slice %51 {offsets = [0, 0, 8], sizes = [2, 8, 8], strides = [1, 1, 1]} : vector<2x8x32xf32> to vector<2x8x8xf32>
    %83 = arith.truncf %81 : vector<2x8x8xf32> to vector<2x8x8xbf16>
    %84 = arith.truncf %82 : vector<2x8x8xf32> to vector<2x8x8xbf16>
    "tpu.trace_start"() <{level = 10 : i32, message = "bqd,bkd->bqk"}> : () -> ()
    %cst_67 = arith.constant dense<0.000000e+00> : vector<2x8x8xf32>
    %85 = tpu.matmul %83, %84, %cst_67 {dimension_numbers = #tpu.dot_dimension_numbers<[2], [2], [1], [1], [0, 0, 0, 1, 1, 1], [0], [0]>} : vector<2x8x8xbf16>, vector<2x8x8xbf16>, vector<2x8x8xf32> -> vector<2x8x8xf32>
    "tpu.trace_stop"() : () -> ()
    %cst_68 = arith.constant 0.353553385 : f32
    %86 = vector.broadcast %cst_68 : f32 to vector<2x8x8xf32>
    %87 = arith.mulf %85, %86 : vector<2x8x8xf32>
    %88 = vector.shape_cast %11 : vector<8x8xf32> to vector<1x8x8xf32>
    %89 = vector.broadcast %88 : vector<1x8x8xf32> to vector<2x8x8xf32>
    %90 = arith.addf %87, %89 : vector<2x8x8xf32>
    %cst_69 = arith.constant dense<0xFF800000> : vector<2x8xf32>
    %91 = vector.multi_reduction <maximumf>, %90, %cst_69 [2] : vector<2x8x8xf32> to vector<2x8xf32>
    %92 = vector.shape_cast %91 : vector<2x8xf32> to vector<2x8x1xf32>
    %93 = vector.broadcast %92 : vector<2x8x1xf32> to vector<2x8x8xf32>
    %94 = arith.subf %90, %93 : vector<2x8x8xf32>
    %95 = math.exp %94 : vector<2x8x8xf32>
    %cst_70 = arith.constant dense<0.000000e+00> : vector<2x8xf32>
    %96 = vector.multi_reduction <add>, %95, %cst_70 [2] : vector<2x8x8xf32> to vector<2x8xf32>
    %97 = vector.shape_cast %96 : vector<2x8xf32> to vector<2x8x1xf32>
    %98 = vector.broadcast %97 : vector<2x8x1xf32> to vector<2x8x8xf32>
    %99 = arith.divf %95, %98 : vector<2x8x8xf32>
    %100 = vector.extract_strided_slice %52 {offsets = [0, 0, 8], sizes = [2, 8, 8], strides = [1, 1, 1]} : vector<2x8x32xf32> to vector<2x8x8xf32>
    %101 = arith.truncf %99 : vector<2x8x8xf32> to vector<2x8x8xbf16>
    %102 = arith.truncf %100 : vector<2x8x8xf32> to vector<2x8x8xbf16>
    "tpu.trace_start"() <{level = 10 : i32, message = "bqk,bkd->bqd"}> : () -> ()
    %cst_71 = arith.constant dense<0.000000e+00> : vector<2x8x8xf32>
    %103 = tpu.matmul %101, %102, %cst_71 {dimension_numbers = #tpu.dot_dimension_numbers<[2], [1], [1], [2], [0, 0, 0, 1, 1, 2], [0], [0]>} : vector<2x8x8xbf16>, vector<2x8x8xbf16>, vector<2x8x8xf32> -> vector<2x8x8xf32>
    "tpu.trace_stop"() : () -> ()
    %104 = vector.extract_strided_slice %15 {offsets = [8, 0], sizes = [8, 32], strides = [1, 1]} : vector<32x32xbf16> to vector<8x32xbf16>
    %105 = arith.truncf %103 : vector<2x8x8xf32> to vector<2x8x8xbf16>
    "tpu.trace_start"() <{level = 10 : i32, message = "bqd,de->bqe"}> : () -> ()
    %cst_72 = arith.constant dense<0.000000e+00> : vector<2x8x32xf32>
    %106 = tpu.matmul %105, %104, %cst_72 {dimension_numbers = #tpu.dot_dimension_numbers<[2], [0], [0, 1], [1], [0, 0, 0, 1, 1, 1], [], []>} : vector<2x8x8xbf16>, vector<8x32xbf16>, vector<2x8x32xf32> -> vector<2x8x32xf32>
    "tpu.trace_stop"() : () -> ()
    %107 = arith.addf %80, %106 : vector<2x8x32xf32>
    %108 = vector.extract_strided_slice %50 {offsets = [0, 0, 16], sizes = [2, 8, 8], strides = [1, 1, 1]} : vector<2x8x32xf32> to vector<2x8x8xf32>
    %109 = vector.extract_strided_slice %51 {offsets = [0, 0, 16], sizes = [2, 8, 8], strides = [1, 1, 1]} : vector<2x8x32xf32> to vector<2x8x8xf32>
    %110 = arith.truncf %108 : vector<2x8x8xf32> to vector<2x8x8xbf16>
    %111 = arith.truncf %109 : vector<2x8x8xf32> to vector<2x8x8xbf16>
    "tpu.trace_start"() <{level = 10 : i32, message = "bqd,bkd->bqk"}> : () -> ()
    %cst_73 = arith.constant dense<0.000000e+00> : vector<2x8x8xf32>
    %112 = tpu.matmul %110, %111, %cst_73 {dimension_numbers = #tpu.dot_dimension_numbers<[2], [2], [1], [1], [0, 0, 0, 1, 1, 1], [0], [0]>} : vector<2x8x8xbf16>, vector<2x8x8xbf16>, vector<2x8x8xf32> -> vector<2x8x8xf32>
    "tpu.trace_stop"() : () -> ()
    %cst_74 = arith.constant 0.353553385 : f32
    %113 = vector.broadcast %cst_74 : f32 to vector<2x8x8xf32>
    %114 = arith.mulf %112, %113 : vector<2x8x8xf32>
    %115 = vector.shape_cast %11 : vector<8x8xf32> to vector<1x8x8xf32>
    %116 = vector.broadcast %115 : vector<1x8x8xf32> to vector<2x8x8xf32>
    %117 = arith.addf %114, %116 : vector<2x8x8xf32>
    %cst_75 = arith.constant dense<0xFF800000> : vector<2x8xf32>
    %118 = vector.multi_reduction <maximumf>, %117, %cst_75 [2] : vector<2x8x8xf32> to vector<2x8xf32>
    %119 = vector.shape_cast %118 : vector<2x8xf32> to vector<2x8x1xf32>
    %120 = vector.broadcast %119 : vector<2x8x1xf32> to vector<2x8x8xf32>
    %121 = arith.subf %117, %120 : vector<2x8x8xf32>
    %122 = math.exp %121 : vector<2x8x8xf32>
    %cst_76 = arith.constant dense<0.000000e+00> : vector<2x8xf32>
    %123 = vector.multi_reduction <add>, %122, %cst_76 [2] : vector<2x8x8xf32> to vector<2x8xf32>
    %124 = vector.shape_cast %123 : vector<2x8xf32> to vector<2x8x1xf32>
    %125 = vector.broadcast %124 : vector<2x8x1xf32> to vector<2x8x8xf32>
    %126 = arith.divf %122, %125 : vector<2x8x8xf32>
    %127 = vector.extract_strided_slice %52 {offsets = [0, 0, 16], sizes = [2, 8, 8], strides = [1, 1, 1]} : vector<2x8x32xf32> to vector<2x8x8xf32>
    %128 = arith.truncf %126 : vector<2x8x8xf32> to vector<2x8x8xbf16>
    %129 = arith.truncf %127 : vector<2x8x8xf32> to vector<2x8x8xbf16>
    "tpu.trace_start"() <{level = 10 : i32, message = "bqk,bkd->bqd"}> : () -> ()
    %cst_77 = arith.constant dense<0.000000e+00> : vector<2x8x8xf32>
    %130 = tpu.matmul %128, %129, %cst_77 {dimension_numbers = #tpu.dot_dimension_numbers<[2], [1], [1], [2], [0, 0, 0, 1, 1, 2], [0], [0]>} : vector<2x8x8xbf16>, vector<2x8x8xbf16>, vector<2x8x8xf32> -> vector<2x8x8xf32>
    "tpu.trace_stop"() : () -> ()
    %131 = vector.extract_strided_slice %15 {offsets = [16, 0], sizes = [8, 32], strides = [1, 1]} : vector<32x32xbf16> to vector<8x32xbf16>
    %132 = arith.truncf %130 : vector<2x8x8xf32> to vector<2x8x8xbf16>
    "tpu.trace_start"() <{level = 10 : i32, message = "bqd,de->bqe"}> : () -> ()
    %cst_78 = arith.constant dense<0.000000e+00> : vector<2x8x32xf32>
    %133 = tpu.matmul %132, %131, %cst_78 {dimension_numbers = #tpu.dot_dimension_numbers<[2], [0], [0, 1], [1], [0, 0, 0, 1, 1, 1], [], []>} : vector<2x8x8xbf16>, vector<8x32xbf16>, vector<2x8x32xf32> -> vector<2x8x32xf32>
    "tpu.trace_stop"() : () -> ()
    %134 = arith.addf %107, %133 : vector<2x8x32xf32>
    %135 = vector.extract_strided_slice %50 {offsets = [0, 0, 24], sizes = [2, 8, 8], strides = [1, 1, 1]} : vector<2x8x32xf32> to vector<2x8x8xf32>
    %136 = vector.extract_strided_slice %51 {offsets = [0, 0, 24], sizes = [2, 8, 8], strides = [1, 1, 1]} : vector<2x8x32xf32> to vector<2x8x8xf32>
    %137 = arith.truncf %135 : vector<2x8x8xf32> to vector<2x8x8xbf16>
    %138 = arith.truncf %136 : vector<2x8x8xf32> to vector<2x8x8xbf16>
    "tpu.trace_start"() <{level = 10 : i32, message = "bqd,bkd->bqk"}> : () -> ()
    %cst_79 = arith.constant dense<0.000000e+00> : vector<2x8x8xf32>
    %139 = tpu.matmul %137, %138, %cst_79 {dimension_numbers = #tpu.dot_dimension_numbers<[2], [2], [1], [1], [0, 0, 0, 1, 1, 1], [0], [0]>} : vector<2x8x8xbf16>, vector<2x8x8xbf16>, vector<2x8x8xf32> -> vector<2x8x8xf32>
    "tpu.trace_stop"() : () -> ()
    %cst_80 = arith.constant 0.353553385 : f32
    %140 = vector.broadcast %cst_80 : f32 to vector<2x8x8xf32>
    %141 = arith.mulf %139, %140 : vector<2x8x8xf32>
    %142 = vector.shape_cast %11 : vector<8x8xf32> to vector<1x8x8xf32>
    %143 = vector.broadcast %142 : vector<1x8x8xf32> to vector<2x8x8xf32>
    %144 = arith.addf %141, %143 : vector<2x8x8xf32>
    %cst_81 = arith.constant dense<0xFF800000> : vector<2x8xf32>
    %145 = vector.multi_reduction <maximumf>, %144, %cst_81 [2] : vector<2x8x8xf32> to vector<2x8xf32>
    %146 = vector.shape_cast %145 : vector<2x8xf32> to vector<2x8x1xf32>
    %147 = vector.broadcast %146 : vector<2x8x1xf32> to vector<2x8x8xf32>
    %148 = arith.subf %144, %147 : vector<2x8x8xf32>
    %149 = math.exp %148 : vector<2x8x8xf32>
    %cst_82 = arith.constant dense<0.000000e+00> : vector<2x8xf32>
    %150 = vector.multi_reduction <add>, %149, %cst_82 [2] : vector<2x8x8xf32> to vector<2x8xf32>
    %151 = vector.shape_cast %150 : vector<2x8xf32> to vector<2x8x1xf32>
    %152 = vector.broadcast %151 : vector<2x8x1xf32> to vector<2x8x8xf32>
    %153 = arith.divf %149, %152 : vector<2x8x8xf32>
    %154 = vector.extract_strided_slice %52 {offsets = [0, 0, 24], sizes = [2, 8, 8], strides = [1, 1, 1]} : vector<2x8x32xf32> to vector<2x8x8xf32>
    %155 = arith.truncf %153 : vector<2x8x8xf32> to vector<2x8x8xbf16>
    %156 = arith.truncf %154 : vector<2x8x8xf32> to vector<2x8x8xbf16>
    "tpu.trace_start"() <{level = 10 : i32, message = "bqk,bkd->bqd"}> : () -> ()
    %cst_83 = arith.constant dense<0.000000e+00> : vector<2x8x8xf32>
    %157 = tpu.matmul %155, %156, %cst_83 {dimension_numbers = #tpu.dot_dimension_numbers<[2], [1], [1], [2], [0, 0, 0, 1, 1, 2], [0], [0]>} : vector<2x8x8xbf16>, vector<2x8x8xbf16>, vector<2x8x8xf32> -> vector<2x8x8xf32>
    "tpu.trace_stop"() : () -> ()
    %158 = vector.extract_strided_slice %15 {offsets = [24, 0], sizes = [8, 32], strides = [1, 1]} : vector<32x32xbf16> to vector<8x32xbf16>
    %159 = arith.truncf %157 : vector<2x8x8xf32> to vector<2x8x8xbf16>
    "tpu.trace_start"() <{level = 10 : i32, message = "bqd,de->bqe"}> : () -> ()
    %cst_84 = arith.constant dense<0.000000e+00> : vector<2x8x32xf32>
    %160 = tpu.matmul %159, %158, %cst_84 {dimension_numbers = #tpu.dot_dimension_numbers<[2], [0], [0, 1], [1], [0, 0, 0, 1, 1, 1], [], []>} : vector<2x8x8xbf16>, vector<8x32xbf16>, vector<2x8x32xf32> -> vector<2x8x32xf32>
    "tpu.trace_stop"() : () -> ()
    %161 = arith.addf %134, %160 : vector<2x8x32xf32>
    %162 = vector.shape_cast %17 : vector<1x32xf32> to vector<1x1x32xf32>
    %163 = vector.broadcast %162 : vector<1x1x32xf32> to vector<2x8x32xf32>
    %164 = arith.addf %161, %163 : vector<2x8x32xf32>
    %165 = arith.addf %164, %4 : vector<2x8x32xf32>
    %cst_85 = arith.constant dense<0.000000e+00> : vector<2x8xf32>
    %166 = vector.multi_reduction <add>, %165, %cst_85 [2] : vector<2x8x32xf32> to vector<2x8xf32>
    %167 = vector.shape_cast %166 : vector<2x8xf32> to vector<2x8x1xf32>
    %cst_86 = arith.constant 3.200000e+01 : f32
    %168 = vector.broadcast %cst_86 : f32 to vector<2x8x1xf32>
    %169 = arith.divf %167, %168 : vector<2x8x1xf32>
    %170 = vector.broadcast %169 : vector<2x8x1xf32> to vector<2x8x32xf32>
    %171 = arith.subf %165, %170 : vector<2x8x32xf32>
    %172 = arith.mulf %171, %171 : vector<2x8x32xf32>
    %cst_87 = arith.constant dense<0.000000e+00> : vector<2x8xf32>
    %173 = vector.multi_reduction <add>, %172, %cst_87 [2] : vector<2x8x32xf32> to vector<2x8xf32>
    %174 = vector.shape_cast %173 : vector<2x8xf32> to vector<2x8x1xf32>
    %cst_88 = arith.constant 3.200000e+01 : f32
    %175 = vector.broadcast %cst_88 : f32 to vector<2x8x1xf32>
    %176 = arith.divf %174, %175 : vector<2x8x1xf32>
    %177 = vector.broadcast %169 : vector<2x8x1xf32> to vector<2x8x32xf32>
    %178 = arith.subf %165, %177 : vector<2x8x32xf32>
    %cst_89 = arith.constant 9.99999974E-6 : f32
    %179 = vector.broadcast %cst_89 : f32 to vector<2x8x1xf32>
    %180 = arith.addf %176, %179 : vector<2x8x1xf32>
    %181 = math.rsqrt %180 : vector<2x8x1xf32>
    %182 = vector.broadcast %181 : vector<2x8x1xf32> to vector<2x8x32xf32>
    %183 = arith.mulf %178, %182 : vector<2x8x32xf32>
    %184 = vector.shape_cast %19 : vector<1x32xf32> to vector<1x1x32xf32>
    %185 = vector.broadcast %184 : vector<1x1x32xf32> to vector<2x8x32xf32>
    %186 = arith.mulf %183, %185 : vector<2x8x32xf32>
    %187 = vector.shape_cast %21 : vector<1x32xf32> to vector<1x1x32xf32>
    %188 = vector.broadcast %187 : vector<1x1x32xf32> to vector<2x8x32xf32>
    %189 = arith.addf %186, %188 : vector<2x8x32xf32>
    %190 = vector.shape_cast %189 : vector<2x8x32xf32> to vector<16x32xf32>
    %191 = arith.truncf %190 : vector<16x32xf32> to vector<16x32xbf16>
    %cst_90 = arith.constant dense<0.000000e+00> : vector<16x32xf32>
    %192 = tpu.matmul %191, %23, %cst_90 {dimension_numbers = #tpu.dot_dimension_numbers<[1], [0], [0], [1], [0, 0, 1, 1], [], []>} : vector<16x32xbf16>, vector<32x32xbf16>, vector<16x32xf32> -> vector<16x32xf32>
    %193 = vector.shape_cast %192 : vector<16x32xf32> to vector<2x8x32xf32>
    %194 = vector.shape_cast %5 : vector<2x8x32xf32> to vector<16x32xf32>
    %195 = arith.truncf %194 : vector<16x32xf32> to vector<16x32xbf16>
    %cst_91 = arith.constant dense<0.000000e+00> : vector<16x64xf32>
    %196 = tpu.matmul %195, %25, %cst_91 {dimension_numbers = #tpu.dot_dimension_numbers<[1], [0], [0], [1], [0, 0, 1, 1], [], []>} : vector<16x32xbf16>, vector<32x64xbf16>, vector<16x64xf32> -> vector<16x64xf32>
    %197 = vector.shape_cast %196 : vector<16x64xf32> to vector<2x8x64xf32>
    %198 = vector.extract_strided_slice %197 {offsets = [0, 0, 0], sizes = [2, 8, 32], strides = [1, 1, 1]} : vector<2x8x64xf32> to vector<2x8x32xf32>
    %199 = vector.extract_strided_slice %197 {offsets = [0, 0, 32], sizes = [2, 8, 32], strides = [1, 1, 1]} : vector<2x8x64xf32> to vector<2x8x32xf32>
    %cst_92 = arith.constant 0.000000e+00 : f32
    %200 = vector.broadcast %cst_92 : f32 to vector<2x8x32xf32>
    %201 = vector.extract_strided_slice %193 {offsets = [0, 0, 0], sizes = [2, 8, 8], strides = [1, 1, 1]} : vector<2x8x32xf32> to vector<2x8x8xf32>
    %202 = vector.extract_strided_slice %198 {offsets = [0, 0, 0], sizes = [2, 8, 8], strides = [1, 1, 1]} : vector<2x8x32xf32> to vector<2x8x8xf32>
    %203 = arith.truncf %201 : vector<2x8x8xf32> to vector<2x8x8xbf16>
    %204 = arith.truncf %202 : vector<2x8x8xf32> to vector<2x8x8xbf16>
    "tpu.trace_start"() <{level = 10 : i32, message = "bqd,bkd->bqk"}> : () -> ()
    %cst_93 = arith.constant dense<0.000000e+00> : vector<2x8x8xf32>
    %205 = tpu.matmul %203, %204, %cst_93 {dimension_numbers = #tpu.dot_dimension_numbers<[2], [2], [1], [1], [0, 0, 0, 1, 1, 1], [0], [0]>} : vector<2x8x8xbf16>, vector<2x8x8xbf16>, vector<2x8x8xf32> -> vector<2x8x8xf32>
    "tpu.trace_stop"() : () -> ()
    %cst_94 = arith.constant 0.353553385 : f32
    %206 = vector.broadcast %cst_94 : f32 to vector<2x8x8xf32>
    %207 = arith.mulf %205, %206 : vector<2x8x8xf32>
    %208 = vector.shape_cast %11 : vector<8x8xf32> to vector<1x8x8xf32>
    %209 = vector.broadcast %208 : vector<1x8x8xf32> to vector<2x8x8xf32>
    %210 = arith.addf %207, %209 : vector<2x8x8xf32>
    %cst_95 = arith.constant dense<0xFF800000> : vector<2x8xf32>
    %211 = vector.multi_reduction <maximumf>, %210, %cst_95 [2] : vector<2x8x8xf32> to vector<2x8xf32>
    %212 = vector.shape_cast %211 : vector<2x8xf32> to vector<2x8x1xf32>
    %213 = vector.broadcast %212 : vector<2x8x1xf32> to vector<2x8x8xf32>
    %214 = arith.subf %210, %213 : vector<2x8x8xf32>
    %215 = math.exp %214 : vector<2x8x8xf32>
    %cst_96 = arith.constant dense<0.000000e+00> : vector<2x8xf32>
    %216 = vector.multi_reduction <add>, %215, %cst_96 [2] : vector<2x8x8xf32> to vector<2x8xf32>
    %217 = vector.shape_cast %216 : vector<2x8xf32> to vector<2x8x1xf32>
    %218 = vector.broadcast %217 : vector<2x8x1xf32> to vector<2x8x8xf32>
    %219 = arith.divf %215, %218 : vector<2x8x8xf32>
    %220 = vector.extract_strided_slice %199 {offsets = [0, 0, 0], sizes = [2, 8, 8], strides = [1, 1, 1]} : vector<2x8x32xf32> to vector<2x8x8xf32>
    %221 = arith.truncf %219 : vector<2x8x8xf32> to vector<2x8x8xbf16>
    %222 = arith.truncf %220 : vector<2x8x8xf32> to vector<2x8x8xbf16>
    "tpu.trace_start"() <{level = 10 : i32, message = "bqk,bkd->bqd"}> : () -> ()
    %cst_97 = arith.constant dense<0.000000e+00> : vector<2x8x8xf32>
    %223 = tpu.matmul %221, %222, %cst_97 {dimension_numbers = #tpu.dot_dimension_numbers<[2], [1], [1], [2], [0, 0, 0, 1, 1, 2], [0], [0]>} : vector<2x8x8xbf16>, vector<2x8x8xbf16>, vector<2x8x8xf32> -> vector<2x8x8xf32>
    "tpu.trace_stop"() : () -> ()
    %224 = vector.extract_strided_slice %27 {offsets = [0, 0], sizes = [8, 32], strides = [1, 1]} : vector<32x32xbf16> to vector<8x32xbf16>
    %225 = arith.truncf %223 : vector<2x8x8xf32> to vector<2x8x8xbf16>
    "tpu.trace_start"() <{level = 10 : i32, message = "bqd,de->bqe"}> : () -> ()
    %cst_98 = arith.constant dense<0.000000e+00> : vector<2x8x32xf32>
    %226 = tpu.matmul %225, %224, %cst_98 {dimension_numbers = #tpu.dot_dimension_numbers<[2], [0], [0, 1], [1], [0, 0, 0, 1, 1, 1], [], []>} : vector<2x8x8xbf16>, vector<8x32xbf16>, vector<2x8x32xf32> -> vector<2x8x32xf32>
    "tpu.trace_stop"() : () -> ()
    %227 = arith.addf %200, %226 : vector<2x8x32xf32>
    %228 = vector.extract_strided_slice %193 {offsets = [0, 0, 8], sizes = [2, 8, 8], strides = [1, 1, 1]} : vector<2x8x32xf32> to vector<2x8x8xf32>
    %229 = vector.extract_strided_slice %198 {offsets = [0, 0, 8], sizes = [2, 8, 8], strides = [1, 1, 1]} : vector<2x8x32xf32> to vector<2x8x8xf32>
    %230 = arith.truncf %228 : vector<2x8x8xf32> to vector<2x8x8xbf16>
    %231 = arith.truncf %229 : vector<2x8x8xf32> to vector<2x8x8xbf16>
    "tpu.trace_start"() <{level = 10 : i32, message = "bqd,bkd->bqk"}> : () -> ()
    %cst_99 = arith.constant dense<0.000000e+00> : vector<2x8x8xf32>
    %232 = tpu.matmul %230, %231, %cst_99 {dimension_numbers = #tpu.dot_dimension_numbers<[2], [2], [1], [1], [0, 0, 0, 1, 1, 1], [0], [0]>} : vector<2x8x8xbf16>, vector<2x8x8xbf16>, vector<2x8x8xf32> -> vector<2x8x8xf32>
    "tpu.trace_stop"() : () -> ()
    %cst_100 = arith.constant 0.353553385 : f32
    %233 = vector.broadcast %cst_100 : f32 to vector<2x8x8xf32>
    %234 = arith.mulf %232, %233 : vector<2x8x8xf32>
    %235 = vector.shape_cast %11 : vector<8x8xf32> to vector<1x8x8xf32>
    %236 = vector.broadcast %235 : vector<1x8x8xf32> to vector<2x8x8xf32>
    %237 = arith.addf %234, %236 : vector<2x8x8xf32>
    %cst_101 = arith.constant dense<0xFF800000> : vector<2x8xf32>
    %238 = vector.multi_reduction <maximumf>, %237, %cst_101 [2] : vector<2x8x8xf32> to vector<2x8xf32>
    %239 = vector.shape_cast %238 : vector<2x8xf32> to vector<2x8x1xf32>
    %240 = vector.broadcast %239 : vector<2x8x1xf32> to vector<2x8x8xf32>
    %241 = arith.subf %237, %240 : vector<2x8x8xf32>
    %242 = math.exp %241 : vector<2x8x8xf32>
    %cst_102 = arith.constant dense<0.000000e+00> : vector<2x8xf32>
    %243 = vector.multi_reduction <add>, %242, %cst_102 [2] : vector<2x8x8xf32> to vector<2x8xf32>
    %244 = vector.shape_cast %243 : vector<2x8xf32> to vector<2x8x1xf32>
    %245 = vector.broadcast %244 : vector<2x8x1xf32> to vector<2x8x8xf32>
    %246 = arith.divf %242, %245 : vector<2x8x8xf32>
    %247 = vector.extract_strided_slice %199 {offsets = [0, 0, 8], sizes = [2, 8, 8], strides = [1, 1, 1]} : vector<2x8x32xf32> to vector<2x8x8xf32>
    %248 = arith.truncf %246 : vector<2x8x8xf32> to vector<2x8x8xbf16>
    %249 = arith.truncf %247 : vector<2x8x8xf32> to vector<2x8x8xbf16>
    "tpu.trace_start"() <{level = 10 : i32, message = "bqk,bkd->bqd"}> : () -> ()
    %cst_103 = arith.constant dense<0.000000e+00> : vector<2x8x8xf32>
    %250 = tpu.matmul %248, %249, %cst_103 {dimension_numbers = #tpu.dot_dimension_numbers<[2], [1], [1], [2], [0, 0, 0, 1, 1, 2], [0], [0]>} : vector<2x8x8xbf16>, vector<2x8x8xbf16>, vector<2x8x8xf32> -> vector<2x8x8xf32>
    "tpu.trace_stop"() : () -> ()
    %251 = vector.extract_strided_slice %27 {offsets = [8, 0], sizes = [8, 32], strides = [1, 1]} : vector<32x32xbf16> to vector<8x32xbf16>
    %252 = arith.truncf %250 : vector<2x8x8xf32> to vector<2x8x8xbf16>
    "tpu.trace_start"() <{level = 10 : i32, message = "bqd,de->bqe"}> : () -> ()
    %cst_104 = arith.constant dense<0.000000e+00> : vector<2x8x32xf32>
    %253 = tpu.matmul %252, %251, %cst_104 {dimension_numbers = #tpu.dot_dimension_numbers<[2], [0], [0, 1], [1], [0, 0, 0, 1, 1, 1], [], []>} : vector<2x8x8xbf16>, vector<8x32xbf16>, vector<2x8x32xf32> -> vector<2x8x32xf32>
    "tpu.trace_stop"() : () -> ()
    %254 = arith.addf %227, %253 : vector<2x8x32xf32>
    %255 = vector.extract_strided_slice %193 {offsets = [0, 0, 16], sizes = [2, 8, 8], strides = [1, 1, 1]} : vector<2x8x32xf32> to vector<2x8x8xf32>
    %256 = vector.extract_strided_slice %198 {offsets = [0, 0, 16], sizes = [2, 8, 8], strides = [1, 1, 1]} : vector<2x8x32xf32> to vector<2x8x8xf32>
    %257 = arith.truncf %255 : vector<2x8x8xf32> to vector<2x8x8xbf16>
    %258 = arith.truncf %256 : vector<2x8x8xf32> to vector<2x8x8xbf16>
    "tpu.trace_start"() <{level = 10 : i32, message = "bqd,bkd->bqk"}> : () -> ()
    %cst_105 = arith.constant dense<0.000000e+00> : vector<2x8x8xf32>
    %259 = tpu.matmul %257, %258, %cst_105 {dimension_numbers = #tpu.dot_dimension_numbers<[2], [2], [1], [1], [0, 0, 0, 1, 1, 1], [0], [0]>} : vector<2x8x8xbf16>, vector<2x8x8xbf16>, vector<2x8x8xf32> -> vector<2x8x8xf32>
    "tpu.trace_stop"() : () -> ()
    %cst_106 = arith.constant 0.353553385 : f32
    %260 = vector.broadcast %cst_106 : f32 to vector<2x8x8xf32>
    %261 = arith.mulf %259, %260 : vector<2x8x8xf32>
    %262 = vector.shape_cast %11 : vector<8x8xf32> to vector<1x8x8xf32>
    %263 = vector.broadcast %262 : vector<1x8x8xf32> to vector<2x8x8xf32>
    %264 = arith.addf %261, %263 : vector<2x8x8xf32>
    %cst_107 = arith.constant dense<0xFF800000> : vector<2x8xf32>
    %265 = vector.multi_reduction <maximumf>, %264, %cst_107 [2] : vector<2x8x8xf32> to vector<2x8xf32>
    %266 = vector.shape_cast %265 : vector<2x8xf32> to vector<2x8x1xf32>
    %267 = vector.broadcast %266 : vector<2x8x1xf32> to vector<2x8x8xf32>
    %268 = arith.subf %264, %267 : vector<2x8x8xf32>
    %269 = math.exp %268 : vector<2x8x8xf32>
    %cst_108 = arith.constant dense<0.000000e+00> : vector<2x8xf32>
    %270 = vector.multi_reduction <add>, %269, %cst_108 [2] : vector<2x8x8xf32> to vector<2x8xf32>
    %271 = vector.shape_cast %270 : vector<2x8xf32> to vector<2x8x1xf32>
    %272 = vector.broadcast %271 : vector<2x8x1xf32> to vector<2x8x8xf32>
    %273 = arith.divf %269, %272 : vector<2x8x8xf32>
    %274 = vector.extract_strided_slice %199 {offsets = [0, 0, 16], sizes = [2, 8, 8], strides = [1, 1, 1]} : vector<2x8x32xf32> to vector<2x8x8xf32>
    %275 = arith.truncf %273 : vector<2x8x8xf32> to vector<2x8x8xbf16>
    %276 = arith.truncf %274 : vector<2x8x8xf32> to vector<2x8x8xbf16>
    "tpu.trace_start"() <{level = 10 : i32, message = "bqk,bkd->bqd"}> : () -> ()
    %cst_109 = arith.constant dense<0.000000e+00> : vector<2x8x8xf32>
    %277 = tpu.matmul %275, %276, %cst_109 {dimension_numbers = #tpu.dot_dimension_numbers<[2], [1], [1], [2], [0, 0, 0, 1, 1, 2], [0], [0]>} : vector<2x8x8xbf16>, vector<2x8x8xbf16>, vector<2x8x8xf32> -> vector<2x8x8xf32>
    "tpu.trace_stop"() : () -> ()
    %278 = vector.extract_strided_slice %27 {offsets = [16, 0], sizes = [8, 32], strides = [1, 1]} : vector<32x32xbf16> to vector<8x32xbf16>
    %279 = arith.truncf %277 : vector<2x8x8xf32> to vector<2x8x8xbf16>
    "tpu.trace_start"() <{level = 10 : i32, message = "bqd,de->bqe"}> : () -> ()
    %cst_110 = arith.constant dense<0.000000e+00> : vector<2x8x32xf32>
    %280 = tpu.matmul %279, %278, %cst_110 {dimension_numbers = #tpu.dot_dimension_numbers<[2], [0], [0, 1], [1], [0, 0, 0, 1, 1, 1], [], []>} : vector<2x8x8xbf16>, vector<8x32xbf16>, vector<2x8x32xf32> -> vector<2x8x32xf32>
    "tpu.trace_stop"() : () -> ()
    %281 = arith.addf %254, %280 : vector<2x8x32xf32>
    %282 = vector.extract_strided_slice %193 {offsets = [0, 0, 24], sizes = [2, 8, 8], strides = [1, 1, 1]} : vector<2x8x32xf32> to vector<2x8x8xf32>
    %283 = vector.extract_strided_slice %198 {offsets = [0, 0, 24], sizes = [2, 8, 8], strides = [1, 1, 1]} : vector<2x8x32xf32> to vector<2x8x8xf32>
    %284 = arith.truncf %282 : vector<2x8x8xf32> to vector<2x8x8xbf16>
    %285 = arith.truncf %283 : vector<2x8x8xf32> to vector<2x8x8xbf16>
    "tpu.trace_start"() <{level = 10 : i32, message = "bqd,bkd->bqk"}> : () -> ()
    %cst_111 = arith.constant dense<0.000000e+00> : vector<2x8x8xf32>
    %286 = tpu.matmul %284, %285, %cst_111 {dimension_numbers = #tpu.dot_dimension_numbers<[2], [2], [1], [1], [0, 0, 0, 1, 1, 1], [0], [0]>} : vector<2x8x8xbf16>, vector<2x8x8xbf16>, vector<2x8x8xf32> -> vector<2x8x8xf32>
    "tpu.trace_stop"() : () -> ()
    %cst_112 = arith.constant 0.353553385 : f32
    %287 = vector.broadcast %cst_112 : f32 to vector<2x8x8xf32>
    %288 = arith.mulf %286, %287 : vector<2x8x8xf32>
    %289 = vector.shape_cast %11 : vector<8x8xf32> to vector<1x8x8xf32>
    %290 = vector.broadcast %289 : vector<1x8x8xf32> to vector<2x8x8xf32>
    %291 = arith.addf %288, %290 : vector<2x8x8xf32>
    %cst_113 = arith.constant dense<0xFF800000> : vector<2x8xf32>
    %292 = vector.multi_reduction <maximumf>, %291, %cst_113 [2] : vector<2x8x8xf32> to vector<2x8xf32>
    %293 = vector.shape_cast %292 : vector<2x8xf32> to vector<2x8x1xf32>
    %294 = vector.broadcast %293 : vector<2x8x1xf32> to vector<2x8x8xf32>
    %295 = arith.subf %291, %294 : vector<2x8x8xf32>
    %296 = math.exp %295 : vector<2x8x8xf32>
    %cst_114 = arith.constant dense<0.000000e+00> : vector<2x8xf32>
    %297 = vector.multi_reduction <add>, %296, %cst_114 [2] : vector<2x8x8xf32> to vector<2x8xf32>
    %298 = vector.shape_cast %297 : vector<2x8xf32> to vector<2x8x1xf32>
    %299 = vector.broadcast %298 : vector<2x8x1xf32> to vector<2x8x8xf32>
    %300 = arith.divf %296, %299 : vector<2x8x8xf32>
    %301 = vector.extract_strided_slice %199 {offsets = [0, 0, 24], sizes = [2, 8, 8], strides = [1, 1, 1]} : vector<2x8x32xf32> to vector<2x8x8xf32>
    %302 = arith.truncf %300 : vector<2x8x8xf32> to vector<2x8x8xbf16>
    %303 = arith.truncf %301 : vector<2x8x8xf32> to vector<2x8x8xbf16>
    "tpu.trace_start"() <{level = 10 : i32, message = "bqk,bkd->bqd"}> : () -> ()
    %cst_115 = arith.constant dense<0.000000e+00> : vector<2x8x8xf32>
    %304 = tpu.matmul %302, %303, %cst_115 {dimension_numbers = #tpu.dot_dimension_numbers<[2], [1], [1], [2], [0, 0, 0, 1, 1, 2], [0], [0]>} : vector<2x8x8xbf16>, vector<2x8x8xbf16>, vector<2x8x8xf32> -> vector<2x8x8xf32>
    "tpu.trace_stop"() : () -> ()
    %305 = vector.extract_strided_slice %27 {offsets = [24, 0], sizes = [8, 32], strides = [1, 1]} : vector<32x32xbf16> to vector<8x32xbf16>
    %306 = arith.truncf %304 : vector<2x8x8xf32> to vector<2x8x8xbf16>
    "tpu.trace_start"() <{level = 10 : i32, message = "bqd,de->bqe"}> : () -> ()
    %cst_116 = arith.constant dense<0.000000e+00> : vector<2x8x32xf32>
    %307 = tpu.matmul %306, %305, %cst_116 {dimension_numbers = #tpu.dot_dimension_numbers<[2], [0], [0, 1], [1], [0, 0, 0, 1, 1, 1], [], []>} : vector<2x8x8xbf16>, vector<8x32xbf16>, vector<2x8x32xf32> -> vector<2x8x32xf32>
    "tpu.trace_stop"() : () -> ()
    %308 = arith.addf %281, %307 : vector<2x8x32xf32>
    %309 = vector.shape_cast %29 : vector<1x32xf32> to vector<1x1x32xf32>
    %310 = vector.broadcast %309 : vector<1x1x32xf32> to vector<2x8x32xf32>
    %311 = arith.addf %308, %310 : vector<2x8x32xf32>
    %312 = arith.addf %311, %189 : vector<2x8x32xf32>
    %cst_117 = arith.constant dense<0.000000e+00> : vector<2x8xf32>
    %313 = vector.multi_reduction <add>, %312, %cst_117 [2] : vector<2x8x32xf32> to vector<2x8xf32>
    %314 = vector.shape_cast %313 : vector<2x8xf32> to vector<2x8x1xf32>
    %cst_118 = arith.constant 3.200000e+01 : f32
    %315 = vector.broadcast %cst_118 : f32 to vector<2x8x1xf32>
    %316 = arith.divf %314, %315 : vector<2x8x1xf32>
    %317 = vector.broadcast %316 : vector<2x8x1xf32> to vector<2x8x32xf32>
    %318 = arith.subf %312, %317 : vector<2x8x32xf32>
    %319 = arith.mulf %318, %318 : vector<2x8x32xf32>
    %cst_119 = arith.constant dense<0.000000e+00> : vector<2x8xf32>
    %320 = vector.multi_reduction <add>, %319, %cst_119 [2] : vector<2x8x32xf32> to vector<2x8xf32>
    %321 = vector.shape_cast %320 : vector<2x8xf32> to vector<2x8x1xf32>
    %cst_120 = arith.constant 3.200000e+01 : f32
    %322 = vector.broadcast %cst_120 : f32 to vector<2x8x1xf32>
    %323 = arith.divf %321, %322 : vector<2x8x1xf32>
    %324 = vector.broadcast %316 : vector<2x8x1xf32> to vector<2x8x32xf32>
    %325 = arith.subf %312, %324 : vector<2x8x32xf32>
    %cst_121 = arith.constant 9.99999974E-6 : f32
    %326 = vector.broadcast %cst_121 : f32 to vector<2x8x1xf32>
    %327 = arith.addf %323, %326 : vector<2x8x1xf32>
    %328 = math.rsqrt %327 : vector<2x8x1xf32>
    %329 = vector.broadcast %328 : vector<2x8x1xf32> to vector<2x8x32xf32>
    %330 = arith.mulf %325, %329 : vector<2x8x32xf32>
    %331 = vector.shape_cast %31 : vector<1x32xf32> to vector<1x1x32xf32>
    %332 = vector.broadcast %331 : vector<1x1x32xf32> to vector<2x8x32xf32>
    %333 = arith.mulf %330, %332 : vector<2x8x32xf32>
    %334 = vector.shape_cast %33 : vector<1x32xf32> to vector<1x1x32xf32>
    %335 = vector.broadcast %334 : vector<1x1x32xf32> to vector<2x8x32xf32>
    %336 = arith.addf %333, %335 : vector<2x8x32xf32>
    %337 = vector.shape_cast %336 : vector<2x8x32xf32> to vector<16x32xf32>
    %338 = arith.truncf %337 : vector<16x32xf32> to vector<16x32xbf16>
    %cst_122 = arith.constant dense<0.000000e+00> : vector<16x2048xf32>
    %339 = tpu.matmul %338, %35, %cst_122 {dimension_numbers = #tpu.dot_dimension_numbers<[1], [0], [0], [1], [0, 0, 1, 1], [], []>} : vector<16x32xbf16>, vector<32x2048xbf16>, vector<16x2048xf32> -> vector<16x2048xf32>
    %340 = vector.broadcast %37 : vector<1x2048xf32> to vector<16x2048xf32>
    %341 = arith.addf %339, %340 : vector<16x2048xf32>
    %cst_123 = arith.constant 0.000000e+00 : f32
    %342 = vector.broadcast %cst_123 : f32 to vector<16x2048xf32>
    %343 = arith.maximumf %341, %342 : vector<16x2048xf32>
    %344 = arith.truncf %343 : vector<16x2048xf32> to vector<16x2048xbf16>
    %cst_124 = arith.constant dense<0.000000e+00> : vector<16x32xf32>
    %345 = tpu.matmul %344, %39, %cst_124 {dimension_numbers = #tpu.dot_dimension_numbers<[1], [0], [0], [1], [0, 0, 1, 1], [], []>} : vector<16x2048xbf16>, vector<2048x32xbf16>, vector<16x32xf32> -> vector<16x32xf32>
    %346 = vector.broadcast %41 : vector<1x32xf32> to vector<16x32xf32>
    %347 = arith.addf %345, %346 : vector<16x32xf32>
    %348 = vector.shape_cast %347 : vector<16x32xf32> to vector<2x8x32xf32>
    %349 = arith.addf %348, %336 : vector<2x8x32xf32>
    %cst_125 = arith.constant dense<0.000000e+00> : vector<2x8xf32>
    %350 = vector.multi_reduction <add>, %349, %cst_125 [2] : vector<2x8x32xf32> to vector<2x8xf32>
    %351 = vector.shape_cast %350 : vector<2x8xf32> to vector<2x8x1xf32>
    %cst_126 = arith.constant 3.200000e+01 : f32
    %352 = vector.broadcast %cst_126 : f32 to vector<2x8x1xf32>
    %353 = arith.divf %351, %352 : vector<2x8x1xf32>
    %354 = vector.broadcast %353 : vector<2x8x1xf32> to vector<2x8x32xf32>
    %355 = arith.subf %349, %354 : vector<2x8x32xf32>
    %356 = arith.mulf %355, %355 : vector<2x8x32xf32>
    %cst_127 = arith.constant dense<0.000000e+00> : vector<2x8xf32>
    %357 = vector.multi_reduction <add>, %356, %cst_127 [2] : vector<2x8x32xf32> to vector<2x8xf32>
    %358 = vector.shape_cast %357 : vector<2x8xf32> to vector<2x8x1xf32>
    %cst_128 = arith.constant 3.200000e+01 : f32
    %359 = vector.broadcast %cst_128 : f32 to vector<2x8x1xf32>
    %360 = arith.divf %358, %359 : vector<2x8x1xf32>
    %361 = vector.broadcast %353 : vector<2x8x1xf32> to vector<2x8x32xf32>
    %362 = arith.subf %349, %361 : vector<2x8x32xf32>
    %cst_129 = arith.constant 9.99999974E-6 : f32
    %363 = vector.broadcast %cst_129 : f32 to vector<2x8x1xf32>
    %364 = arith.addf %360, %363 : vector<2x8x1xf32>
    %365 = math.rsqrt %364 : vector<2x8x1xf32>
    %366 = vector.broadcast %365 : vector<2x8x1xf32> to vector<2x8x32xf32>
    %367 = arith.mulf %362, %366 : vector<2x8x32xf32>
    %368 = vector.shape_cast %43 : vector<1x32xf32> to vector<1x1x32xf32>
    %369 = vector.broadcast %368 : vector<1x1x32xf32> to vector<2x8x32xf32>
    %370 = arith.mulf %367, %369 : vector<2x8x32xf32>
    %371 = vector.shape_cast %45 : vector<1x32xf32> to vector<1x1x32xf32>
    %372 = vector.broadcast %371 : vector<1x1x32xf32> to vector<2x8x32xf32>
    %373 = arith.addf %370, %372 : vector<2x8x32xf32>
    %c1 = arith.constant 1 : index
    %c0_130 = arith.constant 0 : index
    %c0_131 = arith.constant 0 : index
    %374 = vector.load %arg3[%c1, %c0_130, %c0_131] : memref<2x32x96xbf16, #tpu.memory_space<vmem>>, vector<1x32x96xbf16>
    %375 = vector.shape_cast %374 : vector<1x32x96xbf16> to vector<32x96xbf16>
    %c1_132 = arith.constant 1 : index
    %c0_133 = arith.constant 0 : index
    %c0_134 = arith.constant 0 : index
    %376 = vector.load %arg4[%c1_132, %c0_133, %c0_134] : memref<2x32x32xbf16, #tpu.memory_space<vmem>>, vector<1x32x32xbf16>
    %377 = vector.shape_cast %376 : vector<1x32x32xbf16> to vector<32x32xbf16>
    %c1_135 = arith.constant 1 : index
    %c0_136 = arith.constant 0 : index
    %c0_137 = arith.constant 0 : index
    %378 = vector.load %arg5[%c1_135, %c0_136, %c0_137] : memref<2x1x32xf32, #tpu.memory_space<vmem>>, vector<1x1x32xf32>
    %379 = vector.shape_cast %378 : vector<1x1x32xf32> to vector<1x32xf32>
    %c1_138 = arith.constant 1 : index
    %c0_139 = arith.constant 0 : index
    %c0_140 = arith.constant 0 : index
    %380 = vector.load %arg6[%c1_138, %c0_139, %c0_140] : memref<2x1x32xf32, #tpu.memory_space<vmem>>, vector<1x1x32xf32>
    %381 = vector.shape_cast %380 : vector<1x1x32xf32> to vector<1x32xf32>
    %c1_141 = arith.constant 1 : index
    %c0_142 = arith.constant 0 : index
    %c0_143 = arith.constant 0 : index
    %382 = vector.load %arg7[%c1_141, %c0_142, %c0_143] : memref<2x1x32xf32, #tpu.memory_space<vmem>>, vector<1x1x32xf32>
    %383 = vector.shape_cast %382 : vector<1x1x32xf32> to vector<1x32xf32>
    %c1_144 = arith.constant 1 : index
    %c0_145 = arith.constant 0 : index
    %c0_146 = arith.constant 0 : index
    %384 = vector.load %arg8[%c1_144, %c0_145, %c0_146] : memref<2x32x32xbf16, #tpu.memory_space<vmem>>, vector<1x32x32xbf16>
    %385 = vector.shape_cast %384 : vector<1x32x32xbf16> to vector<32x32xbf16>
    %c1_147 = arith.constant 1 : index
    %c0_148 = arith.constant 0 : index
    %c0_149 = arith.constant 0 : index
    %386 = vector.load %arg9[%c1_147, %c0_148, %c0_149] : memref<2x32x64xbf16, #tpu.memory_space<vmem>>, vector<1x32x64xbf16>
    %387 = vector.shape_cast %386 : vector<1x32x64xbf16> to vector<32x64xbf16>
    %c1_150 = arith.constant 1 : index
    %c0_151 = arith.constant 0 : index
    %c0_152 = arith.constant 0 : index
    %388 = vector.load %arg10[%c1_150, %c0_151, %c0_152] : memref<2x32x32xbf16, #tpu.memory_space<vmem>>, vector<1x32x32xbf16>
    %389 = vector.shape_cast %388 : vector<1x32x32xbf16> to vector<32x32xbf16>
    %c1_153 = arith.constant 1 : index
    %c0_154 = arith.constant 0 : index
    %c0_155 = arith.constant 0 : index
    %390 = vector.load %arg11[%c1_153, %c0_154, %c0_155] : memref<2x1x32xf32, #tpu.memory_space<vmem>>, vector<1x1x32xf32>
    %391 = vector.shape_cast %390 : vector<1x1x32xf32> to vector<1x32xf32>
    %c1_156 = arith.constant 1 : index
    %c0_157 = arith.constant 0 : index
    %c0_158 = arith.constant 0 : index
    %392 = vector.load %arg12[%c1_156, %c0_157, %c0_158] : memref<2x1x32xf32, #tpu.memory_space<vmem>>, vector<1x1x32xf32>
    %393 = vector.shape_cast %392 : vector<1x1x32xf32> to vector<1x32xf32>
    %c1_159 = arith.constant 1 : index
    %c0_160 = arith.constant 0 : index
    %c0_161 = arith.constant 0 : index
    %394 = vector.load %arg13[%c1_159, %c0_160, %c0_161] : memref<2x1x32xf32, #tpu.memory_space<vmem>>, vector<1x1x32xf32>
    %395 = vector.shape_cast %394 : vector<1x1x32xf32> to vector<1x32xf32>
    %c1_162 = arith.constant 1 : index
    %c0_163 = arith.constant 0 : index
    %c0_164 = arith.constant 0 : index
    %396 = vector.load %arg14[%c1_162, %c0_163, %c0_164] : memref<2x32x2048xbf16, #tpu.memory_space<vmem>>, vector<1x32x2048xbf16>
    %397 = vector.shape_cast %396 : vector<1x32x2048xbf16> to vector<32x2048xbf16>
    %c1_165 = arith.constant 1 : index
    %c0_166 = arith.constant 0 : index
    %c0_167 = arith.constant 0 : index
    %398 = vector.load %arg15[%c1_165, %c0_166, %c0_167] : memref<2x1x2048xf32, #tpu.memory_space<vmem>>, vector<1x1x2048xf32>
    %399 = vector.shape_cast %398 : vector<1x1x2048xf32> to vector<1x2048xf32>
    %c1_168 = arith.constant 1 : index
    %c0_169 = arith.constant 0 : index
    %c0_170 = arith.constant 0 : index
    %400 = vector.load %arg16[%c1_168, %c0_169, %c0_170] : memref<2x2048x32xbf16, #tpu.memory_space<vmem>>, vector<1x2048x32xbf16>
    %401 = vector.shape_cast %400 : vector<1x2048x32xbf16> to vector<2048x32xbf16>
    %c1_171 = arith.constant 1 : index
    %c0_172 = arith.constant 0 : index
    %c0_173 = arith.constant 0 : index
    %402 = vector.load %arg17[%c1_171, %c0_172, %c0_173] : memref<2x1x32xf32, #tpu.memory_space<vmem>>, vector<1x1x32xf32>
    %403 = vector.shape_cast %402 : vector<1x1x32xf32> to vector<1x32xf32>
    %c1_174 = arith.constant 1 : index
    %c0_175 = arith.constant 0 : index
    %c0_176 = arith.constant 0 : index
    %404 = vector.load %arg18[%c1_174, %c0_175, %c0_176] : memref<2x1x32xf32, #tpu.memory_space<vmem>>, vector<1x1x32xf32>
    %405 = vector.shape_cast %404 : vector<1x1x32xf32> to vector<1x32xf32>
    %c1_177 = arith.constant 1 : index
    %c0_178 = arith.constant 0 : index
    %c0_179 = arith.constant 0 : index
    %406 = vector.load %arg19[%c1_177, %c0_178, %c0_179] : memref<2x1x32xf32, #tpu.memory_space<vmem>>, vector<1x1x32xf32>
    %407 = vector.shape_cast %406 : vector<1x1x32xf32> to vector<1x32xf32>
    %408 = vector.shape_cast %373 : vector<2x8x32xf32> to vector<16x32xf32>
    %409 = arith.truncf %408 : vector<16x32xf32> to vector<16x32xbf16>
    %cst_180 = arith.constant dense<0.000000e+00> : vector<16x96xf32>
    %410 = tpu.matmul %409, %375, %cst_180 {dimension_numbers = #tpu.dot_dimension_numbers<[1], [0], [0], [1], [0, 0, 1, 1], [], []>} : vector<16x32xbf16>, vector<32x96xbf16>, vector<16x96xf32> -> vector<16x96xf32>
    %411 = vector.shape_cast %410 : vector<16x96xf32> to vector<2x8x96xf32>
    %412 = vector.extract_strided_slice %411 {offsets = [0, 0, 0], sizes = [2, 8, 32], strides = [1, 1, 1]} : vector<2x8x96xf32> to vector<2x8x32xf32>
    %413 = vector.extract_strided_slice %411 {offsets = [0, 0, 32], sizes = [2, 8, 32], strides = [1, 1, 1]} : vector<2x8x96xf32> to vector<2x8x32xf32>
    %414 = vector.extract_strided_slice %411 {offsets = [0, 0, 64], sizes = [2, 8, 32], strides = [1, 1, 1]} : vector<2x8x96xf32> to vector<2x8x32xf32>
    %cst_181 = arith.constant 0.000000e+00 : f32
    %415 = vector.broadcast %cst_181 : f32 to vector<2x8x32xf32>
    %416 = vector.extract_strided_slice %412 {offsets = [0, 0, 0], sizes = [2, 8, 8], strides = [1, 1, 1]} : vector<2x8x32xf32> to vector<2x8x8xf32>
    %417 = vector.extract_strided_slice %413 {offsets = [0, 0, 0], sizes = [2, 8, 8], strides = [1, 1, 1]} : vector<2x8x32xf32> to vector<2x8x8xf32>
    %418 = arith.truncf %416 : vector<2x8x8xf32> to vector<2x8x8xbf16>
    %419 = arith.truncf %417 : vector<2x8x8xf32> to vector<2x8x8xbf16>
    "tpu.trace_start"() <{level = 10 : i32, message = "bqd,bkd->bqk"}> : () -> ()
    %cst_182 = arith.constant dense<0.000000e+00> : vector<2x8x8xf32>
    %420 = tpu.matmul %418, %419, %cst_182 {dimension_numbers = #tpu.dot_dimension_numbers<[2], [2], [1], [1], [0, 0, 0, 1, 1, 1], [0], [0]>} : vector<2x8x8xbf16>, vector<2x8x8xbf16>, vector<2x8x8xf32> -> vector<2x8x8xf32>
    "tpu.trace_stop"() : () -> ()
    %cst_183 = arith.constant 0.353553385 : f32
    %421 = vector.broadcast %cst_183 : f32 to vector<2x8x8xf32>
    %422 = arith.mulf %420, %421 : vector<2x8x8xf32>
    %423 = vector.shape_cast %11 : vector<8x8xf32> to vector<1x8x8xf32>
    %424 = vector.broadcast %423 : vector<1x8x8xf32> to vector<2x8x8xf32>
    %425 = arith.addf %422, %424 : vector<2x8x8xf32>
    %cst_184 = arith.constant dense<0xFF800000> : vector<2x8xf32>
    %426 = vector.multi_reduction <maximumf>, %425, %cst_184 [2] : vector<2x8x8xf32> to vector<2x8xf32>
    %427 = vector.shape_cast %426 : vector<2x8xf32> to vector<2x8x1xf32>
    %428 = vector.broadcast %427 : vector<2x8x1xf32> to vector<2x8x8xf32>
    %429 = arith.subf %425, %428 : vector<2x8x8xf32>
    %430 = math.exp %429 : vector<2x8x8xf32>
    %cst_185 = arith.constant dense<0.000000e+00> : vector<2x8xf32>
    %431 = vector.multi_reduction <add>, %430, %cst_185 [2] : vector<2x8x8xf32> to vector<2x8xf32>
    %432 = vector.shape_cast %431 : vector<2x8xf32> to vector<2x8x1xf32>
    %433 = vector.broadcast %432 : vector<2x8x1xf32> to vector<2x8x8xf32>
    %434 = arith.divf %430, %433 : vector<2x8x8xf32>
    %435 = vector.extract_strided_slice %414 {offsets = [0, 0, 0], sizes = [2, 8, 8], strides = [1, 1, 1]} : vector<2x8x32xf32> to vector<2x8x8xf32>
    %436 = arith.truncf %434 : vector<2x8x8xf32> to vector<2x8x8xbf16>
    %437 = arith.truncf %435 : vector<2x8x8xf32> to vector<2x8x8xbf16>
    "tpu.trace_start"() <{level = 10 : i32, message = "bqk,bkd->bqd"}> : () -> ()
    %cst_186 = arith.constant dense<0.000000e+00> : vector<2x8x8xf32>
    %438 = tpu.matmul %436, %437, %cst_186 {dimension_numbers = #tpu.dot_dimension_numbers<[2], [1], [1], [2], [0, 0, 0, 1, 1, 2], [0], [0]>} : vector<2x8x8xbf16>, vector<2x8x8xbf16>, vector<2x8x8xf32> -> vector<2x8x8xf32>
    "tpu.trace_stop"() : () -> ()
    %439 = vector.extract_strided_slice %377 {offsets = [0, 0], sizes = [8, 32], strides = [1, 1]} : vector<32x32xbf16> to vector<8x32xbf16>
    %440 = arith.truncf %438 : vector<2x8x8xf32> to vector<2x8x8xbf16>
    "tpu.trace_start"() <{level = 10 : i32, message = "bqd,de->bqe"}> : () -> ()
    %cst_187 = arith.constant dense<0.000000e+00> : vector<2x8x32xf32>
    %441 = tpu.matmul %440, %439, %cst_187 {dimension_numbers = #tpu.dot_dimension_numbers<[2], [0], [0, 1], [1], [0, 0, 0, 1, 1, 1], [], []>} : vector<2x8x8xbf16>, vector<8x32xbf16>, vector<2x8x32xf32> -> vector<2x8x32xf32>
    "tpu.trace_stop"() : () -> ()
    %442 = arith.addf %415, %441 : vector<2x8x32xf32>
    %443 = vector.extract_strided_slice %412 {offsets = [0, 0, 8], sizes = [2, 8, 8], strides = [1, 1, 1]} : vector<2x8x32xf32> to vector<2x8x8xf32>
    %444 = vector.extract_strided_slice %413 {offsets = [0, 0, 8], sizes = [2, 8, 8], strides = [1, 1, 1]} : vector<2x8x32xf32> to vector<2x8x8xf32>
    %445 = arith.truncf %443 : vector<2x8x8xf32> to vector<2x8x8xbf16>
    %446 = arith.truncf %444 : vector<2x8x8xf32> to vector<2x8x8xbf16>
    "tpu.trace_start"() <{level = 10 : i32, message = "bqd,bkd->bqk"}> : () -> ()
    %cst_188 = arith.constant dense<0.000000e+00> : vector<2x8x8xf32>
    %447 = tpu.matmul %445, %446, %cst_188 {dimension_numbers = #tpu.dot_dimension_numbers<[2], [2], [1], [1], [0, 0, 0, 1, 1, 1], [0], [0]>} : vector<2x8x8xbf16>, vector<2x8x8xbf16>, vector<2x8x8xf32> -> vector<2x8x8xf32>
    "tpu.trace_stop"() : () -> ()
    %cst_189 = arith.constant 0.353553385 : f32
    %448 = vector.broadcast %cst_189 : f32 to vector<2x8x8xf32>
    %449 = arith.mulf %447, %448 : vector<2x8x8xf32>
    %450 = vector.shape_cast %11 : vector<8x8xf32> to vector<1x8x8xf32>
    %451 = vector.broadcast %450 : vector<1x8x8xf32> to vector<2x8x8xf32>
    %452 = arith.addf %449, %451 : vector<2x8x8xf32>
    %cst_190 = arith.constant dense<0xFF800000> : vector<2x8xf32>
    %453 = vector.multi_reduction <maximumf>, %452, %cst_190 [2] : vector<2x8x8xf32> to vector<2x8xf32>
    %454 = vector.shape_cast %453 : vector<2x8xf32> to vector<2x8x1xf32>
    %455 = vector.broadcast %454 : vector<2x8x1xf32> to vector<2x8x8xf32>
    %456 = arith.subf %452, %455 : vector<2x8x8xf32>
    %457 = math.exp %456 : vector<2x8x8xf32>
    %cst_191 = arith.constant dense<0.000000e+00> : vector<2x8xf32>
    %458 = vector.multi_reduction <add>, %457, %cst_191 [2] : vector<2x8x8xf32> to vector<2x8xf32>
    %459 = vector.shape_cast %458 : vector<2x8xf32> to vector<2x8x1xf32>
    %460 = vector.broadcast %459 : vector<2x8x1xf32> to vector<2x8x8xf32>
    %461 = arith.divf %457, %460 : vector<2x8x8xf32>
    %462 = vector.extract_strided_slice %414 {offsets = [0, 0, 8], sizes = [2, 8, 8], strides = [1, 1, 1]} : vector<2x8x32xf32> to vector<2x8x8xf32>
    %463 = arith.truncf %461 : vector<2x8x8xf32> to vector<2x8x8xbf16>
    %464 = arith.truncf %462 : vector<2x8x8xf32> to vector<2x8x8xbf16>
    "tpu.trace_start"() <{level = 10 : i32, message = "bqk,bkd->bqd"}> : () -> ()
    %cst_192 = arith.constant dense<0.000000e+00> : vector<2x8x8xf32>
    %465 = tpu.matmul %463, %464, %cst_192 {dimension_numbers = #tpu.dot_dimension_numbers<[2], [1], [1], [2], [0, 0, 0, 1, 1, 2], [0], [0]>} : vector<2x8x8xbf16>, vector<2x8x8xbf16>, vector<2x8x8xf32> -> vector<2x8x8xf32>
    "tpu.trace_stop"() : () -> ()
    %466 = vector.extract_strided_slice %377 {offsets = [8, 0], sizes = [8, 32], strides = [1, 1]} : vector<32x32xbf16> to vector<8x32xbf16>
    %467 = arith.truncf %465 : vector<2x8x8xf32> to vector<2x8x8xbf16>
    "tpu.trace_start"() <{level = 10 : i32, message = "bqd,de->bqe"}> : () -> ()
    %cst_193 = arith.constant dense<0.000000e+00> : vector<2x8x32xf32>
    %468 = tpu.matmul %467, %466, %cst_193 {dimension_numbers = #tpu.dot_dimension_numbers<[2], [0], [0, 1], [1], [0, 0, 0, 1, 1, 1], [], []>} : vector<2x8x8xbf16>, vector<8x32xbf16>, vector<2x8x32xf32> -> vector<2x8x32xf32>
    "tpu.trace_stop"() : () -> ()
    %469 = arith.addf %442, %468 : vector<2x8x32xf32>
    %470 = vector.extract_strided_slice %412 {offsets = [0, 0, 16], sizes = [2, 8, 8], strides = [1, 1, 1]} : vector<2x8x32xf32> to vector<2x8x8xf32>
    %471 = vector.extract_strided_slice %413 {offsets = [0, 0, 16], sizes = [2, 8, 8], strides = [1, 1, 1]} : vector<2x8x32xf32> to vector<2x8x8xf32>
    %472 = arith.truncf %470 : vector<2x8x8xf32> to vector<2x8x8xbf16>
    %473 = arith.truncf %471 : vector<2x8x8xf32> to vector<2x8x8xbf16>
    "tpu.trace_start"() <{level = 10 : i32, message = "bqd,bkd->bqk"}> : () -> ()
    %cst_194 = arith.constant dense<0.000000e+00> : vector<2x8x8xf32>
    %474 = tpu.matmul %472, %473, %cst_194 {dimension_numbers = #tpu.dot_dimension_numbers<[2], [2], [1], [1], [0, 0, 0, 1, 1, 1], [0], [0]>} : vector<2x8x8xbf16>, vector<2x8x8xbf16>, vector<2x8x8xf32> -> vector<2x8x8xf32>
    "tpu.trace_stop"() : () -> ()
    %cst_195 = arith.constant 0.353553385 : f32
    %475 = vector.broadcast %cst_195 : f32 to vector<2x8x8xf32>
    %476 = arith.mulf %474, %475 : vector<2x8x8xf32>
    %477 = vector.shape_cast %11 : vector<8x8xf32> to vector<1x8x8xf32>
    %478 = vector.broadcast %477 : vector<1x8x8xf32> to vector<2x8x8xf32>
    %479 = arith.addf %476, %478 : vector<2x8x8xf32>
    %cst_196 = arith.constant dense<0xFF800000> : vector<2x8xf32>
    %480 = vector.multi_reduction <maximumf>, %479, %cst_196 [2] : vector<2x8x8xf32> to vector<2x8xf32>
    %481 = vector.shape_cast %480 : vector<2x8xf32> to vector<2x8x1xf32>
    %482 = vector.broadcast %481 : vector<2x8x1xf32> to vector<2x8x8xf32>
    %483 = arith.subf %479, %482 : vector<2x8x8xf32>
    %484 = math.exp %483 : vector<2x8x8xf32>
    %cst_197 = arith.constant dense<0.000000e+00> : vector<2x8xf32>
    %485 = vector.multi_reduction <add>, %484, %cst_197 [2] : vector<2x8x8xf32> to vector<2x8xf32>
    %486 = vector.shape_cast %485 : vector<2x8xf32> to vector<2x8x1xf32>
    %487 = vector.broadcast %486 : vector<2x8x1xf32> to vector<2x8x8xf32>
    %488 = arith.divf %484, %487 : vector<2x8x8xf32>
    %489 = vector.extract_strided_slice %414 {offsets = [0, 0, 16], sizes = [2, 8, 8], strides = [1, 1, 1]} : vector<2x8x32xf32> to vector<2x8x8xf32>
    %490 = arith.truncf %488 : vector<2x8x8xf32> to vector<2x8x8xbf16>
    %491 = arith.truncf %489 : vector<2x8x8xf32> to vector<2x8x8xbf16>
    "tpu.trace_start"() <{level = 10 : i32, message = "bqk,bkd->bqd"}> : () -> ()
    %cst_198 = arith.constant dense<0.000000e+00> : vector<2x8x8xf32>
    %492 = tpu.matmul %490, %491, %cst_198 {dimension_numbers = #tpu.dot_dimension_numbers<[2], [1], [1], [2], [0, 0, 0, 1, 1, 2], [0], [0]>} : vector<2x8x8xbf16>, vector<2x8x8xbf16>, vector<2x8x8xf32> -> vector<2x8x8xf32>
    "tpu.trace_stop"() : () -> ()
    %493 = vector.extract_strided_slice %377 {offsets = [16, 0], sizes = [8, 32], strides = [1, 1]} : vector<32x32xbf16> to vector<8x32xbf16>
    %494 = arith.truncf %492 : vector<2x8x8xf32> to vector<2x8x8xbf16>
    "tpu.trace_start"() <{level = 10 : i32, message = "bqd,de->bqe"}> : () -> ()
    %cst_199 = arith.constant dense<0.000000e+00> : vector<2x8x32xf32>
    %495 = tpu.matmul %494, %493, %cst_199 {dimension_numbers = #tpu.dot_dimension_numbers<[2], [0], [0, 1], [1], [0, 0, 0, 1, 1, 1], [], []>} : vector<2x8x8xbf16>, vector<8x32xbf16>, vector<2x8x32xf32> -> vector<2x8x32xf32>
    "tpu.trace_stop"() : () -> ()
    %496 = arith.addf %469, %495 : vector<2x8x32xf32>
    %497 = vector.extract_strided_slice %412 {offsets = [0, 0, 24], sizes = [2, 8, 8], strides = [1, 1, 1]} : vector<2x8x32xf32> to vector<2x8x8xf32>
    %498 = vector.extract_strided_slice %413 {offsets = [0, 0, 24], sizes = [2, 8, 8], strides = [1, 1, 1]} : vector<2x8x32xf32> to vector<2x8x8xf32>
    %499 = arith.truncf %497 : vector<2x8x8xf32> to vector<2x8x8xbf16>
    %500 = arith.truncf %498 : vector<2x8x8xf32> to vector<2x8x8xbf16>
    "tpu.trace_start"() <{level = 10 : i32, message = "bqd,bkd->bqk"}> : () -> ()
    %cst_200 = arith.constant dense<0.000000e+00> : vector<2x8x8xf32>
    %501 = tpu.matmul %499, %500, %cst_200 {dimension_numbers = #tpu.dot_dimension_numbers<[2], [2], [1], [1], [0, 0, 0, 1, 1, 1], [0], [0]>} : vector<2x8x8xbf16>, vector<2x8x8xbf16>, vector<2x8x8xf32> -> vector<2x8x8xf32>
    "tpu.trace_stop"() : () -> ()
    %cst_201 = arith.constant 0.353553385 : f32
    %502 = vector.broadcast %cst_201 : f32 to vector<2x8x8xf32>
    %503 = arith.mulf %501, %502 : vector<2x8x8xf32>
    %504 = vector.shape_cast %11 : vector<8x8xf32> to vector<1x8x8xf32>
    %505 = vector.broadcast %504 : vector<1x8x8xf32> to vector<2x8x8xf32>
    %506 = arith.addf %503, %505 : vector<2x8x8xf32>
    %cst_202 = arith.constant dense<0xFF800000> : vector<2x8xf32>
    %507 = vector.multi_reduction <maximumf>, %506, %cst_202 [2] : vector<2x8x8xf32> to vector<2x8xf32>
    %508 = vector.shape_cast %507 : vector<2x8xf32> to vector<2x8x1xf32>
    %509 = vector.broadcast %508 : vector<2x8x1xf32> to vector<2x8x8xf32>
    %510 = arith.subf %506, %509 : vector<2x8x8xf32>
    %511 = math.exp %510 : vector<2x8x8xf32>
    %cst_203 = arith.constant dense<0.000000e+00> : vector<2x8xf32>
    %512 = vector.multi_reduction <add>, %511, %cst_203 [2] : vector<2x8x8xf32> to vector<2x8xf32>
    %513 = vector.shape_cast %512 : vector<2x8xf32> to vector<2x8x1xf32>
    %514 = vector.broadcast %513 : vector<2x8x1xf32> to vector<2x8x8xf32>
    %515 = arith.divf %511, %514 : vector<2x8x8xf32>
    %516 = vector.extract_strided_slice %414 {offsets = [0, 0, 24], sizes = [2, 8, 8], strides = [1, 1, 1]} : vector<2x8x32xf32> to vector<2x8x8xf32>
    %517 = arith.truncf %515 : vector<2x8x8xf32> to vector<2x8x8xbf16>
    %518 = arith.truncf %516 : vector<2x8x8xf32> to vector<2x8x8xbf16>
    "tpu.trace_start"() <{level = 10 : i32, message = "bqk,bkd->bqd"}> : () -> ()
    %cst_204 = arith.constant dense<0.000000e+00> : vector<2x8x8xf32>
    %519 = tpu.matmul %517, %518, %cst_204 {dimension_numbers = #tpu.dot_dimension_numbers<[2], [1], [1], [2], [0, 0, 0, 1, 1, 2], [0], [0]>} : vector<2x8x8xbf16>, vector<2x8x8xbf16>, vector<2x8x8xf32> -> vector<2x8x8xf32>
    "tpu.trace_stop"() : () -> ()
    %520 = vector.extract_strided_slice %377 {offsets = [24, 0], sizes = [8, 32], strides = [1, 1]} : vector<32x32xbf16> to vector<8x32xbf16>
    %521 = arith.truncf %519 : vector<2x8x8xf32> to vector<2x8x8xbf16>
    "tpu.trace_start"() <{level = 10 : i32, message = "bqd,de->bqe"}> : () -> ()
    %cst_205 = arith.constant dense<0.000000e+00> : vector<2x8x32xf32>
    %522 = tpu.matmul %521, %520, %cst_205 {dimension_numbers = #tpu.dot_dimension_numbers<[2], [0], [0, 1], [1], [0, 0, 0, 1, 1, 1], [], []>} : vector<2x8x8xbf16>, vector<8x32xbf16>, vector<2x8x32xf32> -> vector<2x8x32xf32>
    "tpu.trace_stop"() : () -> ()
    %523 = arith.addf %496, %522 : vector<2x8x32xf32>
    %524 = vector.shape_cast %379 : vector<1x32xf32> to vector<1x1x32xf32>
    %525 = vector.broadcast %524 : vector<1x1x32xf32> to vector<2x8x32xf32>
    %526 = arith.addf %523, %525 : vector<2x8x32xf32>
    %527 = arith.addf %526, %373 : vector<2x8x32xf32>
    %cst_206 = arith.constant dense<0.000000e+00> : vector<2x8xf32>
    %528 = vector.multi_reduction <add>, %527, %cst_206 [2] : vector<2x8x32xf32> to vector<2x8xf32>
    %529 = vector.shape_cast %528 : vector<2x8xf32> to vector<2x8x1xf32>
    %cst_207 = arith.constant 3.200000e+01 : f32
    %530 = vector.broadcast %cst_207 : f32 to vector<2x8x1xf32>
    %531 = arith.divf %529, %530 : vector<2x8x1xf32>
    %532 = vector.broadcast %531 : vector<2x8x1xf32> to vector<2x8x32xf32>
    %533 = arith.subf %527, %532 : vector<2x8x32xf32>
    %534 = arith.mulf %533, %533 : vector<2x8x32xf32>
    %cst_208 = arith.constant dense<0.000000e+00> : vector<2x8xf32>
    %535 = vector.multi_reduction <add>, %534, %cst_208 [2] : vector<2x8x32xf32> to vector<2x8xf32>
    %536 = vector.shape_cast %535 : vector<2x8xf32> to vector<2x8x1xf32>
    %cst_209 = arith.constant 3.200000e+01 : f32
    %537 = vector.broadcast %cst_209 : f32 to vector<2x8x1xf32>
    %538 = arith.divf %536, %537 : vector<2x8x1xf32>
    %539 = vector.broadcast %531 : vector<2x8x1xf32> to vector<2x8x32xf32>
    %540 = arith.subf %527, %539 : vector<2x8x32xf32>
    %cst_210 = arith.constant 9.99999974E-6 : f32
    %541 = vector.broadcast %cst_210 : f32 to vector<2x8x1xf32>
    %542 = arith.addf %538, %541 : vector<2x8x1xf32>
    %543 = math.rsqrt %542 : vector<2x8x1xf32>
    %544 = vector.broadcast %543 : vector<2x8x1xf32> to vector<2x8x32xf32>
    %545 = arith.mulf %540, %544 : vector<2x8x32xf32>
    %546 = vector.shape_cast %381 : vector<1x32xf32> to vector<1x1x32xf32>
    %547 = vector.broadcast %546 : vector<1x1x32xf32> to vector<2x8x32xf32>
    %548 = arith.mulf %545, %547 : vector<2x8x32xf32>
    %549 = vector.shape_cast %383 : vector<1x32xf32> to vector<1x1x32xf32>
    %550 = vector.broadcast %549 : vector<1x1x32xf32> to vector<2x8x32xf32>
    %551 = arith.addf %548, %550 : vector<2x8x32xf32>
    %552 = vector.shape_cast %551 : vector<2x8x32xf32> to vector<16x32xf32>
    %553 = arith.truncf %552 : vector<16x32xf32> to vector<16x32xbf16>
    %cst_211 = arith.constant dense<0.000000e+00> : vector<16x32xf32>
    %554 = tpu.matmul %553, %385, %cst_211 {dimension_numbers = #tpu.dot_dimension_numbers<[1], [0], [0], [1], [0, 0, 1, 1], [], []>} : vector<16x32xbf16>, vector<32x32xbf16>, vector<16x32xf32> -> vector<16x32xf32>
    %555 = vector.shape_cast %554 : vector<16x32xf32> to vector<2x8x32xf32>
    %556 = vector.shape_cast %5 : vector<2x8x32xf32> to vector<16x32xf32>
    %557 = arith.truncf %556 : vector<16x32xf32> to vector<16x32xbf16>
    %cst_212 = arith.constant dense<0.000000e+00> : vector<16x64xf32>
    %558 = tpu.matmul %557, %387, %cst_212 {dimension_numbers = #tpu.dot_dimension_numbers<[1], [0], [0], [1], [0, 0, 1, 1], [], []>} : vector<16x32xbf16>, vector<32x64xbf16>, vector<16x64xf32> -> vector<16x64xf32>
    %559 = vector.shape_cast %558 : vector<16x64xf32> to vector<2x8x64xf32>
    %560 = vector.extract_strided_slice %559 {offsets = [0, 0, 0], sizes = [2, 8, 32], strides = [1, 1, 1]} : vector<2x8x64xf32> to vector<2x8x32xf32>
    %561 = vector.extract_strided_slice %559 {offsets = [0, 0, 32], sizes = [2, 8, 32], strides = [1, 1, 1]} : vector<2x8x64xf32> to vector<2x8x32xf32>
    %cst_213 = arith.constant 0.000000e+00 : f32
    %562 = vector.broadcast %cst_213 : f32 to vector<2x8x32xf32>
    %563 = vector.extract_strided_slice %555 {offsets = [0, 0, 0], sizes = [2, 8, 8], strides = [1, 1, 1]} : vector<2x8x32xf32> to vector<2x8x8xf32>
    %564 = vector.extract_strided_slice %560 {offsets = [0, 0, 0], sizes = [2, 8, 8], strides = [1, 1, 1]} : vector<2x8x32xf32> to vector<2x8x8xf32>
    %565 = arith.truncf %563 : vector<2x8x8xf32> to vector<2x8x8xbf16>
    %566 = arith.truncf %564 : vector<2x8x8xf32> to vector<2x8x8xbf16>
    "tpu.trace_start"() <{level = 10 : i32, message = "bqd,bkd->bqk"}> : () -> ()
    %cst_214 = arith.constant dense<0.000000e+00> : vector<2x8x8xf32>
    %567 = tpu.matmul %565, %566, %cst_214 {dimension_numbers = #tpu.dot_dimension_numbers<[2], [2], [1], [1], [0, 0, 0, 1, 1, 1], [0], [0]>} : vector<2x8x8xbf16>, vector<2x8x8xbf16>, vector<2x8x8xf32> -> vector<2x8x8xf32>
    "tpu.trace_stop"() : () -> ()
    %cst_215 = arith.constant 0.353553385 : f32
    %568 = vector.broadcast %cst_215 : f32 to vector<2x8x8xf32>
    %569 = arith.mulf %567, %568 : vector<2x8x8xf32>
    %570 = vector.shape_cast %11 : vector<8x8xf32> to vector<1x8x8xf32>
    %571 = vector.broadcast %570 : vector<1x8x8xf32> to vector<2x8x8xf32>
    %572 = arith.addf %569, %571 : vector<2x8x8xf32>
    %cst_216 = arith.constant dense<0xFF800000> : vector<2x8xf32>
    %573 = vector.multi_reduction <maximumf>, %572, %cst_216 [2] : vector<2x8x8xf32> to vector<2x8xf32>
    %574 = vector.shape_cast %573 : vector<2x8xf32> to vector<2x8x1xf32>
    %575 = vector.broadcast %574 : vector<2x8x1xf32> to vector<2x8x8xf32>
    %576 = arith.subf %572, %575 : vector<2x8x8xf32>
    %577 = math.exp %576 : vector<2x8x8xf32>
    %cst_217 = arith.constant dense<0.000000e+00> : vector<2x8xf32>
    %578 = vector.multi_reduction <add>, %577, %cst_217 [2] : vector<2x8x8xf32> to vector<2x8xf32>
    %579 = vector.shape_cast %578 : vector<2x8xf32> to vector<2x8x1xf32>
    %580 = vector.broadcast %579 : vector<2x8x1xf32> to vector<2x8x8xf32>
    %581 = arith.divf %577, %580 : vector<2x8x8xf32>
    %582 = vector.extract_strided_slice %561 {offsets = [0, 0, 0], sizes = [2, 8, 8], strides = [1, 1, 1]} : vector<2x8x32xf32> to vector<2x8x8xf32>
    %583 = arith.truncf %581 : vector<2x8x8xf32> to vector<2x8x8xbf16>
    %584 = arith.truncf %582 : vector<2x8x8xf32> to vector<2x8x8xbf16>
    "tpu.trace_start"() <{level = 10 : i32, message = "bqk,bkd->bqd"}> : () -> ()
    %cst_218 = arith.constant dense<0.000000e+00> : vector<2x8x8xf32>
    %585 = tpu.matmul %583, %584, %cst_218 {dimension_numbers = #tpu.dot_dimension_numbers<[2], [1], [1], [2], [0, 0, 0, 1, 1, 2], [0], [0]>} : vector<2x8x8xbf16>, vector<2x8x8xbf16>, vector<2x8x8xf32> -> vector<2x8x8xf32>
    "tpu.trace_stop"() : () -> ()
    %586 = vector.extract_strided_slice %389 {offsets = [0, 0], sizes = [8, 32], strides = [1, 1]} : vector<32x32xbf16> to vector<8x32xbf16>
    %587 = arith.truncf %585 : vector<2x8x8xf32> to vector<2x8x8xbf16>
    "tpu.trace_start"() <{level = 10 : i32, message = "bqd,de->bqe"}> : () -> ()
    %cst_219 = arith.constant dense<0.000000e+00> : vector<2x8x32xf32>
    %588 = tpu.matmul %587, %586, %cst_219 {dimension_numbers = #tpu.dot_dimension_numbers<[2], [0], [0, 1], [1], [0, 0, 0, 1, 1, 1], [], []>} : vector<2x8x8xbf16>, vector<8x32xbf16>, vector<2x8x32xf32> -> vector<2x8x32xf32>
    "tpu.trace_stop"() : () -> ()
    %589 = arith.addf %562, %588 : vector<2x8x32xf32>
    %590 = vector.extract_strided_slice %555 {offsets = [0, 0, 8], sizes = [2, 8, 8], strides = [1, 1, 1]} : vector<2x8x32xf32> to vector<2x8x8xf32>
    %591 = vector.extract_strided_slice %560 {offsets = [0, 0, 8], sizes = [2, 8, 8], strides = [1, 1, 1]} : vector<2x8x32xf32> to vector<2x8x8xf32>
    %592 = arith.truncf %590 : vector<2x8x8xf32> to vector<2x8x8xbf16>
    %593 = arith.truncf %591 : vector<2x8x8xf32> to vector<2x8x8xbf16>
    "tpu.trace_start"() <{level = 10 : i32, message = "bqd,bkd->bqk"}> : () -> ()
    %cst_220 = arith.constant dense<0.000000e+00> : vector<2x8x8xf32>
    %594 = tpu.matmul %592, %593, %cst_220 {dimension_numbers = #tpu.dot_dimension_numbers<[2], [2], [1], [1], [0, 0, 0, 1, 1, 1], [0], [0]>} : vector<2x8x8xbf16>, vector<2x8x8xbf16>, vector<2x8x8xf32> -> vector<2x8x8xf32>
    "tpu.trace_stop"() : () -> ()
    %cst_221 = arith.constant 0.353553385 : f32
    %595 = vector.broadcast %cst_221 : f32 to vector<2x8x8xf32>
    %596 = arith.mulf %594, %595 : vector<2x8x8xf32>
    %597 = vector.shape_cast %11 : vector<8x8xf32> to vector<1x8x8xf32>
    %598 = vector.broadcast %597 : vector<1x8x8xf32> to vector<2x8x8xf32>
    %599 = arith.addf %596, %598 : vector<2x8x8xf32>
    %cst_222 = arith.constant dense<0xFF800000> : vector<2x8xf32>
    %600 = vector.multi_reduction <maximumf>, %599, %cst_222 [2] : vector<2x8x8xf32> to vector<2x8xf32>
    %601 = vector.shape_cast %600 : vector<2x8xf32> to vector<2x8x1xf32>
    %602 = vector.broadcast %601 : vector<2x8x1xf32> to vector<2x8x8xf32>
    %603 = arith.subf %599, %602 : vector<2x8x8xf32>
    %604 = math.exp %603 : vector<2x8x8xf32>
    %cst_223 = arith.constant dense<0.000000e+00> : vector<2x8xf32>
    %605 = vector.multi_reduction <add>, %604, %cst_223 [2] : vector<2x8x8xf32> to vector<2x8xf32>
    %606 = vector.shape_cast %605 : vector<2x8xf32> to vector<2x8x1xf32>
    %607 = vector.broadcast %606 : vector<2x8x1xf32> to vector<2x8x8xf32>
    %608 = arith.divf %604, %607 : vector<2x8x8xf32>
    %609 = vector.extract_strided_slice %561 {offsets = [0, 0, 8], sizes = [2, 8, 8], strides = [1, 1, 1]} : vector<2x8x32xf32> to vector<2x8x8xf32>
    %610 = arith.truncf %608 : vector<2x8x8xf32> to vector<2x8x8xbf16>
    %611 = arith.truncf %609 : vector<2x8x8xf32> to vector<2x8x8xbf16>
    "tpu.trace_start"() <{level = 10 : i32, message = "bqk,bkd->bqd"}> : () -> ()
    %cst_224 = arith.constant dense<0.000000e+00> : vector<2x8x8xf32>
    %612 = tpu.matmul %610, %611, %cst_224 {dimension_numbers = #tpu.dot_dimension_numbers<[2], [1], [1], [2], [0, 0, 0, 1, 1, 2], [0], [0]>} : vector<2x8x8xbf16>, vector<2x8x8xbf16>, vector<2x8x8xf32> -> vector<2x8x8xf32>
    "tpu.trace_stop"() : () -> ()
    %613 = vector.extract_strided_slice %389 {offsets = [8, 0], sizes = [8, 32], strides = [1, 1]} : vector<32x32xbf16> to vector<8x32xbf16>
    %614 = arith.truncf %612 : vector<2x8x8xf32> to vector<2x8x8xbf16>
    "tpu.trace_start"() <{level = 10 : i32, message = "bqd,de->bqe"}> : () -> ()
    %cst_225 = arith.constant dense<0.000000e+00> : vector<2x8x32xf32>
    %615 = tpu.matmul %614, %613, %cst_225 {dimension_numbers = #tpu.dot_dimension_numbers<[2], [0], [0, 1], [1], [0, 0, 0, 1, 1, 1], [], []>} : vector<2x8x8xbf16>, vector<8x32xbf16>, vector<2x8x32xf32> -> vector<2x8x32xf32>
    "tpu.trace_stop"() : () -> ()
    %616 = arith.addf %589, %615 : vector<2x8x32xf32>
    %617 = vector.extract_strided_slice %555 {offsets = [0, 0, 16], sizes = [2, 8, 8], strides = [1, 1, 1]} : vector<2x8x32xf32> to vector<2x8x8xf32>
    %618 = vector.extract_strided_slice %560 {offsets = [0, 0, 16], sizes = [2, 8, 8], strides = [1, 1, 1]} : vector<2x8x32xf32> to vector<2x8x8xf32>
    %619 = arith.truncf %617 : vector<2x8x8xf32> to vector<2x8x8xbf16>
    %620 = arith.truncf %618 : vector<2x8x8xf32> to vector<2x8x8xbf16>
    "tpu.trace_start"() <{level = 10 : i32, message = "bqd,bkd->bqk"}> : () -> ()
    %cst_226 = arith.constant dense<0.000000e+00> : vector<2x8x8xf32>
    %621 = tpu.matmul %619, %620, %cst_226 {dimension_numbers = #tpu.dot_dimension_numbers<[2], [2], [1], [1], [0, 0, 0, 1, 1, 1], [0], [0]>} : vector<2x8x8xbf16>, vector<2x8x8xbf16>, vector<2x8x8xf32> -> vector<2x8x8xf32>
    "tpu.trace_stop"() : () -> ()
    %cst_227 = arith.constant 0.353553385 : f32
    %622 = vector.broadcast %cst_227 : f32 to vector<2x8x8xf32>
    %623 = arith.mulf %621, %622 : vector<2x8x8xf32>
    %624 = vector.shape_cast %11 : vector<8x8xf32> to vector<1x8x8xf32>
    %625 = vector.broadcast %624 : vector<1x8x8xf32> to vector<2x8x8xf32>
    %626 = arith.addf %623, %625 : vector<2x8x8xf32>
    %cst_228 = arith.constant dense<0xFF800000> : vector<2x8xf32>
    %627 = vector.multi_reduction <maximumf>, %626, %cst_228 [2] : vector<2x8x8xf32> to vector<2x8xf32>
    %628 = vector.shape_cast %627 : vector<2x8xf32> to vector<2x8x1xf32>
    %629 = vector.broadcast %628 : vector<2x8x1xf32> to vector<2x8x8xf32>
    %630 = arith.subf %626, %629 : vector<2x8x8xf32>
    %631 = math.exp %630 : vector<2x8x8xf32>
    %cst_229 = arith.constant dense<0.000000e+00> : vector<2x8xf32>
    %632 = vector.multi_reduction <add>, %631, %cst_229 [2] : vector<2x8x8xf32> to vector<2x8xf32>
    %633 = vector.shape_cast %632 : vector<2x8xf32> to vector<2x8x1xf32>
    %634 = vector.broadcast %633 : vector<2x8x1xf32> to vector<2x8x8xf32>
    %635 = arith.divf %631, %634 : vector<2x8x8xf32>
    %636 = vector.extract_strided_slice %561 {offsets = [0, 0, 16], sizes = [2, 8, 8], strides = [1, 1, 1]} : vector<2x8x32xf32> to vector<2x8x8xf32>
    %637 = arith.truncf %635 : vector<2x8x8xf32> to vector<2x8x8xbf16>
    %638 = arith.truncf %636 : vector<2x8x8xf32> to vector<2x8x8xbf16>
    "tpu.trace_start"() <{level = 10 : i32, message = "bqk,bkd->bqd"}> : () -> ()
    %cst_230 = arith.constant dense<0.000000e+00> : vector<2x8x8xf32>
    %639 = tpu.matmul %637, %638, %cst_230 {dimension_numbers = #tpu.dot_dimension_numbers<[2], [1], [1], [2], [0, 0, 0, 1, 1, 2], [0], [0]>} : vector<2x8x8xbf16>, vector<2x8x8xbf16>, vector<2x8x8xf32> -> vector<2x8x8xf32>
    "tpu.trace_stop"() : () -> ()
    %640 = vector.extract_strided_slice %389 {offsets = [16, 0], sizes = [8, 32], strides = [1, 1]} : vector<32x32xbf16> to vector<8x32xbf16>
    %641 = arith.truncf %639 : vector<2x8x8xf32> to vector<2x8x8xbf16>
    "tpu.trace_start"() <{level = 10 : i32, message = "bqd,de->bqe"}> : () -> ()
    %cst_231 = arith.constant dense<0.000000e+00> : vector<2x8x32xf32>
    %642 = tpu.matmul %641, %640, %cst_231 {dimension_numbers = #tpu.dot_dimension_numbers<[2], [0], [0, 1], [1], [0, 0, 0, 1, 1, 1], [], []>} : vector<2x8x8xbf16>, vector<8x32xbf16>, vector<2x8x32xf32> -> vector<2x8x32xf32>
    "tpu.trace_stop"() : () -> ()
    %643 = arith.addf %616, %642 : vector<2x8x32xf32>
    %644 = vector.extract_strided_slice %555 {offsets = [0, 0, 24], sizes = [2, 8, 8], strides = [1, 1, 1]} : vector<2x8x32xf32> to vector<2x8x8xf32>
    %645 = vector.extract_strided_slice %560 {offsets = [0, 0, 24], sizes = [2, 8, 8], strides = [1, 1, 1]} : vector<2x8x32xf32> to vector<2x8x8xf32>
    %646 = arith.truncf %644 : vector<2x8x8xf32> to vector<2x8x8xbf16>
    %647 = arith.truncf %645 : vector<2x8x8xf32> to vector<2x8x8xbf16>
    "tpu.trace_start"() <{level = 10 : i32, message = "bqd,bkd->bqk"}> : () -> ()
    %cst_232 = arith.constant dense<0.000000e+00> : vector<2x8x8xf32>
    %648 = tpu.matmul %646, %647, %cst_232 {dimension_numbers = #tpu.dot_dimension_numbers<[2], [2], [1], [1], [0, 0, 0, 1, 1, 1], [0], [0]>} : vector<2x8x8xbf16>, vector<2x8x8xbf16>, vector<2x8x8xf32> -> vector<2x8x8xf32>
    "tpu.trace_stop"() : () -> ()
    %cst_233 = arith.constant 0.353553385 : f32
    %649 = vector.broadcast %cst_233 : f32 to vector<2x8x8xf32>
    %650 = arith.mulf %648, %649 : vector<2x8x8xf32>
    %651 = vector.shape_cast %11 : vector<8x8xf32> to vector<1x8x8xf32>
    %652 = vector.broadcast %651 : vector<1x8x8xf32> to vector<2x8x8xf32>
    %653 = arith.addf %650, %652 : vector<2x8x8xf32>
    %cst_234 = arith.constant dense<0xFF800000> : vector<2x8xf32>
    %654 = vector.multi_reduction <maximumf>, %653, %cst_234 [2] : vector<2x8x8xf32> to vector<2x8xf32>
    %655 = vector.shape_cast %654 : vector<2x8xf32> to vector<2x8x1xf32>
    %656 = vector.broadcast %655 : vector<2x8x1xf32> to vector<2x8x8xf32>
    %657 = arith.subf %653, %656 : vector<2x8x8xf32>
    %658 = math.exp %657 : vector<2x8x8xf32>
    %cst_235 = arith.constant dense<0.000000e+00> : vector<2x8xf32>
    %659 = vector.multi_reduction <add>, %658, %cst_235 [2] : vector<2x8x8xf32> to vector<2x8xf32>
    %660 = vector.shape_cast %659 : vector<2x8xf32> to vector<2x8x1xf32>
    %661 = vector.broadcast %660 : vector<2x8x1xf32> to vector<2x8x8xf32>
    %662 = arith.divf %658, %661 : vector<2x8x8xf32>
    %663 = vector.extract_strided_slice %561 {offsets = [0, 0, 24], sizes = [2, 8, 8], strides = [1, 1, 1]} : vector<2x8x32xf32> to vector<2x8x8xf32>
    %664 = arith.truncf %662 : vector<2x8x8xf32> to vector<2x8x8xbf16>
    %665 = arith.truncf %663 : vector<2x8x8xf32> to vector<2x8x8xbf16>
    "tpu.trace_start"() <{level = 10 : i32, message = "bqk,bkd->bqd"}> : () -> ()
    %cst_236 = arith.constant dense<0.000000e+00> : vector<2x8x8xf32>
    %666 = tpu.matmul %664, %665, %cst_236 {dimension_numbers = #tpu.dot_dimension_numbers<[2], [1], [1], [2], [0, 0, 0, 1, 1, 2], [0], [0]>} : vector<2x8x8xbf16>, vector<2x8x8xbf16>, vector<2x8x8xf32> -> vector<2x8x8xf32>
    "tpu.trace_stop"() : () -> ()
    %667 = vector.extract_strided_slice %389 {offsets = [24, 0], sizes = [8, 32], strides = [1, 1]} : vector<32x32xbf16> to vector<8x32xbf16>
    %668 = arith.truncf %666 : vector<2x8x8xf32> to vector<2x8x8xbf16>
    "tpu.trace_start"() <{level = 10 : i32, message = "bqd,de->bqe"}> : () -> ()
    %cst_237 = arith.constant dense<0.000000e+00> : vector<2x8x32xf32>
    %669 = tpu.matmul %668, %667, %cst_237 {dimension_numbers = #tpu.dot_dimension_numbers<[2], [0], [0, 1], [1], [0, 0, 0, 1, 1, 1], [], []>} : vector<2x8x8xbf16>, vector<8x32xbf16>, vector<2x8x32xf32> -> vector<2x8x32xf32>
    "tpu.trace_stop"() : () -> ()
    %670 = arith.addf %643, %669 : vector<2x8x32xf32>
    %671 = vector.shape_cast %391 : vector<1x32xf32> to vector<1x1x32xf32>
    %672 = vector.broadcast %671 : vector<1x1x32xf32> to vector<2x8x32xf32>
    %673 = arith.addf %670, %672 : vector<2x8x32xf32>
    %674 = arith.addf %673, %551 : vector<2x8x32xf32>
    %cst_238 = arith.constant dense<0.000000e+00> : vector<2x8xf32>
    %675 = vector.multi_reduction <add>, %674, %cst_238 [2] : vector<2x8x32xf32> to vector<2x8xf32>
    %676 = vector.shape_cast %675 : vector<2x8xf32> to vector<2x8x1xf32>
    %cst_239 = arith.constant 3.200000e+01 : f32
    %677 = vector.broadcast %cst_239 : f32 to vector<2x8x1xf32>
    %678 = arith.divf %676, %677 : vector<2x8x1xf32>
    %679 = vector.broadcast %678 : vector<2x8x1xf32> to vector<2x8x32xf32>
    %680 = arith.subf %674, %679 : vector<2x8x32xf32>
    %681 = arith.mulf %680, %680 : vector<2x8x32xf32>
    %cst_240 = arith.constant dense<0.000000e+00> : vector<2x8xf32>
    %682 = vector.multi_reduction <add>, %681, %cst_240 [2] : vector<2x8x32xf32> to vector<2x8xf32>
    %683 = vector.shape_cast %682 : vector<2x8xf32> to vector<2x8x1xf32>
    %cst_241 = arith.constant 3.200000e+01 : f32
    %684 = vector.broadcast %cst_241 : f32 to vector<2x8x1xf32>
    %685 = arith.divf %683, %684 : vector<2x8x1xf32>
    %686 = vector.broadcast %678 : vector<2x8x1xf32> to vector<2x8x32xf32>
    %687 = arith.subf %674, %686 : vector<2x8x32xf32>
    %cst_242 = arith.constant 9.99999974E-6 : f32
    %688 = vector.broadcast %cst_242 : f32 to vector<2x8x1xf32>
    %689 = arith.addf %685, %688 : vector<2x8x1xf32>
    %690 = math.rsqrt %689 : vector<2x8x1xf32>
    %691 = vector.broadcast %690 : vector<2x8x1xf32> to vector<2x8x32xf32>
    %692 = arith.mulf %687, %691 : vector<2x8x32xf32>
    %693 = vector.shape_cast %393 : vector<1x32xf32> to vector<1x1x32xf32>
    %694 = vector.broadcast %693 : vector<1x1x32xf32> to vector<2x8x32xf32>
    %695 = arith.mulf %692, %694 : vector<2x8x32xf32>
    %696 = vector.shape_cast %395 : vector<1x32xf32> to vector<1x1x32xf32>
    %697 = vector.broadcast %696 : vector<1x1x32xf32> to vector<2x8x32xf32>
    %698 = arith.addf %695, %697 : vector<2x8x32xf32>
    %699 = vector.shape_cast %698 : vector<2x8x32xf32> to vector<16x32xf32>
    %700 = arith.truncf %699 : vector<16x32xf32> to vector<16x32xbf16>
    %cst_243 = arith.constant dense<0.000000e+00> : vector<16x2048xf32>
    %701 = tpu.matmul %700, %397, %cst_243 {dimension_numbers = #tpu.dot_dimension_numbers<[1], [0], [0], [1], [0, 0, 1, 1], [], []>} : vector<16x32xbf16>, vector<32x2048xbf16>, vector<16x2048xf32> -> vector<16x2048xf32>
    %702 = vector.broadcast %399 : vector<1x2048xf32> to vector<16x2048xf32>
    %703 = arith.addf %701, %702 : vector<16x2048xf32>
    %cst_244 = arith.constant 0.000000e+00 : f32
    %704 = vector.broadcast %cst_244 : f32 to vector<16x2048xf32>
    %705 = arith.maximumf %703, %704 : vector<16x2048xf32>
    %706 = arith.truncf %705 : vector<16x2048xf32> to vector<16x2048xbf16>
    %cst_245 = arith.constant dense<0.000000e+00> : vector<16x32xf32>
    %707 = tpu.matmul %706, %401, %cst_245 {dimension_numbers = #tpu.dot_dimension_numbers<[1], [0], [0], [1], [0, 0, 1, 1], [], []>} : vector<16x2048xbf16>, vector<2048x32xbf16>, vector<16x32xf32> -> vector<16x32xf32>
    %708 = vector.broadcast %403 : vector<1x32xf32> to vector<16x32xf32>
    %709 = arith.addf %707, %708 : vector<16x32xf32>
    %710 = vector.shape_cast %709 : vector<16x32xf32> to vector<2x8x32xf32>
    %711 = arith.addf %710, %698 : vector<2x8x32xf32>
    %cst_246 = arith.constant dense<0.000000e+00> : vector<2x8xf32>
    %712 = vector.multi_reduction <add>, %711, %cst_246 [2] : vector<2x8x32xf32> to vector<2x8xf32>
    %713 = vector.shape_cast %712 : vector<2x8xf32> to vector<2x8x1xf32>
    %cst_247 = arith.constant 3.200000e+01 : f32
    %714 = vector.broadcast %cst_247 : f32 to vector<2x8x1xf32>
    %715 = arith.divf %713, %714 : vector<2x8x1xf32>
    %716 = vector.broadcast %715 : vector<2x8x1xf32> to vector<2x8x32xf32>
    %717 = arith.subf %711, %716 : vector<2x8x32xf32>
    %718 = arith.mulf %717, %717 : vector<2x8x32xf32>
    %cst_248 = arith.constant dense<0.000000e+00> : vector<2x8xf32>
    %719 = vector.multi_reduction <add>, %718, %cst_248 [2] : vector<2x8x32xf32> to vector<2x8xf32>
    %720 = vector.shape_cast %719 : vector<2x8xf32> to vector<2x8x1xf32>
    %cst_249 = arith.constant 3.200000e+01 : f32
    %721 = vector.broadcast %cst_249 : f32 to vector<2x8x1xf32>
    %722 = arith.divf %720, %721 : vector<2x8x1xf32>
    %723 = vector.broadcast %715 : vector<2x8x1xf32> to vector<2x8x32xf32>
    %724 = arith.subf %711, %723 : vector<2x8x32xf32>
    %cst_250 = arith.constant 9.99999974E-6 : f32
    %725 = vector.broadcast %cst_250 : f32 to vector<2x8x1xf32>
    %726 = arith.addf %722, %725 : vector<2x8x1xf32>
    %727 = math.rsqrt %726 : vector<2x8x1xf32>
    %728 = vector.broadcast %727 : vector<2x8x1xf32> to vector<2x8x32xf32>
    %729 = arith.mulf %724, %728 : vector<2x8x32xf32>
    %730 = vector.shape_cast %405 : vector<1x32xf32> to vector<1x1x32xf32>
    %731 = vector.broadcast %730 : vector<1x1x32xf32> to vector<2x8x32xf32>
    %732 = arith.mulf %729, %731 : vector<2x8x32xf32>
    %733 = vector.shape_cast %407 : vector<1x32xf32> to vector<1x1x32xf32>
    %734 = vector.broadcast %733 : vector<1x1x32xf32> to vector<2x8x32xf32>
    %735 = arith.addf %732, %734 : vector<2x8x32xf32>
    %c0_251 = arith.constant 0 : index
    %c0_252 = arith.constant 0 : index
    %c0_253 = arith.constant 0 : index
    %736 = vector.load %arg20[%c0_251, %c0_252, %c0_253] : memref<2x8x32xf32, #tpu.memory_space<vmem>>, vector<2x8x32xf32>
    tpu.vector_store %arg20[%c0_251, %c0_252, %c0_253], %735 {strides = array<i32>} : memref<2x8x32xf32, #tpu.memory_space<vmem>>, vector<2x8x32xf32>,
    return
  }
}

</mosaic_0001>

<llo_original>
// kernel: tpu_custom_call.1
$region0: #{tpu_custom_call.1}
  #allocation0 [shape = 'u32[]', space=smem, size = 0x4, offset = 0x4, fixed_abs, tag = 'smem constant byte address 0x4 - core index']
  #allocation1 [shape = 'u32[144,128]{1,0:T(1,128)}', space=vmem, size = 0x12000, scoped, tag = 'internal scratch']
  %s0 = inlined_call_operand.vmem [shape: f32[2,8,32], index: 0, kind: input, shape index: {}]
  %s1 = inlined_call_operand.vmem [shape: f32[2,8,32], index: 1, kind: input, shape index: {}]
  %s2 = inlined_call_operand.vmem [shape: f32[8,32], index: 2, kind: input, shape index: {}]
  %s3 = inlined_call_operand.vmem [shape: bf16[2,32,96], index: 3, kind: input, shape index: {}]
  %s4 = inlined_call_operand.vmem [shape: bf16[2,32,32], index: 4, kind: input, shape index: {}]
  %s5 = inlined_call_operand.vmem [shape: f32[2,1,32], index: 5, kind: input, shape index: {}]
  %s6 = inlined_call_operand.vmem [shape: f32[2,1,32], index: 6, kind: input, shape index: {}]
  %s7 = inlined_call_operand.vmem [shape: f32[2,1,32], index: 7, kind: input, shape index: {}]
  %s8 = inlined_call_operand.vmem [shape: bf16[2,32,32], index: 8, kind: input, shape index: {}]
  %s9 = inlined_call_operand.vmem [shape: bf16[2,32,64], index: 9, kind: input, shape index: {}]
  %s10 = inlined_call_operand.vmem [shape: bf16[2,32,32], index: 10, kind: input, shape index: {}]
  %s11 = inlined_call_operand.vmem [shape: f32[2,1,32], index: 11, kind: input, shape index: {}]
  %s12 = inlined_call_operand.vmem [shape: f32[2,1,32], index: 12, kind: input, shape index: {}]
  %s13 = inlined_call_operand.vmem [shape: f32[2,1,32], index: 13, kind: input, shape index: {}]
  %s14 = inlined_call_operand.vmem [shape: bf16[2,32,2048], index: 14, kind: input, shape index: {}]
  %s15 = inlined_call_operand.vmem [shape: f32[2,1,2048], index: 15, kind: input, shape index: {}]
  %s16 = inlined_call_operand.vmem [shape: bf16[2,2048,32], index: 16, kind: input, shape index: {}]
  %s17 = inlined_call_operand.vmem [shape: f32[2,1,32], index: 17, kind: input, shape index: {}]
  %s18 = inlined_call_operand.vmem [shape: f32[2,1,32], index: 18, kind: input, shape index: {}]
  %s19 = inlined_call_operand.vmem [shape: f32[2,1,32], index: 19, kind: input, shape index: {}]
  %s20 = inlined_call_operand.hbm [shape: f32[2,8,32], index: 20, kind: output, shape index: {}]
  %s21 = sld [smem:[#allocation0]]
  $region90: #{tpu_custom_call.1} parent=0
    _
  %s23 = ssub.s32 1, %s21
  %s24 = scalar_select 0, %s23, %s21
  $region1: #{tpu_custom_call.1} parent=0
    #allocation2 [shape = 'u8[8192]{0}', space=vmem, size = 0x2000, scoped, tag = 'output window, operand 0, single buffered']
    #allocation3 [shape = 's32[1]{0}', space=sflag, size = 0x4, scoped, tag = 'scoped memory for tpu_custom_call.1']
    %25 = vsyncpa [#allocation3], 0
    // Predicated region
    $region2: #{tpu_custom_call.1} parent=1 // pred_check
      _
    $region3: #{tpu_custom_call.1} parent=1 // pred_check_branch
      %27 = sbr.rel (0) target = $region5
    $region4: #{tpu_custom_call.1} parent=1 // pred_region
      _
    $region5: #{tpu_custom_call.1} parent=1 // pred_fallthru
      _
    // Predicated region
    $region6: #{tpu_custom_call.1} parent=1 // pred_check
      _
    $region7: #{tpu_custom_call.1} parent=1 // pred_check_branch
      %29 = sbr.rel (0) target = $region9
    $region8: #{tpu_custom_call.1} parent=1 // pred_region
      _
    $region9: #{tpu_custom_call.1} parent=1 // pred_fallthru
      _
    // Predicated region
    $region10: #{tpu_custom_call.1} parent=1 // pred_check
      _
    $region11: #{tpu_custom_call.1} parent=1 // pred_check_branch
      %31 = sbr.rel (0) target = $region13
    $region12: #{tpu_custom_call.1} parent=1 // pred_region
      _
    $region13: #{tpu_custom_call.1} parent=1 // pred_fallthru
      _
    // Predicated region
    $region14: #{tpu_custom_call.1} parent=1 // pred_check
      _
    $region15: #{tpu_custom_call.1} parent=1 // pred_check_branch
      %33 = sbr.rel (0) target = $region17
    $region16: #{tpu_custom_call.1} parent=1 // pred_region
      _
    $region17: #{tpu_custom_call.1} parent=1 // pred_fallthru
      _
    // Predicated region
    $region18: #{tpu_custom_call.1} parent=1 // pred_check
      _
    $region19: #{tpu_custom_call.1} parent=1 // pred_check_branch
      %35 = sbr.rel (0) target = $region21
    $region20: #{tpu_custom_call.1} parent=1 // pred_region
      _
    $region21: #{tpu_custom_call.1} parent=1 // pred_fallthru
      _
    // Predicated region
    $region22: #{tpu_custom_call.1} parent=1 // pred_check
      _
    $region23: #{tpu_custom_call.1} parent=1 // pred_check_branch
      %37 = sbr.rel (0) target = $region25
    $region24: #{tpu_custom_call.1} parent=1 // pred_region
      _
    $region25: #{tpu_custom_call.1} parent=1 // pred_fallthru
      _
    // Predicated region
    $region26: #{tpu_custom_call.1} parent=1 // pred_check
      _
    $region27: #{tpu_custom_call.1} parent=1 // pred_check_branch
      %39 = sbr.rel (0) target = $region29
    $region28: #{tpu_custom_call.1} parent=1 // pred_region
      _
    $region29: #{tpu_custom_call.1} parent=1 // pred_fallthru
      _
    // Predicated region
    $region30: #{tpu_custom_call.1} parent=1 // pred_check
      _
    $region31: #{tpu_custom_call.1} parent=1 // pred_check_branch
      %41 = sbr.rel (0) target = $region33
    $region32: #{tpu_custom_call.1} parent=1 // pred_region
      _
    $region33: #{tpu_custom_call.1} parent=1 // pred_fallthru
      _
    // Predicated region
    $region34: #{tpu_custom_call.1} parent=1 // pred_check
      _
    $region35: #{tpu_custom_call.1} parent=1 // pred_check_branch
      %43 = sbr.rel (0) target = $region37
    $region36: #{tpu_custom_call.1} parent=1 // pred_region
      _
    $region37: #{tpu_custom_call.1} parent=1 // pred_fallthru
      _
    // Predicated region
    $region38: #{tpu_custom_call.1} parent=1 // pred_check
      _
    $region39: #{tpu_custom_call.1} parent=1 // pred_check_branch
      %45 = sbr.rel (0) target = $region41
    $region40: #{tpu_custom_call.1} parent=1 // pred_region
      _
    $region41: #{tpu_custom_call.1} parent=1 // pred_fallthru
      _
    // Predicated region
    $region42: #{tpu_custom_call.1} parent=1 // pred_check
      _
    $region43: #{tpu_custom_call.1} parent=1 // pred_check_branch
      %47 = sbr.rel (0) target = $region45
    $region44: #{tpu_custom_call.1} parent=1 // pred_region
      _
    $region45: #{tpu_custom_call.1} parent=1 // pred_fallthru
      _
    // Predicated region
    $region46: #{tpu_custom_call.1} parent=1 // pred_check
      _
    $region47: #{tpu_custom_call.1} parent=1 // pred_check_branch
      %49 = sbr.rel (0) target = $region49
    $region48: #{tpu_custom_call.1} parent=1 // pred_region
      _
    $region49: #{tpu_custom_call.1} parent=1 // pred_fallthru
      _
    // Predicated region
    $region50: #{tpu_custom_call.1} parent=1 // pred_check
      _
    $region51: #{tpu_custom_call.1} parent=1 // pred_check_branch
      %51 = sbr.rel (0) target = $region53
    $region52: #{tpu_custom_call.1} parent=1 // pred_region
      _
    $region53: #{tpu_custom_call.1} parent=1 // pred_fallthru
      _
    // Predicated region
    $region54: #{tpu_custom_call.1} parent=1 // pred_check
      _
    $region55: #{tpu_custom_call.1} parent=1 // pred_check_branch
      %53 = sbr.rel (0) target = $region57
    $region56: #{tpu_custom_call.1} parent=1 // pred_region
      _
    $region57: #{tpu_custom_call.1} parent=1 // pred_fallthru
      _
    // Predicated region
    $region58: #{tpu_custom_call.1} parent=1 // pred_check
      _
    $region59: #{tpu_custom_call.1} parent=1 // pred_check_branch
      %55 = sbr.rel (0) target = $region61
    $region60: #{tpu_custom_call.1} parent=1 // pred_region
      _
    $region61: #{tpu_custom_call.1} parent=1 // pred_fallthru
      _
    // Predicated region
    $region62: #{tpu_custom_call.1} parent=1 // pred_check
      _
    $region63: #{tpu_custom_call.1} parent=1 // pred_check_branch
      %57 = sbr.rel (0) target = $region65
    $region64: #{tpu_custom_call.1} parent=1 // pred_region
      _
    $region65: #{tpu_custom_call.1} parent=1 // pred_fallthru
      _
    // Predicated region
    $region66: #{tpu_custom_call.1} parent=1 // pred_check
      _
    $region67: #{tpu_custom_call.1} parent=1 // pred_check_branch
      %59 = sbr.rel (0) target = $region69
    $region68: #{tpu_custom_call.1} parent=1 // pred_region
      _
    $region69: #{tpu_custom_call.1} parent=1 // pred_fallthru
      _
    // Predicated region
    $region70: #{tpu_custom_call.1} parent=1 // pred_check
      _
    $region71: #{tpu_custom_call.1} parent=1 // pred_check_branch
      %61 = sbr.rel (0) target = $region73
    $region72: #{tpu_custom_call.1} parent=1 // pred_region
      _
    $region73: #{tpu_custom_call.1} parent=1 // pred_fallthru
      _
    // Predicated region
    $region74: #{tpu_custom_call.1} parent=1 // pred_check
      _
    $region75: #{tpu_custom_call.1} parent=1 // pred_check_branch
      %63 = sbr.rel (0) target = $region77
    $region76: #{tpu_custom_call.1} parent=1 // pred_region
      _
    $region77: #{tpu_custom_call.1} parent=1 // pred_fallthru
      _
    // Predicated region
    $region78: #{tpu_custom_call.1} parent=1 // pred_check
      _
    $region79: #{tpu_custom_call.1} parent=1 // pred_check_branch
      %65 = sbr.rel (0) target = $region81
    $region80: #{tpu_custom_call.1} parent=1 // pred_region
      _
    $region81: #{tpu_custom_call.1} parent=1 // pred_fallthru
      _
    %v67 = vld [vmem:[%s0] sm:$0xff]
    %v68 = vld [vmem:[%s0 + $0x8] sm:$0xff]
    %v69 = vld [vmem:[%s2] sm:$0xff]
    %v70 = vadd.f32 %v67, %v69
    %v71 = vadd.f32 %v68, %v69
    %v72 = vld [vmem:[%s1] sm:$0xff]
    %v73 = vld [vmem:[%s1 + $0x8] sm:$0xff]
    %v74 = vlaneseq
    %v75 = vshrl.u32 %v74, 7
    %v76 = vlaneseq
    %v77 = vand.u32 %v76, 127
    %vm78 = vcmp.ge.s32.totalorder %v77, %v75
    %v79 = vsel %vm78, 0.0, -1e+30
    %v80 = vld [vmem:[%s3] sm:$0xf]
    %v81 = vld [vmem:[%s3 + $0x4] sm:$0xf]
    %v82 = vld [vmem:[%s3 + $0x8] sm:$0xf]
    %v83 = vld [vmem:[%s3 + $0xc] sm:$0xf]
    %v84 = vld [vmem:[%s4] sm:$0xf]
    %v85 = vld [vmem:[%s4 + $0x4] sm:$0xf]
    %v86 = vld [vmem:[%s4 + $0x8] sm:$0xf]
    %v87 = vld [vmem:[%s4 + $0xc] sm:$0xf]
    %v88 = vld [vmem:[%s5] sm:$0x1]
    %v89 = vld [vmem:[%s6] sm:$0x1]
    %v90 = vld [vmem:[%s7] sm:$0x1]
    %v91 = vld [vmem:[%s8] sm:$0xf]
    %v92 = vld [vmem:[%s8 + $0x4] sm:$0xf]
    %v93 = vld [vmem:[%s8 + $0x8] sm:$0xf]
    %v94 = vld [vmem:[%s8 + $0xc] sm:$0xf]
    %v95 = vld [vmem:[%s9] sm:$0xf]
    %v96 = vld [vmem:[%s9 + $0x4] sm:$0xf]
    %v97 = vld [vmem:[%s9 + $0x8] sm:$0xf]
    %v98 = vld [vmem:[%s9 + $0xc] sm:$0xf]
    %v99 = vld [vmem:[%s10] sm:$0xf]
    %v100 = vld [vmem:[%s10 + $0x4] sm:$0xf]
    %v101 = vld [vmem:[%s10 + $0x8] sm:$0xf]
    %v102 = vld [vmem:[%s10 + $0xc] sm:$0xf]
    %v103 = vld [vmem:[%s11] sm:$0x1]
    %v104 = vld [vmem:[%s12] sm:$0x1]
    %v105 = vld [vmem:[%s13] sm:$0x1]
    %v106 = vld [vmem:[%s14] sm:$0xff]
    %v107 = vld [vmem:[%s14 + $0x8] sm:$0xff]
    %v108 = vld [vmem:[%s14 + $0x10] sm:$0xff]
    %v109 = vld [vmem:[%s14 + $0x18] sm:$0xff]
    %v110 = vld [vmem:[%s14 + $0x20] sm:$0xff]
    %v111 = vld [vmem:[%s14 + $0x28] sm:$0xff]
    %v112 = vld [vmem:[%s14 + $0x30] sm:$0xff]
    %v113 = vld [vmem:[%s14 + $0x38] sm:$0xff]
    %v114 = vld [vmem:[%s14 + $0x40] sm:$0xff]
    %v115 = vld [vmem:[%s14 + $0x48] sm:$0xff]
    %v116 = vld [vmem:[%s14 + $0x50] sm:$0xff]
    %v117 = vld [vmem:[%s14 + $0x58] sm:$0xff]
    %v118 = vld [vmem:[%s14 + $0x60] sm:$0xff]
    %v119 = vld [vmem:[%s14 + $0x68] sm:$0xff]
    %v120 = vld [vmem:[%s14 + $0x70] sm:$0xff]
    %v121 = vld [vmem:[%s14 + $0x78] sm:$0xff]
    %v122 = vld [vmem:[%s14 + $0x80] sm:$0xff]
    %v123 = vld [vmem:[%s14 + $0x88] sm:$0xff]
    %v124 = vld [vmem:[%s14 + $0x90] sm:$0xff]
    %v125 = vld [vmem:[%s14 + $0x98] sm:$0xff]
    %v126 = vld [vmem:[%s14 + $0xa0] sm:$0xff]
    %v127 = vld [vmem:[%s14 + $0xa8] sm:$0xff]
    %v128 = vld [vmem:[%s14 + $0xb0] sm:$0xff]
    %v129 = vld [vmem:[%s14 + $0xb8] sm:$0xff]
    %v130 = vld [vmem:[%s14 + $0xc0] sm:$0xff]
    %v131 = vld [vmem:[%s14 + $0xc8] sm:$0xff]
    %v132 = vld [vmem:[%s14 + $0xd0] sm:$0xff]
    %v133 = vld [vmem:[%s14 + $0xd8] sm:$0xff]
    %v134 = vld [vmem:[%s14 + $0xe0] sm:$0xff]
    %v135 = vld [vmem:[%s14 + $0xe8] sm:$0xff]
    %v136 = vld [vmem:[%s14 + $0xf0] sm:$0xff]
    %v137 = vld [vmem:[%s14 + $0xf8] sm:$0xff]
    %v138 = vld [vmem:[%s15] sm:$0xff]
    %v139 = vld [vmem:[%s15 + $0x8] sm:$0xff]
    %v140 = vld [vmem:[%s16] sm:$0xf]
    %v141 = vld [vmem:[%s16 + $0x4] sm:$0xf]
    %v142 = vld [vmem:[%s16 + $0x8] sm:$0xf]
    %v143 = vld [vmem:[%s16 + $0xc] sm:$0xf]
    %v144 = vld [vmem:[%s16 + $0x10] sm:$0xf]
    %v145 = vld [vmem:[%s16 + $0x14] sm:$0xf]
    %v146 = vld [vmem:[%s16 + $0x18] sm:$0xf]
    %v147 = vld [vmem:[%s16 + $0x1c] sm:$0xf]
    %v148 = vld [vmem:[%s16 + $0x20] sm:$0xf]
    %v149 = vld [vmem:[%s16 + $0x24] sm:$0xf]
    %v150 = vld [vmem:[%s16 + $0x28] sm:$0xf]
    %v151 = vld [vmem:[%s16 + $0x2c] sm:$0xf]
    %v152 = vld [vmem:[%s16 + $0x30] sm:$0xf]
    %v153 = vld [vmem:[%s16 + $0x34] sm:$0xf]
    %v154 = vld [vmem:[%s16 + $0x38] sm:$0xf]
    %v155 = vld [vmem:[%s16 + $0x3c] sm:$0xf]
    %v156 = vld [vmem:[%s16 + $0x40] sm:$0xf]
    %v157 = vld [vmem:[%s16 + $0x44] sm:$0xf]
    %v158 = vld [vmem:[%s16 + $0x48] sm:$0xf]
    %v159 = vld [vmem:[%s16 + $0x4c] sm:$0xf]
    %v160 = vld [vmem:[%s16 + $0x50] sm:$0xf]
    %v161 = vld [vmem:[%s16 + $0x54] sm:$0xf]
    %v162 = vld [vmem:[%s16 + $0x58] sm:$0xf]
    %v163 = vld [vmem:[%s16 + $0x5c] sm:$0xf]
    %v164 = vld [vmem:[%s16 + $0x60] sm:$0xf]
    %v165 = vld [vmem:[%s16 + $0x64] sm:$0xf]
    %v166 = vld [vmem:[%s16 + $0x68] sm:$0xf]
    %v167 = vld [vmem:[%s16 + $0x6c] sm:$0xf]
    %v168 = vld [vmem:[%s16 + $0x70] sm:$0xf]
    %v169 = vld [vmem:[%s16 + $0x74] sm:$0xf]
    %v170 = vld [vmem:[%s16 + $0x78] sm:$0xf]
    %v171 = vld [vmem:[%s16 + $0x7c] sm:$0xf]
    %v172 = vld [vmem:[%s16 + $0x80] sm:$0xf]
    %v173 = vld [vmem:[%s16 + $0x84] sm:$0xf]
    %v174 = vld [vmem:[%s16 + $0x88] sm:$0xf]
    %v175 = vld [vmem:[%s16 + $0x8c] sm:$0xf]
    %v176 = vld [vmem:[%s16 + $0x90] sm:$0xf]
    %v177 = vld [vmem:[%s16 + $0x94] sm:$0xf]
    %v178 = vld [vmem:[%s16 + $0x98] sm:$0xf]
    %v179 = vld [vmem:[%s16 + $0x9c] sm:$0xf]
    %v180 = vld [vmem:[%s16 + $0xa0] sm:$0xf]
    %v181 = vld [vmem:[%s16 + $0xa4] sm:$0xf]
    %v182 = vld [vmem:[%s16 + $0xa8] sm:$0xf]
    %v183 = vld [vmem:[%s16 + $0xac] sm:$0xf]
    %v184 = vld [vmem:[%s16 + $0xb0] sm:$0xf]
    %v185 = vld [vmem:[%s16 + $0xb4] sm:$0xf]
    %v186 = vld [vmem:[%s16 + $0xb8] sm:$0xf]
    %v187 = vld [vmem:[%s16 + $0xbc] sm:$0xf]
    %v188 = vld [vmem:[%s16 + $0xc0] sm:$0xf]
    %v189 = vld [vmem:[%s16 + $0xc4] sm:$0xf]
    %v190 = vld [vmem:[%s16 + $0xc8] sm:$0xf]
    %v191 = vld [vmem:[%s16 + $0xcc] sm:$0xf]
    %v192 = vld [vmem:[%s16 + $0xd0] sm:$0xf]
    %v193 = vld [vmem:[%s16 + $0xd4] sm:$0xf]
    %v194 = vld [vmem:[%s16 + $0xd8] sm:$0xf]
    %v195 = vld [vmem:[%s16 + $0xdc] sm:$0xf]
    %v196 = vld [vmem:[%s16 + $0xe0] sm:$0xf]
    %v197 = vld [vmem:[%s16 + $0xe4] sm:$0xf]
    %v198 = vld [vmem:[%s16 + $0xe8] sm:$0xf]
    %v199 = vld [vmem:[%s16 + $0xec] sm:$0xf]
    %v200 = vld [vmem:[%s16 + $0xf0] sm:$0xf]
    %v201 = vld [vmem:[%s16 + $0xf4] sm:$0xf]
    %v202 = vld [vmem:[%s16 + $0xf8] sm:$0xf]
    %v203 = vld [vmem:[%s16 + $0xfc] sm:$0xf]
    %v204 = vld [vmem:[%s16 + $0x100] sm:$0xf]
    %v205 = vld [vmem:[%s16 + $0x104] sm:$0xf]
    %v206 = vld [vmem:[%s16 + $0x108] sm:$0xf]
    %v207 = vld [vmem:[%s16 + $0x10c] sm:$0xf]
    %v208 = vld [vmem:[%s16 + $0x110] sm:$0xf]
    %v209 = vld [vmem:[%s16 + $0x114] sm:$0xf]
    %v210 = vld [vmem:[%s16 + $0x118] sm:$0xf]
    %v211 = vld [vmem:[%s16 + $0x11c] sm:$0xf]
    %v212 = vld [vmem:[%s16 + $0x120] sm:$0xf]
    %v213 = vld [vmem:[%s16 + $0x124] sm:$0xf]
    %v214 = vld [vmem:[%s16 + $0x128] sm:$0xf]
    %v215 = vld [vmem:[%s16 + $0x12c] sm:$0xf]
    %v216 = vld [vmem:[%s16 + $0x130] sm:$0xf]
    %v217 = vld [vmem:[%s16 + $0x134] sm:$0xf]
    %v218 = vld [vmem:[%s16 + $0x138] sm:$0xf]
    %v219 = vld [vmem:[%s16 + $0x13c] sm:$0xf]
    %v220 = vld [vmem:[%s16 + $0x140] sm:$0xf]
    %v221 = vld [vmem:[%s16 + $0x144] sm:$0xf]
    %v222 = vld [vmem:[%s16 + $0x148] sm:$0xf]
    %v223 = vld [vmem:[%s16 + $0x14c] sm:$0xf]
    %v224 = vld [vmem:[%s16 + $0x150] sm:$0xf]
    %v225 = vld [vmem:[%s16 + $0x154] sm:$0xf]
    %v226 = vld [vmem:[%s16 + $0x158] sm:$0xf]
    %v227 = vld [vmem:[%s16 + $0x15c] sm:$0xf]
    %v228 = vld [vmem:[%s16 + $0x160] sm:$0xf]
    %v229 = vld [vmem:[%s16 + $0x164] sm:$0xf]
    %v230 = vld [vmem:[%s16 + $0x168] sm:$0xf]
    %v231 = vld [vmem:[%s16 + $0x16c] sm:$0xf]
    %v232 = vld [vmem:[%s16 + $0x170] sm:$0xf]
    %v233 = vld [vmem:[%s16 + $0x174] sm:$0xf]
    %v234 = vld [vmem:[%s16 + $0x178] sm:$0xf]
    %v235 = vld [vmem:[%s16 + $0x17c] sm:$0xf]
    %v236 = vld [vmem:[%s16 + $0x180] sm:$0xf]
    %v237 = vld [vmem:[%s16 + $0x184] sm:$0xf]
    %v238 = vld [vmem:[%s16 + $0x188] sm:$0xf]
    %v239 = vld [vmem:[%s16 + $0x18c] sm:$0xf]
    %v240 = vld [vmem:[%s16 + $0x190] sm:$0xf]
    %v241 = vld [vmem:[%s16 + $0x194] sm:$0xf]
    %v242 = vld [vmem:[%s16 + $0x198] sm:$0xf]
    %v243 = vld [vmem:[%s16 + $0x19c] sm:$0xf]
    %v244 = vld [vmem:[%s16 + $0x1a0] sm:$0xf]
    %v245 = vld [vmem:[%s16 + $0x1a4] sm:$0xf]
    %v246 = vld [vmem:[%s16 + $0x1a8] sm:$0xf]
    %v247 = vld [vmem:[%s16 + $0x1ac] sm:$0xf]
    %v248 = vld [vmem:[%s16 + $0x1b0] sm:$0xf]
    %v249 = vld [vmem:[%s16 + $0x1b4] sm:$0xf]
    %v250 = vld [vmem:[%s16 + $0x1b8] sm:$0xf]
    %v251 = vld [vmem:[%s16 + $0x1bc] sm:$0xf]
    %v252 = vld [vmem:[%s16 + $0x1c0] sm:$0xf]
    %v253 = vld [vmem:[%s16 + $0x1c4] sm:$0xf]
    %v254 = vld [vmem:[%s16 + $0x1c8] sm:$0xf]
    %v255 = vld [vmem:[%s16 + $0x1cc] sm:$0xf]
    %v256 = vld [vmem:[%s16 + $0x1d0] sm:$0xf]
    %v257 = vld [vmem:[%s16 + $0x1d4] sm:$0xf]
    %v258 = vld [vmem:[%s16 + $0x1d8] sm:$0xf]
    %v259 = vld [vmem:[%s16 + $0x1dc] sm:$0xf]
    %v260 = vld [vmem:[%s16 + $0x1e0] sm:$0xf]
    %v261 = vld [vmem:[%s16 + $0x1e4] sm:$0xf]
    %v262 = vld [vmem:[%s16 + $0x1e8] sm:$0xf]
    %v263 = vld [vmem:[%s16 + $0x1ec] sm:$0xf]
    %v264 = vld [vmem:[%s16 + $0x1f0] sm:$0xf]
    %v265 = vld [vmem:[%s16 + $0x1f4] sm:$0xf]
    %v266 = vld [vmem:[%s16 + $0x1f8] sm:$0xf]
    %v267 = vld [vmem:[%s16 + $0x1fc] sm:$0xf]
    %v268 = vld [vmem:[%s16 + $0x200] sm:$0xf]
    %v269 = vld [vmem:[%s16 + $0x204] sm:$0xf]
    %v270 = vld [vmem:[%s16 + $0x208] sm:$0xf]
    %v271 = vld [vmem:[%s16 + $0x20c] sm:$0xf]
    %v272 = vld [vmem:[%s16 + $0x210] sm:$0xf]
    %v273 = vld [vmem:[%s16 + $0x214] sm:$0xf]
    %v274 = vld [vmem:[%s16 + $0x218] sm:$0xf]
    %v275 = vld [vmem:[%s16 + $0x21c] sm:$0xf]
    %v276 = vld [vmem:[%s16 + $0x220] sm:$0xf]
    %v277 = vld [vmem:[%s16 + $0x224] sm:$0xf]
    %v278 = vld [vmem:[%s16 + $0x228] sm:$0xf]
    %v279 = vld [vmem:[%s16 + $0x22c] sm:$0xf]
    %v280 = vld [vmem:[%s16 + $0x230] sm:$0xf]
    %v281 = vld [vmem:[%s16 + $0x234] sm:$0xf]
    %v282 = vld [vmem:[%s16 + $0x238] sm:$0xf]
    %v283 = vld [vmem:[%s16 + $0x23c] sm:$0xf]
    %v284 = vld [vmem:[%s16 + $0x240] sm:$0xf]
    %v285 = vld [vmem:[%s16 + $0x244] sm:$0xf]
    %v286 = vld [vmem:[%s16 + $0x248] sm:$0xf]
    %v287 = vld [vmem:[%s16 + $0x24c] sm:$0xf]
    %v288 = vld [vmem:[%s16 + $0x250] sm:$0xf]
    %v289 = vld [vmem:[%s16 + $0x254] sm:$0xf]
    %v290 = vld [vmem:[%s16 + $0x258] sm:$0xf]
    %v291 = vld [vmem:[%s16 + $0x25c] sm:$0xf]
    %v292 = vld [vmem:[%s16 + $0x260] sm:$0xf]
    %v293 = vld [vmem:[%s16 + $0x264] sm:$0xf]
    %v294 = vld [vmem:[%s16 + $0x268] sm:$0xf]
    %v295 = vld [vmem:[%s16 + $0x26c] sm:$0xf]
    %v296 = vld [vmem:[%s16 + $0x270] sm:$0xf]
    %v297 = vld [vmem:[%s16 + $0x274] sm:$0xf]
    %v298 = vld [vmem:[%s16 + $0x278] sm:$0xf]
    %v299 = vld [vmem:[%s16 + $0x27c] sm:$0xf]
    %v300 = vld [vmem:[%s16 + $0x280] sm:$0xf]
    %v301 = vld [vmem:[%s16 + $0x284] sm:$0xf]
    %v302 = vld [vmem:[%s16 + $0x288] sm:$0xf]
    %v303 = vld [vmem:[%s16 + $0x28c] sm:$0xf]
    %v304 = vld [vmem:[%s16 + $0x290] sm:$0xf]
    %v305 = vld [vmem:[%s16 + $0x294] sm:$0xf]
    %v306 = vld [vmem:[%s16 + $0x298] sm:$0xf]
    %v307 = vld [vmem:[%s16 + $0x29c] sm:$0xf]
    %v308 = vld [vmem:[%s16 + $0x2a0] sm:$0xf]
    %v309 = vld [vmem:[%s16 + $0x2a4] sm:$0xf]
    %v310 = vld [vmem:[%s16 + $0x2a8] sm:$0xf]
    %v311 = vld [vmem:[%s16 + $0x2ac] sm:$0xf]
    %v312 = vld [vmem:[%s16 + $0x2b0] sm:$0xf]
    %v313 = vld [vmem:[%s16 + $0x2b4] sm:$0xf]
    %v314 = vld [vmem:[%s16 + $0x2b8] sm:$0xf]
    %v315 = vld [vmem:[%s16 + $0x2bc] sm:$0xf]
    %v316 = vld [vmem:[%s16 + $0x2c0] sm:$0xf]
    %v317 = vld [vmem:[%s16 + $0x2c4] sm:$0xf]
    %v318 = vld [vmem:[%s16 + $0x2c8] sm:$0xf]
    %v319 = vld [vmem:[%s16 + $0x2cc] sm:$0xf]
    %v320 = vld [vmem:[%s16 + $0x2d0] sm:$0xf]
    %v321 = vld [vmem:[%s16 + $0x2d4] sm:$0xf]
    %v322 = vld [vmem:[%s16 + $0x2d8] sm:$0xf]
    %v323 = vld [vmem:[%s16 + $0x2dc] sm:$0xf]
    %v324 = vld [vmem:[%s16 + $0x2e0] sm:$0xf]
    %v325 = vld [vmem:[%s16 + $0x2e4] sm:$0xf]
    %v326 = vld [vmem:[%s16 + $0x2e8] sm:$0xf]
    %v327 = vld [vmem:[%s16 + $0x2ec] sm:$0xf]
    %v328 = vld [vmem:[%s16 + $0x2f0] sm:$0xf]
    %v329 = vld [vmem:[%s16 + $0x2f4] sm:$0xf]
    %v330 = vld [vmem:[%s16 + $0x2f8] sm:$0xf]
    %v331 = vld [vmem:[%s16 + $0x2fc] sm:$0xf]
    %v332 = vld [vmem:[%s16 + $0x300] sm:$0xf]
    %v333 = vld [vmem:[%s16 + $0x304] sm:$0xf]
    %v334 = vld [vmem:[%s16 + $0x308] sm:$0xf]
    %v335 = vld [vmem:[%s16 + $0x30c] sm:$0xf]
    %v336 = vld [vmem:[%s16 + $0x310] sm:$0xf]
    %v337 = vld [vmem:[%s16 + $0x314] sm:$0xf]
    %v338 = vld [vmem:[%s16 + $0x318] sm:$0xf]
    %v339 = vld [vmem:[%s16 + $0x31c] sm:$0xf]
    %v340 = vld [vmem:[%s16 + $0x320] sm:$0xf]
    %v341 = vld [vmem:[%s16 + $0x324] sm:$0xf]
    %v342 = vld [vmem:[%s16 + $0x328] sm:$0xf]
    %v343 = vld [vmem:[%s16 + $0x32c] sm:$0xf]
    %v344 = vld [vmem:[%s16 + $0x330] sm:$0xf]
    %v345 = vld [vmem:[%s16 + $0x334] sm:$0xf]
    %v346 = vld [vmem:[%s16 + $0x338] sm:$0xf]
    %v347 = vld [vmem:[%s16 + $0x33c] sm:$0xf]
    %v348 = vld [vmem:[%s16 + $0x340] sm:$0xf]
    %v349 = vld [vmem:[%s16 + $0x344] sm:$0xf]
    %v350 = vld [vmem:[%s16 + $0x348] sm:$0xf]
    %v351 = vld [vmem:[%s16 + $0x34c] sm:$0xf]
    %v352 = vld [vmem:[%s16 + $0x350] sm:$0xf]
    %v353 = vld [vmem:[%s16 + $0x354] sm:$0xf]
    %v354 = vld [vmem:[%s16 + $0x358] sm:$0xf]
    %v355 = vld [vmem:[%s16 + $0x35c] sm:$0xf]
    %v356 = vld [vmem:[%s16 + $0x360] sm:$0xf]
    %v357 = vld [vmem:[%s16 + $0x364] sm:$0xf]
    %v358 = vld [vmem:[%s16 + $0x368] sm:$0xf]
    %v359 = vld [vmem:[%s16 + $0x36c] sm:$0xf]
    %v360 = vld [vmem:[%s16 + $0x370] sm:$0xf]
    %v361 = vld [vmem:[%s16 + $0x374] sm:$0xf]
    %v362 = vld [vmem:[%s16 + $0x378] sm:$0xf]
    %v363 = vld [vmem:[%s16 + $0x37c] sm:$0xf]
    %v364 = vld [vmem:[%s16 + $0x380] sm:$0xf]
    %v365 = vld [vmem:[%s16 + $0x384] sm:$0xf]
    %v366 = vld [vmem:[%s16 + $0x388] sm:$0xf]
    %v367 = vld [vmem:[%s16 + $0x38c] sm:$0xf]
    %v368 = vld [vmem:[%s16 + $0x390] sm:$0xf]
    %v369 = vld [vmem:[%s16 + $0x394] sm:$0xf]
    %v370 = vld [vmem:[%s16 + $0x398] sm:$0xf]
    %v371 = vld [vmem:[%s16 + $0x39c] sm:$0xf]
    %v372 = vld [vmem:[%s16 + $0x3a0] sm:$0xf]
    %v373 = vld [vmem:[%s16 + $0x3a4] sm:$0xf]
    %v374 = vld [vmem:[%s16 + $0x3a8] sm:$0xf]
    %v375 = vld [vmem:[%s16 + $0x3ac] sm:$0xf]
    %v376 = vld [vmem:[%s16 + $0x3b0] sm:$0xf]
    %v377 = vld [vmem:[%s16 + $0x3b4] sm:$0xf]
    %v378 = vld [vmem:[%s16 + $0x3b8] sm:$0xf]
    %v379 = vld [vmem:[%s16 + $0x3bc] sm:$0xf]
    %v380 = vld [vmem:[%s16 + $0x3c0] sm:$0xf]
    %v381 = vld [vmem:[%s16 + $0x3c4] sm:$0xf]
    %v382 = vld [vmem:[%s16 + $0x3c8] sm:$0xf]
    %v383 = vld [vmem:[%s16 + $0x3cc] sm:$0xf]
    %v384 = vld [vmem:[%s16 + $0x3d0] sm:$0xf]
    %v385 = vld [vmem:[%s16 + $0x3d4] sm:$0xf]
    %v386 = vld [vmem:[%s16 + $0x3d8] sm:$0xf]
    %v387 = vld [vmem:[%s16 + $0x3dc] sm:$0xf]
    %v388 = vld [vmem:[%s16 + $0x3e0] sm:$0xf]
    %v389 = vld [vmem:[%s16 + $0x3e4] sm:$0xf]
    %v390 = vld [vmem:[%s16 + $0x3e8] sm:$0xf]
    %v391 = vld [vmem:[%s16 + $0x3ec] sm:$0xf]
    %v392 = vld [vmem:[%s16 + $0x3f0] sm:$0xf]
    %v393 = vld [vmem:[%s16 + $0x3f4] sm:$0xf]
    %v394 = vld [vmem:[%s16 + $0x3f8] sm:$0xf]
    %v395 = vld [vmem:[%s16 + $0x3fc] sm:$0xf]
    %v396 = vld [vmem:[%s17] sm:$0x1]
    %v397 = vld [vmem:[%s18] sm:$0x1]
    %v398 = vld [vmem:[%s19] sm:$0x1]
    %v399 = vpack.c.bf16 %v71, %v70
    %v404 = vunpack.c.l.b16 %v80
    %v405 = vunpack.c.l.b16 %v81
    %v406 = vunpack.c.l.b16 %v82
    %v407 = vunpack.c.l.b16 %v83
    %v408 = vpack.c.b16 %v405, %v404
    %v409 = vpack.c.b16 %v407, %v406
    %vm412 = vcmask 261120
    %v414 = vsel %vm412, %v399, 0
    %416 = vmatprep.subr.bf16.mxu0 0
    %417 = vmatpush1.bf16.msra.mxu0 %v408
    %418 = vmatprep.subr.bf16.mxu0 0
    %419 = vmatpush1.bf16.msra.mxu0 %v409
    %420 = vmatprep.subr.bf16.mxu0 0
    %421 = vmatpush1.bf16.msra.mxu0 0
    %422 = vmatprep.subr.bf16.mxu0 0
    %423 = vmatpush1.bf16.msra.mxu0 0
    %424 = vmatprep.subr.bf16.mxu0 0
    %425 = vmatpush1.bf16.msra.mxu0 0
    %426 = vmatprep.subr.bf16.mxu0 0
    %427 = vmatpush1.bf16.msra.mxu0 0
    %428 = vmatprep.subr.bf16.mxu0 0
    %429 = vmatpush1.bf16.msra.mxu0 0
    %430 = vmatprep.subr.bf16.mxu0 0
    %431 = vmatpush1.bf16.msra.mxu0 0
    %432 = vmatprep.subr.bf16.mxu0 0
    %433 = vmatpush1.bf16.msra.mxu0 0
    %434 = vmatprep.subr.bf16.mxu0 0
    %435 = vmatpush1.bf16.msra.mxu0 0
    %436 = vmatprep.subr.bf16.mxu0 0
    %437 = vmatpush1.bf16.msra.mxu0 0
    %438 = vmatprep.subr.bf16.mxu0 0
    %439 = vmatpush1.bf16.msra.mxu0 0
    %440 = vmatprep.subr.bf16.mxu0 0
    %441 = vmatpush1.bf16.msra.mxu0 0
    %442 = vmatprep.subr.bf16.mxu0 0
    %443 = vmatpush1.bf16.msra.mxu0 0
    %444 = vmatprep.subr.bf16.mxu0 0
    %445 = vmatpush1.bf16.msra.mxu0 0
    %446 = vmatprep.subr.bf16.mxu0 0
    %447 = vmatpush1.bf16.msra.mxu0 0
    %448 = vmatprep.mubr.bf16.mxu0 0
    %449 = vmatmul.mubr.bf16.gmra.mrb[0].mxu0 %v414
    %v450 = vpop.f32.mrb[0].mxu0
    %v451 = vadd.f32 0.0, %v450
    %v452 = vpop.f32.mrb[0].mxu0
    %v453 = vpop.f32.mrb[0].mxu0
    %v454 = vadd.f32 0.0, %v453
    %v455 = vpop.f32.mrb[0].mxu0
    %456 = vdwg.mxu0
    %v457 = vpack.c.bf16 %v451, %v451
    %v458 = vpack.c.bf16 %v454, %v454
    %460 = vrot.lane.b32.xlu0 %v457, 96
    %v461 = vpop.permute.xlu0 %460
    %vm462 = vcmask 64512
    %v464 = vsel %vm462, %v457, 0
    %v467 = vsel %vm462, %v461, 0
    %469 = vmatprep.subr.bf16.mxu0 0
    %470 = vmatpush1.bf16.xpose.msra.mxu0 %v467
    %471 = vmatprep.subr.bf16.mxu0 0
    %472 = vmatpush1.bf16.xpose.msra.mxu0 0
    %473 = vmatprep.subr.bf16.mxu0 0
    %474 = vmatpush1.bf16.xpose.msra.mxu0 0
    %475 = vmatprep.subr.bf16.mxu0 0
    %476 = vmatpush1.bf16.xpose.msra.mxu0 0
    %477 = vmatprep.subr.bf16.mxu0 0
    %478 = vmatpush1.bf16.xpose.msra.mxu0 0
    %479 = vmatprep.subr.bf16.mxu0 0
    %480 = vmatpush1.bf16.xpose.msra.mxu0 0
    %481 = vmatprep.subr.bf16.mxu0 0
    %482 = vmatpush1.bf16.xpose.msra.mxu0 0
    %483 = vmatprep.subr.bf16.mxu0 0
    %484 = vmatpush1.bf16.xpose.msra.mxu0 0
    %485 = vmatprep.subr.bf16.mxu0 0
    %486 = vmatpush1.bf16.xpose.msra.mxu0 0
    %487 = vmatprep.subr.bf16.mxu0 0
    %488 = vmatpush1.bf16.xpose.msra.mxu0 0
    %489 = vmatprep.subr.bf16.mxu0 0
    %490 = vmatpush1.bf16.xpose.msra.mxu0 0
    %491 = vmatprep.subr.bf16.mxu0 0
    %492 = vmatpush1.bf16.xpose.msra.mxu0 0
    %493 = vmatprep.subr.bf16.mxu0 0
    %494 = vmatpush1.bf16.xpose.msra.mxu0 0
    %495 = vmatprep.subr.bf16.mxu0 0
    %496 = vmatpush1.bf16.xpose.msra.mxu0 0
    %497 = vmatprep.subr.bf16.mxu0 0
    %498 = vmatpush1.bf16.xpose.msra.mxu0 0
    %499 = vmatprep.subr.bf16.mxu0 0
    %500 = vmatpush1.bf16.xpose.msra.mxu0 0
    %501 = vmatprep.mubr.bf16.mxu0 0
    %502 = vmatmul.mubr.bf16.gmra.mrb[0].mxu0 %v464
    %v503 = vpop.f32.mrb[0].mxu0
    %v504 = vadd.f32 0.0, %v503
    %v505 = vpop.f32.mrb[0].mxu0
    %v506 = vpop.f32.mrb[0].mxu0
    %v507 = vpop.f32.mrb[0].mxu0
    %508 = vdwg.mxu0
    %510 = vrot.lane.b32.xlu0 %v458, 96
    %v511 = vpop.permute.xlu0 %510
    %v513 = vsel %vm462, %v458, 0
    %v516 = vsel %vm462, %v511, 0
    %518 = vmatprep.subr.bf16.mxu0 0
    %519 = vmatpush1.bf16.xpose.msra.mxu0 %v516
    %520 = vmatprep.subr.bf16.mxu0 0
    %521 = vmatpush1.bf16.xpose.msra.mxu0 0
    %522 = vmatprep.subr.bf16.mxu0 0
    %523 = vmatpush1.bf16.xpose.msra.mxu0 0
    %524 = vmatprep.subr.bf16.mxu0 0
    %525 = vmatpush1.bf16.xpose.msra.mxu0 0
    %526 = vmatprep.subr.bf16.mxu0 0
    %527 = vmatpush1.bf16.xpose.msra.mxu0 0
    %528 = vmatprep.subr.bf16.mxu0 0
    %529 = vmatpush1.bf16.xpose.msra.mxu0 0
    %530 = vmatprep.subr.bf16.mxu0 0
    %531 = vmatpush1.bf16.xpose.msra.mxu0 0
    %532 = vmatprep.subr.bf16.mxu0 0
    %533 = vmatpush1.bf16.xpose.msra.mxu0 0
    %534 = vmatprep.subr.bf16.mxu0 0
    %535 = vmatpush1.bf16.xpose.msra.mxu0 0
    %536 = vmatprep.subr.bf16.mxu0 0
    %537 = vmatpush1.bf16.xpose.msra.mxu0 0
    %538 = vmatprep.subr.bf16.mxu0 0
    %539 = vmatpush1.bf16.xpose.msra.mxu0 0
    %540 = vmatprep.subr.bf16.mxu0 0
    %541 = vmatpush1.bf16.xpose.msra.mxu0 0
    %542 = vmatprep.subr.bf16.mxu0 0
    %543 = vmatpush1.bf16.xpose.msra.mxu0 0
    %544 = vmatprep.subr.bf16.mxu0 0
    %545 = vmatpush1.bf16.xpose.msra.mxu0 0
    %546 = vmatprep.subr.bf16.mxu0 0
    %547 = vmatpush1.bf16.xpose.msra.mxu0 0
    %548 = vmatprep.subr.bf16.mxu0 0
    %549 = vmatpush1.bf16.xpose.msra.mxu0 0
    %550 = vmatprep.mubr.bf16.mxu0 0
    %551 = vmatmul.mubr.bf16.gmra.mrb[0].mxu0 %v513
    %v552 = vpop.f32.mrb[0].mxu0
    %v553 = vadd.f32 0.0, %v552
    %v554 = vpop.f32.mrb[0].mxu0
    %v555 = vpop.f32.mrb[0].mxu0
    %v556 = vpop.f32.mrb[0].mxu0
    %557 = vdwg.mxu0
    %v558 = vmul.f32 %v504, 0.35355338
    %v559 = vmul.f32 %v553, 0.35355338
    %v560 = vadd.f32 %v558, %v79
    %v561 = vadd.f32 %v559, %v79
    %v562 = vsel %vm462, %v560, -inf
    %563 = vmax.xlane.f32.xlu0 %v562
    %v564 = vpop.xlane.xlu0 %563
    %v565 = vsel %vm462, %v561, -inf
    %566 = vmax.xlane.f32.xlu0 %v565
    %v567 = vpop.xlane.xlu0 %566
    %v568 = vsub.f32 %v560, %v564
    %v569 = vsub.f32 %v561, %v567
    %v570 = vmul.f32 %v568, 1.442695
    %v571 = vpow.pop %v570
    %v572 = vmul.f32 %v569, 1.442695
    %v573 = vpow.pop %v572
    %v574 = vsel %vm462, %v571, 0.0
    %575 = vadd.xlane.f32.xlu0 %v574
    %v576 = vpop.xlane.xlu0 %575
    %v577 = vsel %vm462, %v573, 0.0
    %578 = vadd.xlane.f32.xlu0 %v577
    %v579 = vpop.xlane.xlu0 %578
    %v580 = vrcp.pop %v576
    %v581 = vmul.f32 %v571, %v580
    %v582 = vrcp.pop %v579
    %v583 = vmul.f32 %v573, %v582
    %v584 = vpack.c.bf16 %v581, %v581
    %v585 = vpack.c.bf16 %v583, %v583
    %586 = vrot.lane.b32.xlu0 %v457, 64
    %v587 = vpop.permute.xlu0 %586
    %v589 = vsel %vm462, %v584, 0
    %vm591 = vcmask 1043456
    %v593 = vsel %vm591, %v587, 0
    %595 = vmatprep.subr.bf16.mxu0 0
    %596 = vmatpush1.bf16.msra.mxu0 %v593
    %597 = vmatprep.subr.bf16.mxu0 0
    %598 = vmatpush1.bf16.msra.mxu0 0
    %599 = vmatprep.subr.bf16.mxu0 0
    %600 = vmatpush1.bf16.msra.mxu0 0
    %601 = vmatprep.subr.bf16.mxu0 0
    %602 = vmatpush1.bf16.msra.mxu0 0
    %603 = vmatprep.subr.bf16.mxu0 0
    %604 = vmatpush1.bf16.msra.mxu0 0
    %605 = vmatprep.subr.bf16.mxu0 0
    %606 = vmatpush1.bf16.msra.mxu0 0
    %607 = vmatprep.subr.bf16.mxu0 0
    %608 = vmatpush1.bf16.msra.mxu0 0
    %609 = vmatprep.subr.bf16.mxu0 0
    %610 = vmatpush1.bf16.msra.mxu0 0
    %611 = vmatprep.subr.bf16.mxu0 0
    %612 = vmatpush1.bf16.msra.mxu0 0
    %613 = vmatprep.subr.bf16.mxu0 0
    %614 = vmatpush1.bf16.msra.mxu0 0
    %615 = vmatprep.subr.bf16.mxu0 0
    %616 = vmatpush1.bf16.msra.mxu0 0
    %617 = vmatprep.subr.bf16.mxu0 0
    %618 = vmatpush1.bf16.msra.mxu0 0
    %619 = vmatprep.subr.bf16.mxu0 0
    %620 = vmatpush1.bf16.msra.mxu0 0
    %621 = vmatprep.subr.bf16.mxu0 0
    %622 = vmatpush1.bf16.msra.mxu0 0
    %623 = vmatprep.subr.bf16.mxu0 0
    %624 = vmatpush1.bf16.msra.mxu0 0
    %625 = vmatprep.subr.bf16.mxu0 0
    %626 = vmatpush1.bf16.msra.mxu0 0
    %627 = vmatprep.mubr.bf16.mxu0 0
    %628 = vmatmul.mubr.bf16.gmra.mrb[0].mxu0 %v589
    %v629 = vpop.f32.mrb[0].mxu0
    %v630 = vadd.f32 0.0, %v629
    %v631 = vpop.f32.mrb[0].mxu0
    %v632 = vpop.f32.mrb[0].mxu0
    %v633 = vpop.f32.mrb[0].mxu0
    %634 = vdwg.mxu0
    %635 = vrot.lane.b32.xlu0 %v458, 64
    %v636 = vpop.permute.xlu0 %635
    %v638 = vsel %vm462, %v585, 0
    %v641 = vsel %vm591, %v636, 0
    %643 = vmatprep.subr.bf16.mxu0 0
    %644 = vmatpush1.bf16.msra.mxu0 %v641
    %645 = vmatprep.subr.bf16.mxu0 0
    %646 = vmatpush1.bf16.msra.mxu0 0
    %647 = vmatprep.subr.bf16.mxu0 0
    %648 = vmatpush1.bf16.msra.mxu0 0
    %649 = vmatprep.subr.bf16.mxu0 0
    %650 = vmatpush1.bf16.msra.mxu0 0
    %651 = vmatprep.subr.bf16.mxu0 0
    %652 = vmatpush1.bf16.msra.mxu0 0
    %653 = vmatprep.subr.bf16.mxu0 0
    %654 = vmatpush1.bf16.msra.mxu0 0
    %655 = vmatprep.subr.bf16.mxu0 0
    %656 = vmatpush1.bf16.msra.mxu0 0
    %657 = vmatprep.subr.bf16.mxu0 0
    %658 = vmatpush1.bf16.msra.mxu0 0
    %659 = vmatprep.subr.bf16.mxu0 0
    %660 = vmatpush1.bf16.msra.mxu0 0
    %661 = vmatprep.subr.bf16.mxu0 0
    %662 = vmatpush1.bf16.msra.mxu0 0
    %663 = vmatprep.subr.bf16.mxu0 0
    %664 = vmatpush1.bf16.msra.mxu0 0
    %665 = vmatprep.subr.bf16.mxu0 0
    %666 = vmatpush1.bf16.msra.mxu0 0
    %667 = vmatprep.subr.bf16.mxu0 0
    %668 = vmatpush1.bf16.msra.mxu0 0
    %669 = vmatprep.subr.bf16.mxu0 0
    %670 = vmatpush1.bf16.msra.mxu0 0
    %671 = vmatprep.subr.bf16.mxu0 0
    %672 = vmatpush1.bf16.msra.mxu0 0
    %673 = vmatprep.subr.bf16.mxu0 0
    %674 = vmatpush1.bf16.msra.mxu0 0
    %675 = vmatprep.mubr.bf16.mxu0 0
    %676 = vmatmul.mubr.bf16.gmra.mrb[0].mxu0 %v638
    %v677 = vpop.f32.mrb[0].mxu0
    %v678 = vadd.f32 0.0, %v677
    %v679 = vpop.f32.mrb[0].mxu0
    %v680 = vpop.f32.mrb[0].mxu0
    %v681 = vpop.f32.mrb[0].mxu0
    %682 = vdwg.mxu0
    %v683 = vpack.c.bf16 %v630, %v630
    %v684 = vpack.c.bf16 %v678, %v678
    %685 = vrot.lane.b32.xlu0 %v457, 120
    %v686 = vpop.permute.xlu0 %685
    %687 = vrot.lane.b32.xlu0 %v457, 88
    %v688 = vpop.permute.xlu0 %687
    %v690 = vsel %vm462, %v686, 0
    %v693 = vsel %vm462, %v688, 0
    %695 = vmatprep.subr.bf16.mxu0 0
    %696 = vmatpush1.bf16.xpose.msra.mxu0 %v693
    %697 = vmatprep.subr.bf16.mxu0 0
    %698 = vmatpush1.bf16.xpose.msra.mxu0 0
    %699 = vmatprep.subr.bf16.mxu0 0
    %700 = vmatpush1.bf16.xpose.msra.mxu0 0
    %701 = vmatprep.subr.bf16.mxu0 0
    %702 = vmatpush1.bf16.xpose.msra.mxu0 0
    %703 = vmatprep.subr.bf16.mxu0 0
    %704 = vmatpush1.bf16.xpose.msra.mxu0 0
    %705 = vmatprep.subr.bf16.mxu0 0
    %706 = vmatpush1.bf16.xpose.msra.mxu0 0
    %707 = vmatprep.subr.bf16.mxu0 0
    %708 = vmatpush1.bf16.xpose.msra.mxu0 0
    %709 = vmatprep.subr.bf16.mxu0 0
    %710 = vmatpush1.bf16.xpose.msra.mxu0 0
    %711 = vmatprep.subr.bf16.mxu0 0
    %712 = vmatpush1.bf16.xpose.msra.mxu0 0
    %713 = vmatprep.subr.bf16.mxu0 0
    %714 = vmatpush1.bf16.xpose.msra.mxu0 0
    %715 = vmatprep.subr.bf16.mxu0 0
    %716 = vmatpush1.bf16.xpose.msra.mxu0 0
    %717 = vmatprep.subr.bf16.mxu0 0
    %718 = vmatpush1.bf16.xpose.msra.mxu0 0
    %719 = vmatprep.subr.bf16.mxu0 0
    %720 = vmatpush1.bf16.xpose.msra.mxu0 0
    %721 = vmatprep.subr.bf16.mxu0 0
    %722 = vmatpush1.bf16.xpose.msra.mxu0 0
    %723 = vmatprep.subr.bf16.mxu0 0
    %724 = vmatpush1.bf16.xpose.msra.mxu0 0
    %725 = vmatprep.subr.bf16.mxu0 0
    %726 = vmatpush1.bf16.xpose.msra.mxu0 0
    %727 = vmatprep.mubr.bf16.mxu0 0
    %728 = vmatmul.mubr.bf16.gmra.mrb[0].mxu0 %v690
    %v729 = vpop.f32.mrb[0].mxu0
    %v730 = vadd.f32 0.0, %v729
    %v731 = vpop.f32.mrb[0].mxu0
    %v732 = vpop.f32.mrb[0].mxu0
    %v733 = vpop.f32.mrb[0].mxu0
    %734 = vdwg.mxu0
    %735 = vrot.lane.b32.xlu0 %v458, 120
    %v736 = vpop.permute.xlu0 %735
    %737 = vrot.lane.b32.xlu0 %v458, 88
    %v738 = vpop.permute.xlu0 %737
    %v740 = vsel %vm462, %v736, 0
    %v743 = vsel %vm462, %v738, 0
    %745 = vmatprep.subr.bf16.mxu0 0
    %746 = vmatpush1.bf16.xpose.msra.mxu0 %v743
    %747 = vmatprep.subr.bf16.mxu0 0
    %748 = vmatpush1.bf16.xpose.msra.mxu0 0
    %749 = vmatprep.subr.bf16.mxu0 0
    %750 = vmatpush1.bf16.xpose.msra.mxu0 0
    %751 = vmatprep.subr.bf16.mxu0 0
    %752 = vmatpush1.bf16.xpose.msra.mxu0 0
    %753 = vmatprep.subr.bf16.mxu0 0
    %754 = vmatpush1.bf16.xpose.msra.mxu0 0
    %755 = vmatprep.subr.bf16.mxu0 0
    %756 = vmatpush1.bf16.xpose.msra.mxu0 0
    %757 = vmatprep.subr.bf16.mxu0 0
    %758 = vmatpush1.bf16.xpose.msra.mxu0 0
    %759 = vmatprep.subr.bf16.mxu0 0
    %760 = vmatpush1.bf16.xpose.msra.mxu0 0
    %761 = vmatprep.subr.bf16.mxu0 0
    %762 = vmatpush1.bf16.xpose.msra.mxu0 0
    %763 = vmatprep.subr.bf16.mxu0 0
    %764 = vmatpush1.bf16.xpose.msra.mxu0 0
    %765 = vmatprep.subr.bf16.mxu0 0
    %766 = vmatpush1.bf16.xpose.msra.mxu0 0
    %767 = vmatprep.subr.bf16.mxu0 0
    %768 = vmatpush1.bf16.xpose.msra.mxu0 0
    %769 = vmatprep.subr.bf16.mxu0 0
    %770 = vmatpush1.bf16.xpose.msra.mxu0 0
    %771 = vmatprep.subr.bf16.mxu0 0
    %772 = vmatpush1.bf16.xpose.msra.mxu0 0
    %773 = vmatprep.subr.bf16.mxu0 0
    %774 = vmatpush1.bf16.xpose.msra.mxu0 0
    %775 = vmatprep.subr.bf16.mxu0 0
    %776 = vmatpush1.bf16.xpose.msra.mxu0 0
    %777 = vmatprep.mubr.bf16.mxu0 0
    %778 = vmatmul.mubr.bf16.gmra.mrb[0].mxu0 %v740
    %v779 = vpop.f32.mrb[0].mxu0
    %v780 = vadd.f32 0.0, %v779
    %v781 = vpop.f32.mrb[0].mxu0
    %v782 = vpop.f32.mrb[0].mxu0
    %v783 = vpop.f32.mrb[0].mxu0
    %784 = vdwg.mxu0
    %v785 = vmul.f32 %v730, 0.35355338
    %v786 = vmul.f32 %v780, 0.35355338
    %v787 = vadd.f32 %v785, %v79
    %v788 = vadd.f32 %v786, %v79
    %v789 = vsel %vm462, %v787, -inf
    %790 = vmax.xlane.f32.xlu0 %v789
    %v791 = vpop.xlane.xlu0 %790
    %v792 = vsel %vm462, %v788, -inf
    %793 = vmax.xlane.f32.xlu0 %v792
    %v794 = vpop.xlane.xlu0 %793
    %v795 = vsub.f32 %v787, %v791
    %v796 = vsub.f32 %v788, %v794
    %v797 = vmul.f32 %v795, 1.442695
    %v798 = vpow.pop %v797
    %v799 = vmul.f32 %v796, 1.442695
    %v800 = vpow.pop %v799
    %v801 = vsel %vm462, %v798, 0.0
    %802 = vadd.xlane.f32.xlu0 %v801
    %v803 = vpop.xlane.xlu0 %802
    %v804 = vsel %vm462, %v800, 0.0
    %805 = vadd.xlane.f32.xlu0 %v804
    %v806 = vpop.xlane.xlu0 %805
    %v807 = vrcp.pop %v803
    %v808 = vmul.f32 %v798, %v807
    %v809 = vrcp.pop %v806
    %v810 = vmul.f32 %v800, %v809
    %v811 = vpack.c.bf16 %v808, %v808
    %v812 = vpack.c.bf16 %v810, %v810
    %813 = vrot.lane.b32.xlu0 %v457, 56
    %v814 = vpop.permute.xlu0 %813
    %v816 = vsel %vm462, %v811, 0
    %v819 = vsel %vm591, %v814, 0
    %821 = vmatprep.subr.bf16.mxu0 0
    %822 = vmatpush1.bf16.msra.mxu0 %v819
    %823 = vmatprep.subr.bf16.mxu0 0
    %824 = vmatpush1.bf16.msra.mxu0 0
    %825 = vmatprep.subr.bf16.mxu0 0
    %826 = vmatpush1.bf16.msra.mxu0 0
    %827 = vmatprep.subr.bf16.mxu0 0
    %828 = vmatpush1.bf16.msra.mxu0 0
    %829 = vmatprep.subr.bf16.mxu0 0
    %830 = vmatpush1.bf16.msra.mxu0 0
    %831 = vmatprep.subr.bf16.mxu0 0
    %832 = vmatpush1.bf16.msra.mxu0 0
    %833 = vmatprep.subr.bf16.mxu0 0
    %834 = vmatpush1.bf16.msra.mxu0 0
    %835 = vmatprep.subr.bf16.mxu0 0
    %836 = vmatpush1.bf16.msra.mxu0 0
    %837 = vmatprep.subr.bf16.mxu0 0
    %838 = vmatpush1.bf16.msra.mxu0 0
    %839 = vmatprep.subr.bf16.mxu0 0
    %840 = vmatpush1.bf16.msra.mxu0 0
    %841 = vmatprep.subr.bf16.mxu0 0
    %842 = vmatpush1.bf16.msra.mxu0 0
    %843 = vmatprep.subr.bf16.mxu0 0
    %844 = vmatpush1.bf16.msra.mxu0 0
    %845 = vmatprep.subr.bf16.mxu0 0
    %846 = vmatpush1.bf16.msra.mxu0 0
    %847 = vmatprep.subr.bf16.mxu0 0
    %848 = vmatpush1.bf16.msra.mxu0 0
    %849 = vmatprep.subr.bf16.mxu0 0
    %850 = vmatpush1.bf16.msra.mxu0 0
    %851 = vmatprep.subr.bf16.mxu0 0
    %852 = vmatpush1.bf16.msra.mxu0 0
    %853 = vmatprep.mubr.bf16.mxu0 0
    %854 = vmatmul.mubr.bf16.gmra.mrb[0].mxu0 %v816
    %v855 = vpop.f32.mrb[0].mxu0
    %v856 = vadd.f32 0.0, %v855
    %v857 = vpop.f32.mrb[0].mxu0
    %v858 = vpop.f32.mrb[0].mxu0
    %v859 = vpop.f32.mrb[0].mxu0
    %860 = vdwg.mxu0
    %861 = vrot.lane.b32.xlu0 %v458, 56
    %v862 = vpop.permute.xlu0 %861
    %v864 = vsel %vm462, %v812, 0
    %v867 = vsel %vm591, %v862, 0
    %869 = vmatprep.subr.bf16.mxu0 0
    %870 = vmatpush1.bf16.msra.mxu0 %v867
    %871 = vmatprep.subr.bf16.mxu0 0
    %872 = vmatpush1.bf16.msra.mxu0 0
    %873 = vmatprep.subr.bf16.mxu0 0
    %874 = vmatpush1.bf16.msra.mxu0 0
    %875 = vmatprep.subr.bf16.mxu0 0
    %876 = vmatpush1.bf16.msra.mxu0 0
    %877 = vmatprep.subr.bf16.mxu0 0
    %878 = vmatpush1.bf16.msra.mxu0 0
    %879 = vmatprep.subr.bf16.mxu0 0
    %880 = vmatpush1.bf16.msra.mxu0 0
    %881 = vmatprep.subr.bf16.mxu0 0
    %882 = vmatpush1.bf16.msra.mxu0 0
    %883 = vmatprep.subr.bf16.mxu0 0
    %884 = vmatpush1.bf16.msra.mxu0 0
    %885 = vmatprep.subr.bf16.mxu0 0
    %886 = vmatpush1.bf16.msra.mxu0 0
    %887 = vmatprep.subr.bf16.mxu0 0
    %888 = vmatpush1.bf16.msra.mxu0 0
    %889 = vmatprep.subr.bf16.mxu0 0
    %890 = vmatpush1.bf16.msra.mxu0 0
    %891 = vmatprep.subr.bf16.mxu0 0
    %892 = vmatpush1.bf16.msra.mxu0 0
    %893 = vmatprep.subr.bf16.mxu0 0
    %894 = vmatpush1.bf16.msra.mxu0 0
    %895 = vmatprep.subr.bf16.mxu0 0
    %896 = vmatpush1.bf16.msra.mxu0 0
    %897 = vmatprep.subr.bf16.mxu0 0
    %898 = vmatpush1.bf16.msra.mxu0 0
    %899 = vmatprep.subr.bf16.mxu0 0
    %900 = vmatpush1.bf16.msra.mxu0 0
    %901 = vmatprep.mubr.bf16.mxu0 0
    %902 = vmatmul.mubr.bf16.gmra.mrb[0].mxu0 %v864
    %v903 = vpop.f32.mrb[0].mxu0
    %v904 = vadd.f32 0.0, %v903
    %v905 = vpop.f32.mrb[0].mxu0
    %v906 = vpop.f32.mrb[0].mxu0
    %v907 = vpop.f32.mrb[0].mxu0
    %908 = vdwg.mxu0
    %v909 = vpack.c.bf16 %v856, %v856
    %v910 = vpack.c.bf16 %v904, %v904
    %v913 = vunpack.c.l.b16 %v909
    %v914 = vunpack.c.l.b16 %v910
    %v915 = vpack.c.b16 %v914, %v913
    %v917 = vsel %vm462, %v915, 0
    %v920 = vsel %vm591, %v85, 0
    %922 = vmatprep.subr.bf16.mxu0 0
    %923 = vmatpush1.bf16.msra.mxu0 %v920
    %924 = vmatprep.subr.bf16.mxu0 0
    %925 = vmatpush1.bf16.msra.mxu0 0
    %926 = vmatprep.subr.bf16.mxu0 0
    %927 = vmatpush1.bf16.msra.mxu0 0
    %928 = vmatprep.subr.bf16.mxu0 0
    %929 = vmatpush1.bf16.msra.mxu0 0
    %930 = vmatprep.subr.bf16.mxu0 0
    %931 = vmatpush1.bf16.msra.mxu0 0
    %932 = vmatprep.subr.bf16.mxu0 0
    %933 = vmatpush1.bf16.msra.mxu0 0
    %934 = vmatprep.subr.bf16.mxu0 0
    %935 = vmatpush1.bf16.msra.mxu0 0
    %936 = vmatprep.subr.bf16.mxu0 0
    %937 = vmatpush1.bf16.msra.mxu0 0
    %938 = vmatprep.subr.bf16.mxu0 0
    %939 = vmatpush1.bf16.msra.mxu0 0
    %940 = vmatprep.subr.bf16.mxu0 0
    %941 = vmatpush1.bf16.msra.mxu0 0
    %942 = vmatprep.subr.bf16.mxu0 0
    %943 = vmatpush1.bf16.msra.mxu0 0
    %944 = vmatprep.subr.bf16.mxu0 0
    %945 = vmatpush1.bf16.msra.mxu0 0
    %946 = vmatprep.subr.bf16.mxu0 0
    %947 = vmatpush1.bf16.msra.mxu0 0
    %948 = vmatprep.subr.bf16.mxu0 0
    %949 = vmatpush1.bf16.msra.mxu0 0
    %950 = vmatprep.subr.bf16.mxu0 0
    %951 = vmatpush1.bf16.msra.mxu0 0
    %952 = vmatprep.subr.bf16.mxu0 0
    %953 = vmatpush1.bf16.msra.mxu0 0
    %954 = vmatprep.mubr.bf16.mxu0 0
    %955 = vmatmul.mubr.bf16.gmra.mrb[0].mxu0 %v917
    %v956 = vpop.f32.mrb[0].mxu0
    %v957 = vadd.f32 0.0, %v956
    %v958 = vpop.f32.mrb[0].mxu0
    %v959 = vpop.f32.mrb[0].mxu0
    %v960 = vadd.f32 0.0, %v959
    %v961 = vpop.f32.mrb[0].mxu0
    %962 = vdwg.mxu0
    %v965 = vunpack.c.l.b16 %v683
    %v966 = vunpack.c.l.b16 %v684
    %v967 = vpack.c.b16 %v966, %v965
    %v969 = vsel %vm462, %v967, 0
    %v972 = vsel %vm591, %v84, 0
    %974 = vmatprep.subr.bf16.mxu0 0
    %975 = vmatpush1.bf16.msra.mxu0 %v972
    %976 = vmatprep.subr.bf16.mxu0 0
    %977 = vmatpush1.bf16.msra.mxu0 0
    %978 = vmatprep.subr.bf16.mxu0 0
    %979 = vmatpush1.bf16.msra.mxu0 0
    %980 = vmatprep.subr.bf16.mxu0 0
    %981 = vmatpush1.bf16.msra.mxu0 0
    %982 = vmatprep.subr.bf16.mxu0 0
    %983 = vmatpush1.bf16.msra.mxu0 0
    %984 = vmatprep.subr.bf16.mxu0 0
    %985 = vmatpush1.bf16.msra.mxu0 0
    %986 = vmatprep.subr.bf16.mxu0 0
    %987 = vmatpush1.bf16.msra.mxu0 0
    %988 = vmatprep.subr.bf16.mxu0 0
    %989 = vmatpush1.bf16.msra.mxu0 0
    %990 = vmatprep.subr.bf16.mxu0 0
    %991 = vmatpush1.bf16.msra.mxu0 0
    %992 = vmatprep.subr.bf16.mxu0 0
    %993 = vmatpush1.bf16.msra.mxu0 0
    %994 = vmatprep.subr.bf16.mxu0 0
    %995 = vmatpush1.bf16.msra.mxu0 0
    %996 = vmatprep.subr.bf16.mxu0 0
    %997 = vmatpush1.bf16.msra.mxu0 0
    %998 = vmatprep.subr.bf16.mxu0 0
    %999 = vmatpush1.bf16.msra.mxu0 0
    %1000 = vmatprep.subr.bf16.mxu0 0
    %1001 = vmatpush1.bf16.msra.mxu0 0
    %1002 = vmatprep.subr.bf16.mxu0 0
    %1003 = vmatpush1.bf16.msra.mxu0 0
    %1004 = vmatprep.subr.bf16.mxu0 0
    %1005 = vmatpush1.bf16.msra.mxu0 0
    %1006 = vmatprep.mubr.bf16.mxu0 0
    %1007 = vmatmul.mubr.bf16.gmra.mrb[0].mxu0 %v969
    %v1008 = vpop.f32.mrb[0].mxu0
    %v1009 = vadd.f32 %v957, %v1008
    %v1010 = vpop.f32.mrb[0].mxu0
    %v1011 = vpop.f32.mrb[0].mxu0
    %v1012 = vadd.f32 %v960, %v1011
    %v1013 = vpop.f32.mrb[0].mxu0
    %1014 = vdwg.mxu0
    %1015 = vrot.lane.b32.xlu0 %v457, 112
    %v1016 = vpop.permute.xlu0 %1015
    %1017 = vrot.lane.b32.xlu0 %v457, 80
    %v1018 = vpop.permute.xlu0 %1017
    %v1020 = vsel %vm462, %v1016, 0
    %v1023 = vsel %vm462, %v1018, 0
    %1025 = vmatprep.subr.bf16.mxu0 0
    %1026 = vmatpush1.bf16.xpose.msra.mxu0 %v1023
    %1027 = vmatprep.subr.bf16.mxu0 0
    %1028 = vmatpush1.bf16.xpose.msra.mxu0 0
    %1029 = vmatprep.subr.bf16.mxu0 0
    %1030 = vmatpush1.bf16.xpose.msra.mxu0 0
    %1031 = vmatprep.subr.bf16.mxu0 0
    %1032 = vmatpush1.bf16.xpose.msra.mxu0 0
    %1033 = vmatprep.subr.bf16.mxu0 0
    %1034 = vmatpush1.bf16.xpose.msra.mxu0 0
    %1035 = vmatprep.subr.bf16.mxu0 0
    %1036 = vmatpush1.bf16.xpose.msra.mxu0 0
    %1037 = vmatprep.subr.bf16.mxu0 0
    %1038 = vmatpush1.bf16.xpose.msra.mxu0 0
    %1039 = vmatprep.subr.bf16.mxu0 0
    %1040 = vmatpush1.bf16.xpose.msra.mxu0 0
    %1041 = vmatprep.subr.bf16.mxu0 0
    %1042 = vmatpush1.bf16.xpose.msra.mxu0 0
    %1043 = vmatprep.subr.bf16.mxu0 0
    %1044 = vmatpush1.bf16.xpose.msra.mxu0 0
    %1045 = vmatprep.subr.bf16.mxu0 0
    %1046 = vmatpush1.bf16.xpose.msra.mxu0 0
    %1047 = vmatprep.subr.bf16.mxu0 0
    %1048 = vmatpush1.bf16.xpose.msra.mxu0 0
    %1049 = vmatprep.subr.bf16.mxu0 0
    %1050 = vmatpush1.bf16.xpose.msra.mxu0 0
    %1051 = vmatprep.subr.bf16.mxu0 0
    %1052 = vmatpush1.bf16.xpose.msra.mxu0 0
    %1053 = vmatprep.subr.bf16.mxu0 0
    %1054 = vmatpush1.bf16.xpose.msra.mxu0 0
    %1055 = vmatprep.subr.bf16.mxu0 0
    %1056 = vmatpush1.bf16.xpose.msra.mxu0 0
    %1057 = vmatprep.mubr.bf16.mxu0 0
    %1058 = vmatmul.mubr.bf16.gmra.mrb[0].mxu0 %v1020
    %v1059 = vpop.f32.mrb[0].mxu0
    %v1060 = vadd.f32 0.0, %v1059
    %v1061 = vpop.f32.mrb[0].mxu0
    %v1062 = vpop.f32.mrb[0].mxu0
    %v1063 = vpop.f32.mrb[0].mxu0
    %1064 = vdwg.mxu0
    %1065 = vrot.lane.b32.xlu0 %v458, 112
    %v1066 = vpop.permute.xlu0 %1065
    %1067 = vrot.lane.b32.xlu0 %v458, 80
    %v1068 = vpop.permute.xlu0 %1067
    %v1070 = vsel %vm462, %v1066, 0
    %v1073 = vsel %vm462, %v1068, 0
    %1075 = vmatprep.subr.bf16.mxu0 0
    %1076 = vmatpush1.bf16.xpose.msra.mxu0 %v1073
    %1077 = vmatprep.subr.bf16.mxu0 0
    %1078 = vmatpush1.bf16.xpose.msra.mxu0 0
    %1079 = vmatprep.subr.bf16.mxu0 0
    %1080 = vmatpush1.bf16.xpose.msra.mxu0 0
    %1081 = vmatprep.subr.bf16.mxu0 0
    %1082 = vmatpush1.bf16.xpose.msra.mxu0 0
    %1083 = vmatprep.subr.bf16.mxu0 0
    %1084 = vmatpush1.bf16.xpose.msra.mxu0 0
    %1085 = vmatprep.subr.bf16.mxu0 0
    %1086 = vmatpush1.bf16.xpose.msra.mxu0 0
    %1087 = vmatprep.subr.bf16.mxu0 0
    %1088 = vmatpush1.bf16.xpose.msra.mxu0 0
    %1089 = vmatprep.subr.bf16.mxu0 0
    %1090 = vmatpush1.bf16.xpose.msra.mxu0 0
    %1091 = vmatprep.subr.bf16.mxu0 0
    %1092 = vmatpush1.bf16.xpose.msra.mxu0 0
    %1093 = vmatprep.subr.bf16.mxu0 0
    %1094 = vmatpush1.bf16.xpose.msra.mxu0 0
    %1095 = vmatprep.subr.bf16.mxu0 0
    %1096 = vmatpush1.bf16.xpose.msra.mxu0 0
    %1097 = vmatprep.subr.bf16.mxu0 0
    %1098 = vmatpush1.bf16.xpose.msra.mxu0 0
    %1099 = vmatprep.subr.bf16.mxu0 0
    %1100 = vmatpush1.bf16.xpose.msra.mxu0 0
    %1101 = vmatprep.subr.bf16.mxu0 0
    %1102 = vmatpush1.bf16.xpose.msra.mxu0 0
    %1103 = vmatprep.subr.bf16.mxu0 0
    %1104 = vmatpush1.bf16.xpose.msra.mxu0 0
    %1105 = vmatprep.subr.bf16.mxu0 0
    %1106 = vmatpush1.bf16.xpose.msra.mxu0 0
    %1107 = vmatprep.mubr.bf16.mxu0 0
    %1108 = vmatmul.mubr.bf16.gmra.mrb[0].mxu0 %v1070
    %v1109 = vpop.f32.mrb[0].mxu0
    %v1110 = vadd.f32 0.0, %v1109
    %v1111 = vpop.f32.mrb[0].mxu0
    %v1112 = vpop.f32.mrb[0].mxu0
    %v1113 = vpop.f32.mrb[0].mxu0
    %1114 = vdwg.mxu0
    %v1115 = vmul.f32 %v1060, 0.35355338
    %v1116 = vmul.f32 %v1110, 0.35355338
    %v1117 = vadd.f32 %v1115, %v79
    %v1118 = vadd.f32 %v1116, %v79
    %v1119 = vsel %vm462, %v1117, -inf
    %1120 = vmax.xlane.f32.xlu0 %v1119
    %v1121 = vpop.xlane.xlu0 %1120
    %v1122 = vsel %vm462, %v1118, -inf
    %1123 = vmax.xlane.f32.xlu0 %v1122
    %v1124 = vpop.xlane.xlu0 %1123
    %v1125 = vsub.f32 %v1117, %v1121
    %v1126 = vsub.f32 %v1118, %v1124
    %v1127 = vmul.f32 %v1125, 1.442695
    %v1128 = vpow.pop %v1127
    %v1129 = vmul.f32 %v1126, 1.442695
    %v1130 = vpow.pop %v1129
    %v1131 = vsel %vm462, %v1128, 0.0
    %1132 = vadd.xlane.f32.xlu0 %v1131
    %v1133 = vpop.xlane.xlu0 %1132
    %v1134 = vsel %vm462, %v1130, 0.0
    %1135 = vadd.xlane.f32.xlu0 %v1134
    %v1136 = vpop.xlane.xlu0 %1135
    %v1137 = vrcp.pop %v1133
    %v1138 = vmul.f32 %v1128, %v1137
    %v1139 = vrcp.pop %v1136
    %v1140 = vmul.f32 %v1130, %v1139
    %v1141 = vpack.c.bf16 %v1138, %v1138
    %v1142 = vpack.c.bf16 %v1140, %v1140
    %1143 = vrot.lane.b32.xlu0 %v457, 48
    %v1144 = vpop.permute.xlu0 %1143
    %v1146 = vsel %vm462, %v1141, 0
    %v1149 = vsel %vm591, %v1144, 0
    %1151 = vmatprep.subr.bf16.mxu0 0
    %1152 = vmatpush1.bf16.msra.mxu0 %v1149
    %1153 = vmatprep.subr.bf16.mxu0 0
    %1154 = vmatpush1.bf16.msra.mxu0 0
    %1155 = vmatprep.subr.bf16.mxu0 0
    %1156 = vmatpush1.bf16.msra.mxu0 0
    %1157 = vmatprep.subr.bf16.mxu0 0
    %1158 = vmatpush1.bf16.msra.mxu0 0
    %1159 = vmatprep.subr.bf16.mxu0 0
    %1160 = vmatpush1.bf16.msra.mxu0 0
    %1161 = vmatprep.subr.bf16.mxu0 0
    %1162 = vmatpush1.bf16.msra.mxu0 0
    %1163 = vmatprep.subr.bf16.mxu0 0
    %1164 = vmatpush1.bf16.msra.mxu0 0
    %1165 = vmatprep.subr.bf16.mxu0 0
    %1166 = vmatpush1.bf16.msra.mxu0 0
    %1167 = vmatprep.subr.bf16.mxu0 0
    %1168 = vmatpush1.bf16.msra.mxu0 0
    %1169 = vmatprep.subr.bf16.mxu0 0
    %1170 = vmatpush1.bf16.msra.mxu0 0
    %1171 = vmatprep.subr.bf16.mxu0 0
    %1172 = vmatpush1.bf16.msra.mxu0 0
    %1173 = vmatprep.subr.bf16.mxu0 0
    %1174 = vmatpush1.bf16.msra.mxu0 0
    %1175 = vmatprep.subr.bf16.mxu0 0
    %1176 = vmatpush1.bf16.msra.mxu0 0
    %1177 = vmatprep.subr.bf16.mxu0 0
    %1178 = vmatpush1.bf16.msra.mxu0 0
    %1179 = vmatprep.subr.bf16.mxu0 0
    %1180 = vmatpush1.bf16.msra.mxu0 0
    %1181 = vmatprep.subr.bf16.mxu0 0
    %1182 = vmatpush1.bf16.msra.mxu0 0
    %1183 = vmatprep.mubr.bf16.mxu0 0
    %1184 = vmatmul.mubr.bf16.gmra.mrb[0].mxu0 %v1146
    %v1185 = vpop.f32.mrb[0].mxu0
    %v1186 = vadd.f32 0.0, %v1185
    %v1187 = vpop.f32.mrb[0].mxu0
    %v1188 = vpop.f32.mrb[0].mxu0
    %v1189 = vpop.f32.mrb[0].mxu0
    %1190 = vdwg.mxu0
    %1191 = vrot.lane.b32.xlu0 %v458, 48
    %v1192 = vpop.permute.xlu0 %1191
    %v1194 = vsel %vm462, %v1142, 0
    %v1197 = vsel %vm591, %v1192, 0
    %1199 = vmatprep.subr.bf16.mxu0 0
    %1200 = vmatpush1.bf16.msra.mxu0 %v1197
    %1201 = vmatprep.subr.bf16.mxu0 0
    %1202 = vmatpush1.bf16.msra.mxu0 0
    %1203 = vmatprep.subr.bf16.mxu0 0
    %1204 = vmatpush1.bf16.msra.mxu0 0
    %1205 = vmatprep.subr.bf16.mxu0 0
    %1206 = vmatpush1.bf16.msra.mxu0 0
    %1207 = vmatprep.subr.bf16.mxu0 0
    %1208 = vmatpush1.bf16.msra.mxu0 0
    %1209 = vmatprep.subr.bf16.mxu0 0
    %1210 = vmatpush1.bf16.msra.mxu0 0
    %1211 = vmatprep.subr.bf16.mxu0 0
    %1212 = vmatpush1.bf16.msra.mxu0 0
    %1213 = vmatprep.subr.bf16.mxu0 0
    %1214 = vmatpush1.bf16.msra.mxu0 0
    %1215 = vmatprep.subr.bf16.mxu0 0
    %1216 = vmatpush1.bf16.msra.mxu0 0
    %1217 = vmatprep.subr.bf16.mxu0 0
    %1218 = vmatpush1.bf16.msra.mxu0 0
    %1219 = vmatprep.subr.bf16.mxu0 0
    %1220 = vmatpush1.bf16.msra.mxu0 0
    %1221 = vmatprep.subr.bf16.mxu0 0
    %1222 = vmatpush1.bf16.msra.mxu0 0
    %1223 = vmatprep.subr.bf16.mxu0 0
    %1224 = vmatpush1.bf16.msra.mxu0 0
    %1225 = vmatprep.subr.bf16.mxu0 0
    %1226 = vmatpush1.bf16.msra.mxu0 0
    %1227 = vmatprep.subr.bf16.mxu0 0
    %1228 = vmatpush1.bf16.msra.mxu0 0
    %1229 = vmatprep.subr.bf16.mxu0 0
    %1230 = vmatpush1.bf16.msra.mxu0 0
    %1231 = vmatprep.mubr.bf16.mxu0 0
    %1232 = vmatmul.mubr.bf16.gmra.mrb[0].mxu0 %v1194
    %v1233 = vpop.f32.mrb[0].mxu0
    %v1234 = vadd.f32 0.0, %v1233
    %v1235 = vpop.f32.mrb[0].mxu0
    %v1236 = vpop.f32.mrb[0].mxu0
    %v1237 = vpop.f32.mrb[0].mxu0
    %1238 = vdwg.mxu0
    %v1239 = vpack.c.bf16 %v1186, %v1186
    %v1240 = vpack.c.bf16 %v1234, %v1234
    %v1243 = vunpack.c.l.b16 %v1239
    %v1244 = vunpack.c.l.b16 %v1240
    %v1245 = vpack.c.b16 %v1244, %v1243
    %v1247 = vsel %vm462, %v1245, 0
    %v1250 = vsel %vm591, %v86, 0
    %1252 = vmatprep.subr.bf16.mxu0 0
    %1253 = vmatpush1.bf16.msra.mxu0 %v1250
    %1254 = vmatprep.subr.bf16.mxu0 0
    %1255 = vmatpush1.bf16.msra.mxu0 0
    %1256 = vmatprep.subr.bf16.mxu0 0
    %1257 = vmatpush1.bf16.msra.mxu0 0
    %1258 = vmatprep.subr.bf16.mxu0 0
    %1259 = vmatpush1.bf16.msra.mxu0 0
    %1260 = vmatprep.subr.bf16.mxu0 0
    %1261 = vmatpush1.bf16.msra.mxu0 0
    %1262 = vmatprep.subr.bf16.mxu0 0
    %1263 = vmatpush1.bf16.msra.mxu0 0
    %1264 = vmatprep.subr.bf16.mxu0 0
    %1265 = vmatpush1.bf16.msra.mxu0 0
    %1266 = vmatprep.subr.bf16.mxu0 0
    %1267 = vmatpush1.bf16.msra.mxu0 0
    %1268 = vmatprep.subr.bf16.mxu0 0
    %1269 = vmatpush1.bf16.msra.mxu0 0
    %1270 = vmatprep.subr.bf16.mxu0 0
    %1271 = vmatpush1.bf16.msra.mxu0 0
    %1272 = vmatprep.subr.bf16.mxu0 0
    %1273 = vmatpush1.bf16.msra.mxu0 0
    %1274 = vmatprep.subr.bf16.mxu0 0
    %1275 = vmatpush1.bf16.msra.mxu0 0
    %1276 = vmatprep.subr.bf16.mxu0 0
    %1277 = vmatpush1.bf16.msra.mxu0 0
    %1278 = vmatprep.subr.bf16.mxu0 0
    %1279 = vmatpush1.bf16.msra.mxu0 0
    %1280 = vmatprep.subr.bf16.mxu0 0
    %1281 = vmatpush1.bf16.msra.mxu0 0
    %1282 = vmatprep.subr.bf16.mxu0 0
    %1283 = vmatpush1.bf16.msra.mxu0 0
    %1284 = vmatprep.mubr.bf16.mxu0 0
    %1285 = vmatmul.mubr.bf16.gmra.mrb[0].mxu0 %v1247
    %v1286 = vpop.f32.mrb[0].mxu0
    %v1287 = vadd.f32 0.0, %v1286
    %v1288 = vpop.f32.mrb[0].mxu0
    %v1289 = vpop.f32.mrb[0].mxu0
    %v1290 = vadd.f32 0.0, %v1289
    %v1291 = vpop.f32.mrb[0].mxu0
    %1292 = vdwg.mxu0
    %v1293 = vadd.f32 %v1009, %v1287
    %v1294 = vadd.f32 %v1012, %v1290
    %1295 = vrot.lane.b32.xlu0 %v457, 104
    %v1296 = vpop.permute.xlu0 %1295
    %1297 = vrot.lane.b32.xlu0 %v457, 72
    %v1298 = vpop.permute.xlu0 %1297
    %v1300 = vsel %vm462, %v1296, 0
    %v1303 = vsel %vm462, %v1298, 0
    %1305 = vmatprep.subr.bf16.mxu0 0
    %1306 = vmatpush1.bf16.xpose.msra.mxu0 %v1303
    %1307 = vmatprep.subr.bf16.mxu0 0
    %1308 = vmatpush1.bf16.xpose.msra.mxu0 0
    %1309 = vmatprep.subr.bf16.mxu0 0
    %1310 = vmatpush1.bf16.xpose.msra.mxu0 0
    %1311 = vmatprep.subr.bf16.mxu0 0
    %1312 = vmatpush1.bf16.xpose.msra.mxu0 0
    %1313 = vmatprep.subr.bf16.mxu0 0
    %1314 = vmatpush1.bf16.xpose.msra.mxu0 0
    %1315 = vmatprep.subr.bf16.mxu0 0
    %1316 = vmatpush1.bf16.xpose.msra.mxu0 0
    %1317 = vmatprep.subr.bf16.mxu0 0
    %1318 = vmatpush1.bf16.xpose.msra.mxu0 0
    %1319 = vmatprep.subr.bf16.mxu0 0
    %1320 = vmatpush1.bf16.xpose.msra.mxu0 0
    %1321 = vmatprep.subr.bf16.mxu0 0
    %1322 = vmatpush1.bf16.xpose.msra.mxu0 0
    %1323 = vmatprep.subr.bf16.mxu0 0
    %1324 = vmatpush1.bf16.xpose.msra.mxu0 0
    %1325 = vmatprep.subr.bf16.mxu0 0
    %1326 = vmatpush1.bf16.xpose.msra.mxu0 0
    %1327 = vmatprep.subr.bf16.mxu0 0
    %1328 = vmatpush1.bf16.xpose.msra.mxu0 0
    %1329 = vmatprep.subr.bf16.mxu0 0
    %1330 = vmatpush1.bf16.xpose.msra.mxu0 0
    %1331 = vmatprep.subr.bf16.mxu0 0
    %1332 = vmatpush1.bf16.xpose.msra.mxu0 0
    %1333 = vmatprep.subr.bf16.mxu0 0
    %1334 = vmatpush1.bf16.xpose.msra.mxu0 0
    %1335 = vmatprep.subr.bf16.mxu0 0
    %1336 = vmatpush1.bf16.xpose.msra.mxu0 0
    %1337 = vmatprep.mubr.bf16.mxu0 0
    %1338 = vmatmul.mubr.bf16.gmra.mrb[0].mxu0 %v1300
    %v1339 = vpop.f32.mrb[0].mxu0
    %v1340 = vadd.f32 0.0, %v1339
    %v1341 = vpop.f32.mrb[0].mxu0
    %v1342 = vpop.f32.mrb[0].mxu0
    %v1343 = vpop.f32.mrb[0].mxu0
    %1344 = vdwg.mxu0
    %1345 = vrot.lane.b32.xlu0 %v458, 104
    %v1346 = vpop.permute.xlu0 %1345
    %1347 = vrot.lane.b32.xlu0 %v458, 72
    %v1348 = vpop.permute.xlu0 %1347
    %v1350 = vsel %vm462, %v1346, 0
    %v1353 = vsel %vm462, %v1348, 0
    %1355 = vmatprep.subr.bf16.mxu0 0
    %1356 = vmatpush1.bf16.xpose.msra.mxu0 %v1353
    %1357 = vmatprep.subr.bf16.mxu0 0
    %1358 = vmatpush1.bf16.xpose.msra.mxu0 0
    %1359 = vmatprep.subr.bf16.mxu0 0
    %1360 = vmatpush1.bf16.xpose.msra.mxu0 0
    %1361 = vmatprep.subr.bf16.mxu0 0
    %1362 = vmatpush1.bf16.xpose.msra.mxu0 0
    %1363 = vmatprep.subr.bf16.mxu0 0
    %1364 = vmatpush1.bf16.xpose.msra.mxu0 0
    %1365 = vmatprep.subr.bf16.mxu0 0
    %1366 = vmatpush1.bf16.xpose.msra.mxu0 0
    %1367 = vmatprep.subr.bf16.mxu0 0
    %1368 = vmatpush1.bf16.xpose.msra.mxu0 0
    %1369 = vmatprep.subr.bf16.mxu0 0
    %1370 = vmatpush1.bf16.xpose.msra.mxu0 0
    %1371 = vmatprep.subr.bf16.mxu0 0
    %1372 = vmatpush1.bf16.xpose.msra.mxu0 0
    %1373 = vmatprep.subr.bf16.mxu0 0
    %1374 = vmatpush1.bf16.xpose.msra.mxu0 0
    %1375 = vmatprep.subr.bf16.mxu0 0
    %1376 = vmatpush1.bf16.xpose.msra.mxu0 0
    %1377 = vmatprep.subr.bf16.mxu0 0
    %1378 = vmatpush1.bf16.xpose.msra.mxu0 0
    %1379 = vmatprep.subr.bf16.mxu0 0
    %1380 = vmatpush1.bf16.xpose.msra.mxu0 0
    %1381 = vmatprep.subr.bf16.mxu0 0
    %1382 = vmatpush1.bf16.xpose.msra.mxu0 0
    %1383 = vmatprep.subr.bf16.mxu0 0
    %1384 = vmatpush1.bf16.xpose.msra.mxu0 0
    %1385 = vmatprep.subr.bf16.mxu0 0
    %1386 = vmatpush1.bf16.xpose.msra.mxu0 0
    %1387 = vmatprep.mubr.bf16.mxu0 0
    %1388 = vmatmul.mubr.bf16.gmra.mrb[0].mxu0 %v1350
    %v1389 = vpop.f32.mrb[0].mxu0
    %v1390 = vadd.f32 0.0, %v1389
    %v1391 = vpop.f32.mrb[0].mxu0
    %v1392 = vpop.f32.mrb[0].mxu0
    %v1393 = vpop.f32.mrb[0].mxu0
    %1394 = vdwg.mxu0
    %v1395 = vmul.f32 %v1340, 0.35355338
    %v1396 = vmul.f32 %v1390, 0.35355338
    %v1397 = vadd.f32 %v1395, %v79
    %v1398 = vadd.f32 %v1396, %v79
    %v1399 = vsel %vm462, %v1397, -inf
    %1400 = vmax.xlane.f32.xlu0 %v1399
    %v1401 = vpop.xlane.xlu0 %1400
    %v1402 = vsel %vm462, %v1398, -inf
    %1403 = vmax.xlane.f32.xlu0 %v1402
    %v1404 = vpop.xlane.xlu0 %1403
    %v1405 = vsub.f32 %v1397, %v1401
    %v1406 = vsub.f32 %v1398, %v1404
    %v1407 = vmul.f32 %v1405, 1.442695
    %v1408 = vpow.pop %v1407
    %v1409 = vmul.f32 %v1406, 1.442695
    %v1410 = vpow.pop %v1409
    %v1411 = vsel %vm462, %v1408, 0.0
    %1412 = vadd.xlane.f32.xlu0 %v1411
    %v1413 = vpop.xlane.xlu0 %1412
    %v1414 = vsel %vm462, %v1410, 0.0
    %1415 = vadd.xlane.f32.xlu0 %v1414
    %v1416 = vpop.xlane.xlu0 %1415
    %v1417 = vrcp.pop %v1413
    %v1418 = vmul.f32 %v1408, %v1417
    %v1419 = vrcp.pop %v1416
    %v1420 = vmul.f32 %v1410, %v1419
    %v1421 = vpack.c.bf16 %v1418, %v1418
    %v1422 = vpack.c.bf16 %v1420, %v1420
    %1423 = vrot.lane.b32.xlu0 %v457, 40
    %v1424 = vpop.permute.xlu0 %1423
    %v1426 = vsel %vm462, %v1421, 0
    %v1429 = vsel %vm591, %v1424, 0
    %1431 = vmatprep.subr.bf16.mxu0 0
    %1432 = vmatpush1.bf16.msra.mxu0 %v1429
    %1433 = vmatprep.subr.bf16.mxu0 0
    %1434 = vmatpush1.bf16.msra.mxu0 0
    %1435 = vmatprep.subr.bf16.mxu0 0
    %1436 = vmatpush1.bf16.msra.mxu0 0
    %1437 = vmatprep.subr.bf16.mxu0 0
    %1438 = vmatpush1.bf16.msra.mxu0 0
    %1439 = vmatprep.subr.bf16.mxu0 0
    %1440 = vmatpush1.bf16.msra.mxu0 0
    %1441 = vmatprep.subr.bf16.mxu0 0
    %1442 = vmatpush1.bf16.msra.mxu0 0
    %1443 = vmatprep.subr.bf16.mxu0 0
    %1444 = vmatpush1.bf16.msra.mxu0 0
    %1445 = vmatprep.subr.bf16.mxu0 0
    %1446 = vmatpush1.bf16.msra.mxu0 0
    %1447 = vmatprep.subr.bf16.mxu0 0
    %1448 = vmatpush1.bf16.msra.mxu0 0
    %1449 = vmatprep.subr.bf16.mxu0 0
    %1450 = vmatpush1.bf16.msra.mxu0 0
    %1451 = vmatprep.subr.bf16.mxu0 0
    %1452 = vmatpush1.bf16.msra.mxu0 0
    %1453 = vmatprep.subr.bf16.mxu0 0
    %1454 = vmatpush1.bf16.msra.mxu0 0
    %1455 = vmatprep.subr.bf16.mxu0 0
    %1456 = vmatpush1.bf16.msra.mxu0 0
    %1457 = vmatprep.subr.bf16.mxu0 0
    %1458 = vmatpush1.bf16.msra.mxu0 0
    %1459 = vmatprep.subr.bf16.mxu0 0
    %1460 = vmatpush1.bf16.msra.mxu0 0
    %1461 = vmatprep.subr.bf16.mxu0 0
    %1462 = vmatpush1.bf16.msra.mxu0 0
    %1463 = vmatprep.mubr.bf16.mxu0 0
    %1464 = vmatmul.mubr.bf16.gmra.mrb[0].mxu0 %v1426
    %v1465 = vpop.f32.mrb[0].mxu0
    %v1466 = vadd.f32 0.0, %v1465
    %v1467 = vpop.f32.mrb[0].mxu0
    %v1468 = vpop.f32.mrb[0].mxu0
    %v1469 = vpop.f32.mrb[0].mxu0
    %1470 = vdwg.mxu0
    %1471 = vrot.lane.b32.xlu0 %v458, 40
    %v1472 = vpop.permute.xlu0 %1471
    %v1474 = vsel %vm462, %v1422, 0
    %v1477 = vsel %vm591, %v1472, 0
    %1479 = vmatprep.subr.bf16.mxu0 0
    %1480 = vmatpush1.bf16.msra.mxu0 %v1477
    %1481 = vmatprep.subr.bf16.mxu0 0
    %1482 = vmatpush1.bf16.msra.mxu0 0
    %1483 = vmatprep.subr.bf16.mxu0 0
    %1484 = vmatpush1.bf16.msra.mxu0 0
    %1485 = vmatprep.subr.bf16.mxu0 0
    %1486 = vmatpush1.bf16.msra.mxu0 0
    %1487 = vmatprep.subr.bf16.mxu0 0
    %1488 = vmatpush1.bf16.msra.mxu0 0
    %1489 = vmatprep.subr.bf16.mxu0 0
    %1490 = vmatpush1.bf16.msra.mxu0 0
    %1491 = vmatprep.subr.bf16.mxu0 0
    %1492 = vmatpush1.bf16.msra.mxu0 0
    %1493 = vmatprep.subr.bf16.mxu0 0
    %1494 = vmatpush1.bf16.msra.mxu0 0
    %1495 = vmatprep.subr.bf16.mxu0 0
    %1496 = vmatpush1.bf16.msra.mxu0 0
    %1497 = vmatprep.subr.bf16.mxu0 0
    %1498 = vmatpush1.bf16.msra.mxu0 0
    %1499 = vmatprep.subr.bf16.mxu0 0
    %1500 = vmatpush1.bf16.msra.mxu0 0
    %1501 = vmatprep.subr.bf16.mxu0 0
    %1502 = vmatpush1.bf16.msra.mxu0 0
    %1503 = vmatprep.subr.bf16.mxu0 0
    %1504 = vmatpush1.bf16.msra.mxu0 0
    %1505 = vmatprep.subr.bf16.mxu0 0
    %1506 = vmatpush1.bf16.msra.mxu0 0
    %1507 = vmatprep.subr.bf16.mxu0 0
    %1508 = vmatpush1.bf16.msra.mxu0 0
    %1509 = vmatprep.subr.bf16.mxu0 0
    %1510 = vmatpush1.bf16.msra.mxu0 0
    %1511 = vmatprep.mubr.bf16.mxu0 0
    %1512 = vmatmul.mubr.bf16.gmra.mrb[0].mxu0 %v1474
    %v1513 = vpop.f32.mrb[0].mxu0
    %v1514 = vadd.f32 0.0, %v1513
    %v1515 = vpop.f32.mrb[0].mxu0
    %v1516 = vpop.f32.mrb[0].mxu0
    %v1517 = vpop.f32.mrb[0].mxu0
    %1518 = vdwg.mxu0
    %v1519 = vpack.c.bf16 %v1466, %v1466
    %v1520 = vpack.c.bf16 %v1514, %v1514
    %v1523 = vunpack.c.l.b16 %v1519
    %v1524 = vunpack.c.l.b16 %v1520
    %v1525 = vpack.c.b16 %v1524, %v1523
    %v1527 = vsel %vm462, %v1525, 0
    %v1530 = vsel %vm591, %v87, 0
    %1532 = vmatprep.subr.bf16.mxu0 0
    %1533 = vmatpush1.bf16.msra.mxu0 %v1530
    %1534 = vmatprep.subr.bf16.mxu0 0
    %1535 = vmatpush1.bf16.msra.mxu0 0
    %1536 = vmatprep.subr.bf16.mxu0 0
    %1537 = vmatpush1.bf16.msra.mxu0 0
    %1538 = vmatprep.subr.bf16.mxu0 0
    %1539 = vmatpush1.bf16.msra.mxu0 0
    %1540 = vmatprep.subr.bf16.mxu0 0
    %1541 = vmatpush1.bf16.msra.mxu0 0
    %1542 = vmatprep.subr.bf16.mxu0 0
    %1543 = vmatpush1.bf16.msra.mxu0 0
    %1544 = vmatprep.subr.bf16.mxu0 0
    %1545 = vmatpush1.bf16.msra.mxu0 0
    %1546 = vmatprep.subr.bf16.mxu0 0
    %1547 = vmatpush1.bf16.msra.mxu0 0
    %1548 = vmatprep.subr.bf16.mxu0 0
    %1549 = vmatpush1.bf16.msra.mxu0 0
    %1550 = vmatprep.subr.bf16.mxu0 0
    %1551 = vmatpush1.bf16.msra.mxu0 0
    %1552 = vmatprep.subr.bf16.mxu0 0
    %1553 = vmatpush1.bf16.msra.mxu0 0
    %1554 = vmatprep.subr.bf16.mxu0 0
    %1555 = vmatpush1.bf16.msra.mxu0 0
    %1556 = vmatprep.subr.bf16.mxu0 0
    %1557 = vmatpush1.bf16.msra.mxu0 0
    %1558 = vmatprep.subr.bf16.mxu0 0
    %1559 = vmatpush1.bf16.msra.mxu0 0
    %1560 = vmatprep.subr.bf16.mxu0 0
    %1561 = vmatpush1.bf16.msra.mxu0 0
    %1562 = vmatprep.subr.bf16.mxu0 0
    %1563 = vmatpush1.bf16.msra.mxu0 0
    %1564 = vmatprep.mubr.bf16.mxu0 0
    %1565 = vmatmul.mubr.bf16.gmra.mrb[0].mxu0 %v1527
    %v1566 = vpop.f32.mrb[0].mxu0
    %v1567 = vadd.f32 0.0, %v1566
    %v1568 = vpop.f32.mrb[0].mxu0
    %v1569 = vpop.f32.mrb[0].mxu0
    %v1570 = vadd.f32 0.0, %v1569
    %v1571 = vpop.f32.mrb[0].mxu0
    %1572 = vdwg.mxu0
    %v1573 = vadd.f32 %v1293, %v1567
    %v1574 = vadd.f32 %v1294, %v1570
    %v1576 = vlaneseq
    %v1577 = vshrl.u32 %v1576, 7
    %v1578 = vsub.s32 0, %v1577
    %v1579 = vrot.slane %v88, %v1578
    %v1581 = vadd.f32 %v1573, %v1579
    %v1582 = vadd.f32 %v1574, %v1579
    %v1583 = vadd.f32 %v1581, %v70
    %v1584 = vadd.f32 %v1582, %v71
    %v1585 = vsel %vm412, %v1583, 0.0
    %1586 = vadd.xlane.f32.xlu0 %v1585
    %v1587 = vpop.xlane.xlu0 %1586
    %v1588 = vsel %vm412, %v1584, 0.0
    %1589 = vadd.xlane.f32.xlu0 %v1588
    %v1590 = vpop.xlane.xlu0 %1589
    %v1591 = vrcp.pop 32.0
    %v1592 = vmul.f32 %v1587, %v1591
    %v1593 = vmul.f32 %v1590, %v1591
    %v1594 = vsub.f32 %v1583, %v1592
    %v1595 = vsub.f32 %v1584, %v1593
    %v1596 = vmul.f32 %v1594, %v1594
    %v1597 = vmul.f32 %v1595, %v1595
    %v1598 = vsel %vm412, %v1596, 0.0
    %1599 = vadd.xlane.f32.xlu0 %v1598
    %v1600 = vpop.xlane.xlu0 %1599
    %v1601 = vsel %vm412, %v1597, 0.0
    %1602 = vadd.xlane.f32.xlu0 %v1601
    %v1603 = vpop.xlane.xlu0 %1602
    %v1604 = vmul.f32 %v1600, %v1591
    %v1605 = vmul.f32 %v1603, %v1591
    %v1606 = vadd.f32 %v1604, 1e-05
    %v1607 = vadd.f32 %v1605, 1e-05
    %v1608 = vrsqrt.pop %v1606
    %v1609 = vrsqrt.pop %v1607
    %v1610 = vmul.f32 %v1594, %v1608
    %v1611 = vmul.f32 %v1595, %v1609
    %v1613 = vlaneseq
    %v1614 = vshrl.u32 %v1613, 7
    %v1615 = vsub.s32 0, %v1614
    %v1616 = vrot.slane %v89, %v1615
    %v1618 = vmul.f32 %v1610, %v1616
    %v1619 = vmul.f32 %v1611, %v1616
    %v1621 = vlaneseq
    %v1622 = vshrl.u32 %v1621, 7
    %v1623 = vsub.s32 0, %v1622
    %v1624 = vrot.slane %v90, %v1623
    %v1626 = vadd.f32 %v1618, %v1624
    %v1627 = vadd.f32 %v1619, %v1624
    %v1628 = vpack.c.bf16 %v1627, %v1626
    %v1633 = vunpack.c.l.b16 %v91
    %v1634 = vunpack.c.l.b16 %v92
    %v1635 = vunpack.c.l.b16 %v93
    %v1636 = vunpack.c.l.b16 %v94
    %v1637 = vpack.c.b16 %v1634, %v1633
    %v1638 = vpack.c.b16 %v1636, %v1635
    %v1642 = vsel %vm412, %v1628, 0
    %1644 = vmatprep.subr.bf16.mxu0 0
    %1645 = vmatpush1.bf16.msra.mxu0 %v1637
    %1646 = vmatprep.subr.bf16.mxu0 0
    %1647 = vmatpush1.bf16.msra.mxu0 %v1638
    %1648 = vmatprep.subr.bf16.mxu0 0
    %1649 = vmatpush1.bf16.msra.mxu0 0
    %1650 = vmatprep.subr.bf16.mxu0 0
    %1651 = vmatpush1.bf16.msra.mxu0 0
    %1652 = vmatprep.subr.bf16.mxu0 0
    %1653 = vmatpush1.bf16.msra.mxu0 0
    %1654 = vmatprep.subr.bf16.mxu0 0
    %1655 = vmatpush1.bf16.msra.mxu0 0
    %1656 = vmatprep.subr.bf16.mxu0 0
    %1657 = vmatpush1.bf16.msra.mxu0 0
    %1658 = vmatprep.subr.bf16.mxu0 0
    %1659 = vmatpush1.bf16.msra.mxu0 0
    %1660 = vmatprep.subr.bf16.mxu0 0
    %1661 = vmatpush1.bf16.msra.mxu0 0
    %1662 = vmatprep.subr.bf16.mxu0 0
    %1663 = vmatpush1.bf16.msra.mxu0 0
    %1664 = vmatprep.subr.bf16.mxu0 0
    %1665 = vmatpush1.bf16.msra.mxu0 0
    %1666 = vmatprep.subr.bf16.mxu0 0
    %1667 = vmatpush1.bf16.msra.mxu0 0
    %1668 = vmatprep.subr.bf16.mxu0 0
    %1669 = vmatpush1.bf16.msra.mxu0 0
    %1670 = vmatprep.subr.bf16.mxu0 0
    %1671 = vmatpush1.bf16.msra.mxu0 0
    %1672 = vmatprep.subr.bf16.mxu0 0
    %1673 = vmatpush1.bf16.msra.mxu0 0
    %1674 = vmatprep.subr.bf16.mxu0 0
    %1675 = vmatpush1.bf16.msra.mxu0 0
    %1676 = vmatprep.mubr.bf16.mxu0 0
    %1677 = vmatmul.mubr.bf16.gmra.mrb[0].mxu0 %v1642
    %v1678 = vpop.f32.mrb[0].mxu0
    %v1679 = vadd.f32 0.0, %v1678
    %v1680 = vpop.f32.mrb[0].mxu0
    %v1681 = vpop.f32.mrb[0].mxu0
    %v1682 = vadd.f32 0.0, %v1681
    %v1683 = vpop.f32.mrb[0].mxu0
    %1684 = vdwg.mxu0
    %v1685 = vpack.c.bf16 %v73, %v72
    %v1690 = vunpack.c.l.b16 %v95
    %v1691 = vunpack.c.l.b16 %v96
    %v1692 = vunpack.c.l.b16 %v97
    %v1693 = vunpack.c.l.b16 %v98
    %v1694 = vpack.c.b16 %v1691, %v1690
    %v1695 = vpack.c.b16 %v1693, %v1692
    %v1699 = vsel %vm412, %v1685, 0
    %1701 = vmatprep.subr.bf16.mxu0 0
    %1702 = vmatpush1.bf16.msra.mxu0 %v1694
    %1703 = vmatprep.subr.bf16.mxu0 0
    %1704 = vmatpush1.bf16.msra.mxu0 %v1695
    %1705 = vmatprep.subr.bf16.mxu0 0
    %1706 = vmatpush1.bf16.msra.mxu0 0
    %1707 = vmatprep.subr.bf16.mxu0 0
    %1708 = vmatpush1.bf16.msra.mxu0 0
    %1709 = vmatprep.subr.bf16.mxu0 0
    %1710 = vmatpush1.bf16.msra.mxu0 0
    %1711 = vmatprep.subr.bf16.mxu0 0
    %1712 = vmatpush1.bf16.msra.mxu0 0
    %1713 = vmatprep.subr.bf16.mxu0 0
    %1714 = vmatpush1.bf16.msra.mxu0 0
    %1715 = vmatprep.subr.bf16.mxu0 0
    %1716 = vmatpush1.bf16.msra.mxu0 0
    %1717 = vmatprep.subr.bf16.mxu0 0
    %1718 = vmatpush1.bf16.msra.mxu0 0
    %1719 = vmatprep.subr.bf16.mxu0 0
    %1720 = vmatpush1.bf16.msra.mxu0 0
    %1721 = vmatprep.subr.bf16.mxu0 0
    %1722 = vmatpush1.bf16.msra.mxu0 0
    %1723 = vmatprep.subr.bf16.mxu0 0
    %1724 = vmatpush1.bf16.msra.mxu0 0
    %1725 = vmatprep.subr.bf16.mxu0 0
    %1726 = vmatpush1.bf16.msra.mxu0 0
    %1727 = vmatprep.subr.bf16.mxu0 0
    %1728 = vmatpush1.bf16.msra.mxu0 0
    %1729 = vmatprep.subr.bf16.mxu0 0
    %1730 = vmatpush1.bf16.msra.mxu0 0
    %1731 = vmatprep.subr.bf16.mxu0 0
    %1732 = vmatpush1.bf16.msra.mxu0 0
    %1733 = vmatprep.mubr.bf16.mxu0 0
    %1734 = vmatmul.mubr.bf16.gmra.mrb[0].mxu0 %v1699
    %v1735 = vpop.f32.mrb[0].mxu0
    %v1736 = vadd.f32 0.0, %v1735
    %v1737 = vpop.f32.mrb[0].mxu0
    %v1738 = vpop.f32.mrb[0].mxu0
    %v1739 = vadd.f32 0.0, %v1738
    %v1740 = vpop.f32.mrb[0].mxu0
    %1741 = vdwg.mxu0
    %v1742 = vpack.c.bf16 %v1679, %v1679
    %v1743 = vpack.c.bf16 %v1682, %v1682
    %v1744 = vpack.c.bf16 %v1736, %v1736
    %v1745 = vpack.c.bf16 %v1739, %v1739
    %v1747 = vsel %vm462, %v1742, 0
    %v1750 = vsel %vm462, %v1744, 0
    %1752 = vmatprep.subr.bf16.mxu0 0
    %1753 = vmatpush1.bf16.xpose.msra.mxu0 %v1750
    %1754 = vmatprep.subr.bf16.mxu0 0
    %1755 = vmatpush1.bf16.xpose.msra.mxu0 0
    %1756 = vmatprep.subr.bf16.mxu0 0
    %1757 = vmatpush1.bf16.xpose.msra.mxu0 0
    %1758 = vmatprep.subr.bf16.mxu0 0
    %1759 = vmatpush1.bf16.xpose.msra.mxu0 0
    %1760 = vmatprep.subr.bf16.mxu0 0
    %1761 = vmatpush1.bf16.xpose.msra.mxu0 0
    %1762 = vmatprep.subr.bf16.mxu0 0
    %1763 = vmatpush1.bf16.xpose.msra.mxu0 0
    %1764 = vmatprep.subr.bf16.mxu0 0
    %1765 = vmatpush1.bf16.xpose.msra.mxu0 0
    %1766 = vmatprep.subr.bf16.mxu0 0
    %1767 = vmatpush1.bf16.xpose.msra.mxu0 0
    %1768 = vmatprep.subr.bf16.mxu0 0
    %1769 = vmatpush1.bf16.xpose.msra.mxu0 0
    %1770 = vmatprep.subr.bf16.mxu0 0
    %1771 = vmatpush1.bf16.xpose.msra.mxu0 0
    %1772 = vmatprep.subr.bf16.mxu0 0
    %1773 = vmatpush1.bf16.xpose.msra.mxu0 0
    %1774 = vmatprep.subr.bf16.mxu0 0
    %1775 = vmatpush1.bf16.xpose.msra.mxu0 0
    %1776 = vmatprep.subr.bf16.mxu0 0
    %1777 = vmatpush1.bf16.xpose.msra.mxu0 0
    %1778 = vmatprep.subr.bf16.mxu0 0
    %1779 = vmatpush1.bf16.xpose.msra.mxu0 0
    %1780 = vmatprep.subr.bf16.mxu0 0
    %1781 = vmatpush1.bf16.xpose.msra.mxu0 0
    %1782 = vmatprep.subr.bf16.mxu0 0
    %1783 = vmatpush1.bf16.xpose.msra.mxu0 0
    %1784 = vmatprep.mubr.bf16.mxu0 0
    %1785 = vmatmul.mubr.bf16.gmra.mrb[0].mxu0 %v1747
    %v1786 = vpop.f32.mrb[0].mxu0
    %v1787 = vadd.f32 0.0, %v1786
    %v1788 = vpop.f32.mrb[0].mxu0
    %v1789 = vpop.f32.mrb[0].mxu0
    %v1790 = vpop.f32.mrb[0].mxu0
    %1791 = vdwg.mxu0
    %v1793 = vsel %vm462, %v1743, 0
    %v1796 = vsel %vm462, %v1745, 0
    %1798 = vmatprep.subr.bf16.mxu0 0
    %1799 = vmatpush1.bf16.xpose.msra.mxu0 %v1796
    %1800 = vmatprep.subr.bf16.mxu0 0
    %1801 = vmatpush1.bf16.xpose.msra.mxu0 0
    %1802 = vmatprep.subr.bf16.mxu0 0
    %1803 = vmatpush1.bf16.xpose.msra.mxu0 0
    %1804 = vmatprep.subr.bf16.mxu0 0
    %1805 = vmatpush1.bf16.xpose.msra.mxu0 0
    %1806 = vmatprep.subr.bf16.mxu0 0
    %1807 = vmatpush1.bf16.xpose.msra.mxu0 0
    %1808 = vmatprep.subr.bf16.mxu0 0
    %1809 = vmatpush1.bf16.xpose.msra.mxu0 0
    %1810 = vmatprep.subr.bf16.mxu0 0
    %1811 = vmatpush1.bf16.xpose.msra.mxu0 0
    %1812 = vmatprep.subr.bf16.mxu0 0
    %1813 = vmatpush1.bf16.xpose.msra.mxu0 0
    %1814 = vmatprep.subr.bf16.mxu0 0
    %1815 = vmatpush1.bf16.xpose.msra.mxu0 0
    %1816 = vmatprep.subr.bf16.mxu0 0
    %1817 = vmatpush1.bf16.xpose.msra.mxu0 0
    %1818 = vmatprep.subr.bf16.mxu0 0
    %1819 = vmatpush1.bf16.xpose.msra.mxu0 0
    %1820 = vmatprep.subr.bf16.mxu0 0
    %1821 = vmatpush1.bf16.xpose.msra.mxu0 0
    %1822 = vmatprep.subr.bf16.mxu0 0
    %1823 = vmatpush1.bf16.xpose.msra.mxu0 0
    %1824 = vmatprep.subr.bf16.mxu0 0
    %1825 = vmatpush1.bf16.xpose.msra.mxu0 0
    %1826 = vmatprep.subr.bf16.mxu0 0
    %1827 = vmatpush1.bf16.xpose.msra.mxu0 0
    %1828 = vmatprep.subr.bf16.mxu0 0
    %1829 = vmatpush1.bf16.xpose.msra.mxu0 0
    %1830 = vmatprep.mubr.bf16.mxu0 0
    %1831 = vmatmul.mubr.bf16.gmra.mrb[0].mxu0 %v1793
    %v1832 = vpop.f32.mrb[0].mxu0
    %v1833 = vadd.f32 0.0, %v1832
    %v1834 = vpop.f32.mrb[0].mxu0
    %v1835 = vpop.f32.mrb[0].mxu0
    %v1836 = vpop.f32.mrb[0].mxu0
    %1837 = vdwg.mxu0
    %v1838 = vmul.f32 %v1787, 0.35355338
    %v1839 = vmul.f32 %v1833, 0.35355338
    %v1840 = vadd.f32 %v1838, %v79
    %v1841 = vadd.f32 %v1839, %v79
    %v1842 = vsel %vm462, %v1840, -inf
    %1843 = vmax.xlane.f32.xlu0 %v1842
    %v1844 = vpop.xlane.xlu0 %1843
    %v1845 = vsel %vm462, %v1841, -inf
    %1846 = vmax.xlane.f32.xlu0 %v1845
    %v1847 = vpop.xlane.xlu0 %1846
    %v1848 = vsub.f32 %v1840, %v1844
    %v1849 = vsub.f32 %v1841, %v1847
    %v1850 = vmul.f32 %v1848, 1.442695
    %v1851 = vpow.pop %v1850
    %v1852 = vmul.f32 %v1849, 1.442695
    %v1853 = vpow.pop %v1852
    %v1854 = vsel %vm462, %v1851, 0.0
    %1855 = vadd.xlane.f32.xlu0 %v1854
    %v1856 = vpop.xlane.xlu0 %1855
    %v1857 = vsel %vm462, %v1853, 0.0
    %1858 = vadd.xlane.f32.xlu0 %v1857
    %v1859 = vpop.xlane.xlu0 %1858
    %v1860 = vrcp.pop %v1856
    %v1861 = vmul.f32 %v1851, %v1860
    %v1862 = vrcp.pop %v1859
    %v1863 = vmul.f32 %v1853, %v1862
    %v1864 = vpack.c.bf16 %v1861, %v1861
    %v1865 = vpack.c.bf16 %v1863, %v1863
    %1867 = vrot.lane.b32.xlu0 %v1744, 96
    %v1868 = vpop.permute.xlu0 %1867
    %v1870 = vsel %vm462, %v1864, 0
    %v1873 = vsel %vm591, %v1868, 0
    %1875 = vmatprep.subr.bf16.mxu0 0
    %1876 = vmatpush1.bf16.msra.mxu0 %v1873
    %1877 = vmatprep.subr.bf16.mxu0 0
    %1878 = vmatpush1.bf16.msra.mxu0 0
    %1879 = vmatprep.subr.bf16.mxu0 0
    %1880 = vmatpush1.bf16.msra.mxu0 0
    %1881 = vmatprep.subr.bf16.mxu0 0
    %1882 = vmatpush1.bf16.msra.mxu0 0
    %1883 = vmatprep.subr.bf16.mxu0 0
    %1884 = vmatpush1.bf16.msra.mxu0 0
    %1885 = vmatprep.subr.bf16.mxu0 0
    %1886 = vmatpush1.bf16.msra.mxu0 0
    %1887 = vmatprep.subr.bf16.mxu0 0
    %1888 = vmatpush1.bf16.msra.mxu0 0
    %1889 = vmatprep.subr.bf16.mxu0 0
    %1890 = vmatpush1.bf16.msra.mxu0 0
    %1891 = vmatprep.subr.bf16.mxu0 0
    %1892 = vmatpush1.bf16.msra.mxu0 0
    %1893 = vmatprep.subr.bf16.mxu0 0
    %1894 = vmatpush1.bf16.msra.mxu0 0
    %1895 = vmatprep.subr.bf16.mxu0 0
    %1896 = vmatpush1.bf16.msra.mxu0 0
    %1897 = vmatprep.subr.bf16.mxu0 0
    %1898 = vmatpush1.bf16.msra.mxu0 0
    %1899 = vmatprep.subr.bf16.mxu0 0
    %1900 = vmatpush1.bf16.msra.mxu0 0
    %1901 = vmatprep.subr.bf16.mxu0 0
    %1902 = vmatpush1.bf16.msra.mxu0 0
    %1903 = vmatprep.subr.bf16.mxu0 0
    %1904 = vmatpush1.bf16.msra.mxu0 0
    %1905 = vmatprep.subr.bf16.mxu0 0
    %1906 = vmatpush1.bf16.msra.mxu0 0
    %1907 = vmatprep.mubr.bf16.mxu0 0
    %1908 = vmatmul.mubr.bf16.gmra.mrb[0].mxu0 %v1870
    %v1909 = vpop.f32.mrb[0].mxu0
    %v1910 = vadd.f32 0.0, %v1909
    %v1911 = vpop.f32.mrb[0].mxu0
    %v1912 = vpop.f32.mrb[0].mxu0
    %v1913 = vpop.f32.mrb[0].mxu0
    %1914 = vdwg.mxu0
    %1916 = vrot.lane.b32.xlu0 %v1745, 96
    %v1917 = vpop.permute.xlu0 %1916
    %v1919 = vsel %vm462, %v1865, 0
    %v1922 = vsel %vm591, %v1917, 0
    %1924 = vmatprep.subr.bf16.mxu0 0
    %1925 = vmatpush1.bf16.msra.mxu0 %v1922
    %1926 = vmatprep.subr.bf16.mxu0 0
    %1927 = vmatpush1.bf16.msra.mxu0 0
    %1928 = vmatprep.subr.bf16.mxu0 0
    %1929 = vmatpush1.bf16.msra.mxu0 0
    %1930 = vmatprep.subr.bf16.mxu0 0
    %1931 = vmatpush1.bf16.msra.mxu0 0
    %1932 = vmatprep.subr.bf16.mxu0 0
    %1933 = vmatpush1.bf16.msra.mxu0 0
    %1934 = vmatprep.subr.bf16.mxu0 0
    %1935 = vmatpush1.bf16.msra.mxu0 0
    %1936 = vmatprep.subr.bf16.mxu0 0
    %1937 = vmatpush1.bf16.msra.mxu0 0
    %1938 = vmatprep.subr.bf16.mxu0 0
    %1939 = vmatpush1.bf16.msra.mxu0 0
    %1940 = vmatprep.subr.bf16.mxu0 0
    %1941 = vmatpush1.bf16.msra.mxu0 0
    %1942 = vmatprep.subr.bf16.mxu0 0
    %1943 = vmatpush1.bf16.msra.mxu0 0
    %1944 = vmatprep.subr.bf16.mxu0 0
    %1945 = vmatpush1.bf16.msra.mxu0 0
    %1946 = vmatprep.subr.bf16.mxu0 0
    %1947 = vmatpush1.bf16.msra.mxu0 0
    %1948 = vmatprep.subr.bf16.mxu0 0
    %1949 = vmatpush1.bf16.msra.mxu0 0
    %1950 = vmatprep.subr.bf16.mxu0 0
    %1951 = vmatpush1.bf16.msra.mxu0 0
    %1952 = vmatprep.subr.bf16.mxu0 0
    %1953 = vmatpush1.bf16.msra.mxu0 0
    %1954 = vmatprep.subr.bf16.mxu0 0
    %1955 = vmatpush1.bf16.msra.mxu0 0
    %1956 = vmatprep.mubr.bf16.mxu0 0
    %1957 = vmatmul.mubr.bf16.gmra.mrb[0].mxu0 %v1919
    %v1958 = vpop.f32.mrb[0].mxu0
    %v1959 = vadd.f32 0.0, %v1958
    %v1960 = vpop.f32.mrb[0].mxu0
    %v1961 = vpop.f32.mrb[0].mxu0
    %v1962 = vpop.f32.mrb[0].mxu0
    %1963 = vdwg.mxu0
    %v1964 = vpack.c.bf16 %v1910, %v1910
    %v1965 = vpack.c.bf16 %v1959, %v1959
    %1967 = vrot.lane.b32.xlu0 %v1742, 120
    %v1968 = vpop.permute.xlu0 %1967
    %1969 = vrot.lane.b32.xlu0 %v1744, 120
    %v1970 = vpop.permute.xlu0 %1969
    %v1972 = vsel %vm462, %v1968, 0
    %v1975 = vsel %vm462, %v1970, 0
    %1977 = vmatprep.subr.bf16.mxu0 0
    %1978 = vmatpush1.bf16.xpose.msra.mxu0 %v1975
    %1979 = vmatprep.subr.bf16.mxu0 0
    %1980 = vmatpush1.bf16.xpose.msra.mxu0 0
    %1981 = vmatprep.subr.bf16.mxu0 0
    %1982 = vmatpush1.bf16.xpose.msra.mxu0 0
    %1983 = vmatprep.subr.bf16.mxu0 0
    %1984 = vmatpush1.bf16.xpose.msra.mxu0 0
    %1985 = vmatprep.subr.bf16.mxu0 0
    %1986 = vmatpush1.bf16.xpose.msra.mxu0 0
    %1987 = vmatprep.subr.bf16.mxu0 0
    %1988 = vmatpush1.bf16.xpose.msra.mxu0 0
    %1989 = vmatprep.subr.bf16.mxu0 0
    %1990 = vmatpush1.bf16.xpose.msra.mxu0 0
    %1991 = vmatprep.subr.bf16.mxu0 0
    %1992 = vmatpush1.bf16.xpose.msra.mxu0 0
    %1993 = vmatprep.subr.bf16.mxu0 0
    %1994 = vmatpush1.bf16.xpose.msra.mxu0 0
    %1995 = vmatprep.subr.bf16.mxu0 0
    %1996 = vmatpush1.bf16.xpose.msra.mxu0 0
    %1997 = vmatprep.subr.bf16.mxu0 0
    %1998 = vmatpush1.bf16.xpose.msra.mxu0 0
    %1999 = vmatprep.subr.bf16.mxu0 0
    %2000 = vmatpush1.bf16.xpose.msra.mxu0 0
    %2001 = vmatprep.subr.bf16.mxu0 0
    %2002 = vmatpush1.bf16.xpose.msra.mxu0 0
    %2003 = vmatprep.subr.bf16.mxu0 0
    %2004 = vmatpush1.bf16.xpose.msra.mxu0 0
    %2005 = vmatprep.subr.bf16.mxu0 0
    %2006 = vmatpush1.bf16.xpose.msra.mxu0 0
    %2007 = vmatprep.subr.bf16.mxu0 0
    %2008 = vmatpush1.bf16.xpose.msra.mxu0 0
    %2009 = vmatprep.mubr.bf16.mxu0 0
    %2010 = vmatmul.mubr.bf16.gmra.mrb[0].mxu0 %v1972
    %v2011 = vpop.f32.mrb[0].mxu0
    %v2012 = vadd.f32 0.0, %v2011
    %v2013 = vpop.f32.mrb[0].mxu0
    %v2014 = vpop.f32.mrb[0].mxu0
    %v2015 = vpop.f32.mrb[0].mxu0
    %2016 = vdwg.mxu0
    %2018 = vrot.lane.b32.xlu0 %v1743, 120
    %v2019 = vpop.permute.xlu0 %2018
    %2020 = vrot.lane.b32.xlu0 %v1745, 120
    %v2021 = vpop.permute.xlu0 %2020
    %v2023 = vsel %vm462, %v2019, 0
    %v2026 = vsel %vm462, %v2021, 0
    %2028 = vmatprep.subr.bf16.mxu0 0
    %2029 = vmatpush1.bf16.xpose.msra.mxu0 %v2026
    %2030 = vmatprep.subr.bf16.mxu0 0
    %2031 = vmatpush1.bf16.xpose.msra.mxu0 0
    %2032 = vmatprep.subr.bf16.mxu0 0
    %2033 = vmatpush1.bf16.xpose.msra.mxu0 0
    %2034 = vmatprep.subr.bf16.mxu0 0
    %2035 = vmatpush1.bf16.xpose.msra.mxu0 0
    %2036 = vmatprep.subr.bf16.mxu0 0
    %2037 = vmatpush1.bf16.xpose.msra.mxu0 0
    %2038 = vmatprep.subr.bf16.mxu0 0
    %2039 = vmatpush1.bf16.xpose.msra.mxu0 0
    %2040 = vmatprep.subr.bf16.mxu0 0
    %2041 = vmatpush1.bf16.xpose.msra.mxu0 0
    %2042 = vmatprep.subr.bf16.mxu0 0
    %2043 = vmatpush1.bf16.xpose.msra.mxu0 0
    %2044 = vmatprep.subr.bf16.mxu0 0
    %2045 = vmatpush1.bf16.xpose.msra.mxu0 0
    %2046 = vmatprep.subr.bf16.mxu0 0
    %2047 = vmatpush1.bf16.xpose.msra.mxu0 0
    %2048 = vmatprep.subr.bf16.mxu0 0
    %2049 = vmatpush1.bf16.xpose.msra.mxu0 0
    %2050 = vmatprep.subr.bf16.mxu0 0
    %2051 = vmatpush1.bf16.xpose.msra.mxu0 0
    %2052 = vmatprep.subr.bf16.mxu0 0
    %2053 = vmatpush1.bf16.xpose.msra.mxu0 0
    %2054 = vmatprep.subr.bf16.mxu0 0
    %2055 = vmatpush1.bf16.xpose.msra.mxu0 0
    %2056 = vmatprep.subr.bf16.mxu0 0
    %2057 = vmatpush1.bf16.xpose.msra.mxu0 0
    %2058 = vmatprep.subr.bf16.mxu0 0
    %2059 = vmatpush1.bf16.xpose.msra.mxu0 0
    %2060 = vmatprep.mubr.bf16.mxu0 0
    %2061 = vmatmul.mubr.bf16.gmra.mrb[0].mxu0 %v2023
    %v2062 = vpop.f32.mrb[0].mxu0
    %v2063 = vadd.f32 0.0, %v2062
    %v2064 = vpop.f32.mrb[0].mxu0
    %v2065 = vpop.f32.mrb[0].mxu0
    %v2066 = vpop.f32.mrb[0].mxu0
    %2067 = vdwg.mxu0
    %v2068 = vmul.f32 %v2012, 0.35355338
    %v2069 = vmul.f32 %v2063, 0.35355338
    %v2070 = vadd.f32 %v2068, %v79
    %v2071 = vadd.f32 %v2069, %v79
    %v2072 = vsel %vm462, %v2070, -inf
    %2073 = vmax.xlane.f32.xlu0 %v2072
    %v2074 = vpop.xlane.xlu0 %2073
    %v2075 = vsel %vm462, %v2071, -inf
    %2076 = vmax.xlane.f32.xlu0 %v2075
    %v2077 = vpop.xlane.xlu0 %2076
    %v2078 = vsub.f32 %v2070, %v2074
    %v2079 = vsub.f32 %v2071, %v2077
    %v2080 = vmul.f32 %v2078, 1.442695
    %v2081 = vpow.pop %v2080
    %v2082 = vmul.f32 %v2079, 1.442695
    %v2083 = vpow.pop %v2082
    %v2084 = vsel %vm462, %v2081, 0.0
    %2085 = vadd.xlane.f32.xlu0 %v2084
    %v2086 = vpop.xlane.xlu0 %2085
    %v2087 = vsel %vm462, %v2083, 0.0
    %2088 = vadd.xlane.f32.xlu0 %v2087
    %v2089 = vpop.xlane.xlu0 %2088
    %v2090 = vrcp.pop %v2086
    %v2091 = vmul.f32 %v2081, %v2090
    %v2092 = vrcp.pop %v2089
    %v2093 = vmul.f32 %v2083, %v2092
    %v2094 = vpack.c.bf16 %v2091, %v2091
    %v2095 = vpack.c.bf16 %v2093, %v2093
    %2096 = vrot.lane.b32.xlu0 %v1744, 88
    %v2097 = vpop.permute.xlu0 %2096
    %v2099 = vsel %vm462, %v2094, 0
    %v2102 = vsel %vm591, %v2097, 0
    %2104 = vmatprep.subr.bf16.mxu0 0
    %2105 = vmatpush1.bf16.msra.mxu0 %v2102
    %2106 = vmatprep.subr.bf16.mxu0 0
    %2107 = vmatpush1.bf16.msra.mxu0 0
    %2108 = vmatprep.subr.bf16.mxu0 0
    %2109 = vmatpush1.bf16.msra.mxu0 0
    %2110 = vmatprep.subr.bf16.mxu0 0
    %2111 = vmatpush1.bf16.msra.mxu0 0
    %2112 = vmatprep.subr.bf16.mxu0 0
    %2113 = vmatpush1.bf16.msra.mxu0 0
    %2114 = vmatprep.subr.bf16.mxu0 0
    %2115 = vmatpush1.bf16.msra.mxu0 0
    %2116 = vmatprep.subr.bf16.mxu0 0
    %2117 = vmatpush1.bf16.msra.mxu0 0
    %2118 = vmatprep.subr.bf16.mxu0 0
    %2119 = vmatpush1.bf16.msra.mxu0 0
    %2120 = vmatprep.subr.bf16.mxu0 0
    %2121 = vmatpush1.bf16.msra.mxu0 0
    %2122 = vmatprep.subr.bf16.mxu0 0
    %2123 = vmatpush1.bf16.msra.mxu0 0
    %2124 = vmatprep.subr.bf16.mxu0 0
    %2125 = vmatpush1.bf16.msra.mxu0 0
    %2126 = vmatprep.subr.bf16.mxu0 0
    %2127 = vmatpush1.bf16.msra.mxu0 0
    %2128 = vmatprep.subr.bf16.mxu0 0
    %2129 = vmatpush1.bf16.msra.mxu0 0
    %2130 = vmatprep.subr.bf16.mxu0 0
    %2131 = vmatpush1.bf16.msra.mxu0 0
    %2132 = vmatprep.subr.bf16.mxu0 0
    %2133 = vmatpush1.bf16.msra.mxu0 0
    %2134 = vmatprep.subr.bf16.mxu0 0
    %2135 = vmatpush1.bf16.msra.mxu0 0
    %2136 = vmatprep.mubr.bf16.mxu0 0
    %2137 = vmatmul.mubr.bf16.gmra.mrb[0].mxu0 %v2099
    %v2138 = vpop.f32.mrb[0].mxu0
    %v2139 = vadd.f32 0.0, %v2138
    %v2140 = vpop.f32.mrb[0].mxu0
    %v2141 = vpop.f32.mrb[0].mxu0
    %v2142 = vpop.f32.mrb[0].mxu0
    %2143 = vdwg.mxu0
    %2144 = vrot.lane.b32.xlu0 %v1745, 88
    %v2145 = vpop.permute.xlu0 %2144
    %v2147 = vsel %vm462, %v2095, 0
    %v2150 = vsel %vm591, %v2145, 0
    %2152 = vmatprep.subr.bf16.mxu0 0
    %2153 = vmatpush1.bf16.msra.mxu0 %v2150
    %2154 = vmatprep.subr.bf16.mxu0 0
    %2155 = vmatpush1.bf16.msra.mxu0 0
    %2156 = vmatprep.subr.bf16.mxu0 0
    %2157 = vmatpush1.bf16.msra.mxu0 0
    %2158 = vmatprep.subr.bf16.mxu0 0
    %2159 = vmatpush1.bf16.msra.mxu0 0
    %2160 = vmatprep.subr.bf16.mxu0 0
    %2161 = vmatpush1.bf16.msra.mxu0 0
    %2162 = vmatprep.subr.bf16.mxu0 0
    %2163 = vmatpush1.bf16.msra.mxu0 0
    %2164 = vmatprep.subr.bf16.mxu0 0
    %2165 = vmatpush1.bf16.msra.mxu0 0
    %2166 = vmatprep.subr.bf16.mxu0 0
    %2167 = vmatpush1.bf16.msra.mxu0 0
    %2168 = vmatprep.subr.bf16.mxu0 0
    %2169 = vmatpush1.bf16.msra.mxu0 0
    %2170 = vmatprep.subr.bf16.mxu0 0
    %2171 = vmatpush1.bf16.msra.mxu0 0
    %2172 = vmatprep.subr.bf16.mxu0 0
    %2173 = vmatpush1.bf16.msra.mxu0 0
    %2174 = vmatprep.subr.bf16.mxu0 0
    %2175 = vmatpush1.bf16.msra.mxu0 0
    %2176 = vmatprep.subr.bf16.mxu0 0
    %2177 = vmatpush1.bf16.msra.mxu0 0
    %2178 = vmatprep.subr.bf16.mxu0 0
    %2179 = vmatpush1.bf16.msra.mxu0 0
    %2180 = vmatprep.subr.bf16.mxu0 0
    %2181 = vmatpush1.bf16.msra.mxu0 0
    %2182 = vmatprep.subr.bf16.mxu0 0
    %2183 = vmatpush1.bf16.msra.mxu0 0
    %2184 = vmatprep.mubr.bf16.mxu0 0
    %2185 = vmatmul.mubr.bf16.gmra.mrb[0].mxu0 %v2147
    %v2186 = vpop.f32.mrb[0].mxu0
    %v2187 = vadd.f32 0.0, %v2186
    %v2188 = vpop.f32.mrb[0].mxu0
    %v2189 = vpop.f32.mrb[0].mxu0
    %v2190 = vpop.f32.mrb[0].mxu0
    %2191 = vdwg.mxu0
    %v2192 = vpack.c.bf16 %v2139, %v2139
    %v2193 = vpack.c.bf16 %v2187, %v2187
    %v2196 = vunpack.c.l.b16 %v2192
    %v2197 = vunpack.c.l.b16 %v2193
    %v2198 = vpack.c.b16 %v2197, %v2196
    %v2200 = vsel %vm462, %v2198, 0
    %v2203 = vsel %vm591, %v100, 0
    %2205 = vmatprep.subr.bf16.mxu0 0
    %2206 = vmatpush1.bf16.msra.mxu0 %v2203
    %2207 = vmatprep.subr.bf16.mxu0 0
    %2208 = vmatpush1.bf16.msra.mxu0 0
    %2209 = vmatprep.subr.bf16.mxu0 0
    %2210 = vmatpush1.bf16.msra.mxu0 0
    %2211 = vmatprep.subr.bf16.mxu0 0
    %2212 = vmatpush1.bf16.msra.mxu0 0
    %2213 = vmatprep.subr.bf16.mxu0 0
    %2214 = vmatpush1.bf16.msra.mxu0 0
    %2215 = vmatprep.subr.bf16.mxu0 0
    %2216 = vmatpush1.bf16.msra.mxu0 0
    %2217 = vmatprep.subr.bf16.mxu0 0
    %2218 = vmatpush1.bf16.msra.mxu0 0
    %2219 = vmatprep.subr.bf16.mxu0 0
    %2220 = vmatpush1.bf16.msra.mxu0 0
    %2221 = vmatprep.subr.bf16.mxu0 0
    %2222 = vmatpush1.bf16.msra.mxu0 0
    %2223 = vmatprep.subr.bf16.mxu0 0
    %2224 = vmatpush1.bf16.msra.mxu0 0
    %2225 = vmatprep.subr.bf16.mxu0 0
    %2226 = vmatpush1.bf16.msra.mxu0 0
    %2227 = vmatprep.subr.bf16.mxu0 0
    %2228 = vmatpush1.bf16.msra.mxu0 0
    %2229 = vmatprep.subr.bf16.mxu0 0
    %2230 = vmatpush1.bf16.msra.mxu0 0
    %2231 = vmatprep.subr.bf16.mxu0 0
    %2232 = vmatpush1.bf16.msra.mxu0 0
    %2233 = vmatprep.subr.bf16.mxu0 0
    %2234 = vmatpush1.bf16.msra.mxu0 0
    %2235 = vmatprep.subr.bf16.mxu0 0
    %2236 = vmatpush1.bf16.msra.mxu0 0
    %2237 = vmatprep.mubr.bf16.mxu0 0
    %2238 = vmatmul.mubr.bf16.gmra.mrb[0].mxu0 %v2200
    %v2239 = vpop.f32.mrb[0].mxu0
    %v2240 = vadd.f32 0.0, %v2239
    %v2241 = vpop.f32.mrb[0].mxu0
    %v2242 = vpop.f32.mrb[0].mxu0
    %v2243 = vadd.f32 0.0, %v2242
    %v2244 = vpop.f32.mrb[0].mxu0
    %2245 = vdwg.mxu0
    %v2248 = vunpack.c.l.b16 %v1964
    %v2249 = vunpack.c.l.b16 %v1965
    %v2250 = vpack.c.b16 %v2249, %v2248
    %v2252 = vsel %vm462, %v2250, 0
    %v2255 = vsel %vm591, %v99, 0
    %2257 = vmatprep.subr.bf16.mxu0 0
    %2258 = vmatpush1.bf16.msra.mxu0 %v2255
    %2259 = vmatprep.subr.bf16.mxu0 0
    %2260 = vmatpush1.bf16.msra.mxu0 0
    %2261 = vmatprep.subr.bf16.mxu0 0
    %2262 = vmatpush1.bf16.msra.mxu0 0
    %2263 = vmatprep.subr.bf16.mxu0 0
    %2264 = vmatpush1.bf16.msra.mxu0 0
    %2265 = vmatprep.subr.bf16.mxu0 0
    %2266 = vmatpush1.bf16.msra.mxu0 0
    %2267 = vmatprep.subr.bf16.mxu0 0
    %2268 = vmatpush1.bf16.msra.mxu0 0
    %2269 = vmatprep.subr.bf16.mxu0 0
    %2270 = vmatpush1.bf16.msra.mxu0 0
    %2271 = vmatprep.subr.bf16.mxu0 0
    %2272 = vmatpush1.bf16.msra.mxu0 0
    %2273 = vmatprep.subr.bf16.mxu0 0
    %2274 = vmatpush1.bf16.msra.mxu0 0
    %2275 = vmatprep.subr.bf16.mxu0 0
    %2276 = vmatpush1.bf16.msra.mxu0 0
    %2277 = vmatprep.subr.bf16.mxu0 0
    %2278 = vmatpush1.bf16.msra.mxu0 0
    %2279 = vmatprep.subr.bf16.mxu0 0
    %2280 = vmatpush1.bf16.msra.mxu0 0
    %2281 = vmatprep.subr.bf16.mxu0 0
    %2282 = vmatpush1.bf16.msra.mxu0 0
    %2283 = vmatprep.subr.bf16.mxu0 0
    %2284 = vmatpush1.bf16.msra.mxu0 0
    %2285 = vmatprep.subr.bf16.mxu0 0
    %2286 = vmatpush1.bf16.msra.mxu0 0
    %2287 = vmatprep.subr.bf16.mxu0 0
    %2288 = vmatpush1.bf16.msra.mxu0 0
    %2289 = vmatprep.mubr.bf16.mxu0 0
    %2290 = vmatmul.mubr.bf16.gmra.mrb[0].mxu0 %v2252
    %v2291 = vpop.f32.mrb[0].mxu0
    %v2292 = vadd.f32 %v2240, %v2291
    %v2293 = vpop.f32.mrb[0].mxu0
    %v2294 = vpop.f32.mrb[0].mxu0
    %v2295 = vadd.f32 %v2243, %v2294
    %v2296 = vpop.f32.mrb[0].mxu0
    %2297 = vdwg.mxu0
    %2298 = vrot.lane.b32.xlu0 %v1742, 112
    %v2299 = vpop.permute.xlu0 %2298
    %2300 = vrot.lane.b32.xlu0 %v1744, 112
    %v2301 = vpop.permute.xlu0 %2300
    %v2303 = vsel %vm462, %v2299, 0
    %v2306 = vsel %vm462, %v2301, 0
    %2308 = vmatprep.subr.bf16.mxu0 0
    %2309 = vmatpush1.bf16.xpose.msra.mxu0 %v2306
    %2310 = vmatprep.subr.bf16.mxu0 0
    %2311 = vmatpush1.bf16.xpose.msra.mxu0 0
    %2312 = vmatprep.subr.bf16.mxu0 0
    %2313 = vmatpush1.bf16.xpose.msra.mxu0 0
    %2314 = vmatprep.subr.bf16.mxu0 0
    %2315 = vmatpush1.bf16.xpose.msra.mxu0 0
    %2316 = vmatprep.subr.bf16.mxu0 0
    %2317 = vmatpush1.bf16.xpose.msra.mxu0 0
    %2318 = vmatprep.subr.bf16.mxu0 0
    %2319 = vmatpush1.bf16.xpose.msra.mxu0 0
    %2320 = vmatprep.subr.bf16.mxu0 0
    %2321 = vmatpush1.bf16.xpose.msra.mxu0 0
    %2322 = vmatprep.subr.bf16.mxu0 0
    %2323 = vmatpush1.bf16.xpose.msra.mxu0 0
    %2324 = vmatprep.subr.bf16.mxu0 0
    %2325 = vmatpush1.bf16.xpose.msra.mxu0 0
    %2326 = vmatprep.subr.bf16.mxu0 0
    %2327 = vmatpush1.bf16.xpose.msra.mxu0 0
    %2328 = vmatprep.subr.bf16.mxu0 0
    %2329 = vmatpush1.bf16.xpose.msra.mxu0 0
    %2330 = vmatprep.subr.bf16.mxu0 0
    %2331 = vmatpush1.bf16.xpose.msra.mxu0 0
    %2332 = vmatprep.subr.bf16.mxu0 0
    %2333 = vmatpush1.bf16.xpose.msra.mxu0 0
    %2334 = vmatprep.subr.bf16.mxu0 0
    %2335 = vmatpush1.bf16.xpose.msra.mxu0 0
    %2336 = vmatprep.subr.bf16.mxu0 0
    %2337 = vmatpush1.bf16.xpose.msra.mxu0 0
    %2338 = vmatprep.subr.bf16.mxu0 0
    %2339 = vmatpush1.bf16.xpose.msra.mxu0 0
    %2340 = vmatprep.mubr.bf16.mxu0 0
    %2341 = vmatmul.mubr.bf16.gmra.mrb[0].mxu0 %v2303
    %v2342 = vpop.f32.mrb[0].mxu0
    %v2343 = vadd.f32 0.0, %v2342
    %v2344 = vpop.f32.mrb[0].mxu0
    %v2345 = vpop.f32.mrb[0].mxu0
    %v2346 = vpop.f32.mrb[0].mxu0
    %2347 = vdwg.mxu0
    %2348 = vrot.lane.b32.xlu0 %v1743, 112
    %v2349 = vpop.permute.xlu0 %2348
    %2350 = vrot.lane.b32.xlu0 %v1745, 112
    %v2351 = vpop.permute.xlu0 %2350
    %v2353 = vsel %vm462, %v2349, 0
    %v2356 = vsel %vm462, %v2351, 0
    %2358 = vmatprep.subr.bf16.mxu0 0
    %2359 = vmatpush1.bf16.xpose.msra.mxu0 %v2356
    %2360 = vmatprep.subr.bf16.mxu0 0
    %2361 = vmatpush1.bf16.xpose.msra.mxu0 0
    %2362 = vmatprep.subr.bf16.mxu0 0
    %2363 = vmatpush1.bf16.xpose.msra.mxu0 0
    %2364 = vmatprep.subr.bf16.mxu0 0
    %2365 = vmatpush1.bf16.xpose.msra.mxu0 0
    %2366 = vmatprep.subr.bf16.mxu0 0
    %2367 = vmatpush1.bf16.xpose.msra.mxu0 0
    %2368 = vmatprep.subr.bf16.mxu0 0
    %2369 = vmatpush1.bf16.xpose.msra.mxu0 0
    %2370 = vmatprep.subr.bf16.mxu0 0
    %2371 = vmatpush1.bf16.xpose.msra.mxu0 0
    %2372 = vmatprep.subr.bf16.mxu0 0
    %2373 = vmatpush1.bf16.xpose.msra.mxu0 0
    %2374 = vmatprep.subr.bf16.mxu0 0
    %2375 = vmatpush1.bf16.xpose.msra.mxu0 0
    %2376 = vmatprep.subr.bf16.mxu0 0
    %2377 = vmatpush1.bf16.xpose.msra.mxu0 0
    %2378 = vmatprep.subr.bf16.mxu0 0
    %2379 = vmatpush1.bf16.xpose.msra.mxu0 0
    %2380 = vmatprep.subr.bf16.mxu0 0
    %2381 = vmatpush1.bf16.xpose.msra.mxu0 0
    %2382 = vmatprep.subr.bf16.mxu0 0
    %2383 = vmatpush1.bf16.xpose.msra.mxu0 0
    %2384 = vmatprep.subr.bf16.mxu0 0
    %2385 = vmatpush1.bf16.xpose.msra.mxu0 0
    %2386 = vmatprep.subr.bf16.mxu0 0
    %2387 = vmatpush1.bf16.xpose.msra.mxu0 0
    %2388 = vmatprep.subr.bf16.mxu0 0
    %2389 = vmatpush1.bf16.xpose.msra.mxu0 0
    %2390 = vmatprep.mubr.bf16.mxu0 0
    %2391 = vmatmul.mubr.bf16.gmra.mrb[0].mxu0 %v2353
    %v2392 = vpop.f32.mrb[0].mxu0
    %v2393 = vadd.f32 0.0, %v2392
    %v2394 = vpop.f32.mrb[0].mxu0
    %v2395 = vpop.f32.mrb[0].mxu0
    %v2396 = vpop.f32.mrb[0].mxu0
    %2397 = vdwg.mxu0
    %v2398 = vmul.f32 %v2343, 0.35355338
    %v2399 = vmul.f32 %v2393, 0.35355338
    %v2400 = vadd.f32 %v2398, %v79
    %v2401 = vadd.f32 %v2399, %v79
    %v2402 = vsel %vm462, %v2400, -inf
    %2403 = vmax.xlane.f32.xlu0 %v2402
    %v2404 = vpop.xlane.xlu0 %2403
    %v2405 = vsel %vm462, %v2401, -inf
    %2406 = vmax.xlane.f32.xlu0 %v2405
    %v2407 = vpop.xlane.xlu0 %2406
    %v2408 = vsub.f32 %v2400, %v2404
    %v2409 = vsub.f32 %v2401, %v2407
    %v2410 = vmul.f32 %v2408, 1.442695
    %v2411 = vpow.pop %v2410
    %v2412 = vmul.f32 %v2409, 1.442695
    %v2413 = vpow.pop %v2412
    %v2414 = vsel %vm462, %v2411, 0.0
    %2415 = vadd.xlane.f32.xlu0 %v2414
    %v2416 = vpop.xlane.xlu0 %2415
    %v2417 = vsel %vm462, %v2413, 0.0
    %2418 = vadd.xlane.f32.xlu0 %v2417
    %v2419 = vpop.xlane.xlu0 %2418
    %v2420 = vrcp.pop %v2416
    %v2421 = vmul.f32 %v2411, %v2420
    %v2422 = vrcp.pop %v2419
    %v2423 = vmul.f32 %v2413, %v2422
    %v2424 = vpack.c.bf16 %v2421, %v2421
    %v2425 = vpack.c.bf16 %v2423, %v2423
    %2426 = vrot.lane.b32.xlu0 %v1744, 80
    %v2427 = vpop.permute.xlu0 %2426
    %v2429 = vsel %vm462, %v2424, 0
    %v2432 = vsel %vm591, %v2427, 0
    %2434 = vmatprep.subr.bf16.mxu0 0
    %2435 = vmatpush1.bf16.msra.mxu0 %v2432
    %2436 = vmatprep.subr.bf16.mxu0 0
    %2437 = vmatpush1.bf16.msra.mxu0 0
    %2438 = vmatprep.subr.bf16.mxu0 0
    %2439 = vmatpush1.bf16.msra.mxu0 0
    %2440 = vmatprep.subr.bf16.mxu0 0
    %2441 = vmatpush1.bf16.msra.mxu0 0
    %2442 = vmatprep.subr.bf16.mxu0 0
    %2443 = vmatpush1.bf16.msra.mxu0 0
    %2444 = vmatprep.subr.bf16.mxu0 0
    %2445 = vmatpush1.bf16.msra.mxu0 0
    %2446 = vmatprep.subr.bf16.mxu0 0
    %2447 = vmatpush1.bf16.msra.mxu0 0
    %2448 = vmatprep.subr.bf16.mxu0 0
    %2449 = vmatpush1.bf16.msra.mxu0 0
    %2450 = vmatprep.subr.bf16.mxu0 0
    %2451 = vmatpush1.bf16.msra.mxu0 0
    %2452 = vmatprep.subr.bf16.mxu0 0
    %2453 = vmatpush1.bf16.msra.mxu0 0
    %2454 = vmatprep.subr.bf16.mxu0 0
    %2455 = vmatpush1.bf16.msra.mxu0 0
    %2456 = vmatprep.subr.bf16.mxu0 0
    %2457 = vmatpush1.bf16.msra.mxu0 0
    %2458 = vmatprep.subr.bf16.mxu0 0
    %2459 = vmatpush1.bf16.msra.mxu0 0
    %2460 = vmatprep.subr.bf16.mxu0 0
    %2461 = vmatpush1.bf16.msra.mxu0 0
    %2462 = vmatprep.subr.bf16.mxu0 0
    %2463 = vmatpush1.bf16.msra.mxu0 0
    %2464 = vmatprep.subr.bf16.mxu0 0
    %2465 = vmatpush1.bf16.msra.mxu0 0
    %2466 = vmatprep.mubr.bf16.mxu0 0
    %2467 = vmatmul.mubr.bf16.gmra.mrb[0].mxu0 %v2429
    %v2468 = vpop.f32.mrb[0].mxu0
    %v2469 = vadd.f32 0.0, %v2468
    %v2470 = vpop.f32.mrb[0].mxu0
    %v2471 = vpop.f32.mrb[0].mxu0
    %v2472 = vpop.f32.mrb[0].mxu0
    %2473 = vdwg.mxu0
    %2474 = vrot.lane.b32.xlu0 %v1745, 80
    %v2475 = vpop.permute.xlu0 %2474
    %v2477 = vsel %vm462, %v2425, 0
    %v2480 = vsel %vm591, %v2475, 0
    %2482 = vmatprep.subr.bf16.mxu0 0
    %2483 = vmatpush1.bf16.msra.mxu0 %v2480
    %2484 = vmatprep.subr.bf16.mxu0 0
    %2485 = vmatpush1.bf16.msra.mxu0 0
    %2486 = vmatprep.subr.bf16.mxu0 0
    %2487 = vmatpush1.bf16.msra.mxu0 0
    %2488 = vmatprep.subr.bf16.mxu0 0
    %2489 = vmatpush1.bf16.msra.mxu0 0
    %2490 = vmatprep.subr.bf16.mxu0 0
    %2491 = vmatpush1.bf16.msra.mxu0 0
    %2492 = vmatprep.subr.bf16.mxu0 0
    %2493 = vmatpush1.bf16.msra.mxu0 0
    %2494 = vmatprep.subr.bf16.mxu0 0
    %2495 = vmatpush1.bf16.msra.mxu0 0
    %2496 = vmatprep.subr.bf16.mxu0 0
    %2497 = vmatpush1.bf16.msra.mxu0 0
    %2498 = vmatprep.subr.bf16.mxu0 0
    %2499 = vmatpush1.bf16.msra.mxu0 0
    %2500 = vmatprep.subr.bf16.mxu0 0
    %2501 = vmatpush1.bf16.msra.mxu0 0
    %2502 = vmatprep.subr.bf16.mxu0 0
    %2503 = vmatpush1.bf16.msra.mxu0 0
    %2504 = vmatprep.subr.bf16.mxu0 0
    %2505 = vmatpush1.bf16.msra.mxu0 0
    %2506 = vmatprep.subr.bf16.mxu0 0
    %2507 = vmatpush1.bf16.msra.mxu0 0
    %2508 = vmatprep.subr.bf16.mxu0 0
    %2509 = vmatpush1.bf16.msra.mxu0 0
    %2510 = vmatprep.subr.bf16.mxu0 0
    %2511 = vmatpush1.bf16.msra.mxu0 0
    %2512 = vmatprep.subr.bf16.mxu0 0
    %2513 = vmatpush1.bf16.msra.mxu0 0
    %2514 = vmatprep.mubr.bf16.mxu0 0
    %2515 = vmatmul.mubr.bf16.gmra.mrb[0].mxu0 %v2477
    %v2516 = vpop.f32.mrb[0].mxu0
    %v2517 = vadd.f32 0.0, %v2516
    %v2518 = vpop.f32.mrb[0].mxu0
    %v2519 = vpop.f32.mrb[0].mxu0
    %v2520 = vpop.f32.mrb[0].mxu0
    %2521 = vdwg.mxu0
    %v2522 = vpack.c.bf16 %v2469, %v2469
    %v2523 = vpack.c.bf16 %v2517, %v2517
    %v2526 = vunpack.c.l.b16 %v2522
    %v2527 = vunpack.c.l.b16 %v2523
    %v2528 = vpack.c.b16 %v2527, %v2526
    %v2530 = vsel %vm462, %v2528, 0
    %v2533 = vsel %vm591, %v101, 0
    %2535 = vmatprep.subr.bf16.mxu0 0
    %2536 = vmatpush1.bf16.msra.mxu0 %v2533
    %2537 = vmatprep.subr.bf16.mxu0 0
    %2538 = vmatpush1.bf16.msra.mxu0 0
    %2539 = vmatprep.subr.bf16.mxu0 0
    %2540 = vmatpush1.bf16.msra.mxu0 0
    %2541 = vmatprep.subr.bf16.mxu0 0
    %2542 = vmatpush1.bf16.msra.mxu0 0
    %2543 = vmatprep.subr.bf16.mxu0 0
    %2544 = vmatpush1.bf16.msra.mxu0 0
    %2545 = vmatprep.subr.bf16.mxu0 0
    %2546 = vmatpush1.bf16.msra.mxu0 0
    %2547 = vmatprep.subr.bf16.mxu0 0
    %2548 = vmatpush1.bf16.msra.mxu0 0
    %2549 = vmatprep.subr.bf16.mxu0 0
    %2550 = vmatpush1.bf16.msra.mxu0 0
    %2551 = vmatprep.subr.bf16.mxu0 0
    %2552 = vmatpush1.bf16.msra.mxu0 0
    %2553 = vmatprep.subr.bf16.mxu0 0
    %2554 = vmatpush1.bf16.msra.mxu0 0
    %2555 = vmatprep.subr.bf16.mxu0 0
    %2556 = vmatpush1.bf16.msra.mxu0 0
    %2557 = vmatprep.subr.bf16.mxu0 0
    %2558 = vmatpush1.bf16.msra.mxu0 0
    %2559 = vmatprep.subr.bf16.mxu0 0
    %2560 = vmatpush1.bf16.msra.mxu0 0
    %2561 = vmatprep.subr.bf16.mxu0 0
    %2562 = vmatpush1.bf16.msra.mxu0 0
    %2563 = vmatprep.subr.bf16.mxu0 0
    %2564 = vmatpush1.bf16.msra.mxu0 0
    %2565 = vmatprep.subr.bf16.mxu0 0
    %2566 = vmatpush1.bf16.msra.mxu0 0
    %2567 = vmatprep.mubr.bf16.mxu0 0
    %2568 = vmatmul.mubr.bf16.gmra.mrb[0].mxu0 %v2530
    %v2569 = vpop.f32.mrb[0].mxu0
    %v2570 = vadd.f32 0.0, %v2569
    %v2571 = vpop.f32.mrb[0].mxu0
    %v2572 = vpop.f32.mrb[0].mxu0
    %v2573 = vadd.f32 0.0, %v2572
    %v2574 = vpop.f32.mrb[0].mxu0
    %2575 = vdwg.mxu0
    %v2576 = vadd.f32 %v2292, %v2570
    %v2577 = vadd.f32 %v2295, %v2573
    %2578 = vrot.lane.b32.xlu0 %v1742, 104
    %v2579 = vpop.permute.xlu0 %2578
    %2580 = vrot.lane.b32.xlu0 %v1744, 104
    %v2581 = vpop.permute.xlu0 %2580
    %v2583 = vsel %vm462, %v2579, 0
    %v2586 = vsel %vm462, %v2581, 0
    %2588 = vmatprep.subr.bf16.mxu0 0
    %2589 = vmatpush1.bf16.xpose.msra.mxu0 %v2586
    %2590 = vmatprep.subr.bf16.mxu0 0
    %2591 = vmatpush1.bf16.xpose.msra.mxu0 0
    %2592 = vmatprep.subr.bf16.mxu0 0
    %2593 = vmatpush1.bf16.xpose.msra.mxu0 0
    %2594 = vmatprep.subr.bf16.mxu0 0
    %2595 = vmatpush1.bf16.xpose.msra.mxu0 0
    %2596 = vmatprep.subr.bf16.mxu0 0
    %2597 = vmatpush1.bf16.xpose.msra.mxu0 0
    %2598 = vmatprep.subr.bf16.mxu0 0
    %2599 = vmatpush1.bf16.xpose.msra.mxu0 0
    %2600 = vmatprep.subr.bf16.mxu0 0
    %2601 = vmatpush1.bf16.xpose.msra.mxu0 0
    %2602 = vmatprep.subr.bf16.mxu0 0
    %2603 = vmatpush1.bf16.xpose.msra.mxu0 0
    %2604 = vmatprep.subr.bf16.mxu0 0
    %2605 = vmatpush1.bf16.xpose.msra.mxu0 0
    %2606 = vmatprep.subr.bf16.mxu0 0
    %2607 = vmatpush1.bf16.xpose.msra.mxu0 0
    %2608 = vmatprep.subr.bf16.mxu0 0
    %2609 = vmatpush1.bf16.xpose.msra.mxu0 0
    %2610 = vmatprep.subr.bf16.mxu0 0
    %2611 = vmatpush1.bf16.xpose.msra.mxu0 0
    %2612 = vmatprep.subr.bf16.mxu0 0
    %2613 = vmatpush1.bf16.xpose.msra.mxu0 0
    %2614 = vmatprep.subr.bf16.mxu0 0
    %2615 = vmatpush1.bf16.xpose.msra.mxu0 0
    %2616 = vmatprep.subr.bf16.mxu0 0
    %2617 = vmatpush1.bf16.xpose.msra.mxu0 0
    %2618 = vmatprep.subr.bf16.mxu0 0
    %2619 = vmatpush1.bf16.xpose.msra.mxu0 0
    %2620 = vmatprep.mubr.bf16.mxu0 0
    %2621 = vmatmul.mubr.bf16.gmra.mrb[0].mxu0 %v2583
    %v2622 = vpop.f32.mrb[0].mxu0
    %v2623 = vadd.f32 0.0, %v2622
    %v2624 = vpop.f32.mrb[0].mxu0
    %v2625 = vpop.f32.mrb[0].mxu0
    %v2626 = vpop.f32.mrb[0].mxu0
    %2627 = vdwg.mxu0
    %2628 = vrot.lane.b32.xlu0 %v1743, 104
    %v2629 = vpop.permute.xlu0 %2628
    %2630 = vrot.lane.b32.xlu0 %v1745, 104
    %v2631 = vpop.permute.xlu0 %2630
    %v2633 = vsel %vm462, %v2629, 0
    %v2636 = vsel %vm462, %v2631, 0
    %2638 = vmatprep.subr.bf16.mxu0 0
    %2639 = vmatpush1.bf16.xpose.msra.mxu0 %v2636
    %2640 = vmatprep.subr.bf16.mxu0 0
    %2641 = vmatpush1.bf16.xpose.msra.mxu0 0
    %2642 = vmatprep.subr.bf16.mxu0 0
    %2643 = vmatpush1.bf16.xpose.msra.mxu0 0
    %2644 = vmatprep.subr.bf16.mxu0 0
    %2645 = vmatpush1.bf16.xpose.msra.mxu0 0
    %2646 = vmatprep.subr.bf16.mxu0 0
    %2647 = vmatpush1.bf16.xpose.msra.mxu0 0
    %2648 = vmatprep.subr.bf16.mxu0 0
    %2649 = vmatpush1.bf16.xpose.msra.mxu0 0
    %2650 = vmatprep.subr.bf16.mxu0 0
    %2651 = vmatpush1.bf16.xpose.msra.mxu0 0
    %2652 = vmatprep.subr.bf16.mxu0 0
    %2653 = vmatpush1.bf16.xpose.msra.mxu0 0
    %2654 = vmatprep.subr.bf16.mxu0 0
    %2655 = vmatpush1.bf16.xpose.msra.mxu0 0
    %2656 = vmatprep.subr.bf16.mxu0 0
    %2657 = vmatpush1.bf16.xpose.msra.mxu0 0
    %2658 = vmatprep.subr.bf16.mxu0 0
    %2659 = vmatpush1.bf16.xpose.msra.mxu0 0
    %2660 = vmatprep.subr.bf16.mxu0 0
    %2661 = vmatpush1.bf16.xpose.msra.mxu0 0
    %2662 = vmatprep.subr.bf16.mxu0 0
    %2663 = vmatpush1.bf16.xpose.msra.mxu0 0
    %2664 = vmatprep.subr.bf16.mxu0 0
    %2665 = vmatpush1.bf16.xpose.msra.mxu0 0
    %2666 = vmatprep.subr.bf16.mxu0 0
    %2667 = vmatpush1.bf16.xpose.msra.mxu0 0
    %2668 = vmatprep.subr.bf16.mxu0 0
    %2669 = vmatpush1.bf16.xpose.msra.mxu0 0
    %2670 = vmatprep.mubr.bf16.mxu0 0
    %2671 = vmatmul.mubr.bf16.gmra.mrb[0].mxu0 %v2633
    %v2672 = vpop.f32.mrb[0].mxu0
    %v2673 = vadd.f32 0.0, %v2672
    %v2674 = vpop.f32.mrb[0].mxu0
    %v2675 = vpop.f32.mrb[0].mxu0
    %v2676 = vpop.f32.mrb[0].mxu0
    %2677 = vdwg.mxu0
    %v2678 = vmul.f32 %v2623, 0.35355338
    %v2679 = vmul.f32 %v2673, 0.35355338
    %v2680 = vadd.f32 %v2678, %v79
    %v2681 = vadd.f32 %v2679, %v79
    %v2682 = vsel %vm462, %v2680, -inf
    %2683 = vmax.xlane.f32.xlu0 %v2682
    %v2684 = vpop.xlane.xlu0 %2683
    %v2685 = vsel %vm462, %v2681, -inf
    %2686 = vmax.xlane.f32.xlu0 %v2685
    %v2687 = vpop.xlane.xlu0 %2686
    %v2688 = vsub.f32 %v2680, %v2684
    %v2689 = vsub.f32 %v2681, %v2687
    %v2690 = vmul.f32 %v2688, 1.442695
    %v2691 = vpow.pop %v2690
    %v2692 = vmul.f32 %v2689, 1.442695
    %v2693 = vpow.pop %v2692
    %v2694 = vsel %vm462, %v2691, 0.0
    %2695 = vadd.xlane.f32.xlu0 %v2694
    %v2696 = vpop.xlane.xlu0 %2695
    %v2697 = vsel %vm462, %v2693, 0.0
    %2698 = vadd.xlane.f32.xlu0 %v2697
    %v2699 = vpop.xlane.xlu0 %2698
    %v2700 = vrcp.pop %v2696
    %v2701 = vmul.f32 %v2691, %v2700
    %v2702 = vrcp.pop %v2699
    %v2703 = vmul.f32 %v2693, %v2702
    %v2704 = vpack.c.bf16 %v2701, %v2701
    %v2705 = vpack.c.bf16 %v2703, %v2703
    %2706 = vrot.lane.b32.xlu0 %v1744, 72
    %v2707 = vpop.permute.xlu0 %2706
    %v2709 = vsel %vm462, %v2704, 0
    %v2712 = vsel %vm591, %v2707, 0
    %2714 = vmatprep.subr.bf16.mxu0 0
    %2715 = vmatpush1.bf16.msra.mxu0 %v2712
    %2716 = vmatprep.subr.bf16.mxu0 0
    %2717 = vmatpush1.bf16.msra.mxu0 0
    %2718 = vmatprep.subr.bf16.mxu0 0
    %2719 = vmatpush1.bf16.msra.mxu0 0
    %2720 = vmatprep.subr.bf16.mxu0 0
    %2721 = vmatpush1.bf16.msra.mxu0 0
    %2722 = vmatprep.subr.bf16.mxu0 0
    %2723 = vmatpush1.bf16.msra.mxu0 0
    %2724 = vmatprep.subr.bf16.mxu0 0
    %2725 = vmatpush1.bf16.msra.mxu0 0
    %2726 = vmatprep.subr.bf16.mxu0 0
    %2727 = vmatpush1.bf16.msra.mxu0 0
    %2728 = vmatprep.subr.bf16.mxu0 0
    %2729 = vmatpush1.bf16.msra.mxu0 0
    %2730 = vmatprep.subr.bf16.mxu0 0
    %2731 = vmatpush1.bf16.msra.mxu0 0
    %2732 = vmatprep.subr.bf16.mxu0 0
    %2733 = vmatpush1.bf16.msra.mxu0 0
    %2734 = vmatprep.subr.bf16.mxu0 0
    %2735 = vmatpush1.bf16.msra.mxu0 0
    %2736 = vmatprep.subr.bf16.mxu0 0
    %2737 = vmatpush1.bf16.msra.mxu0 0
    %2738 = vmatprep.subr.bf16.mxu0 0
    %2739 = vmatpush1.bf16.msra.mxu0 0
    %2740 = vmatprep.subr.bf16.mxu0 0
    %2741 = vmatpush1.bf16.msra.mxu0 0
    %2742 = vmatprep.subr.bf16.mxu0 0
    %2743 = vmatpush1.bf16.msra.mxu0 0
    %2744 = vmatprep.subr.bf16.mxu0 0
    %2745 = vmatpush1.bf16.msra.mxu0 0
    %2746 = vmatprep.mubr.bf16.mxu0 0
    %2747 = vmatmul.mubr.bf16.gmra.mrb[0].mxu0 %v2709
    %v2748 = vpop.f32.mrb[0].mxu0
    %v2749 = vadd.f32 0.0, %v2748
    %v2750 = vpop.f32.mrb[0].mxu0
    %v2751 = vpop.f32.mrb[0].mxu0
    %v2752 = vpop.f32.mrb[0].mxu0
    %2753 = vdwg.mxu0
    %2754 = vrot.lane.b32.xlu0 %v1745, 72
    %v2755 = vpop.permute.xlu0 %2754
    %v2757 = vsel %vm462, %v2705, 0
    %v2760 = vsel %vm591, %v2755, 0
    %2762 = vmatprep.subr.bf16.mxu0 0
    %2763 = vmatpush1.bf16.msra.mxu0 %v2760
    %2764 = vmatprep.subr.bf16.mxu0 0
    %2765 = vmatpush1.bf16.msra.mxu0 0
    %2766 = vmatprep.subr.bf16.mxu0 0
    %2767 = vmatpush1.bf16.msra.mxu0 0
    %2768 = vmatprep.subr.bf16.mxu0 0
    %2769 = vmatpush1.bf16.msra.mxu0 0
    %2770 = vmatprep.subr.bf16.mxu0 0
    %2771 = vmatpush1.bf16.msra.mxu0 0
    %2772 = vmatprep.subr.bf16.mxu0 0
    %2773 = vmatpush1.bf16.msra.mxu0 0
    %2774 = vmatprep.subr.bf16.mxu0 0
    %2775 = vmatpush1.bf16.msra.mxu0 0
    %2776 = vmatprep.subr.bf16.mxu0 0
    %2777 = vmatpush1.bf16.msra.mxu0 0
    %2778 = vmatprep.subr.bf16.mxu0 0
    %2779 = vmatpush1.bf16.msra.mxu0 0
    %2780 = vmatprep.subr.bf16.mxu0 0
    %2781 = vmatpush1.bf16.msra.mxu0 0
    %2782 = vmatprep.subr.bf16.mxu0 0
    %2783 = vmatpush1.bf16.msra.mxu0 0
    %2784 = vmatprep.subr.bf16.mxu0 0
    %2785 = vmatpush1.bf16.msra.mxu0 0
    %2786 = vmatprep.subr.bf16.mxu0 0
    %2787 = vmatpush1.bf16.msra.mxu0 0
    %2788 = vmatprep.subr.bf16.mxu0 0
    %2789 = vmatpush1.bf16.msra.mxu0 0
    %2790 = vmatprep.subr.bf16.mxu0 0
    %2791 = vmatpush1.bf16.msra.mxu0 0
    %2792 = vmatprep.subr.bf16.mxu0 0
    %2793 = vmatpush1.bf16.msra.mxu0 0
    %2794 = vmatprep.mubr.bf16.mxu0 0
    %2795 = vmatmul.mubr.bf16.gmra.mrb[0].mxu0 %v2757
    %v2796 = vpop.f32.mrb[0].mxu0
    %v2797 = vadd.f32 0.0, %v2796
    %v2798 = vpop.f32.mrb[0].mxu0
    %v2799 = vpop.f32.mrb[0].mxu0
    %v2800 = vpop.f32.mrb[0].mxu0
    %2801 = vdwg.mxu0
    %v2802 = vpack.c.bf16 %v2749, %v2749
    %v2803 = vpack.c.bf16 %v2797, %v2797
    %v2806 = vunpack.c.l.b16 %v2802
    %v2807 = vunpack.c.l.b16 %v2803
    %v2808 = vpack.c.b16 %v2807, %v2806
    %v2810 = vsel %vm462, %v2808, 0
    %v2813 = vsel %vm591, %v102, 0
    %2815 = vmatprep.subr.bf16.mxu0 0
    %2816 = vmatpush1.bf16.msra.mxu0 %v2813
    %2817 = vmatprep.subr.bf16.mxu0 0
    %2818 = vmatpush1.bf16.msra.mxu0 0
    %2819 = vmatprep.subr.bf16.mxu0 0
    %2820 = vmatpush1.bf16.msra.mxu0 0
    %2821 = vmatprep.subr.bf16.mxu0 0
    %2822 = vmatpush1.bf16.msra.mxu0 0
    %2823 = vmatprep.subr.bf16.mxu0 0
    %2824 = vmatpush1.bf16.msra.mxu0 0
    %2825 = vmatprep.subr.bf16.mxu0 0
    %2826 = vmatpush1.bf16.msra.mxu0 0
    %2827 = vmatprep.subr.bf16.mxu0 0
    %2828 = vmatpush1.bf16.msra.mxu0 0
    %2829 = vmatprep.subr.bf16.mxu0 0
    %2830 = vmatpush1.bf16.msra.mxu0 0
    %2831 = vmatprep.subr.bf16.mxu0 0
    %2832 = vmatpush1.bf16.msra.mxu0 0
    %2833 = vmatprep.subr.bf16.mxu0 0
    %2834 = vmatpush1.bf16.msra.mxu0 0
    %2835 = vmatprep.subr.bf16.mxu0 0
    %2836 = vmatpush1.bf16.msra.mxu0 0
    %2837 = vmatprep.subr.bf16.mxu0 0
    %2838 = vmatpush1.bf16.msra.mxu0 0
    %2839 = vmatprep.subr.bf16.mxu0 0
    %2840 = vmatpush1.bf16.msra.mxu0 0
    %2841 = vmatprep.subr.bf16.mxu0 0
    %2842 = vmatpush1.bf16.msra.mxu0 0
    %2843 = vmatprep.subr.bf16.mxu0 0
    %2844 = vmatpush1.bf16.msra.mxu0 0
    %2845 = vmatprep.subr.bf16.mxu0 0
    %2846 = vmatpush1.bf16.msra.mxu0 0
    %2847 = vmatprep.mubr.bf16.mxu0 0
    %2848 = vmatmul.mubr.bf16.gmra.mrb[0].mxu0 %v2810
    %v2849 = vpop.f32.mrb[0].mxu0
    %v2850 = vadd.f32 0.0, %v2849
    %v2851 = vpop.f32.mrb[0].mxu0
    %v2852 = vpop.f32.mrb[0].mxu0
    %v2853 = vadd.f32 0.0, %v2852
    %v2854 = vpop.f32.mrb[0].mxu0
    %2855 = vdwg.mxu0
    %v2856 = vadd.f32 %v2576, %v2850
    %v2857 = vadd.f32 %v2577, %v2853
    %v2859 = vlaneseq
    %v2860 = vshrl.u32 %v2859, 7
    %v2861 = vsub.s32 0, %v2860
    %v2862 = vrot.slane %v103, %v2861
    %v2864 = vadd.f32 %v2856, %v2862
    %v2865 = vadd.f32 %v2857, %v2862
    %v2866 = vadd.f32 %v2864, %v1626
    %v2867 = vadd.f32 %v2865, %v1627
    %v2868 = vsel %vm412, %v2866, 0.0
    %2869 = vadd.xlane.f32.xlu0 %v2868
    %v2870 = vpop.xlane.xlu0 %2869
    %v2871 = vsel %vm412, %v2867, 0.0
    %2872 = vadd.xlane.f32.xlu0 %v2871
    %v2873 = vpop.xlane.xlu0 %2872
    %v2874 = vmul.f32 %v2870, %v1591
    %v2875 = vmul.f32 %v2873, %v1591
    %v2876 = vsub.f32 %v2866, %v2874
    %v2877 = vsub.f32 %v2867, %v2875
    %v2878 = vmul.f32 %v2876, %v2876
    %v2879 = vmul.f32 %v2877, %v2877
    %v2880 = vsel %vm412, %v2878, 0.0
    %2881 = vadd.xlane.f32.xlu0 %v2880
    %v2882 = vpop.xlane.xlu0 %2881
    %v2883 = vsel %vm412, %v2879, 0.0
    %2884 = vadd.xlane.f32.xlu0 %v2883
    %v2885 = vpop.xlane.xlu0 %2884
    %v2886 = vmul.f32 %v2882, %v1591
    %v2887 = vmul.f32 %v2885, %v1591
    %v2888 = vadd.f32 %v2886, 1e-05
    %v2889 = vadd.f32 %v2887, 1e-05
    %v2890 = vrsqrt.pop %v2888
    %v2891 = vrsqrt.pop %v2889
    %v2892 = vmul.f32 %v2876, %v2890
    %v2893 = vmul.f32 %v2877, %v2891
    %v2895 = vlaneseq
    %v2896 = vshrl.u32 %v2895, 7
    %v2897 = vsub.s32 0, %v2896
    %v2898 = vrot.slane %v104, %v2897
    %v2900 = vmul.f32 %v2892, %v2898
    %v2901 = vmul.f32 %v2893, %v2898
    %v2903 = vlaneseq
    %v2904 = vshrl.u32 %v2903, 7
    %v2905 = vsub.s32 0, %v2904
    %v2906 = vrot.slane %v105, %v2905
    %v2908 = vadd.f32 %v2900, %v2906
    %v2909 = vadd.f32 %v2901, %v2906
    %v2910 = vpack.c.bf16 %v2909, %v2908
    %v2913 = vlaneseq
    %v2914 = vshrl.u32 %v2913, 7
    %v2915 = vsub.s32 0, %v2914
    %v2916 = vrot.slane %v138, %v2915
    %v2917 = vlaneseq
    %v2918 = vshrl.u32 %v2917, 7
    %v2919 = vsub.s32 1, %v2918
    %v2920 = vrot.slane %v138, %v2919
    %v2921 = vlaneseq
    %v2922 = vshrl.u32 %v2921, 7
    %v2923 = vsub.s32 2, %v2922
    %v2924 = vrot.slane %v138, %v2923
    %v2925 = vlaneseq
    %v2926 = vshrl.u32 %v2925, 7
    %v2927 = vsub.s32 3, %v2926
    %v2928 = vrot.slane %v138, %v2927
    %v2929 = vlaneseq
    %v2930 = vshrl.u32 %v2929, 7
    %v2931 = vsub.s32 4, %v2930
    %v2932 = vrot.slane %v138, %v2931
    %v2933 = vlaneseq
    %v2934 = vshrl.u32 %v2933, 7
    %v2935 = vsub.s32 5, %v2934
    %v2936 = vrot.slane %v138, %v2935
    %v2937 = vlaneseq
    %v2938 = vshrl.u32 %v2937, 7
    %v2939 = vsub.s32 6, %v2938
    %v2940 = vrot.slane %v138, %v2939
    %v2941 = vlaneseq
    %v2942 = vshrl.u32 %v2941, 7
    %v2943 = vsub.s32 7, %v2942
    %v2944 = vrot.slane %v138, %v2943
    %v2945 = vlaneseq
    %v2946 = vshrl.u32 %v2945, 7
    %v2947 = vsub.s32 0, %v2946
    %v2948 = vrot.slane %v139, %v2947
    %v2949 = vlaneseq
    %v2950 = vshrl.u32 %v2949, 7
    %v2951 = vsub.s32 1, %v2950
    %v2952 = vrot.slane %v139, %v2951
    %v2953 = vlaneseq
    %v2954 = vshrl.u32 %v2953, 7
    %v2955 = vsub.s32 2, %v2954
    %v2956 = vrot.slane %v139, %v2955
    %v2957 = vlaneseq
    %v2958 = vshrl.u32 %v2957, 7
    %v2959 = vsub.s32 3, %v2958
    %v2960 = vrot.slane %v139, %v2959
    %v2961 = vlaneseq
    %v2962 = vshrl.u32 %v2961, 7
    %v2963 = vsub.s32 4, %v2962
    %v2964 = vrot.slane %v139, %v2963
    %v2965 = vlaneseq
    %v2966 = vshrl.u32 %v2965, 7
    %v2967 = vsub.s32 5, %v2966
    %v2968 = vrot.slane %v139, %v2967
    %v2969 = vlaneseq
    %v2970 = vshrl.u32 %v2969, 7
    %v2971 = vsub.s32 6, %v2970
    %v2972 = vrot.slane %v139, %v2971
    %v2973 = vlaneseq
    %v2974 = vshrl.u32 %v2973, 7
    %v2975 = vsub.s32 7, %v2974
    %v2976 = vrot.slane %v139, %v2975
    %v3025 = vunpack.c.l.b16 %v106
    %v3026 = vunpack.c.h.b16 %v106
    %v3027 = vunpack.c.l.b16 %v107
    %v3028 = vunpack.c.h.b16 %v107
    %v3029 = vunpack.c.l.b16 %v108
    %v3030 = vunpack.c.h.b16 %v108
    %v3031 = vunpack.c.l.b16 %v109
    %v3032 = vunpack.c.h.b16 %v109
    %v3033 = vunpack.c.l.b16 %v110
    %v3034 = vunpack.c.h.b16 %v110
    %v3035 = vunpack.c.l.b16 %v111
    %v3036 = vunpack.c.h.b16 %v111
    %v3037 = vunpack.c.l.b16 %v112
    %v3038 = vunpack.c.h.b16 %v112
    %v3039 = vunpack.c.l.b16 %v113
    %v3040 = vunpack.c.h.b16 %v113
    %v3041 = vunpack.c.l.b16 %v114
    %v3042 = vunpack.c.h.b16 %v114
    %v3043 = vunpack.c.l.b16 %v115
    %v3044 = vunpack.c.h.b16 %v115
    %v3045 = vunpack.c.l.b16 %v116
    %v3046 = vunpack.c.h.b16 %v116
    %v3047 = vunpack.c.l.b16 %v117
    %v3048 = vunpack.c.h.b16 %v117
    %v3049 = vunpack.c.l.b16 %v118
    %v3050 = vunpack.c.h.b16 %v118
    %v3051 = vunpack.c.l.b16 %v119
    %v3052 = vunpack.c.h.b16 %v119
    %v3053 = vunpack.c.l.b16 %v120
    %v3054 = vunpack.c.h.b16 %v120
    %v3055 = vunpack.c.l.b16 %v121
    %v3056 = vunpack.c.h.b16 %v121
    %v3057 = vunpack.c.l.b16 %v122
    %v3058 = vunpack.c.h.b16 %v122
    %v3059 = vunpack.c.l.b16 %v123
    %v3060 = vunpack.c.h.b16 %v123
    %v3061 = vunpack.c.l.b16 %v124
    %v3062 = vunpack.c.h.b16 %v124
    %v3063 = vunpack.c.l.b16 %v125
    %v3064 = vunpack.c.h.b16 %v125
    %v3065 = vunpack.c.l.b16 %v126
    %v3066 = vunpack.c.h.b16 %v126
    %v3067 = vunpack.c.l.b16 %v127
    %v3068 = vunpack.c.h.b16 %v127
    %v3069 = vunpack.c.l.b16 %v128
    %v3070 = vunpack.c.h.b16 %v128
    %v3071 = vunpack.c.l.b16 %v129
    %v3072 = vunpack.c.h.b16 %v129
    %v3073 = vunpack.c.l.b16 %v130
    %v3074 = vunpack.c.h.b16 %v130
    %v3075 = vunpack.c.l.b16 %v131
    %v3076 = vunpack.c.h.b16 %v131
    %v3077 = vunpack.c.l.b16 %v132
    %v3078 = vunpack.c.h.b16 %v132
    %v3079 = vunpack.c.l.b16 %v133
    %v3080 = vunpack.c.h.b16 %v133
    %v3081 = vunpack.c.l.b16 %v134
    %v3082 = vunpack.c.h.b16 %v134
    %v3083 = vunpack.c.l.b16 %v135
    %v3084 = vunpack.c.h.b16 %v135
    %v3085 = vunpack.c.l.b16 %v136
    %v3086 = vunpack.c.h.b16 %v136
    %v3087 = vunpack.c.l.b16 %v137
    %v3088 = vunpack.c.h.b16 %v137
    %v3089 = vpack.c.b16 %v3041, %v3025
    %v3090 = vpack.c.b16 %v3042, %v3026
    %v3091 = vpack.c.b16 %v3043, %v3027
    %v3092 = vpack.c.b16 %v3044, %v3028
    %v3093 = vpack.c.b16 %v3045, %v3029
    %v3094 = vpack.c.b16 %v3046, %v3030
    %v3095 = vpack.c.b16 %v3047, %v3031
    %v3096 = vpack.c.b16 %v3048, %v3032
    %v3097 = vpack.c.b16 %v3049, %v3033
    %v3098 = vpack.c.b16 %v3050, %v3034
    %v3099 = vpack.c.b16 %v3051, %v3035
    %v3100 = vpack.c.b16 %v3052, %v3036
    %v3101 = vpack.c.b16 %v3053, %v3037
    %v3102 = vpack.c.b16 %v3054, %v3038
    %v3103 = vpack.c.b16 %v3055, %v3039
    %v3104 = vpack.c.b16 %v3056, %v3040
    %v3105 = vpack.c.b16 %v3073, %v3057
    %v3106 = vpack.c.b16 %v3074, %v3058
    %v3107 = vpack.c.b16 %v3075, %v3059
    %v3108 = vpack.c.b16 %v3076, %v3060
    %v3109 = vpack.c.b16 %v3077, %v3061
    %v3110 = vpack.c.b16 %v3078, %v3062
    %v3111 = vpack.c.b16 %v3079, %v3063
    %v3112 = vpack.c.b16 %v3080, %v3064
    %v3113 = vpack.c.b16 %v3081, %v3065
    %v3114 = vpack.c.b16 %v3082, %v3066
    %v3115 = vpack.c.b16 %v3083, %v3067
    %v3116 = vpack.c.b16 %v3084, %v3068
    %v3117 = vpack.c.b16 %v3085, %v3069
    %v3118 = vpack.c.b16 %v3086, %v3070
    %v3119 = vpack.c.b16 %v3087, %v3071
    %v3120 = vpack.c.b16 %v3088, %v3072
    %v3154 = vsel %vm412, %v2910, 0
    %3156 = vmatprep.subr.bf16.mxu0 %v3090
    %3157 = vmatpush1.bf16.msra.mxu0 %v3089
    %3158 = vmatprep.subr.bf16.mxu0 %v3106
    %3159 = vmatpush1.bf16.msra.mxu0 %v3105
    %3160 = vmatprep.subr.bf16.mxu0 0
    %3161 = vmatpush1.bf16.msra.mxu0 0
    %3162 = vmatprep.subr.bf16.mxu0 0
    %3163 = vmatpush1.bf16.msra.mxu0 0
    %3164 = vmatprep.subr.bf16.mxu0 0
    %3165 = vmatpush1.bf16.msra.mxu0 0
    %3166 = vmatprep.subr.bf16.mxu0 0
    %3167 = vmatpush1.bf16.msra.mxu0 0
    %3168 = vmatprep.subr.bf16.mxu0 0
    %3169 = vmatpush1.bf16.msra.mxu0 0
    %3170 = vmatprep.subr.bf16.mxu0 0
    %3171 = vmatpush1.bf16.msra.mxu0 0
    %3172 = vmatprep.subr.bf16.mxu0 0
    %3173 = vmatpush1.bf16.msra.mxu0 0
    %3174 = vmatprep.subr.bf16.mxu0 0
    %3175 = vmatpush1.bf16.msra.mxu0 0
    %3176 = vmatprep.subr.bf16.mxu0 0
    %3177 = vmatpush1.bf16.msra.mxu0 0
    %3178 = vmatprep.subr.bf16.mxu0 0
    %3179 = vmatpush1.bf16.msra.mxu0 0
    %3180 = vmatprep.subr.bf16.mxu0 0
    %3181 = vmatpush1.bf16.msra.mxu0 0
    %3182 = vmatprep.subr.bf16.mxu0 0
    %3183 = vmatpush1.bf16.msra.mxu0 0
    %3184 = vmatprep.subr.bf16.mxu0 0
    %3185 = vmatpush1.bf16.msra.mxu0 0
    %3186 = vmatprep.subr.bf16.mxu0 0
    %3187 = vmatpush1.bf16.msra.mxu0 0
    %3188 = vmatprep.mubr.bf16.mxu0 0
    %3189 = vmatmul.mubr.bf16.gmra.mrb[0].mxu0 %v3154
    %v3190 = vpop.f32.mrb[0].mxu0
    %v3191 = vadd.f32 %v2916, %v3190
    %v3192 = vpop.f32.mrb[0].mxu0
    %v3193 = vadd.f32 %v2920, %v3192
    %v3194 = vpop.f32.mrb[0].mxu0
    %v3195 = vadd.f32 %v2916, %v3194
    %v3196 = vpop.f32.mrb[0].mxu0
    %v3197 = vadd.f32 %v2920, %v3196
    %3198 = vdwg.mxu0
    %3199 = vmatprep.subr.bf16.mxu0 %v3092
    %3200 = vmatpush1.bf16.msra.mxu0 %v3091
    %3201 = vmatprep.subr.bf16.mxu0 %v3108
    %3202 = vmatpush1.bf16.msra.mxu0 %v3107
    %3203 = vmatprep.subr.bf16.mxu0 0
    %3204 = vmatpush1.bf16.msra.mxu0 0
    %3205 = vmatprep.subr.bf16.mxu0 0
    %3206 = vmatpush1.bf16.msra.mxu0 0
    %3207 = vmatprep.subr.bf16.mxu0 0
    %3208 = vmatpush1.bf16.msra.mxu0 0
    %3209 = vmatprep.subr.bf16.mxu0 0
    %3210 = vmatpush1.bf16.msra.mxu0 0
    %3211 = vmatprep.subr.bf16.mxu0 0
    %3212 = vmatpush1.bf16.msra.mxu0 0
    %3213 = vmatprep.subr.bf16.mxu0 0
    %3214 = vmatpush1.bf16.msra.mxu0 0
    %3215 = vmatprep.subr.bf16.mxu0 0
    %3216 = vmatpush1.bf16.msra.mxu0 0
    %3217 = vmatprep.subr.bf16.mxu0 0
    %3218 = vmatpush1.bf16.msra.mxu0 0
    %3219 = vmatprep.subr.bf16.mxu0 0
    %3220 = vmatpush1.bf16.msra.mxu0 0
    %3221 = vmatprep.subr.bf16.mxu0 0
    %3222 = vmatpush1.bf16.msra.mxu0 0
    %3223 = vmatprep.subr.bf16.mxu0 0
    %3224 = vmatpush1.bf16.msra.mxu0 0
    %3225 = vmatprep.subr.bf16.mxu0 0
    %3226 = vmatpush1.bf16.msra.mxu0 0
    %3227 = vmatprep.subr.bf16.mxu0 0
    %3228 = vmatpush1.bf16.msra.mxu0 0
    %3229 = vmatprep.subr.bf16.mxu0 0
    %3230 = vmatpush1.bf16.msra.mxu0 0
    %3231 = vmatprep.mubr.bf16.mxu0 0
    %3232 = vmatmul.mubr.bf16.gmra.mrb[0].mxu0 %v3154
    %v3233 = vpop.f32.mrb[0].mxu0
    %v3234 = vadd.f32 %v2924, %v3233
    %v3235 = vpop.f32.mrb[0].mxu0
    %v3236 = vadd.f32 %v2928, %v3235
    %v3237 = vpop.f32.mrb[0].mxu0
    %v3238 = vadd.f32 %v2924, %v3237
    %v3239 = vpop.f32.mrb[0].mxu0
    %v3240 = vadd.f32 %v2928, %v3239
    %3241 = vdwg.mxu0
    %3242 = vmatprep.subr.bf16.mxu0 %v3094
    %3243 = vmatpush1.bf16.msra.mxu0 %v3093
    %3244 = vmatprep.subr.bf16.mxu0 %v3110
    %3245 = vmatpush1.bf16.msra.mxu0 %v3109
    %3246 = vmatprep.subr.bf16.mxu0 0
    %3247 = vmatpush1.bf16.msra.mxu0 0
    %3248 = vmatprep.subr.bf16.mxu0 0
    %3249 = vmatpush1.bf16.msra.mxu0 0
    %3250 = vmatprep.subr.bf16.mxu0 0
    %3251 = vmatpush1.bf16.msra.mxu0 0
    %3252 = vmatprep.subr.bf16.mxu0 0
    %3253 = vmatpush1.bf16.msra.mxu0 0
    %3254 = vmatprep.subr.bf16.mxu0 0
    %3255 = vmatpush1.bf16.msra.mxu0 0
    %3256 = vmatprep.subr.bf16.mxu0 0
    %3257 = vmatpush1.bf16.msra.mxu0 0
    %3258 = vmatprep.subr.bf16.mxu0 0
    %3259 = vmatpush1.bf16.msra.mxu0 0
    %3260 = vmatprep.subr.bf16.mxu0 0
    %3261 = vmatpush1.bf16.msra.mxu0 0
    %3262 = vmatprep.subr.bf16.mxu0 0
    %3263 = vmatpush1.bf16.msra.mxu0 0
    %3264 = vmatprep.subr.bf16.mxu0 0
    %3265 = vmatpush1.bf16.msra.mxu0 0
    %3266 = vmatprep.subr.bf16.mxu0 0
    %3267 = vmatpush1.bf16.msra.mxu0 0
    %3268 = vmatprep.subr.bf16.mxu0 0
    %3269 = vmatpush1.bf16.msra.mxu0 0
    %3270 = vmatprep.subr.bf16.mxu0 0
    %3271 = vmatpush1.bf16.msra.mxu0 0
    %3272 = vmatprep.subr.bf16.mxu0 0
    %3273 = vmatpush1.bf16.msra.mxu0 0
    %3274 = vmatprep.mubr.bf16.mxu0 0
    %3275 = vmatmul.mubr.bf16.gmra.mrb[0].mxu0 %v3154
    %v3276 = vpop.f32.mrb[0].mxu0
    %v3277 = vadd.f32 %v2932, %v3276
    %v3278 = vpop.f32.mrb[0].mxu0
    %v3279 = vadd.f32 %v2936, %v3278
    %v3280 = vpop.f32.mrb[0].mxu0
    %v3281 = vadd.f32 %v2932, %v3280
    %v3282 = vpop.f32.mrb[0].mxu0
    %v3283 = vadd.f32 %v2936, %v3282
    %3284 = vdwg.mxu0
    %3285 = vmatprep.subr.bf16.mxu0 %v3096
    %3286 = vmatpush1.bf16.msra.mxu0 %v3095
    %3287 = vmatprep.subr.bf16.mxu0 %v3112
    %3288 = vmatpush1.bf16.msra.mxu0 %v3111
    %3289 = vmatprep.subr.bf16.mxu0 0
    %3290 = vmatpush1.bf16.msra.mxu0 0
    %3291 = vmatprep.subr.bf16.mxu0 0
    %3292 = vmatpush1.bf16.msra.mxu0 0
    %3293 = vmatprep.subr.bf16.mxu0 0
    %3294 = vmatpush1.bf16.msra.mxu0 0
    %3295 = vmatprep.subr.bf16.mxu0 0
    %3296 = vmatpush1.bf16.msra.mxu0 0
    %3297 = vmatprep.subr.bf16.mxu0 0
    %3298 = vmatpush1.bf16.msra.mxu0 0
    %3299 = vmatprep.subr.bf16.mxu0 0
    %3300 = vmatpush1.bf16.msra.mxu0 0
    %3301 = vmatprep.subr.bf16.mxu0 0
    %3302 = vmatpush1.bf16.msra.mxu0 0
    %3303 = vmatprep.subr.bf16.mxu0 0
    %3304 = vmatpush1.bf16.msra.mxu0 0
    %3305 = vmatprep.subr.bf16.mxu0 0
    %3306 = vmatpush1.bf16.msra.mxu0 0
    %3307 = vmatprep.subr.bf16.mxu0 0
    %3308 = vmatpush1.bf16.msra.mxu0 0
    %3309 = vmatprep.subr.bf16.mxu0 0
    %3310 = vmatpush1.bf16.msra.mxu0 0
    %3311 = vmatprep.subr.bf16.mxu0 0
    %3312 = vmatpush1.bf16.msra.mxu0 0
    %3313 = vmatprep.subr.bf16.mxu0 0
    %3314 = vmatpush1.bf16.msra.mxu0 0
    %3315 = vmatprep.subr.bf16.mxu0 0
    %3316 = vmatpush1.bf16.msra.mxu0 0
    %3317 = vmatprep.mubr.bf16.mxu0 0
    %3318 = vmatmul.mubr.bf16.gmra.mrb[0].mxu0 %v3154
    %v3319 = vpop.f32.mrb[0].mxu0
    %v3320 = vadd.f32 %v2940, %v3319
    %v3321 = vpop.f32.mrb[0].mxu0
    %v3322 = vadd.f32 %v2944, %v3321
    %v3323 = vpop.f32.mrb[0].mxu0
    %v3324 = vadd.f32 %v2940, %v3323
    %v3325 = vpop.f32.mrb[0].mxu0
    %v3326 = vadd.f32 %v2944, %v3325
    %3327 = vdwg.mxu0
    %3328 = vmatprep.subr.bf16.mxu0 %v3098
    %3329 = vmatpush1.bf16.msra.mxu0 %v3097
    %3330 = vmatprep.subr.bf16.mxu0 %v3114
    %3331 = vmatpush1.bf16.msra.mxu0 %v3113
    %3332 = vmatprep.subr.bf16.mxu0 0
    %3333 = vmatpush1.bf16.msra.mxu0 0
    %3334 = vmatprep.subr.bf16.mxu0 0
    %3335 = vmatpush1.bf16.msra.mxu0 0
    %3336 = vmatprep.subr.bf16.mxu0 0
    %3337 = vmatpush1.bf16.msra.mxu0 0
    %3338 = vmatprep.subr.bf16.mxu0 0
    %3339 = vmatpush1.bf16.msra.mxu0 0
    %3340 = vmatprep.subr.bf16.mxu0 0
    %3341 = vmatpush1.bf16.msra.mxu0 0
    %3342 = vmatprep.subr.bf16.mxu0 0
    %3343 = vmatpush1.bf16.msra.mxu0 0
    %3344 = vmatprep.subr.bf16.mxu0 0
    %3345 = vmatpush1.bf16.msra.mxu0 0
    %3346 = vmatprep.subr.bf16.mxu0 0
    %3347 = vmatpush1.bf16.msra.mxu0 0
    %3348 = vmatprep.subr.bf16.mxu0 0
    %3349 = vmatpush1.bf16.msra.mxu0 0
    %3350 = vmatprep.subr.bf16.mxu0 0
    %3351 = vmatpush1.bf16.msra.mxu0 0
    %3352 = vmatprep.subr.bf16.mxu0 0
    %3353 = vmatpush1.bf16.msra.mxu0 0
    %3354 = vmatprep.subr.bf16.mxu0 0
    %3355 = vmatpush1.bf16.msra.mxu0 0
    %3356 = vmatprep.subr.bf16.mxu0 0
    %3357 = vmatpush1.bf16.msra.mxu0 0
    %3358 = vmatprep.subr.bf16.mxu0 0
    %3359 = vmatpush1.bf16.msra.mxu0 0
    %3360 = vmatprep.mubr.bf16.mxu0 0
    %3361 = vmatmul.mubr.bf16.gmra.mrb[0].mxu0 %v3154
    %v3362 = vpop.f32.mrb[0].mxu0
    %v3363 = vadd.f32 %v2948, %v3362
    %v3364 = vpop.f32.mrb[0].mxu0
    %v3365 = vadd.f32 %v2952, %v3364
    %v3366 = vpop.f32.mrb[0].mxu0
    %v3367 = vadd.f32 %v2948, %v3366
    %v3368 = vpop.f32.mrb[0].mxu0
    %v3369 = vadd.f32 %v2952, %v3368
    %3370 = vdwg.mxu0
    %3371 = vmatprep.subr.bf16.mxu0 %v3100
    %3372 = vmatpush1.bf16.msra.mxu0 %v3099
    %3373 = vmatprep.subr.bf16.mxu0 %v3116
    %3374 = vmatpush1.bf16.msra.mxu0 %v3115
    %3375 = vmatprep.subr.bf16.mxu0 0
    %3376 = vmatpush1.bf16.msra.mxu0 0
    %3377 = vmatprep.subr.bf16.mxu0 0
    %3378 = vmatpush1.bf16.msra.mxu0 0
    %3379 = vmatprep.subr.bf16.mxu0 0
    %3380 = vmatpush1.bf16.msra.mxu0 0
    %3381 = vmatprep.subr.bf16.mxu0 0
    %3382 = vmatpush1.bf16.msra.mxu0 0
    %3383 = vmatprep.subr.bf16.mxu0 0
    %3384 = vmatpush1.bf16.msra.mxu0 0
    %3385 = vmatprep.subr.bf16.mxu0 0
    %3386 = vmatpush1.bf16.msra.mxu0 0
    %3387 = vmatprep.subr.bf16.mxu0 0
    %3388 = vmatpush1.bf16.msra.mxu0 0
    %3389 = vmatprep.subr.bf16.mxu0 0
    %3390 = vmatpush1.bf16.msra.mxu0 0
    %3391 = vmatprep.subr.bf16.mxu0 0
    %3392 = vmatpush1.bf16.msra.mxu0 0
    %3393 = vmatprep.subr.bf16.mxu0 0
    %3394 = vmatpush1.bf16.msra.mxu0 0
    %3395 = vmatprep.subr.bf16.mxu0 0
    %3396 = vmatpush1.bf16.msra.mxu0 0
    %3397 = vmatprep.subr.bf16.mxu0 0
    %3398 = vmatpush1.bf16.msra.mxu0 0
    %3399 = vmatprep.subr.bf16.mxu0 0
    %3400 = vmatpush1.bf16.msra.mxu0 0
    %3401 = vmatprep.subr.bf16.mxu0 0
    %3402 = vmatpush1.bf16.msra.mxu0 0
    %3403 = vmatprep.mubr.bf16.mxu0 0
    %3404 = vmatmul.mubr.bf16.gmra.mrb[0].mxu0 %v3154
    %v3405 = vpop.f32.mrb[0].mxu0
    %v3406 = vadd.f32 %v2956, %v3405
    %v3407 = vpop.f32.mrb[0].mxu0
    %v3408 = vadd.f32 %v2960, %v3407
    %v3409 = vpop.f32.mrb[0].mxu0
    %v3410 = vadd.f32 %v2956, %v3409
    %v3411 = vpop.f32.mrb[0].mxu0
    %v3412 = vadd.f32 %v2960, %v3411
    %3413 = vdwg.mxu0
    %3414 = vmatprep.subr.bf16.mxu0 %v3102
    %3415 = vmatpush1.bf16.msra.mxu0 %v3101
    %3416 = vmatprep.subr.bf16.mxu0 %v3118
    %3417 = vmatpush1.bf16.msra.mxu0 %v3117
    %3418 = vmatprep.subr.bf16.mxu0 0
    %3419 = vmatpush1.bf16.msra.mxu0 0
    %3420 = vmatprep.subr.bf16.mxu0 0
    %3421 = vmatpush1.bf16.msra.mxu0 0
    %3422 = vmatprep.subr.bf16.mxu0 0
    %3423 = vmatpush1.bf16.msra.mxu0 0
    %3424 = vmatprep.subr.bf16.mxu0 0
    %3425 = vmatpush1.bf16.msra.mxu0 0
    %3426 = vmatprep.subr.bf16.mxu0 0
    %3427 = vmatpush1.bf16.msra.mxu0 0
    %3428 = vmatprep.subr.bf16.mxu0 0
    %3429 = vmatpush1.bf16.msra.mxu0 0
    %3430 = vmatprep.subr.bf16.mxu0 0
    %3431 = vmatpush1.bf16.msra.mxu0 0
    %3432 = vmatprep.subr.bf16.mxu0 0
    %3433 = vmatpush1.bf16.msra.mxu0 0
    %3434 = vmatprep.subr.bf16.mxu0 0
    %3435 = vmatpush1.bf16.msra.mxu0 0
    %3436 = vmatprep.subr.bf16.mxu0 0
    %3437 = vmatpush1.bf16.msra.mxu0 0
    %3438 = vmatprep.subr.bf16.mxu0 0
    %3439 = vmatpush1.bf16.msra.mxu0 0
    %3440 = vmatprep.subr.bf16.mxu0 0
    %3441 = vmatpush1.bf16.msra.mxu0 0
    %3442 = vmatprep.subr.bf16.mxu0 0
    %3443 = vmatpush1.bf16.msra.mxu0 0
    %3444 = vmatprep.subr.bf16.mxu0 0
    %3445 = vmatpush1.bf16.msra.mxu0 0
    %3446 = vmatprep.mubr.bf16.mxu0 0
    %3447 = vmatmul.mubr.bf16.gmra.mrb[0].mxu0 %v3154
    %v3448 = vpop.f32.mrb[0].mxu0
    %v3449 = vadd.f32 %v2964, %v3448
    %v3450 = vpop.f32.mrb[0].mxu0
    %v3451 = vadd.f32 %v2968, %v3450
    %v3452 = vpop.f32.mrb[0].mxu0
    %v3453 = vadd.f32 %v2964, %v3452
    %v3454 = vpop.f32.mrb[0].mxu0
    %v3455 = vadd.f32 %v2968, %v3454
    %3456 = vdwg.mxu0
    %3457 = vmatprep.subr.bf16.mxu0 %v3104
    %3458 = vmatpush1.bf16.msra.mxu0 %v3103
    %3459 = vmatprep.subr.bf16.mxu0 %v3120
    %3460 = vmatpush1.bf16.msra.mxu0 %v3119
    %3461 = vmatprep.subr.bf16.mxu0 0
    %3462 = vmatpush1.bf16.msra.mxu0 0
    %3463 = vmatprep.subr.bf16.mxu0 0
    %3464 = vmatpush1.bf16.msra.mxu0 0
    %3465 = vmatprep.subr.bf16.mxu0 0
    %3466 = vmatpush1.bf16.msra.mxu0 0
    %3467 = vmatprep.subr.bf16.mxu0 0
    %3468 = vmatpush1.bf16.msra.mxu0 0
    %3469 = vmatprep.subr.bf16.mxu0 0
    %3470 = vmatpush1.bf16.msra.mxu0 0
    %3471 = vmatprep.subr.bf16.mxu0 0
    %3472 = vmatpush1.bf16.msra.mxu0 0
    %3473 = vmatprep.subr.bf16.mxu0 0
    %3474 = vmatpush1.bf16.msra.mxu0 0
    %3475 = vmatprep.subr.bf16.mxu0 0
    %3476 = vmatpush1.bf16.msra.mxu0 0
    %3477 = vmatprep.subr.bf16.mxu0 0
    %3478 = vmatpush1.bf16.msra.mxu0 0
    %3479 = vmatprep.subr.bf16.mxu0 0
    %3480 = vmatpush1.bf16.msra.mxu0 0
    %3481 = vmatprep.subr.bf16.mxu0 0
    %3482 = vmatpush1.bf16.msra.mxu0 0
    %3483 = vmatprep.subr.bf16.mxu0 0
    %3484 = vmatpush1.bf16.msra.mxu0 0
    %3485 = vmatprep.subr.bf16.mxu0 0
    %3486 = vmatpush1.bf16.msra.mxu0 0
    %3487 = vmatprep.subr.bf16.mxu0 0
    %3488 = vmatpush1.bf16.msra.mxu0 0
    %3489 = vmatprep.mubr.bf16.mxu0 0
    %3490 = vmatmul.mubr.bf16.gmra.mrb[0].mxu0 %v3154
    %v3491 = vpop.f32.mrb[0].mxu0
    %v3492 = vadd.f32 %v2972, %v3491
    %v3493 = vpop.f32.mrb[0].mxu0
    %v3494 = vadd.f32 %v2976, %v3493
    %v3495 = vpop.f32.mrb[0].mxu0
    %v3496 = vadd.f32 %v2972, %v3495
    %v3497 = vpop.f32.mrb[0].mxu0
    %v3498 = vadd.f32 %v2976, %v3497
    %3499 = vdwg.mxu0
    %v3500 = vmax.f32 %v3191, 0.0
    %v3501 = vmax.f32 %v3193, 0.0
    %v3502 = vmax.f32 %v3234, 0.0
    %v3503 = vmax.f32 %v3236, 0.0
    %v3504 = vmax.f32 %v3277, 0.0
    %v3505 = vmax.f32 %v3279, 0.0
    %v3506 = vmax.f32 %v3320, 0.0
    %v3507 = vmax.f32 %v3322, 0.0
    %v3508 = vmax.f32 %v3363, 0.0
    %v3509 = vmax.f32 %v3365, 0.0
    %v3510 = vmax.f32 %v3406, 0.0
    %v3511 = vmax.f32 %v3408, 0.0
    %v3512 = vmax.f32 %v3449, 0.0
    %v3513 = vmax.f32 %v3451, 0.0
    %v3514 = vmax.f32 %v3492, 0.0
    %v3515 = vmax.f32 %v3494, 0.0
    %v3516 = vmax.f32 %v3195, 0.0
    %v3517 = vmax.f32 %v3197, 0.0
    %v3518 = vmax.f32 %v3238, 0.0
    %v3519 = vmax.f32 %v3240, 0.0
    %v3520 = vmax.f32 %v3281, 0.0
    %v3521 = vmax.f32 %v3283, 0.0
    %v3522 = vmax.f32 %v3324, 0.0
    %v3523 = vmax.f32 %v3326, 0.0
    %v3524 = vmax.f32 %v3367, 0.0
    %v3525 = vmax.f32 %v3369, 0.0
    %v3526 = vmax.f32 %v3410, 0.0
    %v3527 = vmax.f32 %v3412, 0.0
    %v3528 = vmax.f32 %v3453, 0.0
    %v3529 = vmax.f32 %v3455, 0.0
    %v3530 = vmax.f32 %v3496, 0.0
    %v3531 = vmax.f32 %v3498, 0.0
    %v3532 = vpack.c.bf16 %v3516, %v3500
    %v3533 = vpack.c.bf16 %v3517, %v3501
    %v3534 = vpack.c.bf16 %v3518, %v3502
    %v3535 = vpack.c.bf16 %v3519, %v3503
    %v3536 = vpack.c.bf16 %v3520, %v3504
    %v3537 = vpack.c.bf16 %v3521, %v3505
    %v3538 = vpack.c.bf16 %v3522, %v3506
    %v3539 = vpack.c.bf16 %v3523, %v3507
    %v3540 = vpack.c.bf16 %v3524, %v3508
    %v3541 = vpack.c.bf16 %v3525, %v3509
    %v3542 = vpack.c.bf16 %v3526, %v3510
    %v3543 = vpack.c.bf16 %v3527, %v3511
    %v3544 = vpack.c.bf16 %v3528, %v3512
    %v3545 = vpack.c.bf16 %v3529, %v3513
    %v3546 = vpack.c.bf16 %v3530, %v3514
    %v3547 = vpack.c.bf16 %v3531, %v3515
    %v3549 = vlaneseq
    %v3550 = vshrl.u32 %v3549, 7
    %v3551 = vsub.s32 0, %v3550
    %v3552 = vrot.slane %v396, %v3551
    %v3810 = vunpack.c.l.b16 %v140
    %v3811 = vunpack.c.l.b16 %v141
    %v3812 = vunpack.c.l.b16 %v142
    %v3813 = vunpack.c.l.b16 %v143
    %v3814 = vunpack.c.l.b16 %v144
    %v3815 = vunpack.c.l.b16 %v145
    %v3816 = vunpack.c.l.b16 %v146
    %v3817 = vunpack.c.l.b16 %v147
    %v3818 = vunpack.c.l.b16 %v148
    %v3819 = vunpack.c.l.b16 %v149
    %v3820 = vunpack.c.l.b16 %v150
    %v3821 = vunpack.c.l.b16 %v151
    %v3822 = vunpack.c.l.b16 %v152
    %v3823 = vunpack.c.l.b16 %v153
    %v3824 = vunpack.c.l.b16 %v154
    %v3825 = vunpack.c.l.b16 %v155
    %v3826 = vunpack.c.l.b16 %v156
    %v3827 = vunpack.c.l.b16 %v157
    %v3828 = vunpack.c.l.b16 %v158
    %v3829 = vunpack.c.l.b16 %v159
    %v3830 = vunpack.c.l.b16 %v160
    %v3831 = vunpack.c.l.b16 %v161
    %v3832 = vunpack.c.l.b16 %v162
    %v3833 = vunpack.c.l.b16 %v163
    %v3834 = vunpack.c.l.b16 %v164
    %v3835 = vunpack.c.l.b16 %v165
    %v3836 = vunpack.c.l.b16 %v166
    %v3837 = vunpack.c.l.b16 %v167
    %v3838 = vunpack.c.l.b16 %v168
    %v3839 = vunpack.c.l.b16 %v169
    %v3840 = vunpack.c.l.b16 %v170
    %v3841 = vunpack.c.l.b16 %v171
    %v3842 = vunpack.c.l.b16 %v172
    %v3843 = vunpack.c.l.b16 %v173
    %v3844 = vunpack.c.l.b16 %v174
    %v3845 = vunpack.c.l.b16 %v175
    %v3846 = vunpack.c.l.b16 %v176
    %v3847 = vunpack.c.l.b16 %v177
    %v3848 = vunpack.c.l.b16 %v178
    %v3849 = vunpack.c.l.b16 %v179
    %v3850 = vunpack.c.l.b16 %v180
    %v3851 = vunpack.c.l.b16 %v181
    %v3852 = vunpack.c.l.b16 %v182
    %v3853 = vunpack.c.l.b16 %v183
    %v3854 = vunpack.c.l.b16 %v184
    %v3855 = vunpack.c.l.b16 %v185
    %v3856 = vunpack.c.l.b16 %v186
    %v3857 = vunpack.c.l.b16 %v187
    %v3858 = vunpack.c.l.b16 %v188
    %v3859 = vunpack.c.l.b16 %v189
    %v3860 = vunpack.c.l.b16 %v190
    %v3861 = vunpack.c.l.b16 %v191
    %v3862 = vunpack.c.l.b16 %v192
    %v3863 = vunpack.c.l.b16 %v193
    %v3864 = vunpack.c.l.b16 %v194
    %v3865 = vunpack.c.l.b16 %v195
    %v3866 = vunpack.c.l.b16 %v196
    %v3867 = vunpack.c.l.b16 %v197
    %v3868 = vunpack.c.l.b16 %v198
    %v3869 = vunpack.c.l.b16 %v199
    %v3870 = vunpack.c.l.b16 %v200
    %v3871 = vunpack.c.l.b16 %v201
    %v3872 = vunpack.c.l.b16 %v202
    %v3873 = vunpack.c.l.b16 %v203
    %v3874 = vunpack.c.l.b16 %v204
    %v3875 = vunpack.c.l.b16 %v205
    %v3876 = vunpack.c.l.b16 %v206
    %v3877 = vunpack.c.l.b16 %v207
    %v3878 = vunpack.c.l.b16 %v208
    %v3879 = vunpack.c.l.b16 %v209
    %v3880 = vunpack.c.l.b16 %v210
    %v3881 = vunpack.c.l.b16 %v211
    %v3882 = vunpack.c.l.b16 %v212
    %v3883 = vunpack.c.l.b16 %v213
    %v3884 = vunpack.c.l.b16 %v214
    %v3885 = vunpack.c.l.b16 %v215
    %v3886 = vunpack.c.l.b16 %v216
    %v3887 = vunpack.c.l.b16 %v217
    %v3888 = vunpack.c.l.b16 %v218
    %v3889 = vunpack.c.l.b16 %v219
    %v3890 = vunpack.c.l.b16 %v220
    %v3891 = vunpack.c.l.b16 %v221
    %v3892 = vunpack.c.l.b16 %v222
    %v3893 = vunpack.c.l.b16 %v223
    %v3894 = vunpack.c.l.b16 %v224
    %v3895 = vunpack.c.l.b16 %v225
    %v3896 = vunpack.c.l.b16 %v226
    %v3897 = vunpack.c.l.b16 %v227
    %v3898 = vunpack.c.l.b16 %v228
    %v3899 = vunpack.c.l.b16 %v229
    %v3900 = vunpack.c.l.b16 %v230
    %v3901 = vunpack.c.l.b16 %v231
    %v3902 = vunpack.c.l.b16 %v232
    %v3903 = vunpack.c.l.b16 %v233
    %v3904 = vunpack.c.l.b16 %v234
    %v3905 = vunpack.c.l.b16 %v235
    %v3906 = vunpack.c.l.b16 %v236
    %v3907 = vunpack.c.l.b16 %v237
    %v3908 = vunpack.c.l.b16 %v238
    %v3909 = vunpack.c.l.b16 %v239
    %v3910 = vunpack.c.l.b16 %v240
    %v3911 = vunpack.c.l.b16 %v241
    %v3912 = vunpack.c.l.b16 %v242
    %v3913 = vunpack.c.l.b16 %v243
    %v3914 = vunpack.c.l.b16 %v244
    %v3915 = vunpack.c.l.b16 %v245
    %v3916 = vunpack.c.l.b16 %v246
    %v3917 = vunpack.c.l.b16 %v247
    %v3918 = vunpack.c.l.b16 %v248
    %v3919 = vunpack.c.l.b16 %v249
    %v3920 = vunpack.c.l.b16 %v250
    %v3921 = vunpack.c.l.b16 %v251
    %v3922 = vunpack.c.l.b16 %v252
    %v3923 = vunpack.c.l.b16 %v253
    %v3924 = vunpack.c.l.b16 %v254
    %v3925 = vunpack.c.l.b16 %v255
    %v3926 = vunpack.c.l.b16 %v256
    %v3927 = vunpack.c.l.b16 %v257
    %v3928 = vunpack.c.l.b16 %v258
    %v3929 = vunpack.c.l.b16 %v259
    %v3930 = vunpack.c.l.b16 %v260
    %v3931 = vunpack.c.l.b16 %v261
    %v3932 = vunpack.c.l.b16 %v262
    %v3933 = vunpack.c.l.b16 %v263
    %v3934 = vunpack.c.l.b16 %v264
    %v3935 = vunpack.c.l.b16 %v265
    %v3936 = vunpack.c.l.b16 %v266
    %v3937 = vunpack.c.l.b16 %v267
    %v3938 = vunpack.c.l.b16 %v268
    %v3939 = vunpack.c.l.b16 %v269
    %v3940 = vunpack.c.l.b16 %v270
    %v3941 = vunpack.c.l.b16 %v271
    %v3942 = vunpack.c.l.b16 %v272
    %v3943 = vunpack.c.l.b16 %v273
    %v3944 = vunpack.c.l.b16 %v274
    %v3945 = vunpack.c.l.b16 %v275
    %v3946 = vunpack.c.l.b16 %v276
    %v3947 = vunpack.c.l.b16 %v277
    %v3948 = vunpack.c.l.b16 %v278
    %v3949 = vunpack.c.l.b16 %v279
    %v3950 = vunpack.c.l.b16 %v280
    %v3951 = vunpack.c.l.b16 %v281
    %v3952 = vunpack.c.l.b16 %v282
    %v3953 = vunpack.c.l.b16 %v283
    %v3954 = vunpack.c.l.b16 %v284
    %v3955 = vunpack.c.l.b16 %v285
    %v3956 = vunpack.c.l.b16 %v286
    %v3957 = vunpack.c.l.b16 %v287
    %v3958 = vunpack.c.l.b16 %v288
    %v3959 = vunpack.c.l.b16 %v289
    %v3960 = vunpack.c.l.b16 %v290
    %v3961 = vunpack.c.l.b16 %v291
    %v3962 = vunpack.c.l.b16 %v292
    %v3963 = vunpack.c.l.b16 %v293
    %v3964 = vunpack.c.l.b16 %v294
    %v3965 = vunpack.c.l.b16 %v295
    %v3966 = vunpack.c.l.b16 %v296
    %v3967 = vunpack.c.l.b16 %v297
    %v3968 = vunpack.c.l.b16 %v298
    %v3969 = vunpack.c.l.b16 %v299
    %v3970 = vunpack.c.l.b16 %v300
    %v3971 = vunpack.c.l.b16 %v301
    %v3972 = vunpack.c.l.b16 %v302
    %v3973 = vunpack.c.l.b16 %v303
    %v3974 = vunpack.c.l.b16 %v304
    %v3975 = vunpack.c.l.b16 %v305
    %v3976 = vunpack.c.l.b16 %v306
    %v3977 = vunpack.c.l.b16 %v307
    %v3978 = vunpack.c.l.b16 %v308
    %v3979 = vunpack.c.l.b16 %v309
    %v3980 = vunpack.c.l.b16 %v310
    %v3981 = vunpack.c.l.b16 %v311
    %v3982 = vunpack.c.l.b16 %v312
    %v3983 = vunpack.c.l.b16 %v313
    %v3984 = vunpack.c.l.b16 %v314
    %v3985 = vunpack.c.l.b16 %v315
    %v3986 = vunpack.c.l.b16 %v316
    %v3987 = vunpack.c.l.b16 %v317
    %v3988 = vunpack.c.l.b16 %v318
    %v3989 = vunpack.c.l.b16 %v319
    %v3990 = vunpack.c.l.b16 %v320
    %v3991 = vunpack.c.l.b16 %v321
    %v3992 = vunpack.c.l.b16 %v322
    %v3993 = vunpack.c.l.b16 %v323
    %v3994 = vunpack.c.l.b16 %v324
    %v3995 = vunpack.c.l.b16 %v325
    %v3996 = vunpack.c.l.b16 %v326
    %v3997 = vunpack.c.l.b16 %v327
    %v3998 = vunpack.c.l.b16 %v328
    %v3999 = vunpack.c.l.b16 %v329
    %v4000 = vunpack.c.l.b16 %v330
    %v4001 = vunpack.c.l.b16 %v331
    %v4002 = vunpack.c.l.b16 %v332
    %v4003 = vunpack.c.l.b16 %v333
    %v4004 = vunpack.c.l.b16 %v334
    %v4005 = vunpack.c.l.b16 %v335
    %v4006 = vunpack.c.l.b16 %v336
    %v4007 = vunpack.c.l.b16 %v337
    %v4008 = vunpack.c.l.b16 %v338
    %v4009 = vunpack.c.l.b16 %v339
    %v4010 = vunpack.c.l.b16 %v340
    %v4011 = vunpack.c.l.b16 %v341
    %v4012 = vunpack.c.l.b16 %v342
    %v4013 = vunpack.c.l.b16 %v343
    %v4014 = vunpack.c.l.b16 %v344
    %v4015 = vunpack.c.l.b16 %v345
    %v4016 = vunpack.c.l.b16 %v346
    %v4017 = vunpack.c.l.b16 %v347
    %v4018 = vunpack.c.l.b16 %v348
    %v4019 = vunpack.c.l.b16 %v349
    %v4020 = vunpack.c.l.b16 %v350
    %v4021 = vunpack.c.l.b16 %v351
    %v4022 = vunpack.c.l.b16 %v352
    %v4023 = vunpack.c.l.b16 %v353
    %v4024 = vunpack.c.l.b16 %v354
    %v4025 = vunpack.c.l.b16 %v355
    %v4026 = vunpack.c.l.b16 %v356
    %v4027 = vunpack.c.l.b16 %v357
    %v4028 = vunpack.c.l.b16 %v358
    %v4029 = vunpack.c.l.b16 %v359
    %v4030 = vunpack.c.l.b16 %v360
    %v4031 = vunpack.c.l.b16 %v361
    %v4032 = vunpack.c.l.b16 %v362
    %v4033 = vunpack.c.l.b16 %v363
    %v4034 = vunpack.c.l.b16 %v364
    %v4035 = vunpack.c.l.b16 %v365
    %v4036 = vunpack.c.l.b16 %v366
    %v4037 = vunpack.c.l.b16 %v367
    %v4038 = vunpack.c.l.b16 %v368
    %v4039 = vunpack.c.l.b16 %v369
    %v4040 = vunpack.c.l.b16 %v370
    %v4041 = vunpack.c.l.b16 %v371
    %v4042 = vunpack.c.l.b16 %v372
    %v4043 = vunpack.c.l.b16 %v373
    %v4044 = vunpack.c.l.b16 %v374
    %v4045 = vunpack.c.l.b16 %v375
    %v4046 = vunpack.c.l.b16 %v376
    %v4047 = vunpack.c.l.b16 %v377
    %v4048 = vunpack.c.l.b16 %v378
    %v4049 = vunpack.c.l.b16 %v379
    %v4050 = vunpack.c.l.b16 %v380
    %v4051 = vunpack.c.l.b16 %v381
    %v4052 = vunpack.c.l.b16 %v382
    %v4053 = vunpack.c.l.b16 %v383
    %v4054 = vunpack.c.l.b16 %v384
    %v4055 = vunpack.c.l.b16 %v385
    %v4056 = vunpack.c.l.b16 %v386
    %v4057 = vunpack.c.l.b16 %v387
    %v4058 = vunpack.c.l.b16 %v388
    %v4059 = vunpack.c.l.b16 %v389
    %v4060 = vunpack.c.l.b16 %v390
    %v4061 = vunpack.c.l.b16 %v391
    %v4062 = vunpack.c.l.b16 %v392
    %v4063 = vunpack.c.l.b16 %v393
    %v4064 = vunpack.c.l.b16 %v394
    %v4065 = vunpack.c.l.b16 %v395
    %v4066 = vpack.c.b16 %v3811, %v3810
    %v4067 = vpack.c.b16 %v3813, %v3812
    %v4068 = vpack.c.b16 %v3815, %v3814
    %v4069 = vpack.c.b16 %v3817, %v3816
    %v4070 = vpack.c.b16 %v3819, %v3818
    %v4071 = vpack.c.b16 %v3821, %v3820
    %v4072 = vpack.c.b16 %v3823, %v3822
    %v4073 = vpack.c.b16 %v3825, %v3824
    %v4074 = vpack.c.b16 %v3827, %v3826
    %v4075 = vpack.c.b16 %v3829, %v3828
    %v4076 = vpack.c.b16 %v3831, %v3830
    %v4077 = vpack.c.b16 %v3833, %v3832
    %v4078 = vpack.c.b16 %v3835, %v3834
    %v4079 = vpack.c.b16 %v3837, %v3836
    %v4080 = vpack.c.b16 %v3839, %v3838
    %v4081 = vpack.c.b16 %v3841, %v3840
    %v4082 = vpack.c.b16 %v3843, %v3842
    %v4083 = vpack.c.b16 %v3845, %v3844
    %v4084 = vpack.c.b16 %v3847, %v3846
    %v4085 = vpack.c.b16 %v3849, %v3848
    %v4086 = vpack.c.b16 %v3851, %v3850
    %v4087 = vpack.c.b16 %v3853, %v3852
    %v4088 = vpack.c.b16 %v3855, %v3854
    %v4089 = vpack.c.b16 %v3857, %v3856
    %v4090 = vpack.c.b16 %v3859, %v3858
    %v4091 = vpack.c.b16 %v3861, %v3860
    %v4092 = vpack.c.b16 %v3863, %v3862
    %v4093 = vpack.c.b16 %v3865, %v3864
    %v4094 = vpack.c.b16 %v3867, %v3866
    %v4095 = vpack.c.b16 %v3869, %v3868
    %v4096 = vpack.c.b16 %v3871, %v3870
    %v4097 = vpack.c.b16 %v3873, %v3872
    %v4098 = vpack.c.b16 %v3875, %v3874
    %v4099 = vpack.c.b16 %v3877, %v3876
    %v4100 = vpack.c.b16 %v3879, %v3878
    %v4101 = vpack.c.b16 %v3881, %v3880
    %v4102 = vpack.c.b16 %v3883, %v3882
    %v4103 = vpack.c.b16 %v3885, %v3884
    %v4104 = vpack.c.b16 %v3887, %v3886
    %v4105 = vpack.c.b16 %v3889, %v3888
    %v4106 = vpack.c.b16 %v3891, %v3890
    %v4107 = vpack.c.b16 %v3893, %v3892
    %v4108 = vpack.c.b16 %v3895, %v3894
    %v4109 = vpack.c.b16 %v3897, %v3896
    %v4110 = vpack.c.b16 %v3899, %v3898
    %v4111 = vpack.c.b16 %v3901, %v3900
    %v4112 = vpack.c.b16 %v3903, %v3902
    %v4113 = vpack.c.b16 %v3905, %v3904
    %v4114 = vpack.c.b16 %v3907, %v3906
    %v4115 = vpack.c.b16 %v3909, %v3908
    %v4116 = vpack.c.b16 %v3911, %v3910
    %v4117 = vpack.c.b16 %v3913, %v3912
    %v4118 = vpack.c.b16 %v3915, %v3914
    %v4119 = vpack.c.b16 %v3917, %v3916
    %v4120 = vpack.c.b16 %v3919, %v3918
    %v4121 = vpack.c.b16 %v3921, %v3920
    %v4122 = vpack.c.b16 %v3923, %v3922
    %v4123 = vpack.c.b16 %v3925, %v3924
    %v4124 = vpack.c.b16 %v3927, %v3926
    %v4125 = vpack.c.b16 %v3929, %v3928
    %v4126 = vpack.c.b16 %v3931, %v3930
    %v4127 = vpack.c.b16 %v3933, %v3932
    %v4128 = vpack.c.b16 %v3935, %v3934
    %v4129 = vpack.c.b16 %v3937, %v3936
    %v4130 = vpack.c.b16 %v3939, %v3938
    %v4131 = vpack.c.b16 %v3941, %v3940
    %v4132 = vpack.c.b16 %v3943, %v3942
    %v4133 = vpack.c.b16 %v3945, %v3944
    %v4134 = vpack.c.b16 %v3947, %v3946
    %v4135 = vpack.c.b16 %v3949, %v3948
    %v4136 = vpack.c.b16 %v3951, %v3950
    %v4137 = vpack.c.b16 %v3953, %v3952
    %v4138 = vpack.c.b16 %v3955, %v3954
    %v4139 = vpack.c.b16 %v3957, %v3956
    %v4140 = vpack.c.b16 %v3959, %v3958
    %v4141 = vpack.c.b16 %v3961, %v3960
    %v4142 = vpack.c.b16 %v3963, %v3962
    %v4143 = vpack.c.b16 %v3965, %v3964
    %v4144 = vpack.c.b16 %v3967, %v3966
    %v4145 = vpack.c.b16 %v3969, %v3968
    %v4146 = vpack.c.b16 %v3971, %v3970
    %v4147 = vpack.c.b16 %v3973, %v3972
    %v4148 = vpack.c.b16 %v3975, %v3974
    %v4149 = vpack.c.b16 %v3977, %v3976
    %v4150 = vpack.c.b16 %v3979, %v3978
    %v4151 = vpack.c.b16 %v3981, %v3980
    %v4152 = vpack.c.b16 %v3983, %v3982
    %v4153 = vpack.c.b16 %v3985, %v3984
    %v4154 = vpack.c.b16 %v3987, %v3986
    %v4155 = vpack.c.b16 %v3989, %v3988
    %v4156 = vpack.c.b16 %v3991, %v3990
    %v4157 = vpack.c.b16 %v3993, %v3992
    %v4158 = vpack.c.b16 %v3995, %v3994
    %v4159 = vpack.c.b16 %v3997, %v3996
    %v4160 = vpack.c.b16 %v3999, %v3998
    %v4161 = vpack.c.b16 %v4001, %v4000
    %v4162 = vpack.c.b16 %v4003, %v4002
    %v4163 = vpack.c.b16 %v4005, %v4004
    %v4164 = vpack.c.b16 %v4007, %v4006
    %v4165 = vpack.c.b16 %v4009, %v4008
    %v4166 = vpack.c.b16 %v4011, %v4010
    %v4167 = vpack.c.b16 %v4013, %v4012
    %v4168 = vpack.c.b16 %v4015, %v4014
    %v4169 = vpack.c.b16 %v4017, %v4016
    %v4170 = vpack.c.b16 %v4019, %v4018
    %v4171 = vpack.c.b16 %v4021, %v4020
    %v4172 = vpack.c.b16 %v4023, %v4022
    %v4173 = vpack.c.b16 %v4025, %v4024
    %v4174 = vpack.c.b16 %v4027, %v4026
    %v4175 = vpack.c.b16 %v4029, %v4028
    %v4176 = vpack.c.b16 %v4031, %v4030
    %v4177 = vpack.c.b16 %v4033, %v4032
    %v4178 = vpack.c.b16 %v4035, %v4034
    %v4179 = vpack.c.b16 %v4037, %v4036
    %v4180 = vpack.c.b16 %v4039, %v4038
    %v4181 = vpack.c.b16 %v4041, %v4040
    %v4182 = vpack.c.b16 %v4043, %v4042
    %v4183 = vpack.c.b16 %v4045, %v4044
    %v4184 = vpack.c.b16 %v4047, %v4046
    %v4185 = vpack.c.b16 %v4049, %v4048
    %v4186 = vpack.c.b16 %v4051, %v4050
    %v4187 = vpack.c.b16 %v4053, %v4052
    %v4188 = vpack.c.b16 %v4055, %v4054
    %v4189 = vpack.c.b16 %v4057, %v4056
    %v4190 = vpack.c.b16 %v4059, %v4058
    %v4191 = vpack.c.b16 %v4061, %v4060
    %v4192 = vpack.c.b16 %v4063, %v4062
    %v4193 = vpack.c.b16 %v4065, %v4064
    %4322 = vmatprep.subr.bf16.mxu0 0
    %4323 = vmatpush1.bf16.msra.mxu0 %v4066
    %4324 = vmatprep.subr.bf16.mxu0 0
    %4325 = vmatpush1.bf16.msra.mxu0 %v4067
    %4326 = vmatprep.subr.bf16.mxu0 0
    %4327 = vmatpush1.bf16.msra.mxu0 %v4068
    %4328 = vmatprep.subr.bf16.mxu0 0
    %4329 = vmatpush1.bf16.msra.mxu0 %v4069
    %4330 = vmatprep.subr.bf16.mxu0 0
    %4331 = vmatpush1.bf16.msra.mxu0 %v4070
    %4332 = vmatprep.subr.bf16.mxu0 0
    %4333 = vmatpush1.bf16.msra.mxu0 %v4071
    %4334 = vmatprep.subr.bf16.mxu0 0
    %4335 = vmatpush1.bf16.msra.mxu0 %v4072
    %4336 = vmatprep.subr.bf16.mxu0 0
    %4337 = vmatpush1.bf16.msra.mxu0 %v4073
    %4338 = vmatprep.subr.bf16.mxu0 0
    %4339 = vmatpush1.bf16.msra.mxu0 %v4074
    %4340 = vmatprep.subr.bf16.mxu0 0
    %4341 = vmatpush1.bf16.msra.mxu0 %v4075
    %4342 = vmatprep.subr.bf16.mxu0 0
    %4343 = vmatpush1.bf16.msra.mxu0 %v4076
    %4344 = vmatprep.subr.bf16.mxu0 0
    %4345 = vmatpush1.bf16.msra.mxu0 %v4077
    %4346 = vmatprep.subr.bf16.mxu0 0
    %4347 = vmatpush1.bf16.msra.mxu0 %v4078
    %4348 = vmatprep.subr.bf16.mxu0 0
    %4349 = vmatpush1.bf16.msra.mxu0 %v4079
    %4350 = vmatprep.subr.bf16.mxu0 0
    %4351 = vmatpush1.bf16.msra.mxu0 %v4080
    %4352 = vmatprep.subr.bf16.mxu0 0
    %4353 = vmatpush1.bf16.msra.mxu0 %v4081
    %4354 = vmatprep.mubr.bf16.mxu0 %v3533
    %4355 = vmatmul.mubr.bf16.gmra.mrb[0].mxu0 %v3532
    %v4356 = vpop.f32.mrb[0].mxu0
    %v4357 = vadd.f32 %v3552, %v4356
    %v4358 = vpop.f32.mrb[0].mxu0
    %v4359 = vpop.f32.mrb[0].mxu0
    %v4360 = vadd.f32 %v3552, %v4359
    %v4361 = vpop.f32.mrb[0].mxu0
    %4362 = vdwg.mxu0
    %4363 = vmatprep.subr.bf16.mxu0 0
    %4364 = vmatpush1.bf16.msra.mxu0 %v4082
    %4365 = vmatprep.subr.bf16.mxu0 0
    %4366 = vmatpush1.bf16.msra.mxu0 %v4083
    %4367 = vmatprep.subr.bf16.mxu0 0
    %4368 = vmatpush1.bf16.msra.mxu0 %v4084
    %4369 = vmatprep.subr.bf16.mxu0 0
    %4370 = vmatpush1.bf16.msra.mxu0 %v4085
    %4371 = vmatprep.subr.bf16.mxu0 0
    %4372 = vmatpush1.bf16.msra.mxu0 %v4086
    %4373 = vmatprep.subr.bf16.mxu0 0
    %4374 = vmatpush1.bf16.msra.mxu0 %v4087
    %4375 = vmatprep.subr.bf16.mxu0 0
    %4376 = vmatpush1.bf16.msra.mxu0 %v4088
    %4377 = vmatprep.subr.bf16.mxu0 0
    %4378 = vmatpush1.bf16.msra.mxu0 %v4089
    %4379 = vmatprep.subr.bf16.mxu0 0
    %4380 = vmatpush1.bf16.msra.mxu0 %v4090
    %4381 = vmatprep.subr.bf16.mxu0 0
    %4382 = vmatpush1.bf16.msra.mxu0 %v4091
    %4383 = vmatprep.subr.bf16.mxu0 0
    %4384 = vmatpush1.bf16.msra.mxu0 %v4092
    %4385 = vmatprep.subr.bf16.mxu0 0
    %4386 = vmatpush1.bf16.msra.mxu0 %v4093
    %4387 = vmatprep.subr.bf16.mxu0 0
    %4388 = vmatpush1.bf16.msra.mxu0 %v4094
    %4389 = vmatprep.subr.bf16.mxu0 0
    %4390 = vmatpush1.bf16.msra.mxu0 %v4095
    %4391 = vmatprep.subr.bf16.mxu0 0
    %4392 = vmatpush1.bf16.msra.mxu0 %v4096
    %4393 = vmatprep.subr.bf16.mxu0 0
    %4394 = vmatpush1.bf16.msra.mxu0 %v4097
    %4395 = vmatprep.mubr.bf16.mxu0 %v3535
    %4396 = vmatmul.mubr.bf16.gmra.mrb[0].mxu0 %v3534
    %v4397 = vpop.f32.mrb[0].mxu0
    %v4398 = vadd.f32 %v4357, %v4397
    %v4399 = vpop.f32.mrb[0].mxu0
    %v4400 = vpop.f32.mrb[0].mxu0
    %v4401 = vadd.f32 %v4360, %v4400
    %v4402 = vpop.f32.mrb[0].mxu0
    %4403 = vdwg.mxu0
    %4404 = vmatprep.subr.bf16.mxu0 0
    %4405 = vmatpush1.bf16.msra.mxu0 %v4098
    %4406 = vmatprep.subr.bf16.mxu0 0
    %4407 = vmatpush1.bf16.msra.mxu0 %v4099
    %4408 = vmatprep.subr.bf16.mxu0 0
    %4409 = vmatpush1.bf16.msra.mxu0 %v4100
    %4410 = vmatprep.subr.bf16.mxu0 0
    %4411 = vmatpush1.bf16.msra.mxu0 %v4101
    %4412 = vmatprep.subr.bf16.mxu0 0
    %4413 = vmatpush1.bf16.msra.mxu0 %v4102
    %4414 = vmatprep.subr.bf16.mxu0 0
    %4415 = vmatpush1.bf16.msra.mxu0 %v4103
    %4416 = vmatprep.subr.bf16.mxu0 0
    %4417 = vmatpush1.bf16.msra.mxu0 %v4104
    %4418 = vmatprep.subr.bf16.mxu0 0
    %4419 = vmatpush1.bf16.msra.mxu0 %v4105
    %4420 = vmatprep.subr.bf16.mxu0 0
    %4421 = vmatpush1.bf16.msra.mxu0 %v4106
    %4422 = vmatprep.subr.bf16.mxu0 0
    %4423 = vmatpush1.bf16.msra.mxu0 %v4107
    %4424 = vmatprep.subr.bf16.mxu0 0
    %4425 = vmatpush1.bf16.msra.mxu0 %v4108
    %4426 = vmatprep.subr.bf16.mxu0 0
    %4427 = vmatpush1.bf16.msra.mxu0 %v4109
    %4428 = vmatprep.subr.bf16.mxu0 0
    %4429 = vmatpush1.bf16.msra.mxu0 %v4110
    %4430 = vmatprep.subr.bf16.mxu0 0
    %4431 = vmatpush1.bf16.msra.mxu0 %v4111
    %4432 = vmatprep.subr.bf16.mxu0 0
    %4433 = vmatpush1.bf16.msra.mxu0 %v4112
    %4434 = vmatprep.subr.bf16.mxu0 0
    %4435 = vmatpush1.bf16.msra.mxu0 %v4113
    %4436 = vmatprep.mubr.bf16.mxu0 %v3537
    %4437 = vmatmul.mubr.bf16.gmra.mrb[0].mxu0 %v3536
    %v4438 = vpop.f32.mrb[0].mxu0
    %v4439 = vadd.f32 %v4398, %v4438
    %v4440 = vpop.f32.mrb[0].mxu0
    %v4441 = vpop.f32.mrb[0].mxu0
    %v4442 = vadd.f32 %v4401, %v4441
    %v4443 = vpop.f32.mrb[0].mxu0
    %4444 = vdwg.mxu0
    %4445 = vmatprep.subr.bf16.mxu0 0
    %4446 = vmatpush1.bf16.msra.mxu0 %v4114
    %4447 = vmatprep.subr.bf16.mxu0 0
    %4448 = vmatpush1.bf16.msra.mxu0 %v4115
    %4449 = vmatprep.subr.bf16.mxu0 0
    %4450 = vmatpush1.bf16.msra.mxu0 %v4116
    %4451 = vmatprep.subr.bf16.mxu0 0
    %4452 = vmatpush1.bf16.msra.mxu0 %v4117
    %4453 = vmatprep.subr.bf16.mxu0 0
    %4454 = vmatpush1.bf16.msra.mxu0 %v4118
    %4455 = vmatprep.subr.bf16.mxu0 0
    %4456 = vmatpush1.bf16.msra.mxu0 %v4119
    %4457 = vmatprep.subr.bf16.mxu0 0
    %4458 = vmatpush1.bf16.msra.mxu0 %v4120
    %4459 = vmatprep.subr.bf16.mxu0 0
    %4460 = vmatpush1.bf16.msra.mxu0 %v4121
    %4461 = vmatprep.subr.bf16.mxu0 0
    %4462 = vmatpush1.bf16.msra.mxu0 %v4122
    %4463 = vmatprep.subr.bf16.mxu0 0
    %4464 = vmatpush1.bf16.msra.mxu0 %v4123
    %4465 = vmatprep.subr.bf16.mxu0 0
    %4466 = vmatpush1.bf16.msra.mxu0 %v4124
    %4467 = vmatprep.subr.bf16.mxu0 0
    %4468 = vmatpush1.bf16.msra.mxu0 %v4125
    %4469 = vmatprep.subr.bf16.mxu0 0
    %4470 = vmatpush1.bf16.msra.mxu0 %v4126
    %4471 = vmatprep.subr.bf16.mxu0 0
    %4472 = vmatpush1.bf16.msra.mxu0 %v4127
    %4473 = vmatprep.subr.bf16.mxu0 0
    %4474 = vmatpush1.bf16.msra.mxu0 %v4128
    %4475 = vmatprep.subr.bf16.mxu0 0
    %4476 = vmatpush1.bf16.msra.mxu0 %v4129
    %4477 = vmatprep.mubr.bf16.mxu0 %v3539
    %4478 = vmatmul.mubr.bf16.gmra.mrb[0].mxu0 %v3538
    %v4479 = vpop.f32.mrb[0].mxu0
    %v4480 = vadd.f32 %v4439, %v4479
    %v4481 = vpop.f32.mrb[0].mxu0
    %v4482 = vpop.f32.mrb[0].mxu0
    %v4483 = vadd.f32 %v4442, %v4482
    %v4484 = vpop.f32.mrb[0].mxu0
    %4485 = vdwg.mxu0
    %4486 = vmatprep.subr.bf16.mxu0 0
    %4487 = vmatpush1.bf16.msra.mxu0 %v4130
    %4488 = vmatprep.subr.bf16.mxu0 0
    %4489 = vmatpush1.bf16.msra.mxu0 %v4131
    %4490 = vmatprep.subr.bf16.mxu0 0
    %4491 = vmatpush1.bf16.msra.mxu0 %v4132
    %4492 = vmatprep.subr.bf16.mxu0 0
    %4493 = vmatpush1.bf16.msra.mxu0 %v4133
    %4494 = vmatprep.subr.bf16.mxu0 0
    %4495 = vmatpush1.bf16.msra.mxu0 %v4134
    %4496 = vmatprep.subr.bf16.mxu0 0
    %4497 = vmatpush1.bf16.msra.mxu0 %v4135
    %4498 = vmatprep.subr.bf16.mxu0 0
    %4499 = vmatpush1.bf16.msra.mxu0 %v4136
    %4500 = vmatprep.subr.bf16.mxu0 0
    %4501 = vmatpush1.bf16.msra.mxu0 %v4137
    %4502 = vmatprep.subr.bf16.mxu0 0
    %4503 = vmatpush1.bf16.msra.mxu0 %v4138
    %4504 = vmatprep.subr.bf16.mxu0 0
    %4505 = vmatpush1.bf16.msra.mxu0 %v4139
    %4506 = vmatprep.subr.bf16.mxu0 0
    %4507 = vmatpush1.bf16.msra.mxu0 %v4140
    %4508 = vmatprep.subr.bf16.mxu0 0
    %4509 = vmatpush1.bf16.msra.mxu0 %v4141
    %4510 = vmatprep.subr.bf16.mxu0 0
    %4511 = vmatpush1.bf16.msra.mxu0 %v4142
    %4512 = vmatprep.subr.bf16.mxu0 0
    %4513 = vmatpush1.bf16.msra.mxu0 %v4143
    %4514 = vmatprep.subr.bf16.mxu0 0
    %4515 = vmatpush1.bf16.msra.mxu0 %v4144
    %4516 = vmatprep.subr.bf16.mxu0 0
    %4517 = vmatpush1.bf16.msra.mxu0 %v4145
    %4518 = vmatprep.mubr.bf16.mxu0 %v3541
    %4519 = vmatmul.mubr.bf16.gmra.mrb[0].mxu0 %v3540
    %v4520 = vpop.f32.mrb[0].mxu0
    %v4521 = vadd.f32 %v4480, %v4520
    %v4522 = vpop.f32.mrb[0].mxu0
    %v4523 = vpop.f32.mrb[0].mxu0
    %v4524 = vadd.f32 %v4483, %v4523
    %v4525 = vpop.f32.mrb[0].mxu0
    %4526 = vdwg.mxu0
    %4527 = vmatprep.subr.bf16.mxu0 0
    %4528 = vmatpush1.bf16.msra.mxu0 %v4146
    %4529 = vmatprep.subr.bf16.mxu0 0
    %4530 = vmatpush1.bf16.msra.mxu0 %v4147
    %4531 = vmatprep.subr.bf16.mxu0 0
    %4532 = vmatpush1.bf16.msra.mxu0 %v4148
    %4533 = vmatprep.subr.bf16.mxu0 0
    %4534 = vmatpush1.bf16.msra.mxu0 %v4149
    %4535 = vmatprep.subr.bf16.mxu0 0
    %4536 = vmatpush1.bf16.msra.mxu0 %v4150
    %4537 = vmatprep.subr.bf16.mxu0 0
    %4538 = vmatpush1.bf16.msra.mxu0 %v4151
    %4539 = vmatprep.subr.bf16.mxu0 0
    %4540 = vmatpush1.bf16.msra.mxu0 %v4152
    %4541 = vmatprep.subr.bf16.mxu0 0
    %4542 = vmatpush1.bf16.msra.mxu0 %v4153
    %4543 = vmatprep.subr.bf16.mxu0 0
    %4544 = vmatpush1.bf16.msra.mxu0 %v4154
    %4545 = vmatprep.subr.bf16.mxu0 0
    %4546 = vmatpush1.bf16.msra.mxu0 %v4155
    %4547 = vmatprep.subr.bf16.mxu0 0
    %4548 = vmatpush1.bf16.msra.mxu0 %v4156
    %4549 = vmatprep.subr.bf16.mxu0 0
    %4550 = vmatpush1.bf16.msra.mxu0 %v4157
    %4551 = vmatprep.subr.bf16.mxu0 0
    %4552 = vmatpush1.bf16.msra.mxu0 %v4158
    %4553 = vmatprep.subr.bf16.mxu0 0
    %4554 = vmatpush1.bf16.msra.mxu0 %v4159
    %4555 = vmatprep.subr.bf16.mxu0 0
    %4556 = vmatpush1.bf16.msra.mxu0 %v4160
    %4557 = vmatprep.subr.bf16.mxu0 0
    %4558 = vmatpush1.bf16.msra.mxu0 %v4161
    %4559 = vmatprep.mubr.bf16.mxu0 %v3543
    %4560 = vmatmul.mubr.bf16.gmra.mrb[0].mxu0 %v3542
    %v4561 = vpop.f32.mrb[0].mxu0
    %v4562 = vadd.f32 %v4521, %v4561
    %v4563 = vpop.f32.mrb[0].mxu0
    %v4564 = vpop.f32.mrb[0].mxu0
    %v4565 = vadd.f32 %v4524, %v4564
    %v4566 = vpop.f32.mrb[0].mxu0
    %4567 = vdwg.mxu0
    %4568 = vmatprep.subr.bf16.mxu0 0
    %4569 = vmatpush1.bf16.msra.mxu0 %v4162
    %4570 = vmatprep.subr.bf16.mxu0 0
    %4571 = vmatpush1.bf16.msra.mxu0 %v4163
    %4572 = vmatprep.subr.bf16.mxu0 0
    %4573 = vmatpush1.bf16.msra.mxu0 %v4164
    %4574 = vmatprep.subr.bf16.mxu0 0
    %4575 = vmatpush1.bf16.msra.mxu0 %v4165
    %4576 = vmatprep.subr.bf16.mxu0 0
    %4577 = vmatpush1.bf16.msra.mxu0 %v4166
    %4578 = vmatprep.subr.bf16.mxu0 0
    %4579 = vmatpush1.bf16.msra.mxu0 %v4167
    %4580 = vmatprep.subr.bf16.mxu0 0
    %4581 = vmatpush1.bf16.msra.mxu0 %v4168
    %4582 = vmatprep.subr.bf16.mxu0 0
    %4583 = vmatpush1.bf16.msra.mxu0 %v4169
    %4584 = vmatprep.subr.bf16.mxu0 0
    %4585 = vmatpush1.bf16.msra.mxu0 %v4170
    %4586 = vmatprep.subr.bf16.mxu0 0
    %4587 = vmatpush1.bf16.msra.mxu0 %v4171
    %4588 = vmatprep.subr.bf16.mxu0 0
    %4589 = vmatpush1.bf16.msra.mxu0 %v4172
    %4590 = vmatprep.subr.bf16.mxu0 0
    %4591 = vmatpush1.bf16.msra.mxu0 %v4173
    %4592 = vmatprep.subr.bf16.mxu0 0
    %4593 = vmatpush1.bf16.msra.mxu0 %v4174
    %4594 = vmatprep.subr.bf16.mxu0 0
    %4595 = vmatpush1.bf16.msra.mxu0 %v4175
    %4596 = vmatprep.subr.bf16.mxu0 0
    %4597 = vmatpush1.bf16.msra.mxu0 %v4176
    %4598 = vmatprep.subr.bf16.mxu0 0
    %4599 = vmatpush1.bf16.msra.mxu0 %v4177
    %4600 = vmatprep.mubr.bf16.mxu0 %v3545
    %4601 = vmatmul.mubr.bf16.gmra.mrb[0].mxu0 %v3544
    %v4602 = vpop.f32.mrb[0].mxu0
    %v4603 = vadd.f32 %v4562, %v4602
    %v4604 = vpop.f32.mrb[0].mxu0
    %v4605 = vpop.f32.mrb[0].mxu0
    %v4606 = vadd.f32 %v4565, %v4605
    %v4607 = vpop.f32.mrb[0].mxu0
    %4608 = vdwg.mxu0
    %4609 = vmatprep.subr.bf16.mxu0 0
    %4610 = vmatpush1.bf16.msra.mxu0 %v4178
    %4611 = vmatprep.subr.bf16.mxu0 0
    %4612 = vmatpush1.bf16.msra.mxu0 %v4179
    %4613 = vmatprep.subr.bf16.mxu0 0
    %4614 = vmatpush1.bf16.msra.mxu0 %v4180
    %4615 = vmatprep.subr.bf16.mxu0 0
    %4616 = vmatpush1.bf16.msra.mxu0 %v4181
    %4617 = vmatprep.subr.bf16.mxu0 0
    %4618 = vmatpush1.bf16.msra.mxu0 %v4182
    %4619 = vmatprep.subr.bf16.mxu0 0
    %4620 = vmatpush1.bf16.msra.mxu0 %v4183
    %4621 = vmatprep.subr.bf16.mxu0 0
    %4622 = vmatpush1.bf16.msra.mxu0 %v4184
    %4623 = vmatprep.subr.bf16.mxu0 0
    %4624 = vmatpush1.bf16.msra.mxu0 %v4185
    %4625 = vmatprep.subr.bf16.mxu0 0
    %4626 = vmatpush1.bf16.msra.mxu0 %v4186
    %4627 = vmatprep.subr.bf16.mxu0 0
    %4628 = vmatpush1.bf16.msra.mxu0 %v4187
    %4629 = vmatprep.subr.bf16.mxu0 0
    %4630 = vmatpush1.bf16.msra.mxu0 %v4188
    %4631 = vmatprep.subr.bf16.mxu0 0
    %4632 = vmatpush1.bf16.msra.mxu0 %v4189
    %4633 = vmatprep.subr.bf16.mxu0 0
    %4634 = vmatpush1.bf16.msra.mxu0 %v4190
    %4635 = vmatprep.subr.bf16.mxu0 0
    %4636 = vmatpush1.bf16.msra.mxu0 %v4191
    %4637 = vmatprep.subr.bf16.mxu0 0
    %4638 = vmatpush1.bf16.msra.mxu0 %v4192
    %4639 = vmatprep.subr.bf16.mxu0 0
    %4640 = vmatpush1.bf16.msra.mxu0 %v4193
    %4641 = vmatprep.mubr.bf16.mxu0 %v3547
    %4642 = vmatmul.mubr.bf16.gmra.mrb[0].mxu0 %v3546
    %v4643 = vpop.f32.mrb[0].mxu0
    %v4644 = vadd.f32 %v4603, %v4643
    %v4645 = vpop.f32.mrb[0].mxu0
    %v4646 = vpop.f32.mrb[0].mxu0
    %v4647 = vadd.f32 %v4606, %v4646
    %v4648 = vpop.f32.mrb[0].mxu0
    %4649 = vdwg.mxu0
    %v4650 = vadd.f32 %v4644, %v2908
    %v4651 = vadd.f32 %v4647, %v2909
    %v4652 = vsel %vm412, %v4650, 0.0
    %4653 = vadd.xlane.f32.xlu0 %v4652
    %v4654 = vpop.xlane.xlu0 %4653
    %v4655 = vsel %vm412, %v4651, 0.0
    %4656 = vadd.xlane.f32.xlu0 %v4655
    %v4657 = vpop.xlane.xlu0 %4656
    %v4658 = vmul.f32 %v4654, %v1591
    %v4659 = vmul.f32 %v4657, %v1591
    %v4660 = vsub.f32 %v4650, %v4658
    %v4661 = vsub.f32 %v4651, %v4659
    %v4662 = vmul.f32 %v4660, %v4660
    %v4663 = vmul.f32 %v4661, %v4661
    %v4664 = vsel %vm412, %v4662, 0.0
    %4665 = vadd.xlane.f32.xlu0 %v4664
    %v4666 = vpop.xlane.xlu0 %4665
    %v4667 = vsel %vm412, %v4663, 0.0
    %4668 = vadd.xlane.f32.xlu0 %v4667
    %v4669 = vpop.xlane.xlu0 %4668
    %v4670 = vmul.f32 %v4666, %v1591
    %v4671 = vmul.f32 %v4669, %v1591
    %v4672 = vadd.f32 %v4670, 1e-05
    %v4673 = vadd.f32 %v4671, 1e-05
    %v4674 = vrsqrt.pop %v4672
    %v4675 = vrsqrt.pop %v4673
    %v4676 = vmul.f32 %v4660, %v4674
    %v4677 = vmul.f32 %v4661, %v4675
    %v4679 = vlaneseq
    %v4680 = vshrl.u32 %v4679, 7
    %v4681 = vsub.s32 0, %v4680
    %v4682 = vrot.slane %v397, %v4681
    %v4684 = vmul.f32 %v4676, %v4682
    %v4685 = vmul.f32 %v4677, %v4682
    %v4687 = vlaneseq
    %v4688 = vshrl.u32 %v4687, 7
    %v4689 = vsub.s32 0, %v4688
    %v4690 = vrot.slane %v398, %v4689
    %v4692 = vadd.f32 %v4684, %v4690
    %v4693 = vadd.f32 %v4685, %v4690
    %s4694 = scalar_lea.vmem %s3, 16
    %v4695 = vld [vmem:[%s4694] sm:$0xf]
    %v4696 = vld [vmem:[%s4694 + $0x4] sm:$0xf]
    %v4697 = vld [vmem:[%s4694 + $0x8] sm:$0xf]
    %v4698 = vld [vmem:[%s4694 + $0xc] sm:$0xf]
    %s4699 = scalar_lea.vmem %s4, 16
    %v4700 = vld [vmem:[%s4699] sm:$0xf]
    %v4701 = vld [vmem:[%s4699 + $0x4] sm:$0xf]
    %v4702 = vld [vmem:[%s4699 + $0x8] sm:$0xf]
    %v4703 = vld [vmem:[%s4699 + $0xc] sm:$0xf]
    %s4704 = scalar_lea.vmem %s5, 1
    %v4705 = vld [vmem:[%s4704] sm:$0x1]
    %s4706 = scalar_lea.vmem %s6, 1
    %v4707 = vld [vmem:[%s4706] sm:$0x1]
    %s4708 = scalar_lea.vmem %s7, 1
    %v4709 = vld [vmem:[%s4708] sm:$0x1]
    %s4710 = scalar_lea.vmem %s8, 16
    %v4711 = vld [vmem:[%s4710] sm:$0xf]
    %v4712 = vld [vmem:[%s4710 + $0x4] sm:$0xf]
    %v4713 = vld [vmem:[%s4710 + $0x8] sm:$0xf]
    %v4714 = vld [vmem:[%s4710 + $0xc] sm:$0xf]
    %s4715 = scalar_lea.vmem %s9, 16
    %v4716 = vld [vmem:[%s4715] sm:$0xf]
    %v4717 = vld [vmem:[%s4715 + $0x4] sm:$0xf]
    %v4718 = vld [vmem:[%s4715 + $0x8] sm:$0xf]
    %v4719 = vld [vmem:[%s4715 + $0xc] sm:$0xf]
    %s4720 = scalar_lea.vmem %s10, 16
    %v4721 = vld [vmem:[%s4720] sm:$0xf]
    %v4722 = vld [vmem:[%s4720 + $0x4] sm:$0xf]
    %v4723 = vld [vmem:[%s4720 + $0x8] sm:$0xf]
    %v4724 = vld [vmem:[%s4720 + $0xc] sm:$0xf]
    %s4725 = scalar_lea.vmem %s11, 1
    %v4726 = vld [vmem:[%s4725] sm:$0x1]
    %s4727 = scalar_lea.vmem %s12, 1
    %v4728 = vld [vmem:[%s4727] sm:$0x1]
    %s4729 = scalar_lea.vmem %s13, 1
    %v4730 = vld [vmem:[%s4729] sm:$0x1]
    %s4731 = scalar_lea.vmem %s14, 256
    %v4732 = vld [vmem:[%s4731] sm:$0xff]
    %v4733 = vld [vmem:[%s4731 + $0x8] sm:$0xff]
    %v4734 = vld [vmem:[%s4731 + $0x10] sm:$0xff]
    %v4735 = vld [vmem:[%s4731 + $0x18] sm:$0xff]
    %v4736 = vld [vmem:[%s4731 + $0x20] sm:$0xff]
    %v4737 = vld [vmem:[%s4731 + $0x28] sm:$0xff]
    %v4738 = vld [vmem:[%s4731 + $0x30] sm:$0xff]
    %v4739 = vld [vmem:[%s4731 + $0x38] sm:$0xff]
    %v4740 = vld [vmem:[%s4731 + $0x40] sm:$0xff]
    %v4741 = vld [vmem:[%s4731 + $0x48] sm:$0xff]
    %v4742 = vld [vmem:[%s4731 + $0x50] sm:$0xff]
    %v4743 = vld [vmem:[%s4731 + $0x58] sm:$0xff]
    %v4744 = vld [vmem:[%s4731 + $0x60] sm:$0xff]
    %v4745 = vld [vmem:[%s4731 + $0x68] sm:$0xff]
    %v4746 = vld [vmem:[%s4731 + $0x70] sm:$0xff]
    %v4747 = vld [vmem:[%s4731 + $0x78] sm:$0xff]
    %v4748 = vld [vmem:[%s4731 + $0x80] sm:$0xff]
    %v4749 = vld [vmem:[%s4731 + $0x88] sm:$0xff]
    %v4750 = vld [vmem:[%s4731 + $0x90] sm:$0xff]
    %v4751 = vld [vmem:[%s4731 + $0x98] sm:$0xff]
    %v4752 = vld [vmem:[%s4731 + $0xa0] sm:$0xff]
    %v4753 = vld [vmem:[%s4731 + $0xa8] sm:$0xff]
    %v4754 = vld [vmem:[%s4731 + $0xb0] sm:$0xff]
    %v4755 = vld [vmem:[%s4731 + $0xb8] sm:$0xff]
    %v4756 = vld [vmem:[%s4731 + $0xc0] sm:$0xff]
    %v4757 = vld [vmem:[%s4731 + $0xc8] sm:$0xff]
    %v4758 = vld [vmem:[%s4731 + $0xd0] sm:$0xff]
    %v4759 = vld [vmem:[%s4731 + $0xd8] sm:$0xff]
    %v4760 = vld [vmem:[%s4731 + $0xe0] sm:$0xff]
    %v4761 = vld [vmem:[%s4731 + $0xe8] sm:$0xff]
    %v4762 = vld [vmem:[%s4731 + $0xf0] sm:$0xff]
    %v4763 = vld [vmem:[%s4731 + $0xf8] sm:$0xff]
    %s4764 = scalar_lea.vmem %s15, 16
    %v4765 = vld [vmem:[%s4764] sm:$0xff]
    %v4766 = vld [vmem:[%s4764 + $0x8] sm:$0xff]
    %s4767 = scalar_lea.vmem %s16, 1024
    %v4768 = vld [vmem:[%s4767] sm:$0xf]
    %v4769 = vld [vmem:[%s4767 + $0x4] sm:$0xf]
    %v4770 = vld [vmem:[%s4767 + $0x8] sm:$0xf]
    %v4771 = vld [vmem:[%s4767 + $0xc] sm:$0xf]
    %v4772 = vld [vmem:[%s4767 + $0x10] sm:$0xf]
    %v4773 = vld [vmem:[%s4767 + $0x14] sm:$0xf]
    %v4774 = vld [vmem:[%s4767 + $0x18] sm:$0xf]
    %v4775 = vld [vmem:[%s4767 + $0x1c] sm:$0xf]
    %v4776 = vld [vmem:[%s4767 + $0x20] sm:$0xf]
    %v4777 = vld [vmem:[%s4767 + $0x24] sm:$0xf]
    %v4778 = vld [vmem:[%s4767 + $0x28] sm:$0xf]
    %v4779 = vld [vmem:[%s4767 + $0x2c] sm:$0xf]
    %v4780 = vld [vmem:[%s4767 + $0x30] sm:$0xf]
    %v4781 = vld [vmem:[%s4767 + $0x34] sm:$0xf]
    %v4782 = vld [vmem:[%s4767 + $0x38] sm:$0xf]
    %v4783 = vld [vmem:[%s4767 + $0x3c] sm:$0xf]
    %v4784 = vld [vmem:[%s4767 + $0x40] sm:$0xf]
    %v4785 = vld [vmem:[%s4767 + $0x44] sm:$0xf]
    %v4786 = vld [vmem:[%s4767 + $0x48] sm:$0xf]
    %v4787 = vld [vmem:[%s4767 + $0x4c] sm:$0xf]
    %v4788 = vld [vmem:[%s4767 + $0x50] sm:$0xf]
    %v4789 = vld [vmem:[%s4767 + $0x54] sm:$0xf]
    %v4790 = vld [vmem:[%s4767 + $0x58] sm:$0xf]
    %v4791 = vld [vmem:[%s4767 + $0x5c] sm:$0xf]
    %v4792 = vld [vmem:[%s4767 + $0x60] sm:$0xf]
    %v4793 = vld [vmem:[%s4767 + $0x64] sm:$0xf]
    %v4794 = vld [vmem:[%s4767 + $0x68] sm:$0xf]
    %v4795 = vld [vmem:[%s4767 + $0x6c] sm:$0xf]
    %v4796 = vld [vmem:[%s4767 + $0x70] sm:$0xf]
    %v4797 = vld [vmem:[%s4767 + $0x74] sm:$0xf]
    %v4798 = vld [vmem:[%s4767 + $0x78] sm:$0xf]
    %v4799 = vld [vmem:[%s4767 + $0x7c] sm:$0xf]
    %v4800 = vld [vmem:[%s4767 + $0x80] sm:$0xf]
    %v4801 = vld [vmem:[%s4767 + $0x84] sm:$0xf]
    %v4802 = vld [vmem:[%s4767 + $0x88] sm:$0xf]
    %v4803 = vld [vmem:[%s4767 + $0x8c] sm:$0xf]
    %v4804 = vld [vmem:[%s4767 + $0x90] sm:$0xf]
    %v4805 = vld [vmem:[%s4767 + $0x94] sm:$0xf]
    %v4806 = vld [vmem:[%s4767 + $0x98] sm:$0xf]
    %v4807 = vld [vmem:[%s4767 + $0x9c] sm:$0xf]
    %v4808 = vld [vmem:[%s4767 + $0xa0] sm:$0xf]
    %v4809 = vld [vmem:[%s4767 + $0xa4] sm:$0xf]
    %v4810 = vld [vmem:[%s4767 + $0xa8] sm:$0xf]
    %v4811 = vld [vmem:[%s4767 + $0xac] sm:$0xf]
    %v4812 = vld [vmem:[%s4767 + $0xb0] sm:$0xf]
    %v4813 = vld [vmem:[%s4767 + $0xb4] sm:$0xf]
    %v4814 = vld [vmem:[%s4767 + $0xb8] sm:$0xf]
    %v4815 = vld [vmem:[%s4767 + $0xbc] sm:$0xf]
    %v4816 = vld [vmem:[%s4767 + $0xc0] sm:$0xf]
    %v4817 = vld [vmem:[%s4767 + $0xc4] sm:$0xf]
    %v4818 = vld [vmem:[%s4767 + $0xc8] sm:$0xf]
    %v4819 = vld [vmem:[%s4767 + $0xcc] sm:$0xf]
    %v4820 = vld [vmem:[%s4767 + $0xd0] sm:$0xf]
    %v4821 = vld [vmem:[%s4767 + $0xd4] sm:$0xf]
    %v4822 = vld [vmem:[%s4767 + $0xd8] sm:$0xf]
    %v4823 = vld [vmem:[%s4767 + $0xdc] sm:$0xf]
    %v4824 = vld [vmem:[%s4767 + $0xe0] sm:$0xf]
    %v4825 = vld [vmem:[%s4767 + $0xe4] sm:$0xf]
    %v4826 = vld [vmem:[%s4767 + $0xe8] sm:$0xf]
    %v4827 = vld [vmem:[%s4767 + $0xec] sm:$0xf]
    %v4828 = vld [vmem:[%s4767 + $0xf0] sm:$0xf]
    %v4829 = vld [vmem:[%s4767 + $0xf4] sm:$0xf]
    %v4830 = vld [vmem:[%s4767 + $0xf8] sm:$0xf]
    %v4831 = vld [vmem:[%s4767 + $0xfc] sm:$0xf]
    %v4832 = vld [vmem:[%s4767 + $0x100] sm:$0xf]
    %v4833 = vld [vmem:[%s4767 + $0x104] sm:$0xf]
    %v4834 = vld [vmem:[%s4767 + $0x108] sm:$0xf]
    %v4835 = vld [vmem:[%s4767 + $0x10c] sm:$0xf]
    %v4836 = vld [vmem:[%s4767 + $0x110] sm:$0xf]
    %v4837 = vld [vmem:[%s4767 + $0x114] sm:$0xf]
    %v4838 = vld [vmem:[%s4767 + $0x118] sm:$0xf]
    %v4839 = vld [vmem:[%s4767 + $0x11c] sm:$0xf]
    %v4840 = vld [vmem:[%s4767 + $0x120] sm:$0xf]
    %v4841 = vld [vmem:[%s4767 + $0x124] sm:$0xf]
    %v4842 = vld [vmem:[%s4767 + $0x128] sm:$0xf]
    %v4843 = vld [vmem:[%s4767 + $0x12c] sm:$0xf]
    %v4844 = vld [vmem:[%s4767 + $0x130] sm:$0xf]
    %v4845 = vld [vmem:[%s4767 + $0x134] sm:$0xf]
    %v4846 = vld [vmem:[%s4767 + $0x138] sm:$0xf]
    %v4847 = vld [vmem:[%s4767 + $0x13c] sm:$0xf]
    %v4848 = vld [vmem:[%s4767 + $0x140] sm:$0xf]
    %v4849 = vld [vmem:[%s4767 + $0x144] sm:$0xf]
    %v4850 = vld [vmem:[%s4767 + $0x148] sm:$0xf]
    %v4851 = vld [vmem:[%s4767 + $0x14c] sm:$0xf]
    %v4852 = vld [vmem:[%s4767 + $0x150] sm:$0xf]
    %v4853 = vld [vmem:[%s4767 + $0x154] sm:$0xf]
    %v4854 = vld [vmem:[%s4767 + $0x158] sm:$0xf]
    %v4855 = vld [vmem:[%s4767 + $0x15c] sm:$0xf]
    %v4856 = vld [vmem:[%s4767 + $0x160] sm:$0xf]
    %v4857 = vld [vmem:[%s4767 + $0x164] sm:$0xf]
    %v4858 = vld [vmem:[%s4767 + $0x168] sm:$0xf]
    %v4859 = vld [vmem:[%s4767 + $0x16c] sm:$0xf]
    %v4860 = vld [vmem:[%s4767 + $0x170] sm:$0xf]
    %v4861 = vld [vmem:[%s4767 + $0x174] sm:$0xf]
    %v4862 = vld [vmem:[%s4767 + $0x178] sm:$0xf]
    %v4863 = vld [vmem:[%s4767 + $0x17c] sm:$0xf]
    %v4864 = vld [vmem:[%s4767 + $0x180] sm:$0xf]
    %v4865 = vld [vmem:[%s4767 + $0x184] sm:$0xf]
    %v4866 = vld [vmem:[%s4767 + $0x188] sm:$0xf]
    %v4867 = vld [vmem:[%s4767 + $0x18c] sm:$0xf]
    %v4868 = vld [vmem:[%s4767 + $0x190] sm:$0xf]
    %v4869 = vld [vmem:[%s4767 + $0x194] sm:$0xf]
    %v4870 = vld [vmem:[%s4767 + $0x198] sm:$0xf]
    %v4871 = vld [vmem:[%s4767 + $0x19c] sm:$0xf]
    %v4872 = vld [vmem:[%s4767 + $0x1a0] sm:$0xf]
    %v4873 = vld [vmem:[%s4767 + $0x1a4] sm:$0xf]
    %v4874 = vld [vmem:[%s4767 + $0x1a8] sm:$0xf]
    %v4875 = vld [vmem:[%s4767 + $0x1ac] sm:$0xf]
    %v4876 = vld [vmem:[%s4767 + $0x1b0] sm:$0xf]
    %v4877 = vld [vmem:[%s4767 + $0x1b4] sm:$0xf]
    %v4878 = vld [vmem:[%s4767 + $0x1b8] sm:$0xf]
    %v4879 = vld [vmem:[%s4767 + $0x1bc] sm:$0xf]
    %v4880 = vld [vmem:[%s4767 + $0x1c0] sm:$0xf]
    %v4881 = vld [vmem:[%s4767 + $0x1c4] sm:$0xf]
    %v4882 = vld [vmem:[%s4767 + $0x1c8] sm:$0xf]
    %v4883 = vld [vmem:[%s4767 + $0x1cc] sm:$0xf]
    %v4884 = vld [vmem:[%s4767 + $0x1d0] sm:$0xf]
    %v4885 = vld [vmem:[%s4767 + $0x1d4] sm:$0xf]
    %v4886 = vld [vmem:[%s4767 + $0x1d8] sm:$0xf]
    %v4887 = vld [vmem:[%s4767 + $0x1dc] sm:$0xf]
    %v4888 = vld [vmem:[%s4767 + $0x1e0] sm:$0xf]
    %v4889 = vld [vmem:[%s4767 + $0x1e4] sm:$0xf]
    %v4890 = vld [vmem:[%s4767 + $0x1e8] sm:$0xf]
    %v4891 = vld [vmem:[%s4767 + $0x1ec] sm:$0xf]
    %v4892 = vld [vmem:[%s4767 + $0x1f0] sm:$0xf]
    %v4893 = vld [vmem:[%s4767 + $0x1f4] sm:$0xf]
    %v4894 = vld [vmem:[%s4767 + $0x1f8] sm:$0xf]
    %v4895 = vld [vmem:[%s4767 + $0x1fc] sm:$0xf]
    %v4896 = vld [vmem:[%s4767 + $0x200] sm:$0xf]
    %v4897 = vld [vmem:[%s4767 + $0x204] sm:$0xf]
    %v4898 = vld [vmem:[%s4767 + $0x208] sm:$0xf]
    %v4899 = vld [vmem:[%s4767 + $0x20c] sm:$0xf]
    %v4900 = vld [vmem:[%s4767 + $0x210] sm:$0xf]
    %v4901 = vld [vmem:[%s4767 + $0x214] sm:$0xf]
    %v4902 = vld [vmem:[%s4767 + $0x218] sm:$0xf]
    %v4903 = vld [vmem:[%s4767 + $0x21c] sm:$0xf]
    %v4904 = vld [vmem:[%s4767 + $0x220] sm:$0xf]
    %v4905 = vld [vmem:[%s4767 + $0x224] sm:$0xf]
    %v4906 = vld [vmem:[%s4767 + $0x228] sm:$0xf]
    %v4907 = vld [vmem:[%s4767 + $0x22c] sm:$0xf]
    %v4908 = vld [vmem:[%s4767 + $0x230] sm:$0xf]
    %v4909 = vld [vmem:[%s4767 + $0x234] sm:$0xf]
    %v4910 = vld [vmem:[%s4767 + $0x238] sm:$0xf]
    %v4911 = vld [vmem:[%s4767 + $0x23c] sm:$0xf]
    %v4912 = vld [vmem:[%s4767 + $0x240] sm:$0xf]
    %v4913 = vld [vmem:[%s4767 + $0x244] sm:$0xf]
    %v4914 = vld [vmem:[%s4767 + $0x248] sm:$0xf]
    %v4915 = vld [vmem:[%s4767 + $0x24c] sm:$0xf]
    %v4916 = vld [vmem:[%s4767 + $0x250] sm:$0xf]
    %v4917 = vld [vmem:[%s4767 + $0x254] sm:$0xf]
    %v4918 = vld [vmem:[%s4767 + $0x258] sm:$0xf]
    %v4919 = vld [vmem:[%s4767 + $0x25c] sm:$0xf]
    %v4920 = vld [vmem:[%s4767 + $0x260] sm:$0xf]
    %v4921 = vld [vmem:[%s4767 + $0x264] sm:$0xf]
    %v4922 = vld [vmem:[%s4767 + $0x268] sm:$0xf]
    %v4923 = vld [vmem:[%s4767 + $0x26c] sm:$0xf]
    %v4924 = vld [vmem:[%s4767 + $0x270] sm:$0xf]
    %v4925 = vld [vmem:[%s4767 + $0x274] sm:$0xf]
    %v4926 = vld [vmem:[%s4767 + $0x278] sm:$0xf]
    %v4927 = vld [vmem:[%s4767 + $0x27c] sm:$0xf]
    %v4928 = vld [vmem:[%s4767 + $0x280] sm:$0xf]
    %v4929 = vld [vmem:[%s4767 + $0x284] sm:$0xf]
    %v4930 = vld [vmem:[%s4767 + $0x288] sm:$0xf]
    %v4931 = vld [vmem:[%s4767 + $0x28c] sm:$0xf]
    %v4932 = vld [vmem:[%s4767 + $0x290] sm:$0xf]
    %v4933 = vld [vmem:[%s4767 + $0x294] sm:$0xf]
    %v4934 = vld [vmem:[%s4767 + $0x298] sm:$0xf]
    %v4935 = vld [vmem:[%s4767 + $0x29c] sm:$0xf]
    %v4936 = vld [vmem:[%s4767 + $0x2a0] sm:$0xf]
    %v4937 = vld [vmem:[%s4767 + $0x2a4] sm:$0xf]
    %v4938 = vld [vmem:[%s4767 + $0x2a8] sm:$0xf]
    %v4939 = vld [vmem:[%s4767 + $0x2ac] sm:$0xf]
    %v4940 = vld [vmem:[%s4767 + $0x2b0] sm:$0xf]
    %v4941 = vld [vmem:[%s4767 + $0x2b4] sm:$0xf]
    %v4942 = vld [vmem:[%s4767 + $0x2b8] sm:$0xf]
    %v4943 = vld [vmem:[%s4767 + $0x2bc] sm:$0xf]
    %v4944 = vld [vmem:[%s4767 + $0x2c0] sm:$0xf]
    %v4945 = vld [vmem:[%s4767 + $0x2c4] sm:$0xf]
    %v4946 = vld [vmem:[%s4767 + $0x2c8] sm:$0xf]
    %v4947 = vld [vmem:[%s4767 + $0x2cc] sm:$0xf]
    %v4948 = vld [vmem:[%s4767 + $0x2d0] sm:$0xf]
    %v4949 = vld [vmem:[%s4767 + $0x2d4] sm:$0xf]
    %v4950 = vld [vmem:[%s4767 + $0x2d8] sm:$0xf]
    %v4951 = vld [vmem:[%s4767 + $0x2dc] sm:$0xf]
    %v4952 = vld [vmem:[%s4767 + $0x2e0] sm:$0xf]
    %v4953 = vld [vmem:[%s4767 + $0x2e4] sm:$0xf]
    %v4954 = vld [vmem:[%s4767 + $0x2e8] sm:$0xf]
    %v4955 = vld [vmem:[%s4767 + $0x2ec] sm:$0xf]
    %v4956 = vld [vmem:[%s4767 + $0x2f0] sm:$0xf]
    %v4957 = vld [vmem:[%s4767 + $0x2f4] sm:$0xf]
    %v4958 = vld [vmem:[%s4767 + $0x2f8] sm:$0xf]
    %v4959 = vld [vmem:[%s4767 + $0x2fc] sm:$0xf]
    %v4960 = vld [vmem:[%s4767 + $0x300] sm:$0xf]
    %v4961 = vld [vmem:[%s4767 + $0x304] sm:$0xf]
    %v4962 = vld [vmem:[%s4767 + $0x308] sm:$0xf]
    %v4963 = vld [vmem:[%s4767 + $0x30c] sm:$0xf]
    %v4964 = vld [vmem:[%s4767 + $0x310] sm:$0xf]
    %v4965 = vld [vmem:[%s4767 + $0x314] sm:$0xf]
    %v4966 = vld [vmem:[%s4767 + $0x318] sm:$0xf]
    %v4967 = vld [vmem:[%s4767 + $0x31c] sm:$0xf]
    %v4968 = vld [vmem:[%s4767 + $0x320] sm:$0xf]
    %v4969 = vld [vmem:[%s4767 + $0x324] sm:$0xf]
    %v4970 = vld [vmem:[%s4767 + $0x328] sm:$0xf]
    %v4971 = vld [vmem:[%s4767 + $0x32c] sm:$0xf]
    %v4972 = vld [vmem:[%s4767 + $0x330] sm:$0xf]
    %v4973 = vld [vmem:[%s4767 + $0x334] sm:$0xf]
    %v4974 = vld [vmem:[%s4767 + $0x338] sm:$0xf]
    %v4975 = vld [vmem:[%s4767 + $0x33c] sm:$0xf]
    %v4976 = vld [vmem:[%s4767 + $0x340] sm:$0xf]
    %v4977 = vld [vmem:[%s4767 + $0x344] sm:$0xf]
    %v4978 = vld [vmem:[%s4767 + $0x348] sm:$0xf]
    %v4979 = vld [vmem:[%s4767 + $0x34c] sm:$0xf]
    %v4980 = vld [vmem:[%s4767 + $0x350] sm:$0xf]
    %v4981 = vld [vmem:[%s4767 + $0x354] sm:$0xf]
    %v4982 = vld [vmem:[%s4767 + $0x358] sm:$0xf]
    %v4983 = vld [vmem:[%s4767 + $0x35c] sm:$0xf]
    %v4984 = vld [vmem:[%s4767 + $0x360] sm:$0xf]
    %v4985 = vld [vmem:[%s4767 + $0x364] sm:$0xf]
    %v4986 = vld [vmem:[%s4767 + $0x368] sm:$0xf]
    %v4987 = vld [vmem:[%s4767 + $0x36c] sm:$0xf]
    %v4988 = vld [vmem:[%s4767 + $0x370] sm:$0xf]
    %v4989 = vld [vmem:[%s4767 + $0x374] sm:$0xf]
    %v4990 = vld [vmem:[%s4767 + $0x378] sm:$0xf]
    %v4991 = vld [vmem:[%s4767 + $0x37c] sm:$0xf]
    %v4992 = vld [vmem:[%s4767 + $0x380] sm:$0xf]
    %v4993 = vld [vmem:[%s4767 + $0x384] sm:$0xf]
    %v4994 = vld [vmem:[%s4767 + $0x388] sm:$0xf]
    %v4995 = vld [vmem:[%s4767 + $0x38c] sm:$0xf]
    %v4996 = vld [vmem:[%s4767 + $0x390] sm:$0xf]
    %v4997 = vld [vmem:[%s4767 + $0x394] sm:$0xf]
    %v4998 = vld [vmem:[%s4767 + $0x398] sm:$0xf]
    %v4999 = vld [vmem:[%s4767 + $0x39c] sm:$0xf]
    %v5000 = vld [vmem:[%s4767 + $0x3a0] sm:$0xf]
    %v5001 = vld [vmem:[%s4767 + $0x3a4] sm:$0xf]
    %v5002 = vld [vmem:[%s4767 + $0x3a8] sm:$0xf]
    %v5003 = vld [vmem:[%s4767 + $0x3ac] sm:$0xf]
    %v5004 = vld [vmem:[%s4767 + $0x3b0] sm:$0xf]
    %v5005 = vld [vmem:[%s4767 + $0x3b4] sm:$0xf]
    %v5006 = vld [vmem:[%s4767 + $0x3b8] sm:$0xf]
    %v5007 = vld [vmem:[%s4767 + $0x3bc] sm:$0xf]
    %v5008 = vld [vmem:[%s4767 + $0x3c0] sm:$0xf]
    %v5009 = vld [vmem:[%s4767 + $0x3c4] sm:$0xf]
    %v5010 = vld [vmem:[%s4767 + $0x3c8] sm:$0xf]
    %v5011 = vld [vmem:[%s4767 + $0x3cc] sm:$0xf]
    %v5012 = vld [vmem:[%s4767 + $0x3d0] sm:$0xf]
    %v5013 = vld [vmem:[%s4767 + $0x3d4] sm:$0xf]
    %v5014 = vld [vmem:[%s4767 + $0x3d8] sm:$0xf]
    %v5015 = vld [vmem:[%s4767 + $0x3dc] sm:$0xf]
    %v5016 = vld [vmem:[%s4767 + $0x3e0] sm:$0xf]
    %v5017 = vld [vmem:[%s4767 + $0x3e4] sm:$0xf]
    %v5018 = vld [vmem:[%s4767 + $0x3e8] sm:$0xf]
    %v5019 = vld [vmem:[%s4767 + $0x3ec] sm:$0xf]
    %v5020 = vld [vmem:[%s4767 + $0x3f0] sm:$0xf]
    %v5021 = vld [vmem:[%s4767 + $0x3f4] sm:$0xf]
    %v5022 = vld [vmem:[%s4767 + $0x3f8] sm:$0xf]
    %v5023 = vld [vmem:[%s4767 + $0x3fc] sm:$0xf]
    %s5024 = scalar_lea.vmem %s17, 1
    %v5025 = vld [vmem:[%s5024] sm:$0x1]
    %s5026 = scalar_lea.vmem %s18, 1
    %v5027 = vld [vmem:[%s5026] sm:$0x1]
    %s5028 = scalar_lea.vmem %s19, 1
    %v5029 = vld [vmem:[%s5028] sm:$0x1]
    %v5030 = vpack.c.bf16 %v4693, %v4692
    %v5035 = vunpack.c.l.b16 %v4695
    %v5036 = vunpack.c.l.b16 %v4696
    %v5037 = vunpack.c.l.b16 %v4697
    %v5038 = vunpack.c.l.b16 %v4698
    %v5039 = vpack.c.b16 %v5036, %v5035
    %v5040 = vpack.c.b16 %v5038, %v5037
    %v5044 = vsel %vm412, %v5030, 0
    %5046 = vmatprep.subr.bf16.mxu0 0
    %5047 = vmatpush1.bf16.msra.mxu0 %v5039
    %5048 = vmatprep.subr.bf16.mxu0 0
    %5049 = vmatpush1.bf16.msra.mxu0 %v5040
    %5050 = vmatprep.subr.bf16.mxu0 0
    %5051 = vmatpush1.bf16.msra.mxu0 0
    %5052 = vmatprep.subr.bf16.mxu0 0
    %5053 = vmatpush1.bf16.msra.mxu0 0
    %5054 = vmatprep.subr.bf16.mxu0 0
    %5055 = vmatpush1.bf16.msra.mxu0 0
    %5056 = vmatprep.subr.bf16.mxu0 0
    %5057 = vmatpush1.bf16.msra.mxu0 0
    %5058 = vmatprep.subr.bf16.mxu0 0
    %5059 = vmatpush1.bf16.msra.mxu0 0
    %5060 = vmatprep.subr.bf16.mxu0 0
    %5061 = vmatpush1.bf16.msra.mxu0 0
    %5062 = vmatprep.subr.bf16.mxu0 0
    %5063 = vmatpush1.bf16.msra.mxu0 0
    %5064 = vmatprep.subr.bf16.mxu0 0
    %5065 = vmatpush1.bf16.msra.mxu0 0
    %5066 = vmatprep.subr.bf16.mxu0 0
    %5067 = vmatpush1.bf16.msra.mxu0 0
    %5068 = vmatprep.subr.bf16.mxu0 0
    %5069 = vmatpush1.bf16.msra.mxu0 0
    %5070 = vmatprep.subr.bf16.mxu0 0
    %5071 = vmatpush1.bf16.msra.mxu0 0
    %5072 = vmatprep.subr.bf16.mxu0 0
    %5073 = vmatpush1.bf16.msra.mxu0 0
    %5074 = vmatprep.subr.bf16.mxu0 0
    %5075 = vmatpush1.bf16.msra.mxu0 0
    %5076 = vmatprep.subr.bf16.mxu0 0
    %5077 = vmatpush1.bf16.msra.mxu0 0
    %5078 = vmatprep.mubr.bf16.mxu0 0
    %5079 = vmatmul.mubr.bf16.gmra.mrb[0].mxu0 %v5044
    %v5080 = vpop.f32.mrb[0].mxu0
    %v5081 = vadd.f32 0.0, %v5080
    %v5082 = vpop.f32.mrb[0].mxu0
    %v5083 = vpop.f32.mrb[0].mxu0
    %v5084 = vadd.f32 0.0, %v5083
    %v5085 = vpop.f32.mrb[0].mxu0
    %5086 = vdwg.mxu0
    %v5087 = vpack.c.bf16 %v5081, %v5081
    %v5088 = vpack.c.bf16 %v5084, %v5084
    %5090 = vrot.lane.b32.xlu0 %v5087, 96
    %v5091 = vpop.permute.xlu0 %5090
    %v5093 = vsel %vm462, %v5087, 0
    %v5096 = vsel %vm462, %v5091, 0
    %5098 = vmatprep.subr.bf16.mxu0 0
    %5099 = vmatpush1.bf16.xpose.msra.mxu0 %v5096
    %5100 = vmatprep.subr.bf16.mxu0 0
    %5101 = vmatpush1.bf16.xpose.msra.mxu0 0
    %5102 = vmatprep.subr.bf16.mxu0 0
    %5103 = vmatpush1.bf16.xpose.msra.mxu0 0
    %5104 = vmatprep.subr.bf16.mxu0 0
    %5105 = vmatpush1.bf16.xpose.msra.mxu0 0
    %5106 = vmatprep.subr.bf16.mxu0 0
    %5107 = vmatpush1.bf16.xpose.msra.mxu0 0
    %5108 = vmatprep.subr.bf16.mxu0 0
    %5109 = vmatpush1.bf16.xpose.msra.mxu0 0
    %5110 = vmatprep.subr.bf16.mxu0 0
    %5111 = vmatpush1.bf16.xpose.msra.mxu0 0
    %5112 = vmatprep.subr.bf16.mxu0 0
    %5113 = vmatpush1.bf16.xpose.msra.mxu0 0
    %5114 = vmatprep.subr.bf16.mxu0 0
    %5115 = vmatpush1.bf16.xpose.msra.mxu0 0
    %5116 = vmatprep.subr.bf16.mxu0 0
    %5117 = vmatpush1.bf16.xpose.msra.mxu0 0
    %5118 = vmatprep.subr.bf16.mxu0 0
    %5119 = vmatpush1.bf16.xpose.msra.mxu0 0
    %5120 = vmatprep.subr.bf16.mxu0 0
    %5121 = vmatpush1.bf16.xpose.msra.mxu0 0
    %5122 = vmatprep.subr.bf16.mxu0 0
    %5123 = vmatpush1.bf16.xpose.msra.mxu0 0
    %5124 = vmatprep.subr.bf16.mxu0 0
    %5125 = vmatpush1.bf16.xpose.msra.mxu0 0
    %5126 = vmatprep.subr.bf16.mxu0 0
    %5127 = vmatpush1.bf16.xpose.msra.mxu0 0
    %5128 = vmatprep.subr.bf16.mxu0 0
    %5129 = vmatpush1.bf16.xpose.msra.mxu0 0
    %5130 = vmatprep.mubr.bf16.mxu0 0
    %5131 = vmatmul.mubr.bf16.gmra.mrb[0].mxu0 %v5093
    %v5132 = vpop.f32.mrb[0].mxu0
    %v5133 = vadd.f32 0.0, %v5132
    %v5134 = vpop.f32.mrb[0].mxu0
    %v5135 = vpop.f32.mrb[0].mxu0
    %v5136 = vpop.f32.mrb[0].mxu0
    %5137 = vdwg.mxu0
    %5139 = vrot.lane.b32.xlu0 %v5088, 96
    %v5140 = vpop.permute.xlu0 %5139
    %v5142 = vsel %vm462, %v5088, 0
    %v5145 = vsel %vm462, %v5140, 0
    %5147 = vmatprep.subr.bf16.mxu0 0
    %5148 = vmatpush1.bf16.xpose.msra.mxu0 %v5145
    %5149 = vmatprep.subr.bf16.mxu0 0
    %5150 = vmatpush1.bf16.xpose.msra.mxu0 0
    %5151 = vmatprep.subr.bf16.mxu0 0
    %5152 = vmatpush1.bf16.xpose.msra.mxu0 0
    %5153 = vmatprep.subr.bf16.mxu0 0
    %5154 = vmatpush1.bf16.xpose.msra.mxu0 0
    %5155 = vmatprep.subr.bf16.mxu0 0
    %5156 = vmatpush1.bf16.xpose.msra.mxu0 0
    %5157 = vmatprep.subr.bf16.mxu0 0
    %5158 = vmatpush1.bf16.xpose.msra.mxu0 0
    %5159 = vmatprep.subr.bf16.mxu0 0
    %5160 = vmatpush1.bf16.xpose.msra.mxu0 0
    %5161 = vmatprep.subr.bf16.mxu0 0
    %5162 = vmatpush1.bf16.xpose.msra.mxu0 0
    %5163 = vmatprep.subr.bf16.mxu0 0
    %5164 = vmatpush1.bf16.xpose.msra.mxu0 0
    %5165 = vmatprep.subr.bf16.mxu0 0
    %5166 = vmatpush1.bf16.xpose.msra.mxu0 0
    %5167 = vmatprep.subr.bf16.mxu0 0
    %5168 = vmatpush1.bf16.xpose.msra.mxu0 0
    %5169 = vmatprep.subr.bf16.mxu0 0
    %5170 = vmatpush1.bf16.xpose.msra.mxu0 0
    %5171 = vmatprep.subr.bf16.mxu0 0
    %5172 = vmatpush1.bf16.xpose.msra.mxu0 0
    %5173 = vmatprep.subr.bf16.mxu0 0
    %5174 = vmatpush1.bf16.xpose.msra.mxu0 0
    %5175 = vmatprep.subr.bf16.mxu0 0
    %5176 = vmatpush1.bf16.xpose.msra.mxu0 0
    %5177 = vmatprep.subr.bf16.mxu0 0
    %5178 = vmatpush1.bf16.xpose.msra.mxu0 0
    %5179 = vmatprep.mubr.bf16.mxu0 0
    %5180 = vmatmul.mubr.bf16.gmra.mrb[0].mxu0 %v5142
    %v5181 = vpop.f32.mrb[0].mxu0
    %v5182 = vadd.f32 0.0, %v5181
    %v5183 = vpop.f32.mrb[0].mxu0
    %v5184 = vpop.f32.mrb[0].mxu0
    %v5185 = vpop.f32.mrb[0].mxu0
    %5186 = vdwg.mxu0
    %v5187 = vmul.f32 %v5133, 0.35355338
    %v5188 = vmul.f32 %v5182, 0.35355338
    %v5189 = vadd.f32 %v5187, %v79
    %v5190 = vadd.f32 %v5188, %v79
    %v5191 = vsel %vm462, %v5189, -inf
    %5192 = vmax.xlane.f32.xlu0 %v5191
    %v5193 = vpop.xlane.xlu0 %5192
    %v5194 = vsel %vm462, %v5190, -inf
    %5195 = vmax.xlane.f32.xlu0 %v5194
    %v5196 = vpop.xlane.xlu0 %5195
    %v5197 = vsub.f32 %v5189, %v5193
    %v5198 = vsub.f32 %v5190, %v5196
    %v5199 = vmul.f32 %v5197, 1.442695
    %v5200 = vpow.pop %v5199
    %v5201 = vmul.f32 %v5198, 1.442695
    %v5202 = vpow.pop %v5201
    %v5203 = vsel %vm462, %v5200, 0.0
    %5204 = vadd.xlane.f32.xlu0 %v5203
    %v5205 = vpop.xlane.xlu0 %5204
    %v5206 = vsel %vm462, %v5202, 0.0
    %5207 = vadd.xlane.f32.xlu0 %v5206
    %v5208 = vpop.xlane.xlu0 %5207
    %v5209 = vrcp.pop %v5205
    %v5210 = vmul.f32 %v5200, %v5209
    %v5211 = vrcp.pop %v5208
    %v5212 = vmul.f32 %v5202, %v5211
    %v5213 = vpack.c.bf16 %v5210, %v5210
    %v5214 = vpack.c.bf16 %v5212, %v5212
    %5215 = vrot.lane.b32.xlu0 %v5087, 64
    %v5216 = vpop.permute.xlu0 %5215
    %v5218 = vsel %vm462, %v5213, 0
    %v5221 = vsel %vm591, %v5216, 0
    %5223 = vmatprep.subr.bf16.mxu0 0
    %5224 = vmatpush1.bf16.msra.mxu0 %v5221
    %5225 = vmatprep.subr.bf16.mxu0 0
    %5226 = vmatpush1.bf16.msra.mxu0 0
    %5227 = vmatprep.subr.bf16.mxu0 0
    %5228 = vmatpush1.bf16.msra.mxu0 0
    %5229 = vmatprep.subr.bf16.mxu0 0
    %5230 = vmatpush1.bf16.msra.mxu0 0
    %5231 = vmatprep.subr.bf16.mxu0 0
    %5232 = vmatpush1.bf16.msra.mxu0 0
    %5233 = vmatprep.subr.bf16.mxu0 0
    %5234 = vmatpush1.bf16.msra.mxu0 0
    %5235 = vmatprep.subr.bf16.mxu0 0
    %5236 = vmatpush1.bf16.msra.mxu0 0
    %5237 = vmatprep.subr.bf16.mxu0 0
    %5238 = vmatpush1.bf16.msra.mxu0 0
    %5239 = vmatprep.subr.bf16.mxu0 0
    %5240 = vmatpush1.bf16.msra.mxu0 0
    %5241 = vmatprep.subr.bf16.mxu0 0
    %5242 = vmatpush1.bf16.msra.mxu0 0
    %5243 = vmatprep.subr.bf16.mxu0 0
    %5244 = vmatpush1.bf16.msra.mxu0 0
    %5245 = vmatprep.subr.bf16.mxu0 0
    %5246 = vmatpush1.bf16.msra.mxu0 0
    %5247 = vmatprep.subr.bf16.mxu0 0
    %5248 = vmatpush1.bf16.msra.mxu0 0
    %5249 = vmatprep.subr.bf16.mxu0 0
    %5250 = vmatpush1.bf16.msra.mxu0 0
    %5251 = vmatprep.subr.bf16.mxu0 0
    %5252 = vmatpush1.bf16.msra.mxu0 0
    %5253 = vmatprep.subr.bf16.mxu0 0
    %5254 = vmatpush1.bf16.msra.mxu0 0
    %5255 = vmatprep.mubr.bf16.mxu0 0
    %5256 = vmatmul.mubr.bf16.gmra.mrb[0].mxu0 %v5218
    %v5257 = vpop.f32.mrb[0].mxu0
    %v5258 = vadd.f32 0.0, %v5257
    %v5259 = vpop.f32.mrb[0].mxu0
    %v5260 = vpop.f32.mrb[0].mxu0
    %v5261 = vpop.f32.mrb[0].mxu0
    %5262 = vdwg.mxu0
    %5263 = vrot.lane.b32.xlu0 %v5088, 64
    %v5264 = vpop.permute.xlu0 %5263
    %v5266 = vsel %vm462, %v5214, 0
    %v5269 = vsel %vm591, %v5264, 0
    %5271 = vmatprep.subr.bf16.mxu0 0
    %5272 = vmatpush1.bf16.msra.mxu0 %v5269
    %5273 = vmatprep.subr.bf16.mxu0 0
    %5274 = vmatpush1.bf16.msra.mxu0 0
    %5275 = vmatprep.subr.bf16.mxu0 0
    %5276 = vmatpush1.bf16.msra.mxu0 0
    %5277 = vmatprep.subr.bf16.mxu0 0
    %5278 = vmatpush1.bf16.msra.mxu0 0
    %5279 = vmatprep.subr.bf16.mxu0 0
    %5280 = vmatpush1.bf16.msra.mxu0 0
    %5281 = vmatprep.subr.bf16.mxu0 0
    %5282 = vmatpush1.bf16.msra.mxu0 0
    %5283 = vmatprep.subr.bf16.mxu0 0
    %5284 = vmatpush1.bf16.msra.mxu0 0
    %5285 = vmatprep.subr.bf16.mxu0 0
    %5286 = vmatpush1.bf16.msra.mxu0 0
    %5287 = vmatprep.subr.bf16.mxu0 0
    %5288 = vmatpush1.bf16.msra.mxu0 0
    %5289 = vmatprep.subr.bf16.mxu0 0
    %5290 = vmatpush1.bf16.msra.mxu0 0
    %5291 = vmatprep.subr.bf16.mxu0 0
    %5292 = vmatpush1.bf16.msra.mxu0 0
    %5293 = vmatprep.subr.bf16.mxu0 0
    %5294 = vmatpush1.bf16.msra.mxu0 0
    %5295 = vmatprep.subr.bf16.mxu0 0
    %5296 = vmatpush1.bf16.msra.mxu0 0
    %5297 = vmatprep.subr.bf16.mxu0 0
    %5298 = vmatpush1.bf16.msra.mxu0 0
    %5299 = vmatprep.subr.bf16.mxu0 0
    %5300 = vmatpush1.bf16.msra.mxu0 0
    %5301 = vmatprep.subr.bf16.mxu0 0
    %5302 = vmatpush1.bf16.msra.mxu0 0
    %5303 = vmatprep.mubr.bf16.mxu0 0
    %5304 = vmatmul.mubr.bf16.gmra.mrb[0].mxu0 %v5266
    %v5305 = vpop.f32.mrb[0].mxu0
    %v5306 = vadd.f32 0.0, %v5305
    %v5307 = vpop.f32.mrb[0].mxu0
    %v5308 = vpop.f32.mrb[0].mxu0
    %v5309 = vpop.f32.mrb[0].mxu0
    %5310 = vdwg.mxu0
    %v5311 = vpack.c.bf16 %v5258, %v5258
    %v5312 = vpack.c.bf16 %v5306, %v5306
    %5313 = vrot.lane.b32.xlu0 %v5087, 120
    %v5314 = vpop.permute.xlu0 %5313
    %5315 = vrot.lane.b32.xlu0 %v5087, 88
    %v5316 = vpop.permute.xlu0 %5315
    %v5318 = vsel %vm462, %v5314, 0
    %v5321 = vsel %vm462, %v5316, 0
    %5323 = vmatprep.subr.bf16.mxu0 0
    %5324 = vmatpush1.bf16.xpose.msra.mxu0 %v5321
    %5325 = vmatprep.subr.bf16.mxu0 0
    %5326 = vmatpush1.bf16.xpose.msra.mxu0 0
    %5327 = vmatprep.subr.bf16.mxu0 0
    %5328 = vmatpush1.bf16.xpose.msra.mxu0 0
    %5329 = vmatprep.subr.bf16.mxu0 0
    %5330 = vmatpush1.bf16.xpose.msra.mxu0 0
    %5331 = vmatprep.subr.bf16.mxu0 0
    %5332 = vmatpush1.bf16.xpose.msra.mxu0 0
    %5333 = vmatprep.subr.bf16.mxu0 0
    %5334 = vmatpush1.bf16.xpose.msra.mxu0 0
    %5335 = vmatprep.subr.bf16.mxu0 0
    %5336 = vmatpush1.bf16.xpose.msra.mxu0 0
    %5337 = vmatprep.subr.bf16.mxu0 0
    %5338 = vmatpush1.bf16.xpose.msra.mxu0 0
    %5339 = vmatprep.subr.bf16.mxu0 0
    %5340 = vmatpush1.bf16.xpose.msra.mxu0 0
    %5341 = vmatprep.subr.bf16.mxu0 0
    %5342 = vmatpush1.bf16.xpose.msra.mxu0 0
    %5343 = vmatprep.subr.bf16.mxu0 0
    %5344 = vmatpush1.bf16.xpose.msra.mxu0 0
    %5345 = vmatprep.subr.bf16.mxu0 0
    %5346 = vmatpush1.bf16.xpose.msra.mxu0 0
    %5347 = vmatprep.subr.bf16.mxu0 0
    %5348 = vmatpush1.bf16.xpose.msra.mxu0 0
    %5349 = vmatprep.subr.bf16.mxu0 0
    %5350 = vmatpush1.bf16.xpose.msra.mxu0 0
    %5351 = vmatprep.subr.bf16.mxu0 0
    %5352 = vmatpush1.bf16.xpose.msra.mxu0 0
    %5353 = vmatprep.subr.bf16.mxu0 0
    %5354 = vmatpush1.bf16.xpose.msra.mxu0 0
    %5355 = vmatprep.mubr.bf16.mxu0 0
    %5356 = vmatmul.mubr.bf16.gmra.mrb[0].mxu0 %v5318
    %v5357 = vpop.f32.mrb[0].mxu0
    %v5358 = vadd.f32 0.0, %v5357
    %v5359 = vpop.f32.mrb[0].mxu0
    %v5360 = vpop.f32.mrb[0].mxu0
    %v5361 = vpop.f32.mrb[0].mxu0
    %5362 = vdwg.mxu0
    %5363 = vrot.lane.b32.xlu0 %v5088, 120
    %v5364 = vpop.permute.xlu0 %5363
    %5365 = vrot.lane.b32.xlu0 %v5088, 88
    %v5366 = vpop.permute.xlu0 %5365
    %v5368 = vsel %vm462, %v5364, 0
    %v5371 = vsel %vm462, %v5366, 0
    %5373 = vmatprep.subr.bf16.mxu0 0
    %5374 = vmatpush1.bf16.xpose.msra.mxu0 %v5371
    %5375 = vmatprep.subr.bf16.mxu0 0
    %5376 = vmatpush1.bf16.xpose.msra.mxu0 0
    %5377 = vmatprep.subr.bf16.mxu0 0
    %5378 = vmatpush1.bf16.xpose.msra.mxu0 0
    %5379 = vmatprep.subr.bf16.mxu0 0
    %5380 = vmatpush1.bf16.xpose.msra.mxu0 0
    %5381 = vmatprep.subr.bf16.mxu0 0
    %5382 = vmatpush1.bf16.xpose.msra.mxu0 0
    %5383 = vmatprep.subr.bf16.mxu0 0
    %5384 = vmatpush1.bf16.xpose.msra.mxu0 0
    %5385 = vmatprep.subr.bf16.mxu0 0
    %5386 = vmatpush1.bf16.xpose.msra.mxu0 0
    %5387 = vmatprep.subr.bf16.mxu0 0
    %5388 = vmatpush1.bf16.xpose.msra.mxu0 0
    %5389 = vmatprep.subr.bf16.mxu0 0
    %5390 = vmatpush1.bf16.xpose.msra.mxu0 0
    %5391 = vmatprep.subr.bf16.mxu0 0
    %5392 = vmatpush1.bf16.xpose.msra.mxu0 0
    %5393 = vmatprep.subr.bf16.mxu0 0
    %5394 = vmatpush1.bf16.xpose.msra.mxu0 0
    %5395 = vmatprep.subr.bf16.mxu0 0
    %5396 = vmatpush1.bf16.xpose.msra.mxu0 0
    %5397 = vmatprep.subr.bf16.mxu0 0
    %5398 = vmatpush1.bf16.xpose.msra.mxu0 0
    %5399 = vmatprep.subr.bf16.mxu0 0
    %5400 = vmatpush1.bf16.xpose.msra.mxu0 0
    %5401 = vmatprep.subr.bf16.mxu0 0
    %5402 = vmatpush1.bf16.xpose.msra.mxu0 0
    %5403 = vmatprep.subr.bf16.mxu0 0
    %5404 = vmatpush1.bf16.xpose.msra.mxu0 0
    %5405 = vmatprep.mubr.bf16.mxu0 0
    %5406 = vmatmul.mubr.bf16.gmra.mrb[0].mxu0 %v5368
    %v5407 = vpop.f32.mrb[0].mxu0
    %v5408 = vadd.f32 0.0, %v5407
    %v5409 = vpop.f32.mrb[0].mxu0
    %v5410 = vpop.f32.mrb[0].mxu0
    %v5411 = vpop.f32.mrb[0].mxu0
    %5412 = vdwg.mxu0
    %v5413 = vmul.f32 %v5358, 0.35355338
    %v5414 = vmul.f32 %v5408, 0.35355338
    %v5415 = vadd.f32 %v5413, %v79
    %v5416 = vadd.f32 %v5414, %v79
    %v5417 = vsel %vm462, %v5415, -inf
    %5418 = vmax.xlane.f32.xlu0 %v5417
    %v5419 = vpop.xlane.xlu0 %5418
    %v5420 = vsel %vm462, %v5416, -inf
    %5421 = vmax.xlane.f32.xlu0 %v5420
    %v5422 = vpop.xlane.xlu0 %5421
    %v5423 = vsub.f32 %v5415, %v5419
    %v5424 = vsub.f32 %v5416, %v5422
    %v5425 = vmul.f32 %v5423, 1.442695
    %v5426 = vpow.pop %v5425
    %v5427 = vmul.f32 %v5424, 1.442695
    %v5428 = vpow.pop %v5427
    %v5429 = vsel %vm462, %v5426, 0.0
    %5430 = vadd.xlane.f32.xlu0 %v5429
    %v5431 = vpop.xlane.xlu0 %5430
    %v5432 = vsel %vm462, %v5428, 0.0
    %5433 = vadd.xlane.f32.xlu0 %v5432
    %v5434 = vpop.xlane.xlu0 %5433
    %v5435 = vrcp.pop %v5431
    %v5436 = vmul.f32 %v5426, %v5435
    %v5437 = vrcp.pop %v5434
    %v5438 = vmul.f32 %v5428, %v5437
    %v5439 = vpack.c.bf16 %v5436, %v5436
    %v5440 = vpack.c.bf16 %v5438, %v5438
    %5441 = vrot.lane.b32.xlu0 %v5087, 56
    %v5442 = vpop.permute.xlu0 %5441
    %v5444 = vsel %vm462, %v5439, 0
    %v5447 = vsel %vm591, %v5442, 0
    %5449 = vmatprep.subr.bf16.mxu0 0
    %5450 = vmatpush1.bf16.msra.mxu0 %v5447
    %5451 = vmatprep.subr.bf16.mxu0 0
    %5452 = vmatpush1.bf16.msra.mxu0 0
    %5453 = vmatprep.subr.bf16.mxu0 0
    %5454 = vmatpush1.bf16.msra.mxu0 0
    %5455 = vmatprep.subr.bf16.mxu0 0
    %5456 = vmatpush1.bf16.msra.mxu0 0
    %5457 = vmatprep.subr.bf16.mxu0 0
    %5458 = vmatpush1.bf16.msra.mxu0 0
    %5459 = vmatprep.subr.bf16.mxu0 0
    %5460 = vmatpush1.bf16.msra.mxu0 0
    %5461 = vmatprep.subr.bf16.mxu0 0
    %5462 = vmatpush1.bf16.msra.mxu0 0
    %5463 = vmatprep.subr.bf16.mxu0 0
    %5464 = vmatpush1.bf16.msra.mxu0 0
    %5465 = vmatprep.subr.bf16.mxu0 0
    %5466 = vmatpush1.bf16.msra.mxu0 0
    %5467 = vmatprep.subr.bf16.mxu0 0
    %5468 = vmatpush1.bf16.msra.mxu0 0
    %5469 = vmatprep.subr.bf16.mxu0 0
    %5470 = vmatpush1.bf16.msra.mxu0 0
    %5471 = vmatprep.subr.bf16.mxu0 0
    %5472 = vmatpush1.bf16.msra.mxu0 0
    %5473 = vmatprep.subr.bf16.mxu0 0
    %5474 = vmatpush1.bf16.msra.mxu0 0
    %5475 = vmatprep.subr.bf16.mxu0 0
    %5476 = vmatpush1.bf16.msra.mxu0 0
    %5477 = vmatprep.subr.bf16.mxu0 0
    %5478 = vmatpush1.bf16.msra.mxu0 0
    %5479 = vmatprep.subr.bf16.mxu0 0
    %5480 = vmatpush1.bf16.msra.mxu0 0
    %5481 = vmatprep.mubr.bf16.mxu0 0
    %5482 = vmatmul.mubr.bf16.gmra.mrb[0].mxu0 %v5444
    %v5483 = vpop.f32.mrb[0].mxu0
    %v5484 = vadd.f32 0.0, %v5483
    %v5485 = vpop.f32.mrb[0].mxu0
    %v5486 = vpop.f32.mrb[0].mxu0
    %v5487 = vpop.f32.mrb[0].mxu0
    %5488 = vdwg.mxu0
    %5489 = vrot.lane.b32.xlu0 %v5088, 56
    %v5490 = vpop.permute.xlu0 %5489
    %v5492 = vsel %vm462, %v5440, 0
    %v5495 = vsel %vm591, %v5490, 0
    %5497 = vmatprep.subr.bf16.mxu0 0
    %5498 = vmatpush1.bf16.msra.mxu0 %v5495
    %5499 = vmatprep.subr.bf16.mxu0 0
    %5500 = vmatpush1.bf16.msra.mxu0 0
    %5501 = vmatprep.subr.bf16.mxu0 0
    %5502 = vmatpush1.bf16.msra.mxu0 0
    %5503 = vmatprep.subr.bf16.mxu0 0
    %5504 = vmatpush1.bf16.msra.mxu0 0
    %5505 = vmatprep.subr.bf16.mxu0 0
    %5506 = vmatpush1.bf16.msra.mxu0 0
    %5507 = vmatprep.subr.bf16.mxu0 0
    %5508 = vmatpush1.bf16.msra.mxu0 0
    %5509 = vmatprep.subr.bf16.mxu0 0
    %5510 = vmatpush1.bf16.msra.mxu0 0
    %5511 = vmatprep.subr.bf16.mxu0 0
    %5512 = vmatpush1.bf16.msra.mxu0 0
    %5513 = vmatprep.subr.bf16.mxu0 0
    %5514 = vmatpush1.bf16.msra.mxu0 0
    %5515 = vmatprep.subr.bf16.mxu0 0
    %5516 = vmatpush1.bf16.msra.mxu0 0
    %5517 = vmatprep.subr.bf16.mxu0 0
    %5518 = vmatpush1.bf16.msra.mxu0 0
    %5519 = vmatprep.subr.bf16.mxu0 0
    %5520 = vmatpush1.bf16.msra.mxu0 0
    %5521 = vmatprep.subr.bf16.mxu0 0
    %5522 = vmatpush1.bf16.msra.mxu0 0
    %5523 = vmatprep.subr.bf16.mxu0 0
    %5524 = vmatpush1.bf16.msra.mxu0 0
    %5525 = vmatprep.subr.bf16.mxu0 0
    %5526 = vmatpush1.bf16.msra.mxu0 0
    %5527 = vmatprep.subr.bf16.mxu0 0
    %5528 = vmatpush1.bf16.msra.mxu0 0
    %5529 = vmatprep.mubr.bf16.mxu0 0
    %5530 = vmatmul.mubr.bf16.gmra.mrb[0].mxu0 %v5492
    %v5531 = vpop.f32.mrb[0].mxu0
    %v5532 = vadd.f32 0.0, %v5531
    %v5533 = vpop.f32.mrb[0].mxu0
    %v5534 = vpop.f32.mrb[0].mxu0
    %v5535 = vpop.f32.mrb[0].mxu0
    %5536 = vdwg.mxu0
    %v5537 = vpack.c.bf16 %v5484, %v5484
    %v5538 = vpack.c.bf16 %v5532, %v5532
    %v5541 = vunpack.c.l.b16 %v5537
    %v5542 = vunpack.c.l.b16 %v5538
    %v5543 = vpack.c.b16 %v5542, %v5541
    %v5545 = vsel %vm462, %v5543, 0
    %v5548 = vsel %vm591, %v4701, 0
    %5550 = vmatprep.subr.bf16.mxu0 0
    %5551 = vmatpush1.bf16.msra.mxu0 %v5548
    %5552 = vmatprep.subr.bf16.mxu0 0
    %5553 = vmatpush1.bf16.msra.mxu0 0
    %5554 = vmatprep.subr.bf16.mxu0 0
    %5555 = vmatpush1.bf16.msra.mxu0 0
    %5556 = vmatprep.subr.bf16.mxu0 0
    %5557 = vmatpush1.bf16.msra.mxu0 0
    %5558 = vmatprep.subr.bf16.mxu0 0
    %5559 = vmatpush1.bf16.msra.mxu0 0
    %5560 = vmatprep.subr.bf16.mxu0 0
    %5561 = vmatpush1.bf16.msra.mxu0 0
    %5562 = vmatprep.subr.bf16.mxu0 0
    %5563 = vmatpush1.bf16.msra.mxu0 0
    %5564 = vmatprep.subr.bf16.mxu0 0
    %5565 = vmatpush1.bf16.msra.mxu0 0
    %5566 = vmatprep.subr.bf16.mxu0 0
    %5567 = vmatpush1.bf16.msra.mxu0 0
    %5568 = vmatprep.subr.bf16.mxu0 0
    %5569 = vmatpush1.bf16.msra.mxu0 0
    %5570 = vmatprep.subr.bf16.mxu0 0
    %5571 = vmatpush1.bf16.msra.mxu0 0
    %5572 = vmatprep.subr.bf16.mxu0 0
    %5573 = vmatpush1.bf16.msra.mxu0 0
    %5574 = vmatprep.subr.bf16.mxu0 0
    %5575 = vmatpush1.bf16.msra.mxu0 0
    %5576 = vmatprep.subr.bf16.mxu0 0
    %5577 = vmatpush1.bf16.msra.mxu0 0
    %5578 = vmatprep.subr.bf16.mxu0 0
    %5579 = vmatpush1.bf16.msra.mxu0 0
    %5580 = vmatprep.subr.bf16.mxu0 0
    %5581 = vmatpush1.bf16.msra.mxu0 0
    %5582 = vmatprep.mubr.bf16.mxu0 0
    %5583 = vmatmul.mubr.bf16.gmra.mrb[0].mxu0 %v5545
    %v5584 = vpop.f32.mrb[0].mxu0
    %v5585 = vadd.f32 0.0, %v5584
    %v5586 = vpop.f32.mrb[0].mxu0
    %v5587 = vpop.f32.mrb[0].mxu0
    %v5588 = vadd.f32 0.0, %v5587
    %v5589 = vpop.f32.mrb[0].mxu0
    %5590 = vdwg.mxu0
    %v5593 = vunpack.c.l.b16 %v5311
    %v5594 = vunpack.c.l.b16 %v5312
    %v5595 = vpack.c.b16 %v5594, %v5593
    %v5597 = vsel %vm462, %v5595, 0
    %v5600 = vsel %vm591, %v4700, 0
    %5602 = vmatprep.subr.bf16.mxu0 0
    %5603 = vmatpush1.bf16.msra.mxu0 %v5600
    %5604 = vmatprep.subr.bf16.mxu0 0
    %5605 = vmatpush1.bf16.msra.mxu0 0
    %5606 = vmatprep.subr.bf16.mxu0 0
    %5607 = vmatpush1.bf16.msra.mxu0 0
    %5608 = vmatprep.subr.bf16.mxu0 0
    %5609 = vmatpush1.bf16.msra.mxu0 0
    %5610 = vmatprep.subr.bf16.mxu0 0
    %5611 = vmatpush1.bf16.msra.mxu0 0
    %5612 = vmatprep.subr.bf16.mxu0 0
    %5613 = vmatpush1.bf16.msra.mxu0 0
    %5614 = vmatprep.subr.bf16.mxu0 0
    %5615 = vmatpush1.bf16.msra.mxu0 0
    %5616 = vmatprep.subr.bf16.mxu0 0
    %5617 = vmatpush1.bf16.msra.mxu0 0
    %5618 = vmatprep.subr.bf16.mxu0 0
    %5619 = vmatpush1.bf16.msra.mxu0 0
    %5620 = vmatprep.subr.bf16.mxu0 0
    %5621 = vmatpush1.bf16.msra.mxu0 0
    %5622 = vmatprep.subr.bf16.mxu0 0
    %5623 = vmatpush1.bf16.msra.mxu0 0
    %5624 = vmatprep.subr.bf16.mxu0 0
    %5625 = vmatpush1.bf16.msra.mxu0 0
    %5626 = vmatprep.subr.bf16.mxu0 0
    %5627 = vmatpush1.bf16.msra.mxu0 0
    %5628 = vmatprep.subr.bf16.mxu0 0
    %5629 = vmatpush1.bf16.msra.mxu0 0
    %5630 = vmatprep.subr.bf16.mxu0 0
    %5631 = vmatpush1.bf16.msra.mxu0 0
    %5632 = vmatprep.subr.bf16.mxu0 0
    %5633 = vmatpush1.bf16.msra.mxu0 0
    %5634 = vmatprep.mubr.bf16.mxu0 0
    %5635 = vmatmul.mubr.bf16.gmra.mrb[0].mxu0 %v5597
    %v5636 = vpop.f32.mrb[0].mxu0
    %v5637 = vadd.f32 %v5585, %v5636
    %v5638 = vpop.f32.mrb[0].mxu0
    %v5639 = vpop.f32.mrb[0].mxu0
    %v5640 = vadd.f32 %v5588, %v5639
    %v5641 = vpop.f32.mrb[0].mxu0
    %5642 = vdwg.mxu0
    %5643 = vrot.lane.b32.xlu0 %v5087, 112
    %v5644 = vpop.permute.xlu0 %5643
    %5645 = vrot.lane.b32.xlu0 %v5087, 80
    %v5646 = vpop.permute.xlu0 %5645
    %v5648 = vsel %vm462, %v5644, 0
    %v5651 = vsel %vm462, %v5646, 0
    %5653 = vmatprep.subr.bf16.mxu0 0
    %5654 = vmatpush1.bf16.xpose.msra.mxu0 %v5651
    %5655 = vmatprep.subr.bf16.mxu0 0
    %5656 = vmatpush1.bf16.xpose.msra.mxu0 0
    %5657 = vmatprep.subr.bf16.mxu0 0
    %5658 = vmatpush1.bf16.xpose.msra.mxu0 0
    %5659 = vmatprep.subr.bf16.mxu0 0
    %5660 = vmatpush1.bf16.xpose.msra.mxu0 0
    %5661 = vmatprep.subr.bf16.mxu0 0
    %5662 = vmatpush1.bf16.xpose.msra.mxu0 0
    %5663 = vmatprep.subr.bf16.mxu0 0
    %5664 = vmatpush1.bf16.xpose.msra.mxu0 0
    %5665 = vmatprep.subr.bf16.mxu0 0
    %5666 = vmatpush1.bf16.xpose.msra.mxu0 0
    %5667 = vmatprep.subr.bf16.mxu0 0
    %5668 = vmatpush1.bf16.xpose.msra.mxu0 0
    %5669 = vmatprep.subr.bf16.mxu0 0
    %5670 = vmatpush1.bf16.xpose.msra.mxu0 0
    %5671 = vmatprep.subr.bf16.mxu0 0
    %5672 = vmatpush1.bf16.xpose.msra.mxu0 0
    %5673 = vmatprep.subr.bf16.mxu0 0
    %5674 = vmatpush1.bf16.xpose.msra.mxu0 0
    %5675 = vmatprep.subr.bf16.mxu0 0
    %5676 = vmatpush1.bf16.xpose.msra.mxu0 0
    %5677 = vmatprep.subr.bf16.mxu0 0
    %5678 = vmatpush1.bf16.xpose.msra.mxu0 0
    %5679 = vmatprep.subr.bf16.mxu0 0
    %5680 = vmatpush1.bf16.xpose.msra.mxu0 0
    %5681 = vmatprep.subr.bf16.mxu0 0
    %5682 = vmatpush1.bf16.xpose.msra.mxu0 0
    %5683 = vmatprep.subr.bf16.mxu0 0
    %5684 = vmatpush1.bf16.xpose.msra.mxu0 0
    %5685 = vmatprep.mubr.bf16.mxu0 0
    %5686 = vmatmul.mubr.bf16.gmra.mrb[0].mxu0 %v5648
    %v5687 = vpop.f32.mrb[0].mxu0
    %v5688 = vadd.f32 0.0, %v5687
    %v5689 = vpop.f32.mrb[0].mxu0
    %v5690 = vpop.f32.mrb[0].mxu0
    %v5691 = vpop.f32.mrb[0].mxu0
    %5692 = vdwg.mxu0
    %5693 = vrot.lane.b32.xlu0 %v5088, 112
    %v5694 = vpop.permute.xlu0 %5693
    %5695 = vrot.lane.b32.xlu0 %v5088, 80
    %v5696 = vpop.permute.xlu0 %5695
    %v5698 = vsel %vm462, %v5694, 0
    %v5701 = vsel %vm462, %v5696, 0
    %5703 = vmatprep.subr.bf16.mxu0 0
    %5704 = vmatpush1.bf16.xpose.msra.mxu0 %v5701
    %5705 = vmatprep.subr.bf16.mxu0 0
    %5706 = vmatpush1.bf16.xpose.msra.mxu0 0
    %5707 = vmatprep.subr.bf16.mxu0 0
    %5708 = vmatpush1.bf16.xpose.msra.mxu0 0
    %5709 = vmatprep.subr.bf16.mxu0 0
    %5710 = vmatpush1.bf16.xpose.msra.mxu0 0
    %5711 = vmatprep.subr.bf16.mxu0 0
    %5712 = vmatpush1.bf16.xpose.msra.mxu0 0
    %5713 = vmatprep.subr.bf16.mxu0 0
    %5714 = vmatpush1.bf16.xpose.msra.mxu0 0
    %5715 = vmatprep.subr.bf16.mxu0 0
    %5716 = vmatpush1.bf16.xpose.msra.mxu0 0
    %5717 = vmatprep.subr.bf16.mxu0 0
    %5718 = vmatpush1.bf16.xpose.msra.mxu0 0
    %5719 = vmatprep.subr.bf16.mxu0 0
    %5720 = vmatpush1.bf16.xpose.msra.mxu0 0
    %5721 = vmatprep.subr.bf16.mxu0 0
    %5722 = vmatpush1.bf16.xpose.msra.mxu0 0
    %5723 = vmatprep.subr.bf16.mxu0 0
    %5724 = vmatpush1.bf16.xpose.msra.mxu0 0
    %5725 = vmatprep.subr.bf16.mxu0 0
    %5726 = vmatpush1.bf16.xpose.msra.mxu0 0
    %5727 = vmatprep.subr.bf16.mxu0 0
    %5728 = vmatpush1.bf16.xpose.msra.mxu0 0
    %5729 = vmatprep.subr.bf16.mxu0 0
    %5730 = vmatpush1.bf16.xpose.msra.mxu0 0
    %5731 = vmatprep.subr.bf16.mxu0 0
    %5732 = vmatpush1.bf16.xpose.msra.mxu0 0
    %5733 = vmatprep.subr.bf16.mxu0 0
    %5734 = vmatpush1.bf16.xpose.msra.mxu0 0
    %5735 = vmatprep.mubr.bf16.mxu0 0
    %5736 = vmatmul.mubr.bf16.gmra.mrb[0].mxu0 %v5698
    %v5737 = vpop.f32.mrb[0].mxu0
    %v5738 = vadd.f32 0.0, %v5737
    %v5739 = vpop.f32.mrb[0].mxu0
    %v5740 = vpop.f32.mrb[0].mxu0
    %v5741 = vpop.f32.mrb[0].mxu0
    %5742 = vdwg.mxu0
    %v5743 = vmul.f32 %v5688, 0.35355338
    %v5744 = vmul.f32 %v5738, 0.35355338
    %v5745 = vadd.f32 %v5743, %v79
    %v5746 = vadd.f32 %v5744, %v79
    %v5747 = vsel %vm462, %v5745, -inf
    %5748 = vmax.xlane.f32.xlu0 %v5747
    %v5749 = vpop.xlane.xlu0 %5748
    %v5750 = vsel %vm462, %v5746, -inf
    %5751 = vmax.xlane.f32.xlu0 %v5750
    %v5752 = vpop.xlane.xlu0 %5751
    %v5753 = vsub.f32 %v5745, %v5749
    %v5754 = vsub.f32 %v5746, %v5752
    %v5755 = vmul.f32 %v5753, 1.442695
    %v5756 = vpow.pop %v5755
    %v5757 = vmul.f32 %v5754, 1.442695
    %v5758 = vpow.pop %v5757
    %v5759 = vsel %vm462, %v5756, 0.0
    %5760 = vadd.xlane.f32.xlu0 %v5759
    %v5761 = vpop.xlane.xlu0 %5760
    %v5762 = vsel %vm462, %v5758, 0.0
    %5763 = vadd.xlane.f32.xlu0 %v5762
    %v5764 = vpop.xlane.xlu0 %5763
    %v5765 = vrcp.pop %v5761
    %v5766 = vmul.f32 %v5756, %v5765
    %v5767 = vrcp.pop %v5764
    %v5768 = vmul.f32 %v5758, %v5767
    %v5769 = vpack.c.bf16 %v5766, %v5766
    %v5770 = vpack.c.bf16 %v5768, %v5768
    %5771 = vrot.lane.b32.xlu0 %v5087, 48
    %v5772 = vpop.permute.xlu0 %5771
    %v5774 = vsel %vm462, %v5769, 0
    %v5777 = vsel %vm591, %v5772, 0
    %5779 = vmatprep.subr.bf16.mxu0 0
    %5780 = vmatpush1.bf16.msra.mxu0 %v5777
    %5781 = vmatprep.subr.bf16.mxu0 0
    %5782 = vmatpush1.bf16.msra.mxu0 0
    %5783 = vmatprep.subr.bf16.mxu0 0
    %5784 = vmatpush1.bf16.msra.mxu0 0
    %5785 = vmatprep.subr.bf16.mxu0 0
    %5786 = vmatpush1.bf16.msra.mxu0 0
    %5787 = vmatprep.subr.bf16.mxu0 0
    %5788 = vmatpush1.bf16.msra.mxu0 0
    %5789 = vmatprep.subr.bf16.mxu0 0
    %5790 = vmatpush1.bf16.msra.mxu0 0
    %5791 = vmatprep.subr.bf16.mxu0 0
    %5792 = vmatpush1.bf16.msra.mxu0 0
    %5793 = vmatprep.subr.bf16.mxu0 0
    %5794 = vmatpush1.bf16.msra.mxu0 0
    %5795 = vmatprep.subr.bf16.mxu0 0
    %5796 = vmatpush1.bf16.msra.mxu0 0
    %5797 = vmatprep.subr.bf16.mxu0 0
    %5798 = vmatpush1.bf16.msra.mxu0 0
    %5799 = vmatprep.subr.bf16.mxu0 0
    %5800 = vmatpush1.bf16.msra.mxu0 0
    %5801 = vmatprep.subr.bf16.mxu0 0
    %5802 = vmatpush1.bf16.msra.mxu0 0
    %5803 = vmatprep.subr.bf16.mxu0 0
    %5804 = vmatpush1.bf16.msra.mxu0 0
    %5805 = vmatprep.subr.bf16.mxu0 0
    %5806 = vmatpush1.bf16.msra.mxu0 0
    %5807 = vmatprep.subr.bf16.mxu0 0
    %5808 = vmatpush1.bf16.msra.mxu0 0
    %5809 = vmatprep.subr.bf16.mxu0 0
    %5810 = vmatpush1.bf16.msra.mxu0 0
    %5811 = vmatprep.mubr.bf16.mxu0 0
    %5812 = vmatmul.mubr.bf16.gmra.mrb[0].mxu0 %v5774
    %v5813 = vpop.f32.mrb[0].mxu0
    %v5814 = vadd.f32 0.0, %v5813
    %v5815 = vpop.f32.mrb[0].mxu0
    %v5816 = vpop.f32.mrb[0].mxu0
    %v5817 = vpop.f32.mrb[0].mxu0
    %5818 = vdwg.mxu0
    %5819 = vrot.lane.b32.xlu0 %v5088, 48
    %v5820 = vpop.permute.xlu0 %5819
    %v5822 = vsel %vm462, %v5770, 0
    %v5825 = vsel %vm591, %v5820, 0
    %5827 = vmatprep.subr.bf16.mxu0 0
    %5828 = vmatpush1.bf16.msra.mxu0 %v5825
    %5829 = vmatprep.subr.bf16.mxu0 0
    %5830 = vmatpush1.bf16.msra.mxu0 0
    %5831 = vmatprep.subr.bf16.mxu0 0
    %5832 = vmatpush1.bf16.msra.mxu0 0
    %5833 = vmatprep.subr.bf16.mxu0 0
    %5834 = vmatpush1.bf16.msra.mxu0 0
    %5835 = vmatprep.subr.bf16.mxu0 0
    %5836 = vmatpush1.bf16.msra.mxu0 0
    %5837 = vmatprep.subr.bf16.mxu0 0
    %5838 = vmatpush1.bf16.msra.mxu0 0
    %5839 = vmatprep.subr.bf16.mxu0 0
    %5840 = vmatpush1.bf16.msra.mxu0 0
    %5841 = vmatprep.subr.bf16.mxu0 0
    %5842 = vmatpush1.bf16.msra.mxu0 0
    %5843 = vmatprep.subr.bf16.mxu0 0
    %5844 = vmatpush1.bf16.msra.mxu0 0
    %5845 = vmatprep.subr.bf16.mxu0 0
    %5846 = vmatpush1.bf16.msra.mxu0 0
    %5847 = vmatprep.subr.bf16.mxu0 0
    %5848 = vmatpush1.bf16.msra.mxu0 0
    %5849 = vmatprep.subr.bf16.mxu0 0
    %5850 = vmatpush1.bf16.msra.mxu0 0
    %5851 = vmatprep.subr.bf16.mxu0 0
    %5852 = vmatpush1.bf16.msra.mxu0 0
    %5853 = vmatprep.subr.bf16.mxu0 0
    %5854 = vmatpush1.bf16.msra.mxu0 0
    %5855 = vmatprep.subr.bf16.mxu0 0
    %5856 = vmatpush1.bf16.msra.mxu0 0
    %5857 = vmatprep.subr.bf16.mxu0 0
    %5858 = vmatpush1.bf16.msra.mxu0 0
    %5859 = vmatprep.mubr.bf16.mxu0 0
    %5860 = vmatmul.mubr.bf16.gmra.mrb[0].mxu0 %v5822
    %v5861 = vpop.f32.mrb[0].mxu0
    %v5862 = vadd.f32 0.0, %v5861
    %v5863 = vpop.f32.mrb[0].mxu0
    %v5864 = vpop.f32.mrb[0].mxu0
    %v5865 = vpop.f32.mrb[0].mxu0
    %5866 = vdwg.mxu0
    %v5867 = vpack.c.bf16 %v5814, %v5814
    %v5868 = vpack.c.bf16 %v5862, %v5862
    %v5871 = vunpack.c.l.b16 %v5867
    %v5872 = vunpack.c.l.b16 %v5868
    %v5873 = vpack.c.b16 %v5872, %v5871
    %v5875 = vsel %vm462, %v5873, 0
    %v5878 = vsel %vm591, %v4702, 0
    %5880 = vmatprep.subr.bf16.mxu0 0
    %5881 = vmatpush1.bf16.msra.mxu0 %v5878
    %5882 = vmatprep.subr.bf16.mxu0 0
    %5883 = vmatpush1.bf16.msra.mxu0 0
    %5884 = vmatprep.subr.bf16.mxu0 0
    %5885 = vmatpush1.bf16.msra.mxu0 0
    %5886 = vmatprep.subr.bf16.mxu0 0
    %5887 = vmatpush1.bf16.msra.mxu0 0
    %5888 = vmatprep.subr.bf16.mxu0 0
    %5889 = vmatpush1.bf16.msra.mxu0 0
    %5890 = vmatprep.subr.bf16.mxu0 0
    %5891 = vmatpush1.bf16.msra.mxu0 0
    %5892 = vmatprep.subr.bf16.mxu0 0
    %5893 = vmatpush1.bf16.msra.mxu0 0
    %5894 = vmatprep.subr.bf16.mxu0 0
    %5895 = vmatpush1.bf16.msra.mxu0 0
    %5896 = vmatprep.subr.bf16.mxu0 0
    %5897 = vmatpush1.bf16.msra.mxu0 0
    %5898 = vmatprep.subr.bf16.mxu0 0
    %5899 = vmatpush1.bf16.msra.mxu0 0
    %5900 = vmatprep.subr.bf16.mxu0 0
    %5901 = vmatpush1.bf16.msra.mxu0 0
    %5902 = vmatprep.subr.bf16.mxu0 0
    %5903 = vmatpush1.bf16.msra.mxu0 0
    %5904 = vmatprep.subr.bf16.mxu0 0
    %5905 = vmatpush1.bf16.msra.mxu0 0
    %5906 = vmatprep.subr.bf16.mxu0 0
    %5907 = vmatpush1.bf16.msra.mxu0 0
    %5908 = vmatprep.subr.bf16.mxu0 0
    %5909 = vmatpush1.bf16.msra.mxu0 0
    %5910 = vmatprep.subr.bf16.mxu0 0
    %5911 = vmatpush1.bf16.msra.mxu0 0
    %5912 = vmatprep.mubr.bf16.mxu0 0
    %5913 = vmatmul.mubr.bf16.gmra.mrb[0].mxu0 %v5875
    %v5914 = vpop.f32.mrb[0].mxu0
    %v5915 = vadd.f32 0.0, %v5914
    %v5916 = vpop.f32.mrb[0].mxu0
    %v5917 = vpop.f32.mrb[0].mxu0
    %v5918 = vadd.f32 0.0, %v5917
    %v5919 = vpop.f32.mrb[0].mxu0
    %5920 = vdwg.mxu0
    %v5921 = vadd.f32 %v5637, %v5915
    %v5922 = vadd.f32 %v5640, %v5918
    %5923 = vrot.lane.b32.xlu0 %v5087, 104
    %v5924 = vpop.permute.xlu0 %5923
    %5925 = vrot.lane.b32.xlu0 %v5087, 72
    %v5926 = vpop.permute.xlu0 %5925
    %v5928 = vsel %vm462, %v5924, 0
    %v5931 = vsel %vm462, %v5926, 0
    %5933 = vmatprep.subr.bf16.mxu0 0
    %5934 = vmatpush1.bf16.xpose.msra.mxu0 %v5931
    %5935 = vmatprep.subr.bf16.mxu0 0
    %5936 = vmatpush1.bf16.xpose.msra.mxu0 0
    %5937 = vmatprep.subr.bf16.mxu0 0
    %5938 = vmatpush1.bf16.xpose.msra.mxu0 0
    %5939 = vmatprep.subr.bf16.mxu0 0
    %5940 = vmatpush1.bf16.xpose.msra.mxu0 0
    %5941 = vmatprep.subr.bf16.mxu0 0
    %5942 = vmatpush1.bf16.xpose.msra.mxu0 0
    %5943 = vmatprep.subr.bf16.mxu0 0
    %5944 = vmatpush1.bf16.xpose.msra.mxu0 0
    %5945 = vmatprep.subr.bf16.mxu0 0
    %5946 = vmatpush1.bf16.xpose.msra.mxu0 0
    %5947 = vmatprep.subr.bf16.mxu0 0
    %5948 = vmatpush1.bf16.xpose.msra.mxu0 0
    %5949 = vmatprep.subr.bf16.mxu0 0
    %5950 = vmatpush1.bf16.xpose.msra.mxu0 0
    %5951 = vmatprep.subr.bf16.mxu0 0
    %5952 = vmatpush1.bf16.xpose.msra.mxu0 0
    %5953 = vmatprep.subr.bf16.mxu0 0
    %5954 = vmatpush1.bf16.xpose.msra.mxu0 0
    %5955 = vmatprep.subr.bf16.mxu0 0
    %5956 = vmatpush1.bf16.xpose.msra.mxu0 0
    %5957 = vmatprep.subr.bf16.mxu0 0
    %5958 = vmatpush1.bf16.xpose.msra.mxu0 0
    %5959 = vmatprep.subr.bf16.mxu0 0
    %5960 = vmatpush1.bf16.xpose.msra.mxu0 0
    %5961 = vmatprep.subr.bf16.mxu0 0
    %5962 = vmatpush1.bf16.xpose.msra.mxu0 0
    %5963 = vmatprep.subr.bf16.mxu0 0
    %5964 = vmatpush1.bf16.xpose.msra.mxu0 0
    %5965 = vmatprep.mubr.bf16.mxu0 0
    %5966 = vmatmul.mubr.bf16.gmra.mrb[0].mxu0 %v5928
    %v5967 = vpop.f32.mrb[0].mxu0
    %v5968 = vadd.f32 0.0, %v5967
    %v5969 = vpop.f32.mrb[0].mxu0
    %v5970 = vpop.f32.mrb[0].mxu0
    %v5971 = vpop.f32.mrb[0].mxu0
    %5972 = vdwg.mxu0
    %5973 = vrot.lane.b32.xlu0 %v5088, 104
    %v5974 = vpop.permute.xlu0 %5973
    %5975 = vrot.lane.b32.xlu0 %v5088, 72
    %v5976 = vpop.permute.xlu0 %5975
    %v5978 = vsel %vm462, %v5974, 0
    %v5981 = vsel %vm462, %v5976, 0
    %5983 = vmatprep.subr.bf16.mxu0 0
    %5984 = vmatpush1.bf16.xpose.msra.mxu0 %v5981
    %5985 = vmatprep.subr.bf16.mxu0 0
    %5986 = vmatpush1.bf16.xpose.msra.mxu0 0
    %5987 = vmatprep.subr.bf16.mxu0 0
    %5988 = vmatpush1.bf16.xpose.msra.mxu0 0
    %5989 = vmatprep.subr.bf16.mxu0 0
    %5990 = vmatpush1.bf16.xpose.msra.mxu0 0
    %5991 = vmatprep.subr.bf16.mxu0 0
    %5992 = vmatpush1.bf16.xpose.msra.mxu0 0
    %5993 = vmatprep.subr.bf16.mxu0 0
    %5994 = vmatpush1.bf16.xpose.msra.mxu0 0
    %5995 = vmatprep.subr.bf16.mxu0 0
    %5996 = vmatpush1.bf16.xpose.msra.mxu0 0
    %5997 = vmatprep.subr.bf16.mxu0 0
    %5998 = vmatpush1.bf16.xpose.msra.mxu0 0
    %5999 = vmatprep.subr.bf16.mxu0 0
    %6000 = vmatpush1.bf16.xpose.msra.mxu0 0
    %6001 = vmatprep.subr.bf16.mxu0 0
    %6002 = vmatpush1.bf16.xpose.msra.mxu0 0
    %6003 = vmatprep.subr.bf16.mxu0 0
    %6004 = vmatpush1.bf16.xpose.msra.mxu0 0
    %6005 = vmatprep.subr.bf16.mxu0 0
    %6006 = vmatpush1.bf16.xpose.msra.mxu0 0
    %6007 = vmatprep.subr.bf16.mxu0 0
    %6008 = vmatpush1.bf16.xpose.msra.mxu0 0
    %6009 = vmatprep.subr.bf16.mxu0 0
    %6010 = vmatpush1.bf16.xpose.msra.mxu0 0
    %6011 = vmatprep.subr.bf16.mxu0 0
    %6012 = vmatpush1.bf16.xpose.msra.mxu0 0
    %6013 = vmatprep.subr.bf16.mxu0 0
    %6014 = vmatpush1.bf16.xpose.msra.mxu0 0
    %6015 = vmatprep.mubr.bf16.mxu0 0
    %6016 = vmatmul.mubr.bf16.gmra.mrb[0].mxu0 %v5978
    %v6017 = vpop.f32.mrb[0].mxu0
    %v6018 = vadd.f32 0.0, %v6017
    %v6019 = vpop.f32.mrb[0].mxu0
    %v6020 = vpop.f32.mrb[0].mxu0
    %v6021 = vpop.f32.mrb[0].mxu0
    %6022 = vdwg.mxu0
    %v6023 = vmul.f32 %v5968, 0.35355338
    %v6024 = vmul.f32 %v6018, 0.35355338
    %v6025 = vadd.f32 %v6023, %v79
    %v6026 = vadd.f32 %v6024, %v79
    %v6027 = vsel %vm462, %v6025, -inf
    %6028 = vmax.xlane.f32.xlu0 %v6027
    %v6029 = vpop.xlane.xlu0 %6028
    %v6030 = vsel %vm462, %v6026, -inf
    %6031 = vmax.xlane.f32.xlu0 %v6030
    %v6032 = vpop.xlane.xlu0 %6031
    %v6033 = vsub.f32 %v6025, %v6029
    %v6034 = vsub.f32 %v6026, %v6032
    %v6035 = vmul.f32 %v6033, 1.442695
    %v6036 = vpow.pop %v6035
    %v6037 = vmul.f32 %v6034, 1.442695
    %v6038 = vpow.pop %v6037
    %v6039 = vsel %vm462, %v6036, 0.0
    %6040 = vadd.xlane.f32.xlu0 %v6039
    %v6041 = vpop.xlane.xlu0 %6040
    %v6042 = vsel %vm462, %v6038, 0.0
    %6043 = vadd.xlane.f32.xlu0 %v6042
    %v6044 = vpop.xlane.xlu0 %6043
    %v6045 = vrcp.pop %v6041
    %v6046 = vmul.f32 %v6036, %v6045
    %v6047 = vrcp.pop %v6044
    %v6048 = vmul.f32 %v6038, %v6047
    %v6049 = vpack.c.bf16 %v6046, %v6046
    %v6050 = vpack.c.bf16 %v6048, %v6048
    %6051 = vrot.lane.b32.xlu0 %v5087, 40
    %v6052 = vpop.permute.xlu0 %6051
    %v6054 = vsel %vm462, %v6049, 0
    %v6057 = vsel %vm591, %v6052, 0
    %6059 = vmatprep.subr.bf16.mxu0 0
    %6060 = vmatpush1.bf16.msra.mxu0 %v6057
    %6061 = vmatprep.subr.bf16.mxu0 0
    %6062 = vmatpush1.bf16.msra.mxu0 0
    %6063 = vmatprep.subr.bf16.mxu0 0
    %6064 = vmatpush1.bf16.msra.mxu0 0
    %6065 = vmatprep.subr.bf16.mxu0 0
    %6066 = vmatpush1.bf16.msra.mxu0 0
    %6067 = vmatprep.subr.bf16.mxu0 0
    %6068 = vmatpush1.bf16.msra.mxu0 0
    %6069 = vmatprep.subr.bf16.mxu0 0
    %6070 = vmatpush1.bf16.msra.mxu0 0
    %6071 = vmatprep.subr.bf16.mxu0 0
    %6072 = vmatpush1.bf16.msra.mxu0 0
    %6073 = vmatprep.subr.bf16.mxu0 0
    %6074 = vmatpush1.bf16.msra.mxu0 0
    %6075 = vmatprep.subr.bf16.mxu0 0
    %6076 = vmatpush1.bf16.msra.mxu0 0
    %6077 = vmatprep.subr.bf16.mxu0 0
    %6078 = vmatpush1.bf16.msra.mxu0 0
    %6079 = vmatprep.subr.bf16.mxu0 0
    %6080 = vmatpush1.bf16.msra.mxu0 0
    %6081 = vmatprep.subr.bf16.mxu0 0
    %6082 = vmatpush1.bf16.msra.mxu0 0
    %6083 = vmatprep.subr.bf16.mxu0 0
    %6084 = vmatpush1.bf16.msra.mxu0 0
    %6085 = vmatprep.subr.bf16.mxu0 0
    %6086 = vmatpush1.bf16.msra.mxu0 0
    %6087 = vmatprep.subr.bf16.mxu0 0
    %6088 = vmatpush1.bf16.msra.mxu0 0
    %6089 = vmatprep.subr.bf16.mxu0 0
    %6090 = vmatpush1.bf16.msra.mxu0 0
    %6091 = vmatprep.mubr.bf16.mxu0 0
    %6092 = vmatmul.mubr.bf16.gmra.mrb[0].mxu0 %v6054
    %v6093 = vpop.f32.mrb[0].mxu0
    %v6094 = vadd.f32 0.0, %v6093
    %v6095 = vpop.f32.mrb[0].mxu0
    %v6096 = vpop.f32.mrb[0].mxu0
    %v6097 = vpop.f32.mrb[0].mxu0
    %6098 = vdwg.mxu0
    %6099 = vrot.lane.b32.xlu0 %v5088, 40
    %v6100 = vpop.permute.xlu0 %6099
    %v6102 = vsel %vm462, %v6050, 0
    %v6105 = vsel %vm591, %v6100, 0
    %6107 = vmatprep.subr.bf16.mxu0 0
    %6108 = vmatpush1.bf16.msra.mxu0 %v6105
    %6109 = vmatprep.subr.bf16.mxu0 0
    %6110 = vmatpush1.bf16.msra.mxu0 0
    %6111 = vmatprep.subr.bf16.mxu0 0
    %6112 = vmatpush1.bf16.msra.mxu0 0
    %6113 = vmatprep.subr.bf16.mxu0 0
    %6114 = vmatpush1.bf16.msra.mxu0 0
    %6115 = vmatprep.subr.bf16.mxu0 0
    %6116 = vmatpush1.bf16.msra.mxu0 0
    %6117 = vmatprep.subr.bf16.mxu0 0
    %6118 = vmatpush1.bf16.msra.mxu0 0
    %6119 = vmatprep.subr.bf16.mxu0 0
    %6120 = vmatpush1.bf16.msra.mxu0 0
    %6121 = vmatprep.subr.bf16.mxu0 0
    %6122 = vmatpush1.bf16.msra.mxu0 0
    %6123 = vmatprep.subr.bf16.mxu0 0
    %6124 = vmatpush1.bf16.msra.mxu0 0
    %6125 = vmatprep.subr.bf16.mxu0 0
    %6126 = vmatpush1.bf16.msra.mxu0 0
    %6127 = vmatprep.subr.bf16.mxu0 0
    %6128 = vmatpush1.bf16.msra.mxu0 0
    %6129 = vmatprep.subr.bf16.mxu0 0
    %6130 = vmatpush1.bf16.msra.mxu0 0
    %6131 = vmatprep.subr.bf16.mxu0 0
    %6132 = vmatpush1.bf16.msra.mxu0 0
    %6133 = vmatprep.subr.bf16.mxu0 0
    %6134 = vmatpush1.bf16.msra.mxu0 0
    %6135 = vmatprep.subr.bf16.mxu0 0
    %6136 = vmatpush1.bf16.msra.mxu0 0
    %6137 = vmatprep.subr.bf16.mxu0 0
    %6138 = vmatpush1.bf16.msra.mxu0 0
    %6139 = vmatprep.mubr.bf16.mxu0 0
    %6140 = vmatmul.mubr.bf16.gmra.mrb[0].mxu0 %v6102
    %v6141 = vpop.f32.mrb[0].mxu0
    %v6142 = vadd.f32 0.0, %v6141
    %v6143 = vpop.f32.mrb[0].mxu0
    %v6144 = vpop.f32.mrb[0].mxu0
    %v6145 = vpop.f32.mrb[0].mxu0
    %6146 = vdwg.mxu0
    %v6147 = vpack.c.bf16 %v6094, %v6094
    %v6148 = vpack.c.bf16 %v6142, %v6142
    %v6151 = vunpack.c.l.b16 %v6147
    %v6152 = vunpack.c.l.b16 %v6148
    %v6153 = vpack.c.b16 %v6152, %v6151
    %v6155 = vsel %vm462, %v6153, 0
    %v6158 = vsel %vm591, %v4703, 0
    %6160 = vmatprep.subr.bf16.mxu0 0
    %6161 = vmatpush1.bf16.msra.mxu0 %v6158
    %6162 = vmatprep.subr.bf16.mxu0 0
    %6163 = vmatpush1.bf16.msra.mxu0 0
    %6164 = vmatprep.subr.bf16.mxu0 0
    %6165 = vmatpush1.bf16.msra.mxu0 0
    %6166 = vmatprep.subr.bf16.mxu0 0
    %6167 = vmatpush1.bf16.msra.mxu0 0
    %6168 = vmatprep.subr.bf16.mxu0 0
    %6169 = vmatpush1.bf16.msra.mxu0 0
    %6170 = vmatprep.subr.bf16.mxu0 0
    %6171 = vmatpush1.bf16.msra.mxu0 0
    %6172 = vmatprep.subr.bf16.mxu0 0
    %6173 = vmatpush1.bf16.msra.mxu0 0
    %6174 = vmatprep.subr.bf16.mxu0 0
    %6175 = vmatpush1.bf16.msra.mxu0 0
    %6176 = vmatprep.subr.bf16.mxu0 0
    %6177 = vmatpush1.bf16.msra.mxu0 0
    %6178 = vmatprep.subr.bf16.mxu0 0
    %6179 = vmatpush1.bf16.msra.mxu0 0
    %6180 = vmatprep.subr.bf16.mxu0 0
    %6181 = vmatpush1.bf16.msra.mxu0 0
    %6182 = vmatprep.subr.bf16.mxu0 0
    %6183 = vmatpush1.bf16.msra.mxu0 0
    %6184 = vmatprep.subr.bf16.mxu0 0
    %6185 = vmatpush1.bf16.msra.mxu0 0
    %6186 = vmatprep.subr.bf16.mxu0 0
    %6187 = vmatpush1.bf16.msra.mxu0 0
    %6188 = vmatprep.subr.bf16.mxu0 0
    %6189 = vmatpush1.bf16.msra.mxu0 0
    %6190 = vmatprep.subr.bf16.mxu0 0
    %6191 = vmatpush1.bf16.msra.mxu0 0
    %6192 = vmatprep.mubr.bf16.mxu0 0
    %6193 = vmatmul.mubr.bf16.gmra.mrb[0].mxu0 %v6155
    %v6194 = vpop.f32.mrb[0].mxu0
    %v6195 = vadd.f32 0.0, %v6194
    %v6196 = vpop.f32.mrb[0].mxu0
    %v6197 = vpop.f32.mrb[0].mxu0
    %v6198 = vadd.f32 0.0, %v6197
    %v6199 = vpop.f32.mrb[0].mxu0
    %6200 = vdwg.mxu0
    %v6201 = vadd.f32 %v5921, %v6195
    %v6202 = vadd.f32 %v5922, %v6198
    %v6204 = vlaneseq
    %v6205 = vshrl.u32 %v6204, 7
    %v6206 = vsub.s32 0, %v6205
    %v6207 = vrot.slane %v4705, %v6206
    %v6209 = vadd.f32 %v6201, %v6207
    %v6210 = vadd.f32 %v6202, %v6207
    %v6211 = vadd.f32 %v6209, %v4692
    %v6212 = vadd.f32 %v6210, %v4693
    %v6213 = vsel %vm412, %v6211, 0.0
    %6214 = vadd.xlane.f32.xlu0 %v6213
    %v6215 = vpop.xlane.xlu0 %6214
    %v6216 = vsel %vm412, %v6212, 0.0
    %6217 = vadd.xlane.f32.xlu0 %v6216
    %v6218 = vpop.xlane.xlu0 %6217
    %v6219 = vmul.f32 %v6215, %v1591
    %v6220 = vmul.f32 %v6218, %v1591
    %v6221 = vsub.f32 %v6211, %v6219
    %v6222 = vsub.f32 %v6212, %v6220
    %v6223 = vmul.f32 %v6221, %v6221
    %v6224 = vmul.f32 %v6222, %v6222
    %v6225 = vsel %vm412, %v6223, 0.0
    %6226 = vadd.xlane.f32.xlu0 %v6225
    %v6227 = vpop.xlane.xlu0 %6226
    %v6228 = vsel %vm412, %v6224, 0.0
    %6229 = vadd.xlane.f32.xlu0 %v6228
    %v6230 = vpop.xlane.xlu0 %6229
    %v6231 = vmul.f32 %v6227, %v1591
    %v6232 = vmul.f32 %v6230, %v1591
    %v6233 = vadd.f32 %v6231, 1e-05
    %v6234 = vadd.f32 %v6232, 1e-05
    %v6235 = vrsqrt.pop %v6233
    %v6236 = vrsqrt.pop %v6234
    %v6237 = vmul.f32 %v6221, %v6235
    %v6238 = vmul.f32 %v6222, %v6236
    %v6240 = vlaneseq
    %v6241 = vshrl.u32 %v6240, 7
    %v6242 = vsub.s32 0, %v6241
    %v6243 = vrot.slane %v4707, %v6242
    %v6245 = vmul.f32 %v6237, %v6243
    %v6246 = vmul.f32 %v6238, %v6243
    %v6248 = vlaneseq
    %v6249 = vshrl.u32 %v6248, 7
    %v6250 = vsub.s32 0, %v6249
    %v6251 = vrot.slane %v4709, %v6250
    %v6253 = vadd.f32 %v6245, %v6251
    %v6254 = vadd.f32 %v6246, %v6251
    %v6255 = vpack.c.bf16 %v6254, %v6253
    %v6260 = vunpack.c.l.b16 %v4711
    %v6261 = vunpack.c.l.b16 %v4712
    %v6262 = vunpack.c.l.b16 %v4713
    %v6263 = vunpack.c.l.b16 %v4714
    %v6264 = vpack.c.b16 %v6261, %v6260
    %v6265 = vpack.c.b16 %v6263, %v6262
    %v6269 = vsel %vm412, %v6255, 0
    %6271 = vmatprep.subr.bf16.mxu0 0
    %6272 = vmatpush1.bf16.msra.mxu0 %v6264
    %6273 = vmatprep.subr.bf16.mxu0 0
    %6274 = vmatpush1.bf16.msra.mxu0 %v6265
    %6275 = vmatprep.subr.bf16.mxu0 0
    %6276 = vmatpush1.bf16.msra.mxu0 0
    %6277 = vmatprep.subr.bf16.mxu0 0
    %6278 = vmatpush1.bf16.msra.mxu0 0
    %6279 = vmatprep.subr.bf16.mxu0 0
    %6280 = vmatpush1.bf16.msra.mxu0 0
    %6281 = vmatprep.subr.bf16.mxu0 0
    %6282 = vmatpush1.bf16.msra.mxu0 0
    %6283 = vmatprep.subr.bf16.mxu0 0
    %6284 = vmatpush1.bf16.msra.mxu0 0
    %6285 = vmatprep.subr.bf16.mxu0 0
    %6286 = vmatpush1.bf16.msra.mxu0 0
    %6287 = vmatprep.subr.bf16.mxu0 0
    %6288 = vmatpush1.bf16.msra.mxu0 0
    %6289 = vmatprep.subr.bf16.mxu0 0
    %6290 = vmatpush1.bf16.msra.mxu0 0
    %6291 = vmatprep.subr.bf16.mxu0 0
    %6292 = vmatpush1.bf16.msra.mxu0 0
    %6293 = vmatprep.subr.bf16.mxu0 0
    %6294 = vmatpush1.bf16.msra.mxu0 0
    %6295 = vmatprep.subr.bf16.mxu0 0
    %6296 = vmatpush1.bf16.msra.mxu0 0
    %6297 = vmatprep.subr.bf16.mxu0 0
    %6298 = vmatpush1.bf16.msra.mxu0 0
    %6299 = vmatprep.subr.bf16.mxu0 0
    %6300 = vmatpush1.bf16.msra.mxu0 0
    %6301 = vmatprep.subr.bf16.mxu0 0
    %6302 = vmatpush1.bf16.msra.mxu0 0
    %6303 = vmatprep.mubr.bf16.mxu0 0
    %6304 = vmatmul.mubr.bf16.gmra.mrb[0].mxu0 %v6269
    %v6305 = vpop.f32.mrb[0].mxu0
    %v6306 = vadd.f32 0.0, %v6305
    %v6307 = vpop.f32.mrb[0].mxu0
    %v6308 = vpop.f32.mrb[0].mxu0
    %v6309 = vadd.f32 0.0, %v6308
    %v6310 = vpop.f32.mrb[0].mxu0
    %6311 = vdwg.mxu0
    %v6316 = vunpack.c.l.b16 %v4716
    %v6317 = vunpack.c.l.b16 %v4717
    %v6318 = vunpack.c.l.b16 %v4718
    %v6319 = vunpack.c.l.b16 %v4719
    %v6320 = vpack.c.b16 %v6317, %v6316
    %v6321 = vpack.c.b16 %v6319, %v6318
    %6324 = vmatprep.subr.bf16.mxu0 0
    %6325 = vmatpush1.bf16.msra.mxu0 %v6320
    %6326 = vmatprep.subr.bf16.mxu0 0
    %6327 = vmatpush1.bf16.msra.mxu0 %v6321
    %6328 = vmatprep.subr.bf16.mxu0 0
    %6329 = vmatpush1.bf16.msra.mxu0 0
    %6330 = vmatprep.subr.bf16.mxu0 0
    %6331 = vmatpush1.bf16.msra.mxu0 0
    %6332 = vmatprep.subr.bf16.mxu0 0
    %6333 = vmatpush1.bf16.msra.mxu0 0
    %6334 = vmatprep.subr.bf16.mxu0 0
    %6335 = vmatpush1.bf16.msra.mxu0 0
    %6336 = vmatprep.subr.bf16.mxu0 0
    %6337 = vmatpush1.bf16.msra.mxu0 0
    %6338 = vmatprep.subr.bf16.mxu0 0
    %6339 = vmatpush1.bf16.msra.mxu0 0
    %6340 = vmatprep.subr.bf16.mxu0 0
    %6341 = vmatpush1.bf16.msra.mxu0 0
    %6342 = vmatprep.subr.bf16.mxu0 0
    %6343 = vmatpush1.bf16.msra.mxu0 0
    %6344 = vmatprep.subr.bf16.mxu0 0
    %6345 = vmatpush1.bf16.msra.mxu0 0
    %6346 = vmatprep.subr.bf16.mxu0 0
    %6347 = vmatpush1.bf16.msra.mxu0 0
    %6348 = vmatprep.subr.bf16.mxu0 0
    %6349 = vmatpush1.bf16.msra.mxu0 0
    %6350 = vmatprep.subr.bf16.mxu0 0
    %6351 = vmatpush1.bf16.msra.mxu0 0
    %6352 = vmatprep.subr.bf16.mxu0 0
    %6353 = vmatpush1.bf16.msra.mxu0 0
    %6354 = vmatprep.subr.bf16.mxu0 0
    %6355 = vmatpush1.bf16.msra.mxu0 0
    %6356 = vmatprep.mubr.bf16.mxu0 0
    %6357 = vmatmul.mubr.bf16.gmra.mrb[0].mxu0 %v1699
    %v6358 = vpop.f32.mrb[0].mxu0
    %v6359 = vadd.f32 0.0, %v6358
    %v6360 = vpop.f32.mrb[0].mxu0
    %v6361 = vpop.f32.mrb[0].mxu0
    %v6362 = vadd.f32 0.0, %v6361
    %v6363 = vpop.f32.mrb[0].mxu0
    %6364 = vdwg.mxu0
    %v6365 = vpack.c.bf16 %v6306, %v6306
    %v6366 = vpack.c.bf16 %v6309, %v6309
    %v6367 = vpack.c.bf16 %v6359, %v6359
    %v6368 = vpack.c.bf16 %v6362, %v6362
    %v6370 = vsel %vm462, %v6365, 0
    %v6373 = vsel %vm462, %v6367, 0
    %6375 = vmatprep.subr.bf16.mxu0 0
    %6376 = vmatpush1.bf16.xpose.msra.mxu0 %v6373
    %6377 = vmatprep.subr.bf16.mxu0 0
    %6378 = vmatpush1.bf16.xpose.msra.mxu0 0
    %6379 = vmatprep.subr.bf16.mxu0 0
    %6380 = vmatpush1.bf16.xpose.msra.mxu0 0
    %6381 = vmatprep.subr.bf16.mxu0 0
    %6382 = vmatpush1.bf16.xpose.msra.mxu0 0
    %6383 = vmatprep.subr.bf16.mxu0 0
    %6384 = vmatpush1.bf16.xpose.msra.mxu0 0
    %6385 = vmatprep.subr.bf16.mxu0 0
    %6386 = vmatpush1.bf16.xpose.msra.mxu0 0
    %6387 = vmatprep.subr.bf16.mxu0 0
    %6388 = vmatpush1.bf16.xpose.msra.mxu0 0
    %6389 = vmatprep.subr.bf16.mxu0 0
    %6390 = vmatpush1.bf16.xpose.msra.mxu0 0
    %6391 = vmatprep.subr.bf16.mxu0 0
    %6392 = vmatpush1.bf16.xpose.msra.mxu0 0
    %6393 = vmatprep.subr.bf16.mxu0 0
    %6394 = vmatpush1.bf16.xpose.msra.mxu0 0
    %6395 = vmatprep.subr.bf16.mxu0 0
    %6396 = vmatpush1.bf16.xpose.msra.mxu0 0
    %6397 = vmatprep.subr.bf16.mxu0 0
    %6398 = vmatpush1.bf16.xpose.msra.mxu0 0
    %6399 = vmatprep.subr.bf16.mxu0 0
    %6400 = vmatpush1.bf16.xpose.msra.mxu0 0
    %6401 = vmatprep.subr.bf16.mxu0 0
    %6402 = vmatpush1.bf16.xpose.msra.mxu0 0
    %6403 = vmatprep.subr.bf16.mxu0 0
    %6404 = vmatpush1.bf16.xpose.msra.mxu0 0
    %6405 = vmatprep.subr.bf16.mxu0 0
    %6406 = vmatpush1.bf16.xpose.msra.mxu0 0
    %6407 = vmatprep.mubr.bf16.mxu0 0
    %6408 = vmatmul.mubr.bf16.gmra.mrb[0].mxu0 %v6370
    %v6409 = vpop.f32.mrb[0].mxu0
    %v6410 = vadd.f32 0.0, %v6409
    %v6411 = vpop.f32.mrb[0].mxu0
    %v6412 = vpop.f32.mrb[0].mxu0
    %v6413 = vpop.f32.mrb[0].mxu0
    %6414 = vdwg.mxu0
    %v6416 = vsel %vm462, %v6366, 0
    %v6419 = vsel %vm462, %v6368, 0
    %6421 = vmatprep.subr.bf16.mxu0 0
    %6422 = vmatpush1.bf16.xpose.msra.mxu0 %v6419
    %6423 = vmatprep.subr.bf16.mxu0 0
    %6424 = vmatpush1.bf16.xpose.msra.mxu0 0
    %6425 = vmatprep.subr.bf16.mxu0 0
    %6426 = vmatpush1.bf16.xpose.msra.mxu0 0
    %6427 = vmatprep.subr.bf16.mxu0 0
    %6428 = vmatpush1.bf16.xpose.msra.mxu0 0
    %6429 = vmatprep.subr.bf16.mxu0 0
    %6430 = vmatpush1.bf16.xpose.msra.mxu0 0
    %6431 = vmatprep.subr.bf16.mxu0 0
    %6432 = vmatpush1.bf16.xpose.msra.mxu0 0
    %6433 = vmatprep.subr.bf16.mxu0 0
    %6434 = vmatpush1.bf16.xpose.msra.mxu0 0
    %6435 = vmatprep.subr.bf16.mxu0 0
    %6436 = vmatpush1.bf16.xpose.msra.mxu0 0
    %6437 = vmatprep.subr.bf16.mxu0 0
    %6438 = vmatpush1.bf16.xpose.msra.mxu0 0
    %6439 = vmatprep.subr.bf16.mxu0 0
    %6440 = vmatpush1.bf16.xpose.msra.mxu0 0
    %6441 = vmatprep.subr.bf16.mxu0 0
    %6442 = vmatpush1.bf16.xpose.msra.mxu0 0
    %6443 = vmatprep.subr.bf16.mxu0 0
    %6444 = vmatpush1.bf16.xpose.msra.mxu0 0
    %6445 = vmatprep.subr.bf16.mxu0 0
    %6446 = vmatpush1.bf16.xpose.msra.mxu0 0
    %6447 = vmatprep.subr.bf16.mxu0 0
    %6448 = vmatpush1.bf16.xpose.msra.mxu0 0
    %6449 = vmatprep.subr.bf16.mxu0 0
    %6450 = vmatpush1.bf16.xpose.msra.mxu0 0
    %6451 = vmatprep.subr.bf16.mxu0 0
    %6452 = vmatpush1.bf16.xpose.msra.mxu0 0
    %6453 = vmatprep.mubr.bf16.mxu0 0
    %6454 = vmatmul.mubr.bf16.gmra.mrb[0].mxu0 %v6416
    %v6455 = vpop.f32.mrb[0].mxu0
    %v6456 = vadd.f32 0.0, %v6455
    %v6457 = vpop.f32.mrb[0].mxu0
    %v6458 = vpop.f32.mrb[0].mxu0
    %v6459 = vpop.f32.mrb[0].mxu0
    %6460 = vdwg.mxu0
    %v6461 = vmul.f32 %v6410, 0.35355338
    %v6462 = vmul.f32 %v6456, 0.35355338
    %v6463 = vadd.f32 %v6461, %v79
    %v6464 = vadd.f32 %v6462, %v79
    %v6465 = vsel %vm462, %v6463, -inf
    %6466 = vmax.xlane.f32.xlu0 %v6465
    %v6467 = vpop.xlane.xlu0 %6466
    %v6468 = vsel %vm462, %v6464, -inf
    %6469 = vmax.xlane.f32.xlu0 %v6468
    %v6470 = vpop.xlane.xlu0 %6469
    %v6471 = vsub.f32 %v6463, %v6467
    %v6472 = vsub.f32 %v6464, %v6470
    %v6473 = vmul.f32 %v6471, 1.442695
    %v6474 = vpow.pop %v6473
    %v6475 = vmul.f32 %v6472, 1.442695
    %v6476 = vpow.pop %v6475
    %v6477 = vsel %vm462, %v6474, 0.0
    %6478 = vadd.xlane.f32.xlu0 %v6477
    %v6479 = vpop.xlane.xlu0 %6478
    %v6480 = vsel %vm462, %v6476, 0.0
    %6481 = vadd.xlane.f32.xlu0 %v6480
    %v6482 = vpop.xlane.xlu0 %6481
    %v6483 = vrcp.pop %v6479
    %v6484 = vmul.f32 %v6474, %v6483
    %v6485 = vrcp.pop %v6482
    %v6486 = vmul.f32 %v6476, %v6485
    %v6487 = vpack.c.bf16 %v6484, %v6484
    %v6488 = vpack.c.bf16 %v6486, %v6486
    %6490 = vrot.lane.b32.xlu0 %v6367, 96
    %v6491 = vpop.permute.xlu0 %6490
    %v6493 = vsel %vm462, %v6487, 0
    %v6496 = vsel %vm591, %v6491, 0
    %6498 = vmatprep.subr.bf16.mxu0 0
    %6499 = vmatpush1.bf16.msra.mxu0 %v6496
    %6500 = vmatprep.subr.bf16.mxu0 0
    %6501 = vmatpush1.bf16.msra.mxu0 0
    %6502 = vmatprep.subr.bf16.mxu0 0
    %6503 = vmatpush1.bf16.msra.mxu0 0
    %6504 = vmatprep.subr.bf16.mxu0 0
    %6505 = vmatpush1.bf16.msra.mxu0 0
    %6506 = vmatprep.subr.bf16.mxu0 0
    %6507 = vmatpush1.bf16.msra.mxu0 0
    %6508 = vmatprep.subr.bf16.mxu0 0
    %6509 = vmatpush1.bf16.msra.mxu0 0
    %6510 = vmatprep.subr.bf16.mxu0 0
    %6511 = vmatpush1.bf16.msra.mxu0 0
    %6512 = vmatprep.subr.bf16.mxu0 0
    %6513 = vmatpush1.bf16.msra.mxu0 0
    %6514 = vmatprep.subr.bf16.mxu0 0
    %6515 = vmatpush1.bf16.msra.mxu0 0
    %6516 = vmatprep.subr.bf16.mxu0 0
    %6517 = vmatpush1.bf16.msra.mxu0 0
    %6518 = vmatprep.subr.bf16.mxu0 0
    %6519 = vmatpush1.bf16.msra.mxu0 0
    %6520 = vmatprep.subr.bf16.mxu0 0
    %6521 = vmatpush1.bf16.msra.mxu0 0
    %6522 = vmatprep.subr.bf16.mxu0 0
    %6523 = vmatpush1.bf16.msra.mxu0 0
    %6524 = vmatprep.subr.bf16.mxu0 0
    %6525 = vmatpush1.bf16.msra.mxu0 0
    %6526 = vmatprep.subr.bf16.mxu0 0
    %6527 = vmatpush1.bf16.msra.mxu0 0
    %6528 = vmatprep.subr.bf16.mxu0 0
    %6529 = vmatpush1.bf16.msra.mxu0 0
    %6530 = vmatprep.mubr.bf16.mxu0 0
    %6531 = vmatmul.mubr.bf16.gmra.mrb[0].mxu0 %v6493
    %v6532 = vpop.f32.mrb[0].mxu0
    %v6533 = vadd.f32 0.0, %v6532
    %v6534 = vpop.f32.mrb[0].mxu0
    %v6535 = vpop.f32.mrb[0].mxu0
    %v6536 = vpop.f32.mrb[0].mxu0
    %6537 = vdwg.mxu0
    %6539 = vrot.lane.b32.xlu0 %v6368, 96
    %v6540 = vpop.permute.xlu0 %6539
    %v6542 = vsel %vm462, %v6488, 0
    %v6545 = vsel %vm591, %v6540, 0
    %6547 = vmatprep.subr.bf16.mxu0 0
    %6548 = vmatpush1.bf16.msra.mxu0 %v6545
    %6549 = vmatprep.subr.bf16.mxu0 0
    %6550 = vmatpush1.bf16.msra.mxu0 0
    %6551 = vmatprep.subr.bf16.mxu0 0
    %6552 = vmatpush1.bf16.msra.mxu0 0
    %6553 = vmatprep.subr.bf16.mxu0 0
    %6554 = vmatpush1.bf16.msra.mxu0 0
    %6555 = vmatprep.subr.bf16.mxu0 0
    %6556 = vmatpush1.bf16.msra.mxu0 0
    %6557 = vmatprep.subr.bf16.mxu0 0
    %6558 = vmatpush1.bf16.msra.mxu0 0
    %6559 = vmatprep.subr.bf16.mxu0 0
    %6560 = vmatpush1.bf16.msra.mxu0 0
    %6561 = vmatprep.subr.bf16.mxu0 0
    %6562 = vmatpush1.bf16.msra.mxu0 0
    %6563 = vmatprep.subr.bf16.mxu0 0
    %6564 = vmatpush1.bf16.msra.mxu0 0
    %6565 = vmatprep.subr.bf16.mxu0 0
    %6566 = vmatpush1.bf16.msra.mxu0 0
    %6567 = vmatprep.subr.bf16.mxu0 0
    %6568 = vmatpush1.bf16.msra.mxu0 0
    %6569 = vmatprep.subr.bf16.mxu0 0
    %6570 = vmatpush1.bf16.msra.mxu0 0
    %6571 = vmatprep.subr.bf16.mxu0 0
    %6572 = vmatpush1.bf16.msra.mxu0 0
    %6573 = vmatprep.subr.bf16.mxu0 0
    %6574 = vmatpush1.bf16.msra.mxu0 0
    %6575 = vmatprep.subr.bf16.mxu0 0
    %6576 = vmatpush1.bf16.msra.mxu0 0
    %6577 = vmatprep.subr.bf16.mxu0 0
    %6578 = vmatpush1.bf16.msra.mxu0 0
    %6579 = vmatprep.mubr.bf16.mxu0 0
    %6580 = vmatmul.mubr.bf16.gmra.mrb[0].mxu0 %v6542
    %v6581 = vpop.f32.mrb[0].mxu0
    %v6582 = vadd.f32 0.0, %v6581
    %v6583 = vpop.f32.mrb[0].mxu0
    %v6584 = vpop.f32.mrb[0].mxu0
    %v6585 = vpop.f32.mrb[0].mxu0
    %6586 = vdwg.mxu0
    %v6587 = vpack.c.bf16 %v6533, %v6533
    %v6588 = vpack.c.bf16 %v6582, %v6582
    %6590 = vrot.lane.b32.xlu0 %v6365, 120
    %v6591 = vpop.permute.xlu0 %6590
    %6592 = vrot.lane.b32.xlu0 %v6367, 120
    %v6593 = vpop.permute.xlu0 %6592
    %v6595 = vsel %vm462, %v6591, 0
    %v6598 = vsel %vm462, %v6593, 0
    %6600 = vmatprep.subr.bf16.mxu0 0
    %6601 = vmatpush1.bf16.xpose.msra.mxu0 %v6598
    %6602 = vmatprep.subr.bf16.mxu0 0
    %6603 = vmatpush1.bf16.xpose.msra.mxu0 0
    %6604 = vmatprep.subr.bf16.mxu0 0
    %6605 = vmatpush1.bf16.xpose.msra.mxu0 0
    %6606 = vmatprep.subr.bf16.mxu0 0
    %6607 = vmatpush1.bf16.xpose.msra.mxu0 0
    %6608 = vmatprep.subr.bf16.mxu0 0
    %6609 = vmatpush1.bf16.xpose.msra.mxu0 0
    %6610 = vmatprep.subr.bf16.mxu0 0
    %6611 = vmatpush1.bf16.xpose.msra.mxu0 0
    %6612 = vmatprep.subr.bf16.mxu0 0
    %6613 = vmatpush1.bf16.xpose.msra.mxu0 0
    %6614 = vmatprep.subr.bf16.mxu0 0
    %6615 = vmatpush1.bf16.xpose.msra.mxu0 0
    %6616 = vmatprep.subr.bf16.mxu0 0
    %6617 = vmatpush1.bf16.xpose.msra.mxu0 0
    %6618 = vmatprep.subr.bf16.mxu0 0
    %6619 = vmatpush1.bf16.xpose.msra.mxu0 0
    %6620 = vmatprep.subr.bf16.mxu0 0
    %6621 = vmatpush1.bf16.xpose.msra.mxu0 0
    %6622 = vmatprep.subr.bf16.mxu0 0
    %6623 = vmatpush1.bf16.xpose.msra.mxu0 0
    %6624 = vmatprep.subr.bf16.mxu0 0
    %6625 = vmatpush1.bf16.xpose.msra.mxu0 0
    %6626 = vmatprep.subr.bf16.mxu0 0
    %6627 = vmatpush1.bf16.xpose.msra.mxu0 0
    %6628 = vmatprep.subr.bf16.mxu0 0
    %6629 = vmatpush1.bf16.xpose.msra.mxu0 0
    %6630 = vmatprep.subr.bf16.mxu0 0
    %6631 = vmatpush1.bf16.xpose.msra.mxu0 0
    %6632 = vmatprep.mubr.bf16.mxu0 0
    %6633 = vmatmul.mubr.bf16.gmra.mrb[0].mxu0 %v6595
    %v6634 = vpop.f32.mrb[0].mxu0
    %v6635 = vadd.f32 0.0, %v6634
    %v6636 = vpop.f32.mrb[0].mxu0
    %v6637 = vpop.f32.mrb[0].mxu0
    %v6638 = vpop.f32.mrb[0].mxu0
    %6639 = vdwg.mxu0
    %6641 = vrot.lane.b32.xlu0 %v6366, 120
    %v6642 = vpop.permute.xlu0 %6641
    %6643 = vrot.lane.b32.xlu0 %v6368, 120
    %v6644 = vpop.permute.xlu0 %6643
    %v6646 = vsel %vm462, %v6642, 0
    %v6649 = vsel %vm462, %v6644, 0
    %6651 = vmatprep.subr.bf16.mxu0 0
    %6652 = vmatpush1.bf16.xpose.msra.mxu0 %v6649
    %6653 = vmatprep.subr.bf16.mxu0 0
    %6654 = vmatpush1.bf16.xpose.msra.mxu0 0
    %6655 = vmatprep.subr.bf16.mxu0 0
    %6656 = vmatpush1.bf16.xpose.msra.mxu0 0
    %6657 = vmatprep.subr.bf16.mxu0 0
    %6658 = vmatpush1.bf16.xpose.msra.mxu0 0
    %6659 = vmatprep.subr.bf16.mxu0 0
    %6660 = vmatpush1.bf16.xpose.msra.mxu0 0
    %6661 = vmatprep.subr.bf16.mxu0 0
    %6662 = vmatpush1.bf16.xpose.msra.mxu0 0
    %6663 = vmatprep.subr.bf16.mxu0 0
    %6664 = vmatpush1.bf16.xpose.msra.mxu0 0
    %6665 = vmatprep.subr.bf16.mxu0 0
    %6666 = vmatpush1.bf16.xpose.msra.mxu0 0
    %6667 = vmatprep.subr.bf16.mxu0 0
    %6668 = vmatpush1.bf16.xpose.msra.mxu0 0
    %6669 = vmatprep.subr.bf16.mxu0 0
    %6670 = vmatpush1.bf16.xpose.msra.mxu0 0
    %6671 = vmatprep.subr.bf16.mxu0 0
    %6672 = vmatpush1.bf16.xpose.msra.mxu0 0
    %6673 = vmatprep.subr.bf16.mxu0 0
    %6674 = vmatpush1.bf16.xpose.msra.mxu0 0
    %6675 = vmatprep.subr.bf16.mxu0 0
    %6676 = vmatpush1.bf16.xpose.msra.mxu0 0
    %6677 = vmatprep.subr.bf16.mxu0 0
    %6678 = vmatpush1.bf16.xpose.msra.mxu0 0
    %6679 = vmatprep.subr.bf16.mxu0 0
    %6680 = vmatpush1.bf16.xpose.msra.mxu0 0
    %6681 = vmatprep.subr.bf16.mxu0 0
    %6682 = vmatpush1.bf16.xpose.msra.mxu0 0
    %6683 = vmatprep.mubr.bf16.mxu0 0
    %6684 = vmatmul.mubr.bf16.gmra.mrb[0].mxu0 %v6646
    %v6685 = vpop.f32.mrb[0].mxu0
    %v6686 = vadd.f32 0.0, %v6685
    %v6687 = vpop.f32.mrb[0].mxu0
    %v6688 = vpop.f32.mrb[0].mxu0
    %v6689 = vpop.f32.mrb[0].mxu0
    %6690 = vdwg.mxu0
    %v6691 = vmul.f32 %v6635, 0.35355338
    %v6692 = vmul.f32 %v6686, 0.35355338
    %v6693 = vadd.f32 %v6691, %v79
    %v6694 = vadd.f32 %v6692, %v79
    %v6695 = vsel %vm462, %v6693, -inf
    %6696 = vmax.xlane.f32.xlu0 %v6695
    %v6697 = vpop.xlane.xlu0 %6696
    %v6698 = vsel %vm462, %v6694, -inf
    %6699 = vmax.xlane.f32.xlu0 %v6698
    %v6700 = vpop.xlane.xlu0 %6699
    %v6701 = vsub.f32 %v6693, %v6697
    %v6702 = vsub.f32 %v6694, %v6700
    %v6703 = vmul.f32 %v6701, 1.442695
    %v6704 = vpow.pop %v6703
    %v6705 = vmul.f32 %v6702, 1.442695
    %v6706 = vpow.pop %v6705
    %v6707 = vsel %vm462, %v6704, 0.0
    %6708 = vadd.xlane.f32.xlu0 %v6707
    %v6709 = vpop.xlane.xlu0 %6708
    %v6710 = vsel %vm462, %v6706, 0.0
    %6711 = vadd.xlane.f32.xlu0 %v6710
    %v6712 = vpop.xlane.xlu0 %6711
    %v6713 = vrcp.pop %v6709
    %v6714 = vmul.f32 %v6704, %v6713
    %v6715 = vrcp.pop %v6712
    %v6716 = vmul.f32 %v6706, %v6715
    %v6717 = vpack.c.bf16 %v6714, %v6714
    %v6718 = vpack.c.bf16 %v6716, %v6716
    %6719 = vrot.lane.b32.xlu0 %v6367, 88
    %v6720 = vpop.permute.xlu0 %6719
    %v6722 = vsel %vm462, %v6717, 0
    %v6725 = vsel %vm591, %v6720, 0
    %6727 = vmatprep.subr.bf16.mxu0 0
    %6728 = vmatpush1.bf16.msra.mxu0 %v6725
    %6729 = vmatprep.subr.bf16.mxu0 0
    %6730 = vmatpush1.bf16.msra.mxu0 0
    %6731 = vmatprep.subr.bf16.mxu0 0
    %6732 = vmatpush1.bf16.msra.mxu0 0
    %6733 = vmatprep.subr.bf16.mxu0 0
    %6734 = vmatpush1.bf16.msra.mxu0 0
    %6735 = vmatprep.subr.bf16.mxu0 0
    %6736 = vmatpush1.bf16.msra.mxu0 0
    %6737 = vmatprep.subr.bf16.mxu0 0
    %6738 = vmatpush1.bf16.msra.mxu0 0
    %6739 = vmatprep.subr.bf16.mxu0 0
    %6740 = vmatpush1.bf16.msra.mxu0 0
    %6741 = vmatprep.subr.bf16.mxu0 0
    %6742 = vmatpush1.bf16.msra.mxu0 0
    %6743 = vmatprep.subr.bf16.mxu0 0
    %6744 = vmatpush1.bf16.msra.mxu0 0
    %6745 = vmatprep.subr.bf16.mxu0 0
    %6746 = vmatpush1.bf16.msra.mxu0 0
    %6747 = vmatprep.subr.bf16.mxu0 0
    %6748 = vmatpush1.bf16.msra.mxu0 0
    %6749 = vmatprep.subr.bf16.mxu0 0
    %6750 = vmatpush1.bf16.msra.mxu0 0
    %6751 = vmatprep.subr.bf16.mxu0 0
    %6752 = vmatpush1.bf16.msra.mxu0 0
    %6753 = vmatprep.subr.bf16.mxu0 0
    %6754 = vmatpush1.bf16.msra.mxu0 0
    %6755 = vmatprep.subr.bf16.mxu0 0
    %6756 = vmatpush1.bf16.msra.mxu0 0
    %6757 = vmatprep.subr.bf16.mxu0 0
    %6758 = vmatpush1.bf16.msra.mxu0 0
    %6759 = vmatprep.mubr.bf16.mxu0 0
    %6760 = vmatmul.mubr.bf16.gmra.mrb[0].mxu0 %v6722
    %v6761 = vpop.f32.mrb[0].mxu0
    %v6762 = vadd.f32 0.0, %v6761
    %v6763 = vpop.f32.mrb[0].mxu0
    %v6764 = vpop.f32.mrb[0].mxu0
    %v6765 = vpop.f32.mrb[0].mxu0
    %6766 = vdwg.mxu0
    %6767 = vrot.lane.b32.xlu0 %v6368, 88
    %v6768 = vpop.permute.xlu0 %6767
    %v6770 = vsel %vm462, %v6718, 0
    %v6773 = vsel %vm591, %v6768, 0
    %6775 = vmatprep.subr.bf16.mxu0 0
    %6776 = vmatpush1.bf16.msra.mxu0 %v6773
    %6777 = vmatprep.subr.bf16.mxu0 0
    %6778 = vmatpush1.bf16.msra.mxu0 0
    %6779 = vmatprep.subr.bf16.mxu0 0
    %6780 = vmatpush1.bf16.msra.mxu0 0
    %6781 = vmatprep.subr.bf16.mxu0 0
    %6782 = vmatpush1.bf16.msra.mxu0 0
    %6783 = vmatprep.subr.bf16.mxu0 0
    %6784 = vmatpush1.bf16.msra.mxu0 0
    %6785 = vmatprep.subr.bf16.mxu0 0
    %6786 = vmatpush1.bf16.msra.mxu0 0
    %6787 = vmatprep.subr.bf16.mxu0 0
    %6788 = vmatpush1.bf16.msra.mxu0 0
    %6789 = vmatprep.subr.bf16.mxu0 0
    %6790 = vmatpush1.bf16.msra.mxu0 0
    %6791 = vmatprep.subr.bf16.mxu0 0
    %6792 = vmatpush1.bf16.msra.mxu0 0
    %6793 = vmatprep.subr.bf16.mxu0 0
    %6794 = vmatpush1.bf16.msra.mxu0 0
    %6795 = vmatprep.subr.bf16.mxu0 0
    %6796 = vmatpush1.bf16.msra.mxu0 0
    %6797 = vmatprep.subr.bf16.mxu0 0
    %6798 = vmatpush1.bf16.msra.mxu0 0
    %6799 = vmatprep.subr.bf16.mxu0 0
    %6800 = vmatpush1.bf16.msra.mxu0 0
    %6801 = vmatprep.subr.bf16.mxu0 0
    %6802 = vmatpush1.bf16.msra.mxu0 0
    %6803 = vmatprep.subr.bf16.mxu0 0
    %6804 = vmatpush1.bf16.msra.mxu0 0
    %6805 = vmatprep.subr.bf16.mxu0 0
    %6806 = vmatpush1.bf16.msra.mxu0 0
    %6807 = vmatprep.mubr.bf16.mxu0 0
    %6808 = vmatmul.mubr.bf16.gmra.mrb[0].mxu0 %v6770
    %v6809 = vpop.f32.mrb[0].mxu0
    %v6810 = vadd.f32 0.0, %v6809
    %v6811 = vpop.f32.mrb[0].mxu0
    %v6812 = vpop.f32.mrb[0].mxu0
    %v6813 = vpop.f32.mrb[0].mxu0
    %6814 = vdwg.mxu0
    %v6815 = vpack.c.bf16 %v6762, %v6762
    %v6816 = vpack.c.bf16 %v6810, %v6810
    %v6819 = vunpack.c.l.b16 %v6815
    %v6820 = vunpack.c.l.b16 %v6816
    %v6821 = vpack.c.b16 %v6820, %v6819
    %v6823 = vsel %vm462, %v6821, 0
    %v6826 = vsel %vm591, %v4722, 0
    %6828 = vmatprep.subr.bf16.mxu0 0
    %6829 = vmatpush1.bf16.msra.mxu0 %v6826
    %6830 = vmatprep.subr.bf16.mxu0 0
    %6831 = vmatpush1.bf16.msra.mxu0 0
    %6832 = vmatprep.subr.bf16.mxu0 0
    %6833 = vmatpush1.bf16.msra.mxu0 0
    %6834 = vmatprep.subr.bf16.mxu0 0
    %6835 = vmatpush1.bf16.msra.mxu0 0
    %6836 = vmatprep.subr.bf16.mxu0 0
    %6837 = vmatpush1.bf16.msra.mxu0 0
    %6838 = vmatprep.subr.bf16.mxu0 0
    %6839 = vmatpush1.bf16.msra.mxu0 0
    %6840 = vmatprep.subr.bf16.mxu0 0
    %6841 = vmatpush1.bf16.msra.mxu0 0
    %6842 = vmatprep.subr.bf16.mxu0 0
    %6843 = vmatpush1.bf16.msra.mxu0 0
    %6844 = vmatprep.subr.bf16.mxu0 0
    %6845 = vmatpush1.bf16.msra.mxu0 0
    %6846 = vmatprep.subr.bf16.mxu0 0
    %6847 = vmatpush1.bf16.msra.mxu0 0
    %6848 = vmatprep.subr.bf16.mxu0 0
    %6849 = vmatpush1.bf16.msra.mxu0 0
    %6850 = vmatprep.subr.bf16.mxu0 0
    %6851 = vmatpush1.bf16.msra.mxu0 0
    %6852 = vmatprep.subr.bf16.mxu0 0
    %6853 = vmatpush1.bf16.msra.mxu0 0
    %6854 = vmatprep.subr.bf16.mxu0 0
    %6855 = vmatpush1.bf16.msra.mxu0 0
    %6856 = vmatprep.subr.bf16.mxu0 0
    %6857 = vmatpush1.bf16.msra.mxu0 0
    %6858 = vmatprep.subr.bf16.mxu0 0
    %6859 = vmatpush1.bf16.msra.mxu0 0
    %6860 = vmatprep.mubr.bf16.mxu0 0
    %6861 = vmatmul.mubr.bf16.gmra.mrb[0].mxu0 %v6823
    %v6862 = vpop.f32.mrb[0].mxu0
    %v6863 = vadd.f32 0.0, %v6862
    %v6864 = vpop.f32.mrb[0].mxu0
    %v6865 = vpop.f32.mrb[0].mxu0
    %v6866 = vadd.f32 0.0, %v6865
    %v6867 = vpop.f32.mrb[0].mxu0
    %6868 = vdwg.mxu0
    %v6871 = vunpack.c.l.b16 %v6587
    %v6872 = vunpack.c.l.b16 %v6588
    %v6873 = vpack.c.b16 %v6872, %v6871
    %v6875 = vsel %vm462, %v6873, 0
    %v6878 = vsel %vm591, %v4721, 0
    %6880 = vmatprep.subr.bf16.mxu0 0
    %6881 = vmatpush1.bf16.msra.mxu0 %v6878
    %6882 = vmatprep.subr.bf16.mxu0 0
    %6883 = vmatpush1.bf16.msra.mxu0 0
    %6884 = vmatprep.subr.bf16.mxu0 0
    %6885 = vmatpush1.bf16.msra.mxu0 0
    %6886 = vmatprep.subr.bf16.mxu0 0
    %6887 = vmatpush1.bf16.msra.mxu0 0
    %6888 = vmatprep.subr.bf16.mxu0 0
    %6889 = vmatpush1.bf16.msra.mxu0 0
    %6890 = vmatprep.subr.bf16.mxu0 0
    %6891 = vmatpush1.bf16.msra.mxu0 0
    %6892 = vmatprep.subr.bf16.mxu0 0
    %6893 = vmatpush1.bf16.msra.mxu0 0
    %6894 = vmatprep.subr.bf16.mxu0 0
    %6895 = vmatpush1.bf16.msra.mxu0 0
    %6896 = vmatprep.subr.bf16.mxu0 0
    %6897 = vmatpush1.bf16.msra.mxu0 0
    %6898 = vmatprep.subr.bf16.mxu0 0
    %6899 = vmatpush1.bf16.msra.mxu0 0
    %6900 = vmatprep.subr.bf16.mxu0 0
    %6901 = vmatpush1.bf16.msra.mxu0 0
    %6902 = vmatprep.subr.bf16.mxu0 0
    %6903 = vmatpush1.bf16.msra.mxu0 0
    %6904 = vmatprep.subr.bf16.mxu0 0
    %6905 = vmatpush1.bf16.msra.mxu0 0
    %6906 = vmatprep.subr.bf16.mxu0 0
    %6907 = vmatpush1.bf16.msra.mxu0 0
    %6908 = vmatprep.subr.bf16.mxu0 0
    %6909 = vmatpush1.bf16.msra.mxu0 0
    %6910 = vmatprep.subr.bf16.mxu0 0
    %6911 = vmatpush1.bf16.msra.mxu0 0
    %6912 = vmatprep.mubr.bf16.mxu0 0
    %6913 = vmatmul.mubr.bf16.gmra.mrb[0].mxu0 %v6875
    %v6914 = vpop.f32.mrb[0].mxu0
    %v6915 = vadd.f32 %v6863, %v6914
    %v6916 = vpop.f32.mrb[0].mxu0
    %v6917 = vpop.f32.mrb[0].mxu0
    %v6918 = vadd.f32 %v6866, %v6917
    %v6919 = vpop.f32.mrb[0].mxu0
    %6920 = vdwg.mxu0
    %6921 = vrot.lane.b32.xlu0 %v6365, 112
    %v6922 = vpop.permute.xlu0 %6921
    %6923 = vrot.lane.b32.xlu0 %v6367, 112
    %v6924 = vpop.permute.xlu0 %6923
    %v6926 = vsel %vm462, %v6922, 0
    %v6929 = vsel %vm462, %v6924, 0
    %6931 = vmatprep.subr.bf16.mxu0 0
    %6932 = vmatpush1.bf16.xpose.msra.mxu0 %v6929
    %6933 = vmatprep.subr.bf16.mxu0 0
    %6934 = vmatpush1.bf16.xpose.msra.mxu0 0
    %6935 = vmatprep.subr.bf16.mxu0 0
    %6936 = vmatpush1.bf16.xpose.msra.mxu0 0
    %6937 = vmatprep.subr.bf16.mxu0 0
    %6938 = vmatpush1.bf16.xpose.msra.mxu0 0
    %6939 = vmatprep.subr.bf16.mxu0 0
    %6940 = vmatpush1.bf16.xpose.msra.mxu0 0
    %6941 = vmatprep.subr.bf16.mxu0 0
    %6942 = vmatpush1.bf16.xpose.msra.mxu0 0
    %6943 = vmatprep.subr.bf16.mxu0 0
    %6944 = vmatpush1.bf16.xpose.msra.mxu0 0
    %6945 = vmatprep.subr.bf16.mxu0 0
    %6946 = vmatpush1.bf16.xpose.msra.mxu0 0
    %6947 = vmatprep.subr.bf16.mxu0 0
    %6948 = vmatpush1.bf16.xpose.msra.mxu0 0
    %6949 = vmatprep.subr.bf16.mxu0 0
    %6950 = vmatpush1.bf16.xpose.msra.mxu0 0
    %6951 = vmatprep.subr.bf16.mxu0 0
    %6952 = vmatpush1.bf16.xpose.msra.mxu0 0
    %6953 = vmatprep.subr.bf16.mxu0 0
    %6954 = vmatpush1.bf16.xpose.msra.mxu0 0
    %6955 = vmatprep.subr.bf16.mxu0 0
    %6956 = vmatpush1.bf16.xpose.msra.mxu0 0
    %6957 = vmatprep.subr.bf16.mxu0 0
    %6958 = vmatpush1.bf16.xpose.msra.mxu0 0
    %6959 = vmatprep.subr.bf16.mxu0 0
    %6960 = vmatpush1.bf16.xpose.msra.mxu0 0
    %6961 = vmatprep.subr.bf16.mxu0 0
    %6962 = vmatpush1.bf16.xpose.msra.mxu0 0
    %6963 = vmatprep.mubr.bf16.mxu0 0
    %6964 = vmatmul.mubr.bf16.gmra.mrb[0].mxu0 %v6926
    %v6965 = vpop.f32.mrb[0].mxu0
    %v6966 = vadd.f32 0.0, %v6965
    %v6967 = vpop.f32.mrb[0].mxu0
    %v6968 = vpop.f32.mrb[0].mxu0
    %v6969 = vpop.f32.mrb[0].mxu0
    %6970 = vdwg.mxu0
    %6971 = vrot.lane.b32.xlu0 %v6366, 112
    %v6972 = vpop.permute.xlu0 %6971
    %6973 = vrot.lane.b32.xlu0 %v6368, 112
    %v6974 = vpop.permute.xlu0 %6973
    %v6976 = vsel %vm462, %v6972, 0
    %v6979 = vsel %vm462, %v6974, 0
    %6981 = vmatprep.subr.bf16.mxu0 0
    %6982 = vmatpush1.bf16.xpose.msra.mxu0 %v6979
    %6983 = vmatprep.subr.bf16.mxu0 0
    %6984 = vmatpush1.bf16.xpose.msra.mxu0 0
    %6985 = vmatprep.subr.bf16.mxu0 0
    %6986 = vmatpush1.bf16.xpose.msra.mxu0 0
    %6987 = vmatprep.subr.bf16.mxu0 0
    %6988 = vmatpush1.bf16.xpose.msra.mxu0 0
    %6989 = vmatprep.subr.bf16.mxu0 0
    %6990 = vmatpush1.bf16.xpose.msra.mxu0 0
    %6991 = vmatprep.subr.bf16.mxu0 0
    %6992 = vmatpush1.bf16.xpose.msra.mxu0 0
    %6993 = vmatprep.subr.bf16.mxu0 0
    %6994 = vmatpush1.bf16.xpose.msra.mxu0 0
    %6995 = vmatprep.subr.bf16.mxu0 0
    %6996 = vmatpush1.bf16.xpose.msra.mxu0 0
    %6997 = vmatprep.subr.bf16.mxu0 0
    %6998 = vmatpush1.bf16.xpose.msra.mxu0 0
    %6999 = vmatprep.subr.bf16.mxu0 0
    %7000 = vmatpush1.bf16.xpose.msra.mxu0 0
    %7001 = vmatprep.subr.bf16.mxu0 0
    %7002 = vmatpush1.bf16.xpose.msra.mxu0 0
    %7003 = vmatprep.subr.bf16.mxu0 0
    %7004 = vmatpush1.bf16.xpose.msra.mxu0 0
    %7005 = vmatprep.subr.bf16.mxu0 0
    %7006 = vmatpush1.bf16.xpose.msra.mxu0 0
    %7007 = vmatprep.subr.bf16.mxu0 0
    %7008 = vmatpush1.bf16.xpose.msra.mxu0 0
    %7009 = vmatprep.subr.bf16.mxu0 0
    %7010 = vmatpush1.bf16.xpose.msra.mxu0 0
    %7011 = vmatprep.subr.bf16.mxu0 0
    %7012 = vmatpush1.bf16.xpose.msra.mxu0 0
    %7013 = vmatprep.mubr.bf16.mxu0 0
    %7014 = vmatmul.mubr.bf16.gmra.mrb[0].mxu0 %v6976
    %v7015 = vpop.f32.mrb[0].mxu0
    %v7016 = vadd.f32 0.0, %v7015
    %v7017 = vpop.f32.mrb[0].mxu0
    %v7018 = vpop.f32.mrb[0].mxu0
    %v7019 = vpop.f32.mrb[0].mxu0
    %7020 = vdwg.mxu0
    %v7021 = vmul.f32 %v6966, 0.35355338
    %v7022 = vmul.f32 %v7016, 0.35355338
    %v7023 = vadd.f32 %v7021, %v79
    %v7024 = vadd.f32 %v7022, %v79
    %v7025 = vsel %vm462, %v7023, -inf
    %7026 = vmax.xlane.f32.xlu0 %v7025
    %v7027 = vpop.xlane.xlu0 %7026
    %v7028 = vsel %vm462, %v7024, -inf
    %7029 = vmax.xlane.f32.xlu0 %v7028
    %v7030 = vpop.xlane.xlu0 %7029
    %v7031 = vsub.f32 %v7023, %v7027
    %v7032 = vsub.f32 %v7024, %v7030
    %v7033 = vmul.f32 %v7031, 1.442695
    %v7034 = vpow.pop %v7033
    %v7035 = vmul.f32 %v7032, 1.442695
    %v7036 = vpow.pop %v7035
    %v7037 = vsel %vm462, %v7034, 0.0
    %7038 = vadd.xlane.f32.xlu0 %v7037
    %v7039 = vpop.xlane.xlu0 %7038
    %v7040 = vsel %vm462, %v7036, 0.0
    %7041 = vadd.xlane.f32.xlu0 %v7040
    %v7042 = vpop.xlane.xlu0 %7041
    %v7043 = vrcp.pop %v7039
    %v7044 = vmul.f32 %v7034, %v7043
    %v7045 = vrcp.pop %v7042
    %v7046 = vmul.f32 %v7036, %v7045
    %v7047 = vpack.c.bf16 %v7044, %v7044
    %v7048 = vpack.c.bf16 %v7046, %v7046
    %7049 = vrot.lane.b32.xlu0 %v6367, 80
    %v7050 = vpop.permute.xlu0 %7049
    %v7052 = vsel %vm462, %v7047, 0
    %v7055 = vsel %vm591, %v7050, 0
    %7057 = vmatprep.subr.bf16.mxu0 0
    %7058 = vmatpush1.bf16.msra.mxu0 %v7055
    %7059 = vmatprep.subr.bf16.mxu0 0
    %7060 = vmatpush1.bf16.msra.mxu0 0
    %7061 = vmatprep.subr.bf16.mxu0 0
    %7062 = vmatpush1.bf16.msra.mxu0 0
    %7063 = vmatprep.subr.bf16.mxu0 0
    %7064 = vmatpush1.bf16.msra.mxu0 0
    %7065 = vmatprep.subr.bf16.mxu0 0
    %7066 = vmatpush1.bf16.msra.mxu0 0
    %7067 = vmatprep.subr.bf16.mxu0 0
    %7068 = vmatpush1.bf16.msra.mxu0 0
    %7069 = vmatprep.subr.bf16.mxu0 0
    %7070 = vmatpush1.bf16.msra.mxu0 0
    %7071 = vmatprep.subr.bf16.mxu0 0
    %7072 = vmatpush1.bf16.msra.mxu0 0
    %7073 = vmatprep.subr.bf16.mxu0 0
    %7074 = vmatpush1.bf16.msra.mxu0 0
    %7075 = vmatprep.subr.bf16.mxu0 0
    %7076 = vmatpush1.bf16.msra.mxu0 0
    %7077 = vmatprep.subr.bf16.mxu0 0
    %7078 = vmatpush1.bf16.msra.mxu0 0
    %7079 = vmatprep.subr.bf16.mxu0 0
    %7080 = vmatpush1.bf16.msra.mxu0 0
    %7081 = vmatprep.subr.bf16.mxu0 0
    %7082 = vmatpush1.bf16.msra.mxu0 0
    %7083 = vmatprep.subr.bf16.mxu0 0
    %7084 = vmatpush1.bf16.msra.mxu0 0
    %7085 = vmatprep.subr.bf16.mxu0 0
    %7086 = vmatpush1.bf16.msra.mxu0 0
    %7087 = vmatprep.subr.bf16.mxu0 0
    %7088 = vmatpush1.bf16.msra.mxu0 0
    %7089 = vmatprep.mubr.bf16.mxu0 0
    %7090 = vmatmul.mubr.bf16.gmra.mrb[0].mxu0 %v7052
    %v7091 = vpop.f32.mrb[0].mxu0
    %v7092 = vadd.f32 0.0, %v7091
    %v7093 = vpop.f32.mrb[0].mxu0
    %v7094 = vpop.f32.mrb[0].mxu0
    %v7095 = vpop.f32.mrb[0].mxu0
    %7096 = vdwg.mxu0
    %7097 = vrot.lane.b32.xlu0 %v6368, 80
    %v7098 = vpop.permute.xlu0 %7097
    %v7100 = vsel %vm462, %v7048, 0
    %v7103 = vsel %vm591, %v7098, 0
    %7105 = vmatprep.subr.bf16.mxu0 0
    %7106 = vmatpush1.bf16.msra.mxu0 %v7103
    %7107 = vmatprep.subr.bf16.mxu0 0
    %7108 = vmatpush1.bf16.msra.mxu0 0
    %7109 = vmatprep.subr.bf16.mxu0 0
    %7110 = vmatpush1.bf16.msra.mxu0 0
    %7111 = vmatprep.subr.bf16.mxu0 0
    %7112 = vmatpush1.bf16.msra.mxu0 0
    %7113 = vmatprep.subr.bf16.mxu0 0
    %7114 = vmatpush1.bf16.msra.mxu0 0
    %7115 = vmatprep.subr.bf16.mxu0 0
    %7116 = vmatpush1.bf16.msra.mxu0 0
    %7117 = vmatprep.subr.bf16.mxu0 0
    %7118 = vmatpush1.bf16.msra.mxu0 0
    %7119 = vmatprep.subr.bf16.mxu0 0
    %7120 = vmatpush1.bf16.msra.mxu0 0
    %7121 = vmatprep.subr.bf16.mxu0 0
    %7122 = vmatpush1.bf16.msra.mxu0 0
    %7123 = vmatprep.subr.bf16.mxu0 0
    %7124 = vmatpush1.bf16.msra.mxu0 0
    %7125 = vmatprep.subr.bf16.mxu0 0
    %7126 = vmatpush1.bf16.msra.mxu0 0
    %7127 = vmatprep.subr.bf16.mxu0 0
    %7128 = vmatpush1.bf16.msra.mxu0 0
    %7129 = vmatprep.subr.bf16.mxu0 0
    %7130 = vmatpush1.bf16.msra.mxu0 0
    %7131 = vmatprep.subr.bf16.mxu0 0
    %7132 = vmatpush1.bf16.msra.mxu0 0
    %7133 = vmatprep.subr.bf16.mxu0 0
    %7134 = vmatpush1.bf16.msra.mxu0 0
    %7135 = vmatprep.subr.bf16.mxu0 0
    %7136 = vmatpush1.bf16.msra.mxu0 0
    %7137 = vmatprep.mubr.bf16.mxu0 0
    %7138 = vmatmul.mubr.bf16.gmra.mrb[0].mxu0 %v7100
    %v7139 = vpop.f32.mrb[0].mxu0
    %v7140 = vadd.f32 0.0, %v7139
    %v7141 = vpop.f32.mrb[0].mxu0
    %v7142 = vpop.f32.mrb[0].mxu0
    %v7143 = vpop.f32.mrb[0].mxu0
    %7144 = vdwg.mxu0
    %v7145 = vpack.c.bf16 %v7092, %v7092
    %v7146 = vpack.c.bf16 %v7140, %v7140
    %v7149 = vunpack.c.l.b16 %v7145
    %v7150 = vunpack.c.l.b16 %v7146
    %v7151 = vpack.c.b16 %v7150, %v7149
    %v7153 = vsel %vm462, %v7151, 0
    %v7156 = vsel %vm591, %v4723, 0
    %7158 = vmatprep.subr.bf16.mxu0 0
    %7159 = vmatpush1.bf16.msra.mxu0 %v7156
    %7160 = vmatprep.subr.bf16.mxu0 0
    %7161 = vmatpush1.bf16.msra.mxu0 0
    %7162 = vmatprep.subr.bf16.mxu0 0
    %7163 = vmatpush1.bf16.msra.mxu0 0
    %7164 = vmatprep.subr.bf16.mxu0 0
    %7165 = vmatpush1.bf16.msra.mxu0 0
    %7166 = vmatprep.subr.bf16.mxu0 0
    %7167 = vmatpush1.bf16.msra.mxu0 0
    %7168 = vmatprep.subr.bf16.mxu0 0
    %7169 = vmatpush1.bf16.msra.mxu0 0
    %7170 = vmatprep.subr.bf16.mxu0 0
    %7171 = vmatpush1.bf16.msra.mxu0 0
    %7172 = vmatprep.subr.bf16.mxu0 0
    %7173 = vmatpush1.bf16.msra.mxu0 0
    %7174 = vmatprep.subr.bf16.mxu0 0
    %7175 = vmatpush1.bf16.msra.mxu0 0
    %7176 = vmatprep.subr.bf16.mxu0 0
    %7177 = vmatpush1.bf16.msra.mxu0 0
    %7178 = vmatprep.subr.bf16.mxu0 0
    %7179 = vmatpush1.bf16.msra.mxu0 0
    %7180 = vmatprep.subr.bf16.mxu0 0
    %7181 = vmatpush1.bf16.msra.mxu0 0
    %7182 = vmatprep.subr.bf16.mxu0 0
    %7183 = vmatpush1.bf16.msra.mxu0 0
    %7184 = vmatprep.subr.bf16.mxu0 0
    %7185 = vmatpush1.bf16.msra.mxu0 0
    %7186 = vmatprep.subr.bf16.mxu0 0
    %7187 = vmatpush1.bf16.msra.mxu0 0
    %7188 = vmatprep.subr.bf16.mxu0 0
    %7189 = vmatpush1.bf16.msra.mxu0 0
    %7190 = vmatprep.mubr.bf16.mxu0 0
    %7191 = vmatmul.mubr.bf16.gmra.mrb[0].mxu0 %v7153
    %v7192 = vpop.f32.mrb[0].mxu0
    %v7193 = vadd.f32 0.0, %v7192
    %v7194 = vpop.f32.mrb[0].mxu0
    %v7195 = vpop.f32.mrb[0].mxu0
    %v7196 = vadd.f32 0.0, %v7195
    %v7197 = vpop.f32.mrb[0].mxu0
    %7198 = vdwg.mxu0
    %v7199 = vadd.f32 %v6915, %v7193
    %v7200 = vadd.f32 %v6918, %v7196
    %7201 = vrot.lane.b32.xlu0 %v6365, 104
    %v7202 = vpop.permute.xlu0 %7201
    %7203 = vrot.lane.b32.xlu0 %v6367, 104
    %v7204 = vpop.permute.xlu0 %7203
    %v7206 = vsel %vm462, %v7202, 0
    %v7209 = vsel %vm462, %v7204, 0
    %7211 = vmatprep.subr.bf16.mxu0 0
    %7212 = vmatpush1.bf16.xpose.msra.mxu0 %v7209
    %7213 = vmatprep.subr.bf16.mxu0 0
    %7214 = vmatpush1.bf16.xpose.msra.mxu0 0
    %7215 = vmatprep.subr.bf16.mxu0 0
    %7216 = vmatpush1.bf16.xpose.msra.mxu0 0
    %7217 = vmatprep.subr.bf16.mxu0 0
    %7218 = vmatpush1.bf16.xpose.msra.mxu0 0
    %7219 = vmatprep.subr.bf16.mxu0 0
    %7220 = vmatpush1.bf16.xpose.msra.mxu0 0
    %7221 = vmatprep.subr.bf16.mxu0 0
    %7222 = vmatpush1.bf16.xpose.msra.mxu0 0
    %7223 = vmatprep.subr.bf16.mxu0 0
    %7224 = vmatpush1.bf16.xpose.msra.mxu0 0
    %7225 = vmatprep.subr.bf16.mxu0 0
    %7226 = vmatpush1.bf16.xpose.msra.mxu0 0
    %7227 = vmatprep.subr.bf16.mxu0 0
    %7228 = vmatpush1.bf16.xpose.msra.mxu0 0
    %7229 = vmatprep.subr.bf16.mxu0 0
    %7230 = vmatpush1.bf16.xpose.msra.mxu0 0
    %7231 = vmatprep.subr.bf16.mxu0 0
    %7232 = vmatpush1.bf16.xpose.msra.mxu0 0
    %7233 = vmatprep.subr.bf16.mxu0 0
    %7234 = vmatpush1.bf16.xpose.msra.mxu0 0
    %7235 = vmatprep.subr.bf16.mxu0 0
    %7236 = vmatpush1.bf16.xpose.msra.mxu0 0
    %7237 = vmatprep.subr.bf16.mxu0 0
    %7238 = vmatpush1.bf16.xpose.msra.mxu0 0
    %7239 = vmatprep.subr.bf16.mxu0 0
    %7240 = vmatpush1.bf16.xpose.msra.mxu0 0
    %7241 = vmatprep.subr.bf16.mxu0 0
    %7242 = vmatpush1.bf16.xpose.msra.mxu0 0
    %7243 = vmatprep.mubr.bf16.mxu0 0
    %7244 = vmatmul.mubr.bf16.gmra.mrb[0].mxu0 %v7206
    %v7245 = vpop.f32.mrb[0].mxu0
    %v7246 = vadd.f32 0.0, %v7245
    %v7247 = vpop.f32.mrb[0].mxu0
    %v7248 = vpop.f32.mrb[0].mxu0
    %v7249 = vpop.f32.mrb[0].mxu0
    %7250 = vdwg.mxu0
    %7251 = vrot.lane.b32.xlu0 %v6366, 104
    %v7252 = vpop.permute.xlu0 %7251
    %7253 = vrot.lane.b32.xlu0 %v6368, 104
    %v7254 = vpop.permute.xlu0 %7253
    %v7256 = vsel %vm462, %v7252, 0
    %v7259 = vsel %vm462, %v7254, 0
    %7261 = vmatprep.subr.bf16.mxu0 0
    %7262 = vmatpush1.bf16.xpose.msra.mxu0 %v7259
    %7263 = vmatprep.subr.bf16.mxu0 0
    %7264 = vmatpush1.bf16.xpose.msra.mxu0 0
    %7265 = vmatprep.subr.bf16.mxu0 0
    %7266 = vmatpush1.bf16.xpose.msra.mxu0 0
    %7267 = vmatprep.subr.bf16.mxu0 0
    %7268 = vmatpush1.bf16.xpose.msra.mxu0 0
    %7269 = vmatprep.subr.bf16.mxu0 0
    %7270 = vmatpush1.bf16.xpose.msra.mxu0 0
    %7271 = vmatprep.subr.bf16.mxu0 0
    %7272 = vmatpush1.bf16.xpose.msra.mxu0 0
    %7273 = vmatprep.subr.bf16.mxu0 0
    %7274 = vmatpush1.bf16.xpose.msra.mxu0 0
    %7275 = vmatprep.subr.bf16.mxu0 0
    %7276 = vmatpush1.bf16.xpose.msra.mxu0 0
    %7277 = vmatprep.subr.bf16.mxu0 0
    %7278 = vmatpush1.bf16.xpose.msra.mxu0 0
    %7279 = vmatprep.subr.bf16.mxu0 0
    %7280 = vmatpush1.bf16.xpose.msra.mxu0 0
    %7281 = vmatprep.subr.bf16.mxu0 0
    %7282 = vmatpush1.bf16.xpose.msra.mxu0 0
    %7283 = vmatprep.subr.bf16.mxu0 0
    %7284 = vmatpush1.bf16.xpose.msra.mxu0 0
    %7285 = vmatprep.subr.bf16.mxu0 0
    %7286 = vmatpush1.bf16.xpose.msra.mxu0 0
    %7287 = vmatprep.subr.bf16.mxu0 0
    %7288 = vmatpush1.bf16.xpose.msra.mxu0 0
    %7289 = vmatprep.subr.bf16.mxu0 0
    %7290 = vmatpush1.bf16.xpose.msra.mxu0 0
    %7291 = vmatprep.subr.bf16.mxu0 0
    %7292 = vmatpush1.bf16.xpose.msra.mxu0 0
    %7293 = vmatprep.mubr.bf16.mxu0 0
    %7294 = vmatmul.mubr.bf16.gmra.mrb[0].mxu0 %v7256
    %v7295 = vpop.f32.mrb[0].mxu0
    %v7296 = vadd.f32 0.0, %v7295
    %v7297 = vpop.f32.mrb[0].mxu0
    %v7298 = vpop.f32.mrb[0].mxu0
    %v7299 = vpop.f32.mrb[0].mxu0
    %7300 = vdwg.mxu0
    %v7301 = vmul.f32 %v7246, 0.35355338
    %v7302 = vmul.f32 %v7296, 0.35355338
    %v7303 = vadd.f32 %v7301, %v79
    %v7304 = vadd.f32 %v7302, %v79
    %v7305 = vsel %vm462, %v7303, -inf
    %7306 = vmax.xlane.f32.xlu0 %v7305
    %v7307 = vpop.xlane.xlu0 %7306
    %v7308 = vsel %vm462, %v7304, -inf
    %7309 = vmax.xlane.f32.xlu0 %v7308
    %v7310 = vpop.xlane.xlu0 %7309
    %v7311 = vsub.f32 %v7303, %v7307
    %v7312 = vsub.f32 %v7304, %v7310
    %v7313 = vmul.f32 %v7311, 1.442695
    %v7314 = vpow.pop %v7313
    %v7315 = vmul.f32 %v7312, 1.442695
    %v7316 = vpow.pop %v7315
    %v7317 = vsel %vm462, %v7314, 0.0
    %7318 = vadd.xlane.f32.xlu0 %v7317
    %v7319 = vpop.xlane.xlu0 %7318
    %v7320 = vsel %vm462, %v7316, 0.0
    %7321 = vadd.xlane.f32.xlu0 %v7320
    %v7322 = vpop.xlane.xlu0 %7321
    %v7323 = vrcp.pop %v7319
    %v7324 = vmul.f32 %v7314, %v7323
    %v7325 = vrcp.pop %v7322
    %v7326 = vmul.f32 %v7316, %v7325
    %v7327 = vpack.c.bf16 %v7324, %v7324
    %v7328 = vpack.c.bf16 %v7326, %v7326
    %7329 = vrot.lane.b32.xlu0 %v6367, 72
    %v7330 = vpop.permute.xlu0 %7329
    %v7332 = vsel %vm462, %v7327, 0
    %v7335 = vsel %vm591, %v7330, 0
    %7337 = vmatprep.subr.bf16.mxu0 0
    %7338 = vmatpush1.bf16.msra.mxu0 %v7335
    %7339 = vmatprep.subr.bf16.mxu0 0
    %7340 = vmatpush1.bf16.msra.mxu0 0
    %7341 = vmatprep.subr.bf16.mxu0 0
    %7342 = vmatpush1.bf16.msra.mxu0 0
    %7343 = vmatprep.subr.bf16.mxu0 0
    %7344 = vmatpush1.bf16.msra.mxu0 0
    %7345 = vmatprep.subr.bf16.mxu0 0
    %7346 = vmatpush1.bf16.msra.mxu0 0
    %7347 = vmatprep.subr.bf16.mxu0 0
    %7348 = vmatpush1.bf16.msra.mxu0 0
    %7349 = vmatprep.subr.bf16.mxu0 0
    %7350 = vmatpush1.bf16.msra.mxu0 0
    %7351 = vmatprep.subr.bf16.mxu0 0
    %7352 = vmatpush1.bf16.msra.mxu0 0
    %7353 = vmatprep.subr.bf16.mxu0 0
    %7354 = vmatpush1.bf16.msra.mxu0 0
    %7355 = vmatprep.subr.bf16.mxu0 0
    %7356 = vmatpush1.bf16.msra.mxu0 0
    %7357 = vmatprep.subr.bf16.mxu0 0
    %7358 = vmatpush1.bf16.msra.mxu0 0
    %7359 = vmatprep.subr.bf16.mxu0 0
    %7360 = vmatpush1.bf16.msra.mxu0 0
    %7361 = vmatprep.subr.bf16.mxu0 0
    %7362 = vmatpush1.bf16.msra.mxu0 0
    %7363 = vmatprep.subr.bf16.mxu0 0
    %7364 = vmatpush1.bf16.msra.mxu0 0
    %7365 = vmatprep.subr.bf16.mxu0 0
    %7366 = vmatpush1.bf16.msra.mxu0 0
    %7367 = vmatprep.subr.bf16.mxu0 0
    %7368 = vmatpush1.bf16.msra.mxu0 0
    %7369 = vmatprep.mubr.bf16.mxu0 0
    %7370 = vmatmul.mubr.bf16.gmra.mrb[0].mxu0 %v7332
    %v7371 = vpop.f32.mrb[0].mxu0
    %v7372 = vadd.f32 0.0, %v7371
    %v7373 = vpop.f32.mrb[0].mxu0
    %v7374 = vpop.f32.mrb[0].mxu0
    %v7375 = vpop.f32.mrb[0].mxu0
    %7376 = vdwg.mxu0
    %7377 = vrot.lane.b32.xlu0 %v6368, 72
    %v7378 = vpop.permute.xlu0 %7377
    %v7380 = vsel %vm462, %v7328, 0
    %v7383 = vsel %vm591, %v7378, 0
    %7385 = vmatprep.subr.bf16.mxu0 0
    %7386 = vmatpush1.bf16.msra.mxu0 %v7383
    %7387 = vmatprep.subr.bf16.mxu0 0
    %7388 = vmatpush1.bf16.msra.mxu0 0
    %7389 = vmatprep.subr.bf16.mxu0 0
    %7390 = vmatpush1.bf16.msra.mxu0 0
    %7391 = vmatprep.subr.bf16.mxu0 0
    %7392 = vmatpush1.bf16.msra.mxu0 0
    %7393 = vmatprep.subr.bf16.mxu0 0
    %7394 = vmatpush1.bf16.msra.mxu0 0
    %7395 = vmatprep.subr.bf16.mxu0 0
    %7396 = vmatpush1.bf16.msra.mxu0 0
    %7397 = vmatprep.subr.bf16.mxu0 0
    %7398 = vmatpush1.bf16.msra.mxu0 0
    %7399 = vmatprep.subr.bf16.mxu0 0
    %7400 = vmatpush1.bf16.msra.mxu0 0
    %7401 = vmatprep.subr.bf16.mxu0 0
    %7402 = vmatpush1.bf16.msra.mxu0 0
    %7403 = vmatprep.subr.bf16.mxu0 0
    %7404 = vmatpush1.bf16.msra.mxu0 0
    %7405 = vmatprep.subr.bf16.mxu0 0
    %7406 = vmatpush1.bf16.msra.mxu0 0
    %7407 = vmatprep.subr.bf16.mxu0 0
    %7408 = vmatpush1.bf16.msra.mxu0 0
    %7409 = vmatprep.subr.bf16.mxu0 0
    %7410 = vmatpush1.bf16.msra.mxu0 0
    %7411 = vmatprep.subr.bf16.mxu0 0
    %7412 = vmatpush1.bf16.msra.mxu0 0
    %7413 = vmatprep.subr.bf16.mxu0 0
    %7414 = vmatpush1.bf16.msra.mxu0 0
    %7415 = vmatprep.subr.bf16.mxu0 0
    %7416 = vmatpush1.bf16.msra.mxu0 0
    %7417 = vmatprep.mubr.bf16.mxu0 0
    %7418 = vmatmul.mubr.bf16.gmra.mrb[0].mxu0 %v7380
    %v7419 = vpop.f32.mrb[0].mxu0
    %v7420 = vadd.f32 0.0, %v7419
    %v7421 = vpop.f32.mrb[0].mxu0
    %v7422 = vpop.f32.mrb[0].mxu0
    %v7423 = vpop.f32.mrb[0].mxu0
    %7424 = vdwg.mxu0
    %v7425 = vpack.c.bf16 %v7372, %v7372
    %v7426 = vpack.c.bf16 %v7420, %v7420
    %v7429 = vunpack.c.l.b16 %v7425
    %v7430 = vunpack.c.l.b16 %v7426
    %v7431 = vpack.c.b16 %v7430, %v7429
    %v7433 = vsel %vm462, %v7431, 0
    %v7436 = vsel %vm591, %v4724, 0
    %7438 = vmatprep.subr.bf16.mxu0 0
    %7439 = vmatpush1.bf16.msra.mxu0 %v7436
    %7440 = vmatprep.subr.bf16.mxu0 0
    %7441 = vmatpush1.bf16.msra.mxu0 0
    %7442 = vmatprep.subr.bf16.mxu0 0
    %7443 = vmatpush1.bf16.msra.mxu0 0
    %7444 = vmatprep.subr.bf16.mxu0 0
    %7445 = vmatpush1.bf16.msra.mxu0 0
    %7446 = vmatprep.subr.bf16.mxu0 0
    %7447 = vmatpush1.bf16.msra.mxu0 0
    %7448 = vmatprep.subr.bf16.mxu0 0
    %7449 = vmatpush1.bf16.msra.mxu0 0
    %7450 = vmatprep.subr.bf16.mxu0 0
    %7451 = vmatpush1.bf16.msra.mxu0 0
    %7452 = vmatprep.subr.bf16.mxu0 0
    %7453 = vmatpush1.bf16.msra.mxu0 0
    %7454 = vmatprep.subr.bf16.mxu0 0
    %7455 = vmatpush1.bf16.msra.mxu0 0
    %7456 = vmatprep.subr.bf16.mxu0 0
    %7457 = vmatpush1.bf16.msra.mxu0 0
    %7458 = vmatprep.subr.bf16.mxu0 0
    %7459 = vmatpush1.bf16.msra.mxu0 0
    %7460 = vmatprep.subr.bf16.mxu0 0
    %7461 = vmatpush1.bf16.msra.mxu0 0
    %7462 = vmatprep.subr.bf16.mxu0 0
    %7463 = vmatpush1.bf16.msra.mxu0 0
    %7464 = vmatprep.subr.bf16.mxu0 0
    %7465 = vmatpush1.bf16.msra.mxu0 0
    %7466 = vmatprep.subr.bf16.mxu0 0
    %7467 = vmatpush1.bf16.msra.mxu0 0
    %7468 = vmatprep.subr.bf16.mxu0 0
    %7469 = vmatpush1.bf16.msra.mxu0 0
    %7470 = vmatprep.mubr.bf16.mxu0 0
    %7471 = vmatmul.mubr.bf16.gmra.mrb[0].mxu0 %v7433
    %v7472 = vpop.f32.mrb[0].mxu0
    %v7473 = vadd.f32 0.0, %v7472
    %v7474 = vpop.f32.mrb[0].mxu0
    %v7475 = vpop.f32.mrb[0].mxu0
    %v7476 = vadd.f32 0.0, %v7475
    %v7477 = vpop.f32.mrb[0].mxu0
    %7478 = vdwg.mxu0
    %v7479 = vadd.f32 %v7199, %v7473
    %v7480 = vadd.f32 %v7200, %v7476
    %v7482 = vlaneseq
    %v7483 = vshrl.u32 %v7482, 7
    %v7484 = vsub.s32 0, %v7483
    %v7485 = vrot.slane %v4726, %v7484
    %v7487 = vadd.f32 %v7479, %v7485
    %v7488 = vadd.f32 %v7480, %v7485
    %v7489 = vadd.f32 %v7487, %v6253
    %v7490 = vadd.f32 %v7488, %v6254
    %v7491 = vsel %vm412, %v7489, 0.0
    %7492 = vadd.xlane.f32.xlu0 %v7491
    %v7493 = vpop.xlane.xlu0 %7492
    %v7494 = vsel %vm412, %v7490, 0.0
    %7495 = vadd.xlane.f32.xlu0 %v7494
    %v7496 = vpop.xlane.xlu0 %7495
    %v7497 = vmul.f32 %v7493, %v1591
    %v7498 = vmul.f32 %v7496, %v1591
    %v7499 = vsub.f32 %v7489, %v7497
    %v7500 = vsub.f32 %v7490, %v7498
    %v7501 = vmul.f32 %v7499, %v7499
    %v7502 = vmul.f32 %v7500, %v7500
    %v7503 = vsel %vm412, %v7501, 0.0
    %7504 = vadd.xlane.f32.xlu0 %v7503
    %v7505 = vpop.xlane.xlu0 %7504
    %v7506 = vsel %vm412, %v7502, 0.0
    %7507 = vadd.xlane.f32.xlu0 %v7506
    %v7508 = vpop.xlane.xlu0 %7507
    %v7509 = vmul.f32 %v7505, %v1591
    %v7510 = vmul.f32 %v7508, %v1591
    %v7511 = vadd.f32 %v7509, 1e-05
    %v7512 = vadd.f32 %v7510, 1e-05
    %v7513 = vrsqrt.pop %v7511
    %v7514 = vrsqrt.pop %v7512
    %v7515 = vmul.f32 %v7499, %v7513
    %v7516 = vmul.f32 %v7500, %v7514
    %v7518 = vlaneseq
    %v7519 = vshrl.u32 %v7518, 7
    %v7520 = vsub.s32 0, %v7519
    %v7521 = vrot.slane %v4728, %v7520
    %v7523 = vmul.f32 %v7515, %v7521
    %v7524 = vmul.f32 %v7516, %v7521
    %v7526 = vlaneseq
    %v7527 = vshrl.u32 %v7526, 7
    %v7528 = vsub.s32 0, %v7527
    %v7529 = vrot.slane %v4730, %v7528
    %v7531 = vadd.f32 %v7523, %v7529
    %v7532 = vadd.f32 %v7524, %v7529
    %v7533 = vpack.c.bf16 %v7532, %v7531
    %v7536 = vlaneseq
    %v7537 = vshrl.u32 %v7536, 7
    %v7538 = vsub.s32 0, %v7537
    %v7539 = vrot.slane %v4765, %v7538
    %v7540 = vlaneseq
    %v7541 = vshrl.u32 %v7540, 7
    %v7542 = vsub.s32 1, %v7541
    %v7543 = vrot.slane %v4765, %v7542
    %v7544 = vlaneseq
    %v7545 = vshrl.u32 %v7544, 7
    %v7546 = vsub.s32 2, %v7545
    %v7547 = vrot.slane %v4765, %v7546
    %v7548 = vlaneseq
    %v7549 = vshrl.u32 %v7548, 7
    %v7550 = vsub.s32 3, %v7549
    %v7551 = vrot.slane %v4765, %v7550
    %v7552 = vlaneseq
    %v7553 = vshrl.u32 %v7552, 7
    %v7554 = vsub.s32 4, %v7553
    %v7555 = vrot.slane %v4765, %v7554
    %v7556 = vlaneseq
    %v7557 = vshrl.u32 %v7556, 7
    %v7558 = vsub.s32 5, %v7557
    %v7559 = vrot.slane %v4765, %v7558
    %v7560 = vlaneseq
    %v7561 = vshrl.u32 %v7560, 7
    %v7562 = vsub.s32 6, %v7561
    %v7563 = vrot.slane %v4765, %v7562
    %v7564 = vlaneseq
    %v7565 = vshrl.u32 %v7564, 7
    %v7566 = vsub.s32 7, %v7565
    %v7567 = vrot.slane %v4765, %v7566
    %v7568 = vlaneseq
    %v7569 = vshrl.u32 %v7568, 7
    %v7570 = vsub.s32 0, %v7569
    %v7571 = vrot.slane %v4766, %v7570
    %v7572 = vlaneseq
    %v7573 = vshrl.u32 %v7572, 7
    %v7574 = vsub.s32 1, %v7573
    %v7575 = vrot.slane %v4766, %v7574
    %v7576 = vlaneseq
    %v7577 = vshrl.u32 %v7576, 7
    %v7578 = vsub.s32 2, %v7577
    %v7579 = vrot.slane %v4766, %v7578
    %v7580 = vlaneseq
    %v7581 = vshrl.u32 %v7580, 7
    %v7582 = vsub.s32 3, %v7581
    %v7583 = vrot.slane %v4766, %v7582
    %v7584 = vlaneseq
    %v7585 = vshrl.u32 %v7584, 7
    %v7586 = vsub.s32 4, %v7585
    %v7587 = vrot.slane %v4766, %v7586
    %v7588 = vlaneseq
    %v7589 = vshrl.u32 %v7588, 7
    %v7590 = vsub.s32 5, %v7589
    %v7591 = vrot.slane %v4766, %v7590
    %v7592 = vlaneseq
    %v7593 = vshrl.u32 %v7592, 7
    %v7594 = vsub.s32 6, %v7593
    %v7595 = vrot.slane %v4766, %v7594
    %v7596 = vlaneseq
    %v7597 = vshrl.u32 %v7596, 7
    %v7598 = vsub.s32 7, %v7597
    %v7599 = vrot.slane %v4766, %v7598
    %v7648 = vunpack.c.l.b16 %v4732
    %v7649 = vunpack.c.h.b16 %v4732
    %v7650 = vunpack.c.l.b16 %v4733
    %v7651 = vunpack.c.h.b16 %v4733
    %v7652 = vunpack.c.l.b16 %v4734
    %v7653 = vunpack.c.h.b16 %v4734
    %v7654 = vunpack.c.l.b16 %v4735
    %v7655 = vunpack.c.h.b16 %v4735
    %v7656 = vunpack.c.l.b16 %v4736
    %v7657 = vunpack.c.h.b16 %v4736
    %v7658 = vunpack.c.l.b16 %v4737
    %v7659 = vunpack.c.h.b16 %v4737
    %v7660 = vunpack.c.l.b16 %v4738
    %v7661 = vunpack.c.h.b16 %v4738
    %v7662 = vunpack.c.l.b16 %v4739
    %v7663 = vunpack.c.h.b16 %v4739
    %v7664 = vunpack.c.l.b16 %v4740
    %v7665 = vunpack.c.h.b16 %v4740
    %v7666 = vunpack.c.l.b16 %v4741
    %v7667 = vunpack.c.h.b16 %v4741
    %v7668 = vunpack.c.l.b16 %v4742
    %v7669 = vunpack.c.h.b16 %v4742
    %v7670 = vunpack.c.l.b16 %v4743
    %v7671 = vunpack.c.h.b16 %v4743
    %v7672 = vunpack.c.l.b16 %v4744
    %v7673 = vunpack.c.h.b16 %v4744
    %v7674 = vunpack.c.l.b16 %v4745
    %v7675 = vunpack.c.h.b16 %v4745
    %v7676 = vunpack.c.l.b16 %v4746
    %v7677 = vunpack.c.h.b16 %v4746
    %v7678 = vunpack.c.l.b16 %v4747
    %v7679 = vunpack.c.h.b16 %v4747
    %v7680 = vunpack.c.l.b16 %v4748
    %v7681 = vunpack.c.h.b16 %v4748
    %v7682 = vunpack.c.l.b16 %v4749
    %v7683 = vunpack.c.h.b16 %v4749
    %v7684 = vunpack.c.l.b16 %v4750
    %v7685 = vunpack.c.h.b16 %v4750
    %v7686 = vunpack.c.l.b16 %v4751
    %v7687 = vunpack.c.h.b16 %v4751
    %v7688 = vunpack.c.l.b16 %v4752
    %v7689 = vunpack.c.h.b16 %v4752
    %v7690 = vunpack.c.l.b16 %v4753
    %v7691 = vunpack.c.h.b16 %v4753
    %v7692 = vunpack.c.l.b16 %v4754
    %v7693 = vunpack.c.h.b16 %v4754
    %v7694 = vunpack.c.l.b16 %v4755
    %v7695 = vunpack.c.h.b16 %v4755
    %v7696 = vunpack.c.l.b16 %v4756
    %v7697 = vunpack.c.h.b16 %v4756
    %v7698 = vunpack.c.l.b16 %v4757
    %v7699 = vunpack.c.h.b16 %v4757
    %v7700 = vunpack.c.l.b16 %v4758
    %v7701 = vunpack.c.h.b16 %v4758
    %v7702 = vunpack.c.l.b16 %v4759
    %v7703 = vunpack.c.h.b16 %v4759
    %v7704 = vunpack.c.l.b16 %v4760
    %v7705 = vunpack.c.h.b16 %v4760
    %v7706 = vunpack.c.l.b16 %v4761
    %v7707 = vunpack.c.h.b16 %v4761
    %v7708 = vunpack.c.l.b16 %v4762
    %v7709 = vunpack.c.h.b16 %v4762
    %v7710 = vunpack.c.l.b16 %v4763
    %v7711 = vunpack.c.h.b16 %v4763
    %v7712 = vpack.c.b16 %v7664, %v7648
    %v7713 = vpack.c.b16 %v7665, %v7649
    %v7714 = vpack.c.b16 %v7666, %v7650
    %v7715 = vpack.c.b16 %v7667, %v7651
    %v7716 = vpack.c.b16 %v7668, %v7652
    %v7717 = vpack.c.b16 %v7669, %v7653
    %v7718 = vpack.c.b16 %v7670, %v7654
    %v7719 = vpack.c.b16 %v7671, %v7655
    %v7720 = vpack.c.b16 %v7672, %v7656
    %v7721 = vpack.c.b16 %v7673, %v7657
    %v7722 = vpack.c.b16 %v7674, %v7658
    %v7723 = vpack.c.b16 %v7675, %v7659
    %v7724 = vpack.c.b16 %v7676, %v7660
    %v7725 = vpack.c.b16 %v7677, %v7661
    %v7726 = vpack.c.b16 %v7678, %v7662
    %v7727 = vpack.c.b16 %v7679, %v7663
    %v7728 = vpack.c.b16 %v7696, %v7680
    %v7729 = vpack.c.b16 %v7697, %v7681
    %v7730 = vpack.c.b16 %v7698, %v7682
    %v7731 = vpack.c.b16 %v7699, %v7683
    %v7732 = vpack.c.b16 %v7700, %v7684
    %v7733 = vpack.c.b16 %v7701, %v7685
    %v7734 = vpack.c.b16 %v7702, %v7686
    %v7735 = vpack.c.b16 %v7703, %v7687
    %v7736 = vpack.c.b16 %v7704, %v7688
    %v7737 = vpack.c.b16 %v7705, %v7689
    %v7738 = vpack.c.b16 %v7706, %v7690
    %v7739 = vpack.c.b16 %v7707, %v7691
    %v7740 = vpack.c.b16 %v7708, %v7692
    %v7741 = vpack.c.b16 %v7709, %v7693
    %v7742 = vpack.c.b16 %v7710, %v7694
    %v7743 = vpack.c.b16 %v7711, %v7695
    %v7777 = vsel %vm412, %v7533, 0
    %7779 = vmatprep.subr.bf16.mxu0 %v7713
    %7780 = vmatpush1.bf16.msra.mxu0 %v7712
    %7781 = vmatprep.subr.bf16.mxu0 %v7729
    %7782 = vmatpush1.bf16.msra.mxu0 %v7728
    %7783 = vmatprep.subr.bf16.mxu0 0
    %7784 = vmatpush1.bf16.msra.mxu0 0
    %7785 = vmatprep.subr.bf16.mxu0 0
    %7786 = vmatpush1.bf16.msra.mxu0 0
    %7787 = vmatprep.subr.bf16.mxu0 0
    %7788 = vmatpush1.bf16.msra.mxu0 0
    %7789 = vmatprep.subr.bf16.mxu0 0
    %7790 = vmatpush1.bf16.msra.mxu0 0
    %7791 = vmatprep.subr.bf16.mxu0 0
    %7792 = vmatpush1.bf16.msra.mxu0 0
    %7793 = vmatprep.subr.bf16.mxu0 0
    %7794 = vmatpush1.bf16.msra.mxu0 0
    %7795 = vmatprep.subr.bf16.mxu0 0
    %7796 = vmatpush1.bf16.msra.mxu0 0
    %7797 = vmatprep.subr.bf16.mxu0 0
    %7798 = vmatpush1.bf16.msra.mxu0 0
    %7799 = vmatprep.subr.bf16.mxu0 0
    %7800 = vmatpush1.bf16.msra.mxu0 0
    %7801 = vmatprep.subr.bf16.mxu0 0
    %7802 = vmatpush1.bf16.msra.mxu0 0
    %7803 = vmatprep.subr.bf16.mxu0 0
    %7804 = vmatpush1.bf16.msra.mxu0 0
    %7805 = vmatprep.subr.bf16.mxu0 0
    %7806 = vmatpush1.bf16.msra.mxu0 0
    %7807 = vmatprep.subr.bf16.mxu0 0
    %7808 = vmatpush1.bf16.msra.mxu0 0
    %7809 = vmatprep.subr.bf16.mxu0 0
    %7810 = vmatpush1.bf16.msra.mxu0 0
    %7811 = vmatprep.mubr.bf16.mxu0 0
    %7812 = vmatmul.mubr.bf16.gmra.mrb[0].mxu0 %v7777
    %v7813 = vpop.f32.mrb[0].mxu0
    %v7814 = vadd.f32 %v7539, %v7813
    %v7815 = vpop.f32.mrb[0].mxu0
    %v7816 = vadd.f32 %v7543, %v7815
    %v7817 = vpop.f32.mrb[0].mxu0
    %v7818 = vadd.f32 %v7539, %v7817
    %v7819 = vpop.f32.mrb[0].mxu0
    %v7820 = vadd.f32 %v7543, %v7819
    %7821 = vdwg.mxu0
    %7822 = vmatprep.subr.bf16.mxu0 %v7715
    %7823 = vmatpush1.bf16.msra.mxu0 %v7714
    %7824 = vmatprep.subr.bf16.mxu0 %v7731
    %7825 = vmatpush1.bf16.msra.mxu0 %v7730
    %7826 = vmatprep.subr.bf16.mxu0 0
    %7827 = vmatpush1.bf16.msra.mxu0 0
    %7828 = vmatprep.subr.bf16.mxu0 0
    %7829 = vmatpush1.bf16.msra.mxu0 0
    %7830 = vmatprep.subr.bf16.mxu0 0
    %7831 = vmatpush1.bf16.msra.mxu0 0
    %7832 = vmatprep.subr.bf16.mxu0 0
    %7833 = vmatpush1.bf16.msra.mxu0 0
    %7834 = vmatprep.subr.bf16.mxu0 0
    %7835 = vmatpush1.bf16.msra.mxu0 0
    %7836 = vmatprep.subr.bf16.mxu0 0
    %7837 = vmatpush1.bf16.msra.mxu0 0
    %7838 = vmatprep.subr.bf16.mxu0 0
    %7839 = vmatpush1.bf16.msra.mxu0 0
    %7840 = vmatprep.subr.bf16.mxu0 0
    %7841 = vmatpush1.bf16.msra.mxu0 0
    %7842 = vmatprep.subr.bf16.mxu0 0
    %7843 = vmatpush1.bf16.msra.mxu0 0
    %7844 = vmatprep.subr.bf16.mxu0 0
    %7845 = vmatpush1.bf16.msra.mxu0 0
    %7846 = vmatprep.subr.bf16.mxu0 0
    %7847 = vmatpush1.bf16.msra.mxu0 0
    %7848 = vmatprep.subr.bf16.mxu0 0
    %7849 = vmatpush1.bf16.msra.mxu0 0
    %7850 = vmatprep.subr.bf16.mxu0 0
    %7851 = vmatpush1.bf16.msra.mxu0 0
    %7852 = vmatprep.subr.bf16.mxu0 0
    %7853 = vmatpush1.bf16.msra.mxu0 0
    %7854 = vmatprep.mubr.bf16.mxu0 0
    %7855 = vmatmul.mubr.bf16.gmra.mrb[0].mxu0 %v7777
    %v7856 = vpop.f32.mrb[0].mxu0
    %v7857 = vadd.f32 %v7547, %v7856
    %v7858 = vpop.f32.mrb[0].mxu0
    %v7859 = vadd.f32 %v7551, %v7858
    %v7860 = vpop.f32.mrb[0].mxu0
    %v7861 = vadd.f32 %v7547, %v7860
    %v7862 = vpop.f32.mrb[0].mxu0
    %v7863 = vadd.f32 %v7551, %v7862
    %7864 = vdwg.mxu0
    %7865 = vmatprep.subr.bf16.mxu0 %v7717
    %7866 = vmatpush1.bf16.msra.mxu0 %v7716
    %7867 = vmatprep.subr.bf16.mxu0 %v7733
    %7868 = vmatpush1.bf16.msra.mxu0 %v7732
    %7869 = vmatprep.subr.bf16.mxu0 0
    %7870 = vmatpush1.bf16.msra.mxu0 0
    %7871 = vmatprep.subr.bf16.mxu0 0
    %7872 = vmatpush1.bf16.msra.mxu0 0
    %7873 = vmatprep.subr.bf16.mxu0 0
    %7874 = vmatpush1.bf16.msra.mxu0 0
    %7875 = vmatprep.subr.bf16.mxu0 0
    %7876 = vmatpush1.bf16.msra.mxu0 0
    %7877 = vmatprep.subr.bf16.mxu0 0
    %7878 = vmatpush1.bf16.msra.mxu0 0
    %7879 = vmatprep.subr.bf16.mxu0 0
    %7880 = vmatpush1.bf16.msra.mxu0 0
    %7881 = vmatprep.subr.bf16.mxu0 0
    %7882 = vmatpush1.bf16.msra.mxu0 0
    %7883 = vmatprep.subr.bf16.mxu0 0
    %7884 = vmatpush1.bf16.msra.mxu0 0
    %7885 = vmatprep.subr.bf16.mxu0 0
    %7886 = vmatpush1.bf16.msra.mxu0 0
    %7887 = vmatprep.subr.bf16.mxu0 0
    %7888 = vmatpush1.bf16.msra.mxu0 0
    %7889 = vmatprep.subr.bf16.mxu0 0
    %7890 = vmatpush1.bf16.msra.mxu0 0
    %7891 = vmatprep.subr.bf16.mxu0 0
    %7892 = vmatpush1.bf16.msra.mxu0 0
    %7893 = vmatprep.subr.bf16.mxu0 0
    %7894 = vmatpush1.bf16.msra.mxu0 0
    %7895 = vmatprep.subr.bf16.mxu0 0
    %7896 = vmatpush1.bf16.msra.mxu0 0
    %7897 = vmatprep.mubr.bf16.mxu0 0
    %7898 = vmatmul.mubr.bf16.gmra.mrb[0].mxu0 %v7777
    %v7899 = vpop.f32.mrb[0].mxu0
    %v7900 = vadd.f32 %v7555, %v7899
    %v7901 = vpop.f32.mrb[0].mxu0
    %v7902 = vadd.f32 %v7559, %v7901
    %v7903 = vpop.f32.mrb[0].mxu0
    %v7904 = vadd.f32 %v7555, %v7903
    %v7905 = vpop.f32.mrb[0].mxu0
    %v7906 = vadd.f32 %v7559, %v7905
    %7907 = vdwg.mxu0
    %7908 = vmatprep.subr.bf16.mxu0 %v7719
    %7909 = vmatpush1.bf16.msra.mxu0 %v7718
    %7910 = vmatprep.subr.bf16.mxu0 %v7735
    %7911 = vmatpush1.bf16.msra.mxu0 %v7734
    %7912 = vmatprep.subr.bf16.mxu0 0
    %7913 = vmatpush1.bf16.msra.mxu0 0
    %7914 = vmatprep.subr.bf16.mxu0 0
    %7915 = vmatpush1.bf16.msra.mxu0 0
    %7916 = vmatprep.subr.bf16.mxu0 0
    %7917 = vmatpush1.bf16.msra.mxu0 0
    %7918 = vmatprep.subr.bf16.mxu0 0
    %7919 = vmatpush1.bf16.msra.mxu0 0
    %7920 = vmatprep.subr.bf16.mxu0 0
    %7921 = vmatpush1.bf16.msra.mxu0 0
    %7922 = vmatprep.subr.bf16.mxu0 0
    %7923 = vmatpush1.bf16.msra.mxu0 0
    %7924 = vmatprep.subr.bf16.mxu0 0
    %7925 = vmatpush1.bf16.msra.mxu0 0
    %7926 = vmatprep.subr.bf16.mxu0 0
    %7927 = vmatpush1.bf16.msra.mxu0 0
    %7928 = vmatprep.subr.bf16.mxu0 0
    %7929 = vmatpush1.bf16.msra.mxu0 0
    %7930 = vmatprep.subr.bf16.mxu0 0
    %7931 = vmatpush1.bf16.msra.mxu0 0
    %7932 = vmatprep.subr.bf16.mxu0 0
    %7933 = vmatpush1.bf16.msra.mxu0 0
    %7934 = vmatprep.subr.bf16.mxu0 0
    %7935 = vmatpush1.bf16.msra.mxu0 0
    %7936 = vmatprep.subr.bf16.mxu0 0
    %7937 = vmatpush1.bf16.msra.mxu0 0
    %7938 = vmatprep.subr.bf16.mxu0 0
    %7939 = vmatpush1.bf16.msra.mxu0 0
    %7940 = vmatprep.mubr.bf16.mxu0 0
    %7941 = vmatmul.mubr.bf16.gmra.mrb[0].mxu0 %v7777
    %v7942 = vpop.f32.mrb[0].mxu0
    %v7943 = vadd.f32 %v7563, %v7942
    %v7944 = vpop.f32.mrb[0].mxu0
    %v7945 = vadd.f32 %v7567, %v7944
    %v7946 = vpop.f32.mrb[0].mxu0
    %v7947 = vadd.f32 %v7563, %v7946
    %v7948 = vpop.f32.mrb[0].mxu0
    %v7949 = vadd.f32 %v7567, %v7948
    %7950 = vdwg.mxu0
    %7951 = vmatprep.subr.bf16.mxu0 %v7721
    %7952 = vmatpush1.bf16.msra.mxu0 %v7720
    %7953 = vmatprep.subr.bf16.mxu0 %v7737
    %7954 = vmatpush1.bf16.msra.mxu0 %v7736
    %7955 = vmatprep.subr.bf16.mxu0 0
    %7956 = vmatpush1.bf16.msra.mxu0 0
    %7957 = vmatprep.subr.bf16.mxu0 0
    %7958 = vmatpush1.bf16.msra.mxu0 0
    %7959 = vmatprep.subr.bf16.mxu0 0
    %7960 = vmatpush1.bf16.msra.mxu0 0
    %7961 = vmatprep.subr.bf16.mxu0 0
    %7962 = vmatpush1.bf16.msra.mxu0 0
    %7963 = vmatprep.subr.bf16.mxu0 0
    %7964 = vmatpush1.bf16.msra.mxu0 0
    %7965 = vmatprep.subr.bf16.mxu0 0
    %7966 = vmatpush1.bf16.msra.mxu0 0
    %7967 = vmatprep.subr.bf16.mxu0 0
    %7968 = vmatpush1.bf16.msra.mxu0 0
    %7969 = vmatprep.subr.bf16.mxu0 0
    %7970 = vmatpush1.bf16.msra.mxu0 0
    %7971 = vmatprep.subr.bf16.mxu0 0
    %7972 = vmatpush1.bf16.msra.mxu0 0
    %7973 = vmatprep.subr.bf16.mxu0 0
    %7974 = vmatpush1.bf16.msra.mxu0 0
    %7975 = vmatprep.subr.bf16.mxu0 0
    %7976 = vmatpush1.bf16.msra.mxu0 0
    %7977 = vmatprep.subr.bf16.mxu0 0
    %7978 = vmatpush1.bf16.msra.mxu0 0
    %7979 = vmatprep.subr.bf16.mxu0 0
    %7980 = vmatpush1.bf16.msra.mxu0 0
    %7981 = vmatprep.subr.bf16.mxu0 0
    %7982 = vmatpush1.bf16.msra.mxu0 0
    %7983 = vmatprep.mubr.bf16.mxu0 0
    %7984 = vmatmul.mubr.bf16.gmra.mrb[0].mxu0 %v7777
    %v7985 = vpop.f32.mrb[0].mxu0
    %v7986 = vadd.f32 %v7571, %v7985
    %v7987 = vpop.f32.mrb[0].mxu0
    %v7988 = vadd.f32 %v7575, %v7987
    %v7989 = vpop.f32.mrb[0].mxu0
    %v7990 = vadd.f32 %v7571, %v7989
    %v7991 = vpop.f32.mrb[0].mxu0
    %v7992 = vadd.f32 %v7575, %v7991
    %7993 = vdwg.mxu0
    %7994 = vmatprep.subr.bf16.mxu0 %v7723
    %7995 = vmatpush1.bf16.msra.mxu0 %v7722
    %7996 = vmatprep.subr.bf16.mxu0 %v7739
    %7997 = vmatpush1.bf16.msra.mxu0 %v7738
    %7998 = vmatprep.subr.bf16.mxu0 0
    %7999 = vmatpush1.bf16.msra.mxu0 0
    %8000 = vmatprep.subr.bf16.mxu0 0
    %8001 = vmatpush1.bf16.msra.mxu0 0
    %8002 = vmatprep.subr.bf16.mxu0 0
    %8003 = vmatpush1.bf16.msra.mxu0 0
    %8004 = vmatprep.subr.bf16.mxu0 0
    %8005 = vmatpush1.bf16.msra.mxu0 0
    %8006 = vmatprep.subr.bf16.mxu0 0
    %8007 = vmatpush1.bf16.msra.mxu0 0
    %8008 = vmatprep.subr.bf16.mxu0 0
    %8009 = vmatpush1.bf16.msra.mxu0 0
    %8010 = vmatprep.subr.bf16.mxu0 0
    %8011 = vmatpush1.bf16.msra.mxu0 0
    %8012 = vmatprep.subr.bf16.mxu0 0
    %8013 = vmatpush1.bf16.msra.mxu0 0
    %8014 = vmatprep.subr.bf16.mxu0 0
    %8015 = vmatpush1.bf16.msra.mxu0 0
    %8016 = vmatprep.subr.bf16.mxu0 0
    %8017 = vmatpush1.bf16.msra.mxu0 0
    %8018 = vmatprep.subr.bf16.mxu0 0
    %8019 = vmatpush1.bf16.msra.mxu0 0
    %8020 = vmatprep.subr.bf16.mxu0 0
    %8021 = vmatpush1.bf16.msra.mxu0 0
    %8022 = vmatprep.subr.bf16.mxu0 0
    %8023 = vmatpush1.bf16.msra.mxu0 0
    %8024 = vmatprep.subr.bf16.mxu0 0
    %8025 = vmatpush1.bf16.msra.mxu0 0
    %8026 = vmatprep.mubr.bf16.mxu0 0
    %8027 = vmatmul.mubr.bf16.gmra.mrb[0].mxu0 %v7777
    %v8028 = vpop.f32.mrb[0].mxu0
    %v8029 = vadd.f32 %v7579, %v8028
    %v8030 = vpop.f32.mrb[0].mxu0
    %v8031 = vadd.f32 %v7583, %v8030
    %v8032 = vpop.f32.mrb[0].mxu0
    %v8033 = vadd.f32 %v7579, %v8032
    %v8034 = vpop.f32.mrb[0].mxu0
    %v8035 = vadd.f32 %v7583, %v8034
    %8036 = vdwg.mxu0
    %8037 = vmatprep.subr.bf16.mxu0 %v7725
    %8038 = vmatpush1.bf16.msra.mxu0 %v7724
    %8039 = vmatprep.subr.bf16.mxu0 %v7741
    %8040 = vmatpush1.bf16.msra.mxu0 %v7740
    %8041 = vmatprep.subr.bf16.mxu0 0
    %8042 = vmatpush1.bf16.msra.mxu0 0
    %8043 = vmatprep.subr.bf16.mxu0 0
    %8044 = vmatpush1.bf16.msra.mxu0 0
    %8045 = vmatprep.subr.bf16.mxu0 0
    %8046 = vmatpush1.bf16.msra.mxu0 0
    %8047 = vmatprep.subr.bf16.mxu0 0
    %8048 = vmatpush1.bf16.msra.mxu0 0
    %8049 = vmatprep.subr.bf16.mxu0 0
    %8050 = vmatpush1.bf16.msra.mxu0 0
    %8051 = vmatprep.subr.bf16.mxu0 0
    %8052 = vmatpush1.bf16.msra.mxu0 0
    %8053 = vmatprep.subr.bf16.mxu0 0
    %8054 = vmatpush1.bf16.msra.mxu0 0
    %8055 = vmatprep.subr.bf16.mxu0 0
    %8056 = vmatpush1.bf16.msra.mxu0 0
    %8057 = vmatprep.subr.bf16.mxu0 0
    %8058 = vmatpush1.bf16.msra.mxu0 0
    %8059 = vmatprep.subr.bf16.mxu0 0
    %8060 = vmatpush1.bf16.msra.mxu0 0
    %8061 = vmatprep.subr.bf16.mxu0 0
    %8062 = vmatpush1.bf16.msra.mxu0 0
    %8063 = vmatprep.subr.bf16.mxu0 0
    %8064 = vmatpush1.bf16.msra.mxu0 0
    %8065 = vmatprep.subr.bf16.mxu0 0
    %8066 = vmatpush1.bf16.msra.mxu0 0
    %8067 = vmatprep.subr.bf16.mxu0 0
    %8068 = vmatpush1.bf16.msra.mxu0 0
    %8069 = vmatprep.mubr.bf16.mxu0 0
    %8070 = vmatmul.mubr.bf16.gmra.mrb[0].mxu0 %v7777
    %v8071 = vpop.f32.mrb[0].mxu0
    %v8072 = vadd.f32 %v7587, %v8071
    %v8073 = vpop.f32.mrb[0].mxu0
    %v8074 = vadd.f32 %v7591, %v8073
    %v8075 = vpop.f32.mrb[0].mxu0
    %v8076 = vadd.f32 %v7587, %v8075
    %v8077 = vpop.f32.mrb[0].mxu0
    %v8078 = vadd.f32 %v7591, %v8077
    %8079 = vdwg.mxu0
    %8080 = vmatprep.subr.bf16.mxu0 %v7727
    %8081 = vmatpush1.bf16.msra.mxu0 %v7726
    %8082 = vmatprep.subr.bf16.mxu0 %v7743
    %8083 = vmatpush1.bf16.msra.mxu0 %v7742
    %8084 = vmatprep.subr.bf16.mxu0 0
    %8085 = vmatpush1.bf16.msra.mxu0 0
    %8086 = vmatprep.subr.bf16.mxu0 0
    %8087 = vmatpush1.bf16.msra.mxu0 0
    %8088 = vmatprep.subr.bf16.mxu0 0
    %8089 = vmatpush1.bf16.msra.mxu0 0
    %8090 = vmatprep.subr.bf16.mxu0 0
    %8091 = vmatpush1.bf16.msra.mxu0 0
    %8092 = vmatprep.subr.bf16.mxu0 0
    %8093 = vmatpush1.bf16.msra.mxu0 0
    %8094 = vmatprep.subr.bf16.mxu0 0
    %8095 = vmatpush1.bf16.msra.mxu0 0
    %8096 = vmatprep.subr.bf16.mxu0 0
    %8097 = vmatpush1.bf16.msra.mxu0 0
    %8098 = vmatprep.subr.bf16.mxu0 0
    %8099 = vmatpush1.bf16.msra.mxu0 0
    %8100 = vmatprep.subr.bf16.mxu0 0
    %8101 = vmatpush1.bf16.msra.mxu0 0
    %8102 = vmatprep.subr.bf16.mxu0 0
    %8103 = vmatpush1.bf16.msra.mxu0 0
    %8104 = vmatprep.subr.bf16.mxu0 0
    %8105 = vmatpush1.bf16.msra.mxu0 0
    %8106 = vmatprep.subr.bf16.mxu0 0
    %8107 = vmatpush1.bf16.msra.mxu0 0
    %8108 = vmatprep.subr.bf16.mxu0 0
    %8109 = vmatpush1.bf16.msra.mxu0 0
    %8110 = vmatprep.subr.bf16.mxu0 0
    %8111 = vmatpush1.bf16.msra.mxu0 0
    %8112 = vmatprep.mubr.bf16.mxu0 0
    %8113 = vmatmul.mubr.bf16.gmra.mrb[0].mxu0 %v7777
    %v8114 = vpop.f32.mrb[0].mxu0
    %v8115 = vadd.f32 %v7595, %v8114
    %v8116 = vpop.f32.mrb[0].mxu0
    %v8117 = vadd.f32 %v7599, %v8116
    %v8118 = vpop.f32.mrb[0].mxu0
    %v8119 = vadd.f32 %v7595, %v8118
    %v8120 = vpop.f32.mrb[0].mxu0
    %v8121 = vadd.f32 %v7599, %v8120
    %8122 = vdwg.mxu0
    %v8123 = vmax.f32 %v7814, 0.0
    %v8124 = vmax.f32 %v7816, 0.0
    %v8125 = vmax.f32 %v7857, 0.0
    %v8126 = vmax.f32 %v7859, 0.0
    %v8127 = vmax.f32 %v7900, 0.0
    %v8128 = vmax.f32 %v7902, 0.0
    %v8129 = vmax.f32 %v7943, 0.0
    %v8130 = vmax.f32 %v7945, 0.0
    %v8131 = vmax.f32 %v7986, 0.0
    %v8132 = vmax.f32 %v7988, 0.0
    %v8133 = vmax.f32 %v8029, 0.0
    %v8134 = vmax.f32 %v8031, 0.0
    %v8135 = vmax.f32 %v8072, 0.0
    %v8136 = vmax.f32 %v8074, 0.0
    %v8137 = vmax.f32 %v8115, 0.0
    %v8138 = vmax.f32 %v8117, 0.0
    %v8139 = vmax.f32 %v7818, 0.0
    %v8140 = vmax.f32 %v7820, 0.0
    %v8141 = vmax.f32 %v7861, 0.0
    %v8142 = vmax.f32 %v7863, 0.0
    %v8143 = vmax.f32 %v7904, 0.0
    %v8144 = vmax.f32 %v7906, 0.0
    %v8145 = vmax.f32 %v7947, 0.0
    %v8146 = vmax.f32 %v7949, 0.0
    %v8147 = vmax.f32 %v7990, 0.0
    %v8148 = vmax.f32 %v7992, 0.0
    %v8149 = vmax.f32 %v8033, 0.0
    %v8150 = vmax.f32 %v8035, 0.0
    %v8151 = vmax.f32 %v8076, 0.0
    %v8152 = vmax.f32 %v8078, 0.0
    %v8153 = vmax.f32 %v8119, 0.0
    %v8154 = vmax.f32 %v8121, 0.0
    %v8155 = vpack.c.bf16 %v8139, %v8123
    %v8156 = vpack.c.bf16 %v8140, %v8124
    %v8157 = vpack.c.bf16 %v8141, %v8125
    %v8158 = vpack.c.bf16 %v8142, %v8126
    %v8159 = vpack.c.bf16 %v8143, %v8127
    %v8160 = vpack.c.bf16 %v8144, %v8128
    %v8161 = vpack.c.bf16 %v8145, %v8129
    %v8162 = vpack.c.bf16 %v8146, %v8130
    %v8163 = vpack.c.bf16 %v8147, %v8131
    %v8164 = vpack.c.bf16 %v8148, %v8132
    %v8165 = vpack.c.bf16 %v8149, %v8133
    %v8166 = vpack.c.bf16 %v8150, %v8134
    %v8167 = vpack.c.bf16 %v8151, %v8135
    %v8168 = vpack.c.bf16 %v8152, %v8136
    %v8169 = vpack.c.bf16 %v8153, %v8137
    %v8170 = vpack.c.bf16 %v8154, %v8138
    %v8172 = vlaneseq
    %v8173 = vshrl.u32 %v8172, 7
    %v8174 = vsub.s32 0, %v8173
    %v8175 = vrot.slane %v5025, %v8174
    %v8433 = vunpack.c.l.b16 %v4768
    %v8434 = vunpack.c.l.b16 %v4769
    %v8435 = vunpack.c.l.b16 %v4770
    %v8436 = vunpack.c.l.b16 %v4771
    %v8437 = vunpack.c.l.b16 %v4772
    %v8438 = vunpack.c.l.b16 %v4773
    %v8439 = vunpack.c.l.b16 %v4774
    %v8440 = vunpack.c.l.b16 %v4775
    %v8441 = vunpack.c.l.b16 %v4776
    %v8442 = vunpack.c.l.b16 %v4777
    %v8443 = vunpack.c.l.b16 %v4778
    %v8444 = vunpack.c.l.b16 %v4779
    %v8445 = vunpack.c.l.b16 %v4780
    %v8446 = vunpack.c.l.b16 %v4781
    %v8447 = vunpack.c.l.b16 %v4782
    %v8448 = vunpack.c.l.b16 %v4783
    %v8449 = vunpack.c.l.b16 %v4784
    %v8450 = vunpack.c.l.b16 %v4785
    %v8451 = vunpack.c.l.b16 %v4786
    %v8452 = vunpack.c.l.b16 %v4787
    %v8453 = vunpack.c.l.b16 %v4788
    %v8454 = vunpack.c.l.b16 %v4789
    %v8455 = vunpack.c.l.b16 %v4790
    %v8456 = vunpack.c.l.b16 %v4791
    %v8457 = vunpack.c.l.b16 %v4792
    %v8458 = vunpack.c.l.b16 %v4793
    %v8459 = vunpack.c.l.b16 %v4794
    %v8460 = vunpack.c.l.b16 %v4795
    %v8461 = vunpack.c.l.b16 %v4796
    %v8462 = vunpack.c.l.b16 %v4797
    %v8463 = vunpack.c.l.b16 %v4798
    %v8464 = vunpack.c.l.b16 %v4799
    %v8465 = vunpack.c.l.b16 %v4800
    %v8466 = vunpack.c.l.b16 %v4801
    %v8467 = vunpack.c.l.b16 %v4802
    %v8468 = vunpack.c.l.b16 %v4803
    %v8469 = vunpack.c.l.b16 %v4804
    %v8470 = vunpack.c.l.b16 %v4805
    %v8471 = vunpack.c.l.b16 %v4806
    %v8472 = vunpack.c.l.b16 %v4807
    %v8473 = vunpack.c.l.b16 %v4808
    %v8474 = vunpack.c.l.b16 %v4809
    %v8475 = vunpack.c.l.b16 %v4810
    %v8476 = vunpack.c.l.b16 %v4811
    %v8477 = vunpack.c.l.b16 %v4812
    %v8478 = vunpack.c.l.b16 %v4813
    %v8479 = vunpack.c.l.b16 %v4814
    %v8480 = vunpack.c.l.b16 %v4815
    %v8481 = vunpack.c.l.b16 %v4816
    %v8482 = vunpack.c.l.b16 %v4817
    %v8483 = vunpack.c.l.b16 %v4818
    %v8484 = vunpack.c.l.b16 %v4819
    %v8485 = vunpack.c.l.b16 %v4820
    %v8486 = vunpack.c.l.b16 %v4821
    %v8487 = vunpack.c.l.b16 %v4822
    %v8488 = vunpack.c.l.b16 %v4823
    %v8489 = vunpack.c.l.b16 %v4824
    %v8490 = vunpack.c.l.b16 %v4825
    %v8491 = vunpack.c.l.b16 %v4826
    %v8492 = vunpack.c.l.b16 %v4827
    %v8493 = vunpack.c.l.b16 %v4828
    %v8494 = vunpack.c.l.b16 %v4829
    %v8495 = vunpack.c.l.b16 %v4830
    %v8496 = vunpack.c.l.b16 %v4831
    %v8497 = vunpack.c.l.b16 %v4832
    %v8498 = vunpack.c.l.b16 %v4833
    %v8499 = vunpack.c.l.b16 %v4834
    %v8500 = vunpack.c.l.b16 %v4835
    %v8501 = vunpack.c.l.b16 %v4836
    %v8502 = vunpack.c.l.b16 %v4837
    %v8503 = vunpack.c.l.b16 %v4838
    %v8504 = vunpack.c.l.b16 %v4839
    %v8505 = vunpack.c.l.b16 %v4840
    %v8506 = vunpack.c.l.b16 %v4841
    %v8507 = vunpack.c.l.b16 %v4842
    %v8508 = vunpack.c.l.b16 %v4843
    %v8509 = vunpack.c.l.b16 %v4844
    %v8510 = vunpack.c.l.b16 %v4845
    %v8511 = vunpack.c.l.b16 %v4846
    %v8512 = vunpack.c.l.b16 %v4847
    %v8513 = vunpack.c.l.b16 %v4848
    %v8514 = vunpack.c.l.b16 %v4849
    %v8515 = vunpack.c.l.b16 %v4850
    %v8516 = vunpack.c.l.b16 %v4851
    %v8517 = vunpack.c.l.b16 %v4852
    %v8518 = vunpack.c.l.b16 %v4853
    %v8519 = vunpack.c.l.b16 %v4854
    %v8520 = vunpack.c.l.b16 %v4855
    %v8521 = vunpack.c.l.b16 %v4856
    %v8522 = vunpack.c.l.b16 %v4857
    %v8523 = vunpack.c.l.b16 %v4858
    %v8524 = vunpack.c.l.b16 %v4859
    %v8525 = vunpack.c.l.b16 %v4860
    %v8526 = vunpack.c.l.b16 %v4861
    %v8527 = vunpack.c.l.b16 %v4862
    %v8528 = vunpack.c.l.b16 %v4863
    %v8529 = vunpack.c.l.b16 %v4864
    %v8530 = vunpack.c.l.b16 %v4865
    %v8531 = vunpack.c.l.b16 %v4866
    %v8532 = vunpack.c.l.b16 %v4867
    %v8533 = vunpack.c.l.b16 %v4868
    %v8534 = vunpack.c.l.b16 %v4869
    %v8535 = vunpack.c.l.b16 %v4870
    %v8536 = vunpack.c.l.b16 %v4871
    %v8537 = vunpack.c.l.b16 %v4872
    %v8538 = vunpack.c.l.b16 %v4873
    %v8539 = vunpack.c.l.b16 %v4874
    %v8540 = vunpack.c.l.b16 %v4875
    %v8541 = vunpack.c.l.b16 %v4876
    %v8542 = vunpack.c.l.b16 %v4877
    %v8543 = vunpack.c.l.b16 %v4878
    %v8544 = vunpack.c.l.b16 %v4879
    %v8545 = vunpack.c.l.b16 %v4880
    %v8546 = vunpack.c.l.b16 %v4881
    %v8547 = vunpack.c.l.b16 %v4882
    %v8548 = vunpack.c.l.b16 %v4883
    %v8549 = vunpack.c.l.b16 %v4884
    %v8550 = vunpack.c.l.b16 %v4885
    %v8551 = vunpack.c.l.b16 %v4886
    %v8552 = vunpack.c.l.b16 %v4887
    %v8553 = vunpack.c.l.b16 %v4888
    %v8554 = vunpack.c.l.b16 %v4889
    %v8555 = vunpack.c.l.b16 %v4890
    %v8556 = vunpack.c.l.b16 %v4891
    %v8557 = vunpack.c.l.b16 %v4892
    %v8558 = vunpack.c.l.b16 %v4893
    %v8559 = vunpack.c.l.b16 %v4894
    %v8560 = vunpack.c.l.b16 %v4895
    %v8561 = vunpack.c.l.b16 %v4896
    %v8562 = vunpack.c.l.b16 %v4897
    %v8563 = vunpack.c.l.b16 %v4898
    %v8564 = vunpack.c.l.b16 %v4899
    %v8565 = vunpack.c.l.b16 %v4900
    %v8566 = vunpack.c.l.b16 %v4901
    %v8567 = vunpack.c.l.b16 %v4902
    %v8568 = vunpack.c.l.b16 %v4903
    %v8569 = vunpack.c.l.b16 %v4904
    %v8570 = vunpack.c.l.b16 %v4905
    %v8571 = vunpack.c.l.b16 %v4906
    %v8572 = vunpack.c.l.b16 %v4907
    %v8573 = vunpack.c.l.b16 %v4908
    %v8574 = vunpack.c.l.b16 %v4909
    %v8575 = vunpack.c.l.b16 %v4910
    %v8576 = vunpack.c.l.b16 %v4911
    %v8577 = vunpack.c.l.b16 %v4912
    %v8578 = vunpack.c.l.b16 %v4913
    %v8579 = vunpack.c.l.b16 %v4914
    %v8580 = vunpack.c.l.b16 %v4915
    %v8581 = vunpack.c.l.b16 %v4916
    %v8582 = vunpack.c.l.b16 %v4917
    %v8583 = vunpack.c.l.b16 %v4918
    %v8584 = vunpack.c.l.b16 %v4919
    %v8585 = vunpack.c.l.b16 %v4920
    %v8586 = vunpack.c.l.b16 %v4921
    %v8587 = vunpack.c.l.b16 %v4922
    %v8588 = vunpack.c.l.b16 %v4923
    %v8589 = vunpack.c.l.b16 %v4924
    %v8590 = vunpack.c.l.b16 %v4925
    %v8591 = vunpack.c.l.b16 %v4926
    %v8592 = vunpack.c.l.b16 %v4927
    %v8593 = vunpack.c.l.b16 %v4928
    %v8594 = vunpack.c.l.b16 %v4929
    %v8595 = vunpack.c.l.b16 %v4930
    %v8596 = vunpack.c.l.b16 %v4931
    %v8597 = vunpack.c.l.b16 %v4932
    %v8598 = vunpack.c.l.b16 %v4933
    %v8599 = vunpack.c.l.b16 %v4934
    %v8600 = vunpack.c.l.b16 %v4935
    %v8601 = vunpack.c.l.b16 %v4936
    %v8602 = vunpack.c.l.b16 %v4937
    %v8603 = vunpack.c.l.b16 %v4938
    %v8604 = vunpack.c.l.b16 %v4939
    %v8605 = vunpack.c.l.b16 %v4940
    %v8606 = vunpack.c.l.b16 %v4941
    %v8607 = vunpack.c.l.b16 %v4942
    %v8608 = vunpack.c.l.b16 %v4943
    %v8609 = vunpack.c.l.b16 %v4944
    %v8610 = vunpack.c.l.b16 %v4945
    %v8611 = vunpack.c.l.b16 %v4946
    %v8612 = vunpack.c.l.b16 %v4947
    %v8613 = vunpack.c.l.b16 %v4948
    %v8614 = vunpack.c.l.b16 %v4949
    %v8615 = vunpack.c.l.b16 %v4950
    %v8616 = vunpack.c.l.b16 %v4951
    %v8617 = vunpack.c.l.b16 %v4952
    %v8618 = vunpack.c.l.b16 %v4953
    %v8619 = vunpack.c.l.b16 %v4954
    %v8620 = vunpack.c.l.b16 %v4955
    %v8621 = vunpack.c.l.b16 %v4956
    %v8622 = vunpack.c.l.b16 %v4957
    %v8623 = vunpack.c.l.b16 %v4958
    %v8624 = vunpack.c.l.b16 %v4959
    %v8625 = vunpack.c.l.b16 %v4960
    %v8626 = vunpack.c.l.b16 %v4961
    %v8627 = vunpack.c.l.b16 %v4962
    %v8628 = vunpack.c.l.b16 %v4963
    %v8629 = vunpack.c.l.b16 %v4964
    %v8630 = vunpack.c.l.b16 %v4965
    %v8631 = vunpack.c.l.b16 %v4966
    %v8632 = vunpack.c.l.b16 %v4967
    %v8633 = vunpack.c.l.b16 %v4968
    %v8634 = vunpack.c.l.b16 %v4969
    %v8635 = vunpack.c.l.b16 %v4970
    %v8636 = vunpack.c.l.b16 %v4971
    %v8637 = vunpack.c.l.b16 %v4972
    %v8638 = vunpack.c.l.b16 %v4973
    %v8639 = vunpack.c.l.b16 %v4974
    %v8640 = vunpack.c.l.b16 %v4975
    %v8641 = vunpack.c.l.b16 %v4976
    %v8642 = vunpack.c.l.b16 %v4977
    %v8643 = vunpack.c.l.b16 %v4978
    %v8644 = vunpack.c.l.b16 %v4979
    %v8645 = vunpack.c.l.b16 %v4980
    %v8646 = vunpack.c.l.b16 %v4981
    %v8647 = vunpack.c.l.b16 %v4982
    %v8648 = vunpack.c.l.b16 %v4983
    %v8649 = vunpack.c.l.b16 %v4984
    %v8650 = vunpack.c.l.b16 %v4985
    %v8651 = vunpack.c.l.b16 %v4986
    %v8652 = vunpack.c.l.b16 %v4987
    %v8653 = vunpack.c.l.b16 %v4988
    %v8654 = vunpack.c.l.b16 %v4989
    %v8655 = vunpack.c.l.b16 %v4990
    %v8656 = vunpack.c.l.b16 %v4991
    %v8657 = vunpack.c.l.b16 %v4992
    %v8658 = vunpack.c.l.b16 %v4993
    %v8659 = vunpack.c.l.b16 %v4994
    %v8660 = vunpack.c.l.b16 %v4995
    %v8661 = vunpack.c.l.b16 %v4996
    %v8662 = vunpack.c.l.b16 %v4997
    %v8663 = vunpack.c.l.b16 %v4998
    %v8664 = vunpack.c.l.b16 %v4999
    %v8665 = vunpack.c.l.b16 %v5000
    %v8666 = vunpack.c.l.b16 %v5001
    %v8667 = vunpack.c.l.b16 %v5002
    %v8668 = vunpack.c.l.b16 %v5003
    %v8669 = vunpack.c.l.b16 %v5004
    %v8670 = vunpack.c.l.b16 %v5005
    %v8671 = vunpack.c.l.b16 %v5006
    %v8672 = vunpack.c.l.b16 %v5007
    %v8673 = vunpack.c.l.b16 %v5008
    %v8674 = vunpack.c.l.b16 %v5009
    %v8675 = vunpack.c.l.b16 %v5010
    %v8676 = vunpack.c.l.b16 %v5011
    %v8677 = vunpack.c.l.b16 %v5012
    %v8678 = vunpack.c.l.b16 %v5013
    %v8679 = vunpack.c.l.b16 %v5014
    %v8680 = vunpack.c.l.b16 %v5015
    %v8681 = vunpack.c.l.b16 %v5016
    %v8682 = vunpack.c.l.b16 %v5017
    %v8683 = vunpack.c.l.b16 %v5018
    %v8684 = vunpack.c.l.b16 %v5019
    %v8685 = vunpack.c.l.b16 %v5020
    %v8686 = vunpack.c.l.b16 %v5021
    %v8687 = vunpack.c.l.b16 %v5022
    %v8688 = vunpack.c.l.b16 %v5023
    %v8689 = vpack.c.b16 %v8434, %v8433
    %v8690 = vpack.c.b16 %v8436, %v8435
    %v8691 = vpack.c.b16 %v8438, %v8437
    %v8692 = vpack.c.b16 %v8440, %v8439
    %v8693 = vpack.c.b16 %v8442, %v8441
    %v8694 = vpack.c.b16 %v8444, %v8443
    %v8695 = vpack.c.b16 %v8446, %v8445
    %v8696 = vpack.c.b16 %v8448, %v8447
    %v8697 = vpack.c.b16 %v8450, %v8449
    %v8698 = vpack.c.b16 %v8452, %v8451
    %v8699 = vpack.c.b16 %v8454, %v8453
    %v8700 = vpack.c.b16 %v8456, %v8455
    %v8701 = vpack.c.b16 %v8458, %v8457
    %v8702 = vpack.c.b16 %v8460, %v8459
    %v8703 = vpack.c.b16 %v8462, %v8461
    %v8704 = vpack.c.b16 %v8464, %v8463
    %v8705 = vpack.c.b16 %v8466, %v8465
    %v8706 = vpack.c.b16 %v8468, %v8467
    %v8707 = vpack.c.b16 %v8470, %v8469
    %v8708 = vpack.c.b16 %v8472, %v8471
    %v8709 = vpack.c.b16 %v8474, %v8473
    %v8710 = vpack.c.b16 %v8476, %v8475
    %v8711 = vpack.c.b16 %v8478, %v8477
    %v8712 = vpack.c.b16 %v8480, %v8479
    %v8713 = vpack.c.b16 %v8482, %v8481
    %v8714 = vpack.c.b16 %v8484, %v8483
    %v8715 = vpack.c.b16 %v8486, %v8485
    %v8716 = vpack.c.b16 %v8488, %v8487
    %v8717 = vpack.c.b16 %v8490, %v8489
    %v8718 = vpack.c.b16 %v8492, %v8491
    %v8719 = vpack.c.b16 %v8494, %v8493
    %v8720 = vpack.c.b16 %v8496, %v8495
    %v8721 = vpack.c.b16 %v8498, %v8497
    %v8722 = vpack.c.b16 %v8500, %v8499
    %v8723 = vpack.c.b16 %v8502, %v8501
    %v8724 = vpack.c.b16 %v8504, %v8503
    %v8725 = vpack.c.b16 %v8506, %v8505
    %v8726 = vpack.c.b16 %v8508, %v8507
    %v8727 = vpack.c.b16 %v8510, %v8509
    %v8728 = vpack.c.b16 %v8512, %v8511
    %v8729 = vpack.c.b16 %v8514, %v8513
    %v8730 = vpack.c.b16 %v8516, %v8515
    %v8731 = vpack.c.b16 %v8518, %v8517
    %v8732 = vpack.c.b16 %v8520, %v8519
    %v8733 = vpack.c.b16 %v8522, %v8521
    %v8734 = vpack.c.b16 %v8524, %v8523
    %v8735 = vpack.c.b16 %v8526, %v8525
    %v8736 = vpack.c.b16 %v8528, %v8527
    %v8737 = vpack.c.b16 %v8530, %v8529
    %v8738 = vpack.c.b16 %v8532, %v8531
    %v8739 = vpack.c.b16 %v8534, %v8533
    %v8740 = vpack.c.b16 %v8536, %v8535
    %v8741 = vpack.c.b16 %v8538, %v8537
    %v8742 = vpack.c.b16 %v8540, %v8539
    %v8743 = vpack.c.b16 %v8542, %v8541
    %v8744 = vpack.c.b16 %v8544, %v8543
    %v8745 = vpack.c.b16 %v8546, %v8545
    %v8746 = vpack.c.b16 %v8548, %v8547
    %v8747 = vpack.c.b16 %v8550, %v8549
    %v8748 = vpack.c.b16 %v8552, %v8551
    %v8749 = vpack.c.b16 %v8554, %v8553
    %v8750 = vpack.c.b16 %v8556, %v8555
    %v8751 = vpack.c.b16 %v8558, %v8557
    %v8752 = vpack.c.b16 %v8560, %v8559
    %v8753 = vpack.c.b16 %v8562, %v8561
    %v8754 = vpack.c.b16 %v8564, %v8563
    %v8755 = vpack.c.b16 %v8566, %v8565
    %v8756 = vpack.c.b16 %v8568, %v8567
    %v8757 = vpack.c.b16 %v8570, %v8569
    %v8758 = vpack.c.b16 %v8572, %v8571
    %v8759 = vpack.c.b16 %v8574, %v8573
    %v8760 = vpack.c.b16 %v8576, %v8575
    %v8761 = vpack.c.b16 %v8578, %v8577
    %v8762 = vpack.c.b16 %v8580, %v8579
    %v8763 = vpack.c.b16 %v8582, %v8581
    %v8764 = vpack.c.b16 %v8584, %v8583
    %v8765 = vpack.c.b16 %v8586, %v8585
    %v8766 = vpack.c.b16 %v8588, %v8587
    %v8767 = vpack.c.b16 %v8590, %v8589
    %v8768 = vpack.c.b16 %v8592, %v8591
    %v8769 = vpack.c.b16 %v8594, %v8593
    %v8770 = vpack.c.b16 %v8596, %v8595
    %v8771 = vpack.c.b16 %v8598, %v8597
    %v8772 = vpack.c.b16 %v8600, %v8599
    %v8773 = vpack.c.b16 %v8602, %v8601
    %v8774 = vpack.c.b16 %v8604, %v8603
    %v8775 = vpack.c.b16 %v8606, %v8605
    %v8776 = vpack.c.b16 %v8608, %v8607
    %v8777 = vpack.c.b16 %v8610, %v8609
    %v8778 = vpack.c.b16 %v8612, %v8611
    %v8779 = vpack.c.b16 %v8614, %v8613
    %v8780 = vpack.c.b16 %v8616, %v8615
    %v8781 = vpack.c.b16 %v8618, %v8617
    %v8782 = vpack.c.b16 %v8620, %v8619
    %v8783 = vpack.c.b16 %v8622, %v8621
    %v8784 = vpack.c.b16 %v8624, %v8623
    %v8785 = vpack.c.b16 %v8626, %v8625
    %v8786 = vpack.c.b16 %v8628, %v8627
    %v8787 = vpack.c.b16 %v8630, %v8629
    %v8788 = vpack.c.b16 %v8632, %v8631
    %v8789 = vpack.c.b16 %v8634, %v8633
    %v8790 = vpack.c.b16 %v8636, %v8635
    %v8791 = vpack.c.b16 %v8638, %v8637
    %v8792 = vpack.c.b16 %v8640, %v8639
    %v8793 = vpack.c.b16 %v8642, %v8641
    %v8794 = vpack.c.b16 %v8644, %v8643
    %v8795 = vpack.c.b16 %v8646, %v8645
    %v8796 = vpack.c.b16 %v8648, %v8647
    %v8797 = vpack.c.b16 %v8650, %v8649
    %v8798 = vpack.c.b16 %v8652, %v8651
    %v8799 = vpack.c.b16 %v8654, %v8653
    %v8800 = vpack.c.b16 %v8656, %v8655
    %v8801 = vpack.c.b16 %v8658, %v8657
    %v8802 = vpack.c.b16 %v8660, %v8659
    %v8803 = vpack.c.b16 %v8662, %v8661
    %v8804 = vpack.c.b16 %v8664, %v8663
    %v8805 = vpack.c.b16 %v8666, %v8665
    %v8806 = vpack.c.b16 %v8668, %v8667
    %v8807 = vpack.c.b16 %v8670, %v8669
    %v8808 = vpack.c.b16 %v8672, %v8671
    %v8809 = vpack.c.b16 %v8674, %v8673
    %v8810 = vpack.c.b16 %v8676, %v8675
    %v8811 = vpack.c.b16 %v8678, %v8677
    %v8812 = vpack.c.b16 %v8680, %v8679
    %v8813 = vpack.c.b16 %v8682, %v8681
    %v8814 = vpack.c.b16 %v8684, %v8683
    %v8815 = vpack.c.b16 %v8686, %v8685
    %v8816 = vpack.c.b16 %v8688, %v8687
    %8945 = vmatprep.subr.bf16.mxu0 0
    %8946 = vmatpush1.bf16.msra.mxu0 %v8689
    %8947 = vmatprep.subr.bf16.mxu0 0
    %8948 = vmatpush1.bf16.msra.mxu0 %v8690
    %8949 = vmatprep.subr.bf16.mxu0 0
    %8950 = vmatpush1.bf16.msra.mxu0 %v8691
    %8951 = vmatprep.subr.bf16.mxu0 0
    %8952 = vmatpush1.bf16.msra.mxu0 %v8692
    %8953 = vmatprep.subr.bf16.mxu0 0
    %8954 = vmatpush1.bf16.msra.mxu0 %v8693
    %8955 = vmatprep.subr.bf16.mxu0 0
    %8956 = vmatpush1.bf16.msra.mxu0 %v8694
    %8957 = vmatprep.subr.bf16.mxu0 0
    %8958 = vmatpush1.bf16.msra.mxu0 %v8695
    %8959 = vmatprep.subr.bf16.mxu0 0
    %8960 = vmatpush1.bf16.msra.mxu0 %v8696
    %8961 = vmatprep.subr.bf16.mxu0 0
    %8962 = vmatpush1.bf16.msra.mxu0 %v8697
    %8963 = vmatprep.subr.bf16.mxu0 0
    %8964 = vmatpush1.bf16.msra.mxu0 %v8698
    %8965 = vmatprep.subr.bf16.mxu0 0
    %8966 = vmatpush1.bf16.msra.mxu0 %v8699
    %8967 = vmatprep.subr.bf16.mxu0 0
    %8968 = vmatpush1.bf16.msra.mxu0 %v8700
    %8969 = vmatprep.subr.bf16.mxu0 0
    %8970 = vmatpush1.bf16.msra.mxu0 %v8701
    %8971 = vmatprep.subr.bf16.mxu0 0
    %8972 = vmatpush1.bf16.msra.mxu0 %v8702
    %8973 = vmatprep.subr.bf16.mxu0 0
    %8974 = vmatpush1.bf16.msra.mxu0 %v8703
    %8975 = vmatprep.subr.bf16.mxu0 0
    %8976 = vmatpush1.bf16.msra.mxu0 %v8704
    %8977 = vmatprep.mubr.bf16.mxu0 %v8156
    %8978 = vmatmul.mubr.bf16.gmra.mrb[0].mxu0 %v8155
    %v8979 = vpop.f32.mrb[0].mxu0
    %v8980 = vadd.f32 %v8175, %v8979
    %v8981 = vpop.f32.mrb[0].mxu0
    %v8982 = vpop.f32.mrb[0].mxu0
    %v8983 = vadd.f32 %v8175, %v8982
    %v8984 = vpop.f32.mrb[0].mxu0
    %8985 = vdwg.mxu0
    %8986 = vmatprep.subr.bf16.mxu0 0
    %8987 = vmatpush1.bf16.msra.mxu0 %v8705
    %8988 = vmatprep.subr.bf16.mxu0 0
    %8989 = vmatpush1.bf16.msra.mxu0 %v8706
    %8990 = vmatprep.subr.bf16.mxu0 0
    %8991 = vmatpush1.bf16.msra.mxu0 %v8707
    %8992 = vmatprep.subr.bf16.mxu0 0
    %8993 = vmatpush1.bf16.msra.mxu0 %v8708
    %8994 = vmatprep.subr.bf16.mxu0 0
    %8995 = vmatpush1.bf16.msra.mxu0 %v8709
    %8996 = vmatprep.subr.bf16.mxu0 0
    %8997 = vmatpush1.bf16.msra.mxu0 %v8710
    %8998 = vmatprep.subr.bf16.mxu0 0
    %8999 = vmatpush1.bf16.msra.mxu0 %v8711
    %9000 = vmatprep.subr.bf16.mxu0 0
    %9001 = vmatpush1.bf16.msra.mxu0 %v8712
    %9002 = vmatprep.subr.bf16.mxu0 0
    %9003 = vmatpush1.bf16.msra.mxu0 %v8713
    %9004 = vmatprep.subr.bf16.mxu0 0
    %9005 = vmatpush1.bf16.msra.mxu0 %v8714
    %9006 = vmatprep.subr.bf16.mxu0 0
    %9007 = vmatpush1.bf16.msra.mxu0 %v8715
    %9008 = vmatprep.subr.bf16.mxu0 0
    %9009 = vmatpush1.bf16.msra.mxu0 %v8716
    %9010 = vmatprep.subr.bf16.mxu0 0
    %9011 = vmatpush1.bf16.msra.mxu0 %v8717
    %9012 = vmatprep.subr.bf16.mxu0 0
    %9013 = vmatpush1.bf16.msra.mxu0 %v8718
    %9014 = vmatprep.subr.bf16.mxu0 0
    %9015 = vmatpush1.bf16.msra.mxu0 %v8719
    %9016 = vmatprep.subr.bf16.mxu0 0
    %9017 = vmatpush1.bf16.msra.mxu0 %v8720
    %9018 = vmatprep.mubr.bf16.mxu0 %v8158
    %9019 = vmatmul.mubr.bf16.gmra.mrb[0].mxu0 %v8157
    %v9020 = vpop.f32.mrb[0].mxu0
    %v9021 = vadd.f32 %v8980, %v9020
    %v9022 = vpop.f32.mrb[0].mxu0
    %v9023 = vpop.f32.mrb[0].mxu0
    %v9024 = vadd.f32 %v8983, %v9023
    %v9025 = vpop.f32.mrb[0].mxu0
    %9026 = vdwg.mxu0
    %9027 = vmatprep.subr.bf16.mxu0 0
    %9028 = vmatpush1.bf16.msra.mxu0 %v8721
    %9029 = vmatprep.subr.bf16.mxu0 0
    %9030 = vmatpush1.bf16.msra.mxu0 %v8722
    %9031 = vmatprep.subr.bf16.mxu0 0
    %9032 = vmatpush1.bf16.msra.mxu0 %v8723
    %9033 = vmatprep.subr.bf16.mxu0 0
    %9034 = vmatpush1.bf16.msra.mxu0 %v8724
    %9035 = vmatprep.subr.bf16.mxu0 0
    %9036 = vmatpush1.bf16.msra.mxu0 %v8725
    %9037 = vmatprep.subr.bf16.mxu0 0
    %9038 = vmatpush1.bf16.msra.mxu0 %v8726
    %9039 = vmatprep.subr.bf16.mxu0 0
    %9040 = vmatpush1.bf16.msra.mxu0 %v8727
    %9041 = vmatprep.subr.bf16.mxu0 0
    %9042 = vmatpush1.bf16.msra.mxu0 %v8728
    %9043 = vmatprep.subr.bf16.mxu0 0
    %9044 = vmatpush1.bf16.msra.mxu0 %v8729
    %9045 = vmatprep.subr.bf16.mxu0 0
    %9046 = vmatpush1.bf16.msra.mxu0 %v8730
    %9047 = vmatprep.subr.bf16.mxu0 0
    %9048 = vmatpush1.bf16.msra.mxu0 %v8731
    %9049 = vmatprep.subr.bf16.mxu0 0
    %9050 = vmatpush1.bf16.msra.mxu0 %v8732
    %9051 = vmatprep.subr.bf16.mxu0 0
    %9052 = vmatpush1.bf16.msra.mxu0 %v8733
    %9053 = vmatprep.subr.bf16.mxu0 0
    %9054 = vmatpush1.bf16.msra.mxu0 %v8734
    %9055 = vmatprep.subr.bf16.mxu0 0
    %9056 = vmatpush1.bf16.msra.mxu0 %v8735
    %9057 = vmatprep.subr.bf16.mxu0 0
    %9058 = vmatpush1.bf16.msra.mxu0 %v8736
    %9059 = vmatprep.mubr.bf16.mxu0 %v8160
    %9060 = vmatmul.mubr.bf16.gmra.mrb[0].mxu0 %v8159
    %v9061 = vpop.f32.mrb[0].mxu0
    %v9062 = vadd.f32 %v9021, %v9061
    %v9063 = vpop.f32.mrb[0].mxu0
    %v9064 = vpop.f32.mrb[0].mxu0
    %v9065 = vadd.f32 %v9024, %v9064
    %v9066 = vpop.f32.mrb[0].mxu0
    %9067 = vdwg.mxu0
    %9068 = vmatprep.subr.bf16.mxu0 0
    %9069 = vmatpush1.bf16.msra.mxu0 %v8737
    %9070 = vmatprep.subr.bf16.mxu0 0
    %9071 = vmatpush1.bf16.msra.mxu0 %v8738
    %9072 = vmatprep.subr.bf16.mxu0 0
    %9073 = vmatpush1.bf16.msra.mxu0 %v8739
    %9074 = vmatprep.subr.bf16.mxu0 0
    %9075 = vmatpush1.bf16.msra.mxu0 %v8740
    %9076 = vmatprep.subr.bf16.mxu0 0
    %9077 = vmatpush1.bf16.msra.mxu0 %v8741
    %9078 = vmatprep.subr.bf16.mxu0 0
    %9079 = vmatpush1.bf16.msra.mxu0 %v8742
    %9080 = vmatprep.subr.bf16.mxu0 0
    %9081 = vmatpush1.bf16.msra.mxu0 %v8743
    %9082 = vmatprep.subr.bf16.mxu0 0
    %9083 = vmatpush1.bf16.msra.mxu0 %v8744
    %9084 = vmatprep.subr.bf16.mxu0 0
    %9085 = vmatpush1.bf16.msra.mxu0 %v8745
    %9086 = vmatprep.subr.bf16.mxu0 0
    %9087 = vmatpush1.bf16.msra.mxu0 %v8746
    %9088 = vmatprep.subr.bf16.mxu0 0
    %9089 = vmatpush1.bf16.msra.mxu0 %v8747
    %9090 = vmatprep.subr.bf16.mxu0 0
    %9091 = vmatpush1.bf16.msra.mxu0 %v8748
    %9092 = vmatprep.subr.bf16.mxu0 0
    %9093 = vmatpush1.bf16.msra.mxu0 %v8749
    %9094 = vmatprep.subr.bf16.mxu0 0
    %9095 = vmatpush1.bf16.msra.mxu0 %v8750
    %9096 = vmatprep.subr.bf16.mxu0 0
    %9097 = vmatpush1.bf16.msra.mxu0 %v8751
    %9098 = vmatprep.subr.bf16.mxu0 0
    %9099 = vmatpush1.bf16.msra.mxu0 %v8752
    %9100 = vmatprep.mubr.bf16.mxu0 %v8162
    %9101 = vmatmul.mubr.bf16.gmra.mrb[0].mxu0 %v8161
    %v9102 = vpop.f32.mrb[0].mxu0
    %v9103 = vadd.f32 %v9062, %v9102
    %v9104 = vpop.f32.mrb[0].mxu0
    %v9105 = vpop.f32.mrb[0].mxu0
    %v9106 = vadd.f32 %v9065, %v9105
    %v9107 = vpop.f32.mrb[0].mxu0
    %9108 = vdwg.mxu0
    %9109 = vmatprep.subr.bf16.mxu0 0
    %9110 = vmatpush1.bf16.msra.mxu0 %v8753
    %9111 = vmatprep.subr.bf16.mxu0 0
    %9112 = vmatpush1.bf16.msra.mxu0 %v8754
    %9113 = vmatprep.subr.bf16.mxu0 0
    %9114 = vmatpush1.bf16.msra.mxu0 %v8755
    %9115 = vmatprep.subr.bf16.mxu0 0
    %9116 = vmatpush1.bf16.msra.mxu0 %v8756
    %9117 = vmatprep.subr.bf16.mxu0 0
    %9118 = vmatpush1.bf16.msra.mxu0 %v8757
    %9119 = vmatprep.subr.bf16.mxu0 0
    %9120 = vmatpush1.bf16.msra.mxu0 %v8758
    %9121 = vmatprep.subr.bf16.mxu0 0
    %9122 = vmatpush1.bf16.msra.mxu0 %v8759
    %9123 = vmatprep.subr.bf16.mxu0 0
    %9124 = vmatpush1.bf16.msra.mxu0 %v8760
    %9125 = vmatprep.subr.bf16.mxu0 0
    %9126 = vmatpush1.bf16.msra.mxu0 %v8761
    %9127 = vmatprep.subr.bf16.mxu0 0
    %9128 = vmatpush1.bf16.msra.mxu0 %v8762
    %9129 = vmatprep.subr.bf16.mxu0 0
    %9130 = vmatpush1.bf16.msra.mxu0 %v8763
    %9131 = vmatprep.subr.bf16.mxu0 0
    %9132 = vmatpush1.bf16.msra.mxu0 %v8764
    %9133 = vmatprep.subr.bf16.mxu0 0
    %9134 = vmatpush1.bf16.msra.mxu0 %v8765
    %9135 = vmatprep.subr.bf16.mxu0 0
    %9136 = vmatpush1.bf16.msra.mxu0 %v8766
    %9137 = vmatprep.subr.bf16.mxu0 0
    %9138 = vmatpush1.bf16.msra.mxu0 %v8767
    %9139 = vmatprep.subr.bf16.mxu0 0
    %9140 = vmatpush1.bf16.msra.mxu0 %v8768
    %9141 = vmatprep.mubr.bf16.mxu0 %v8164
    %9142 = vmatmul.mubr.bf16.gmra.mrb[0].mxu0 %v8163
    %v9143 = vpop.f32.mrb[0].mxu0
    %v9144 = vadd.f32 %v9103, %v9143
    %v9145 = vpop.f32.mrb[0].mxu0
    %v9146 = vpop.f32.mrb[0].mxu0
    %v9147 = vadd.f32 %v9106, %v9146
    %v9148 = vpop.f32.mrb[0].mxu0
    %9149 = vdwg.mxu0
    %9150 = vmatprep.subr.bf16.mxu0 0
    %9151 = vmatpush1.bf16.msra.mxu0 %v8769
    %9152 = vmatprep.subr.bf16.mxu0 0
    %9153 = vmatpush1.bf16.msra.mxu0 %v8770
    %9154 = vmatprep.subr.bf16.mxu0 0
    %9155 = vmatpush1.bf16.msra.mxu0 %v8771
    %9156 = vmatprep.subr.bf16.mxu0 0
    %9157 = vmatpush1.bf16.msra.mxu0 %v8772
    %9158 = vmatprep.subr.bf16.mxu0 0
    %9159 = vmatpush1.bf16.msra.mxu0 %v8773
    %9160 = vmatprep.subr.bf16.mxu0 0
    %9161 = vmatpush1.bf16.msra.mxu0 %v8774
    %9162 = vmatprep.subr.bf16.mxu0 0
    %9163 = vmatpush1.bf16.msra.mxu0 %v8775
    %9164 = vmatprep.subr.bf16.mxu0 0
    %9165 = vmatpush1.bf16.msra.mxu0 %v8776
    %9166 = vmatprep.subr.bf16.mxu0 0
    %9167 = vmatpush1.bf16.msra.mxu0 %v8777
    %9168 = vmatprep.subr.bf16.mxu0 0
    %9169 = vmatpush1.bf16.msra.mxu0 %v8778
    %9170 = vmatprep.subr.bf16.mxu0 0
    %9171 = vmatpush1.bf16.msra.mxu0 %v8779
    %9172 = vmatprep.subr.bf16.mxu0 0
    %9173 = vmatpush1.bf16.msra.mxu0 %v8780
    %9174 = vmatprep.subr.bf16.mxu0 0
    %9175 = vmatpush1.bf16.msra.mxu0 %v8781
    %9176 = vmatprep.subr.bf16.mxu0 0
    %9177 = vmatpush1.bf16.msra.mxu0 %v8782
    %9178 = vmatprep.subr.bf16.mxu0 0
    %9179 = vmatpush1.bf16.msra.mxu0 %v8783
    %9180 = vmatprep.subr.bf16.mxu0 0
    %9181 = vmatpush1.bf16.msra.mxu0 %v8784
    %9182 = vmatprep.mubr.bf16.mxu0 %v8166
    %9183 = vmatmul.mubr.bf16.gmra.mrb[0].mxu0 %v8165
    %v9184 = vpop.f32.mrb[0].mxu0
    %v9185 = vadd.f32 %v9144, %v9184
    %v9186 = vpop.f32.mrb[0].mxu0
    %v9187 = vpop.f32.mrb[0].mxu0
    %v9188 = vadd.f32 %v9147, %v9187
    %v9189 = vpop.f32.mrb[0].mxu0
    %9190 = vdwg.mxu0
    %9191 = vmatprep.subr.bf16.mxu0 0
    %9192 = vmatpush1.bf16.msra.mxu0 %v8785
    %9193 = vmatprep.subr.bf16.mxu0 0
    %9194 = vmatpush1.bf16.msra.mxu0 %v8786
    %9195 = vmatprep.subr.bf16.mxu0 0
    %9196 = vmatpush1.bf16.msra.mxu0 %v8787
    %9197 = vmatprep.subr.bf16.mxu0 0
    %9198 = vmatpush1.bf16.msra.mxu0 %v8788
    %9199 = vmatprep.subr.bf16.mxu0 0
    %9200 = vmatpush1.bf16.msra.mxu0 %v8789
    %9201 = vmatprep.subr.bf16.mxu0 0
    %9202 = vmatpush1.bf16.msra.mxu0 %v8790
    %9203 = vmatprep.subr.bf16.mxu0 0
    %9204 = vmatpush1.bf16.msra.mxu0 %v8791
    %9205 = vmatprep.subr.bf16.mxu0 0
    %9206 = vmatpush1.bf16.msra.mxu0 %v8792
    %9207 = vmatprep.subr.bf16.mxu0 0
    %9208 = vmatpush1.bf16.msra.mxu0 %v8793
    %9209 = vmatprep.subr.bf16.mxu0 0
    %9210 = vmatpush1.bf16.msra.mxu0 %v8794
    %9211 = vmatprep.subr.bf16.mxu0 0
    %9212 = vmatpush1.bf16.msra.mxu0 %v8795
    %9213 = vmatprep.subr.bf16.mxu0 0
    %9214 = vmatpush1.bf16.msra.mxu0 %v8796
    %9215 = vmatprep.subr.bf16.mxu0 0
    %9216 = vmatpush1.bf16.msra.mxu0 %v8797
    %9217 = vmatprep.subr.bf16.mxu0 0
    %9218 = vmatpush1.bf16.msra.mxu0 %v8798
    %9219 = vmatprep.subr.bf16.mxu0 0
    %9220 = vmatpush1.bf16.msra.mxu0 %v8799
    %9221 = vmatprep.subr.bf16.mxu0 0
    %9222 = vmatpush1.bf16.msra.mxu0 %v8800
    %9223 = vmatprep.mubr.bf16.mxu0 %v8168
    %9224 = vmatmul.mubr.bf16.gmra.mrb[0].mxu0 %v8167
    %v9225 = vpop.f32.mrb[0].mxu0
    %v9226 = vadd.f32 %v9185, %v9225
    %v9227 = vpop.f32.mrb[0].mxu0
    %v9228 = vpop.f32.mrb[0].mxu0
    %v9229 = vadd.f32 %v9188, %v9228
    %v9230 = vpop.f32.mrb[0].mxu0
    %9231 = vdwg.mxu0
    %9232 = vmatprep.subr.bf16.mxu0 0
    %9233 = vmatpush1.bf16.msra.mxu0 %v8801
    %9234 = vmatprep.subr.bf16.mxu0 0
    %9235 = vmatpush1.bf16.msra.mxu0 %v8802
    %9236 = vmatprep.subr.bf16.mxu0 0
    %9237 = vmatpush1.bf16.msra.mxu0 %v8803
    %9238 = vmatprep.subr.bf16.mxu0 0
    %9239 = vmatpush1.bf16.msra.mxu0 %v8804
    %9240 = vmatprep.subr.bf16.mxu0 0
    %9241 = vmatpush1.bf16.msra.mxu0 %v8805
    %9242 = vmatprep.subr.bf16.mxu0 0
    %9243 = vmatpush1.bf16.msra.mxu0 %v8806
    %9244 = vmatprep.subr.bf16.mxu0 0
    %9245 = vmatpush1.bf16.msra.mxu0 %v8807
    %9246 = vmatprep.subr.bf16.mxu0 0
    %9247 = vmatpush1.bf16.msra.mxu0 %v8808
    %9248 = vmatprep.subr.bf16.mxu0 0
    %9249 = vmatpush1.bf16.msra.mxu0 %v8809
    %9250 = vmatprep.subr.bf16.mxu0 0
    %9251 = vmatpush1.bf16.msra.mxu0 %v8810
    %9252 = vmatprep.subr.bf16.mxu0 0
    %9253 = vmatpush1.bf16.msra.mxu0 %v8811
    %9254 = vmatprep.subr.bf16.mxu0 0
    %9255 = vmatpush1.bf16.msra.mxu0 %v8812
    %9256 = vmatprep.subr.bf16.mxu0 0
    %9257 = vmatpush1.bf16.msra.mxu0 %v8813
    %9258 = vmatprep.subr.bf16.mxu0 0
    %9259 = vmatpush1.bf16.msra.mxu0 %v8814
    %9260 = vmatprep.subr.bf16.mxu0 0
    %9261 = vmatpush1.bf16.msra.mxu0 %v8815
    %9262 = vmatprep.subr.bf16.mxu0 0
    %9263 = vmatpush1.bf16.msra.mxu0 %v8816
    %9264 = vmatprep.mubr.bf16.mxu0 %v8170
    %9265 = vmatmul.mubr.bf16.gmra.mrb[0].mxu0 %v8169
    %v9266 = vpop.f32.mrb[0].mxu0
    %v9267 = vadd.f32 %v9226, %v9266
    %v9268 = vpop.f32.mrb[0].mxu0
    %v9269 = vpop.f32.mrb[0].mxu0
    %v9270 = vadd.f32 %v9229, %v9269
    %v9271 = vpop.f32.mrb[0].mxu0
    %9272 = vdwg.mxu0
    %v9273 = vadd.f32 %v9267, %v7531
    %v9274 = vadd.f32 %v9270, %v7532
    %v9275 = vsel %vm412, %v9273, 0.0
    %9276 = vadd.xlane.f32.xlu0 %v9275
    %v9277 = vpop.xlane.xlu0 %9276
    %v9278 = vsel %vm412, %v9274, 0.0
    %9279 = vadd.xlane.f32.xlu0 %v9278
    %v9280 = vpop.xlane.xlu0 %9279
    %v9281 = vmul.f32 %v9277, %v1591
    %v9282 = vmul.f32 %v9280, %v1591
    %v9283 = vsub.f32 %v9273, %v9281
    %v9284 = vsub.f32 %v9274, %v9282
    %v9285 = vmul.f32 %v9283, %v9283
    %v9286 = vmul.f32 %v9284, %v9284
    %v9287 = vsel %vm412, %v9285, 0.0
    %9288 = vadd.xlane.f32.xlu0 %v9287
    %v9289 = vpop.xlane.xlu0 %9288
    %v9290 = vsel %vm412, %v9286, 0.0
    %9291 = vadd.xlane.f32.xlu0 %v9290
    %v9292 = vpop.xlane.xlu0 %9291
    %v9293 = vmul.f32 %v9289, %v1591
    %v9294 = vmul.f32 %v9292, %v1591
    %v9295 = vadd.f32 %v9293, 1e-05
    %v9296 = vadd.f32 %v9294, 1e-05
    %v9297 = vrsqrt.pop %v9295
    %v9298 = vrsqrt.pop %v9296
    %v9299 = vmul.f32 %v9283, %v9297
    %v9300 = vmul.f32 %v9284, %v9298
    %v9302 = vlaneseq
    %v9303 = vshrl.u32 %v9302, 7
    %v9304 = vsub.s32 0, %v9303
    %v9305 = vrot.slane %v5027, %v9304
    %v9307 = vmul.f32 %v9299, %v9305
    %v9308 = vmul.f32 %v9300, %v9305
    %v9310 = vlaneseq
    %v9311 = vshrl.u32 %v9310, 7
    %v9312 = vsub.s32 0, %v9311
    %v9313 = vrot.slane %v5029, %v9312
    %v9315 = vadd.f32 %v9307, %v9313
    %v9316 = vadd.f32 %v9308, %v9313
    %9317 = vst.msk [vmem:[#allocation2] sm:$0xff] %vm412, %v9315
    %9318 = vst.msk [vmem:[#allocation2 + $0x8] sm:$0xff] %vm412, %v9316
    // Predicated region
    $region82: #{tpu_custom_call.1} parent=1 // pred_check
      _
    $region83: #{tpu_custom_call.1} parent=1 // pred_check_branch
      %9320 = sbr.rel (0) target = $region85
    $region84: #{tpu_custom_call.1} parent=1 // pred_region
      %s9322 = ssub.s32 256, 256
      %9323 = vsyncadd [#allocation3], %s9322
      %s9324 = sshll.u32 [#allocation2], 4
      %s9325 = int_to_ptr.vmem [resolvable:$true] %s9324
      %9330 = dma.vmem_to_hbm [thread:$0]  %s9325, 256, %s20, [#allocation3], 128, 128, 8
    $region85: #{tpu_custom_call.1} parent=1 // pred_fallthru
      _
    // Predicated region
    $region86: #{tpu_custom_call.1} parent=1 // pred_check
      _
    $region87: #{tpu_custom_call.1} parent=1 // pred_check_branch
      %9332 = sbr.rel (0) target = $region89
    $region88: #{tpu_custom_call.1} parent=1 // pred_region
      %9333 = dma.done [#allocation3], 256
    $region89: #{tpu_custom_call.1} parent=1 // pred_fallthru
      _
    %9334 = vsyncpa [#allocation3], 1

</llo_original>
